<compile_context>
chip_gen: v6e
topology: v6e:2x2x1
jax: 0.10.0
libtpu: 0.0.40
codegen_flags: <defaults>
</compile_context>

<pallas_src>
import functools

import jax
import jax.numpy as jnp
from jax import lax
from jax.experimental import pallas as pl
from jax.experimental.pallas import tpu as pltpu

NEG_SLOPE = 0.2
LANE = 128


def _round_up(x, m):
    return (x + m - 1) // m * m


# ---------------------------------------------------------------------------
# Pallas kernel: tiled (M, Cout, K) matmul with fused bias + LeakyReLU(0.2).
# ---------------------------------------------------------------------------
def _conv_mm_kernel(a_ref, w_ref, b_ref, o_ref, acc_ref, *, apply_leaky_relu):
    # a_ref: (tm, tk) bf16 patches, w_ref: (tk, tn) bf16, b_ref: (1, tn) f32,
    # o_ref: (tm, tn) out dtype, acc_ref: (tm, tn) f32 scratch.
    k = pl.program_id(2)

    @pl.when(k == 0)
    def _():
        acc_ref[...] = jnp.zeros_like(acc_ref)

    acc_ref[...] += jnp.dot(a_ref[...], w_ref[...],
                            preferred_element_type=jnp.float32)

    @pl.when(k == pl.num_programs(2) - 1)
    def _():
        out = acc_ref[...] + b_ref[...]
        if apply_leaky_relu:
            out = jnp.where(out >= 0, out, NEG_SLOPE * out)
        o_ref[...] = out.astype(o_ref.dtype)


# ---------------------------------------------------------------------------
# Lane-dense NHWC patch extraction for Conv2d(k=4, s=2, p=1).
# ---------------------------------------------------------------------------
def _extract_patches_nhwc(x):
    """x: (N, H, W, C) -> ((N*Ho*Wo, 16*C), (N, Ho, Wo)); K order = (kh, kw, c)."""
    n, h, w, c = x.shape
    ho = (h + 2 - 4) // 2 + 1
    wo = (w + 2 - 4) // 2 + 1
    xp = jnp.pad(x, ((0, 0), (1, 1), (1, 1), (0, 0)))
    taps = [xp[:, kh:kh + 2 * ho:2, kw:kw + 2 * wo:2, :]
            for kh in range(4) for kw in range(4)]
    a = jnp.concatenate(taps, axis=-1)            # (N, Ho, Wo, 16*C), lane-dense
    return a.reshape(n * ho * wo, 16 * c), (n, ho, wo)


def _prep_weights(w, b, c_act, compute_dtype=jnp.bfloat16):
    """Torch OIHW (Cout, Cin, 4, 4) -> (16*c_act, Cout_pad) bf16, (1, Cout_pad) f32.

    c_act >= Cin is the (lane-padded) channel count of the incoming NHWC
    activation; extra input rows / output columns are zero so the padded
    channels stay exactly zero through the whole stack.
    """
    cout, cin, kh, kw = w.shape
    cout_pad = _round_up(cout, LANE)
    w2 = jnp.transpose(w, (2, 3, 1, 0))           # (kh, kw, Cin, Cout)
    w2 = jnp.pad(w2, ((0, 0), (0, 0), (0, c_act - cin), (0, cout_pad - cout)))
    w2 = w2.reshape(kh * kw * c_act, cout_pad).astype(compute_dtype)
    b2 = jnp.pad(b, (0, cout_pad - cout)).reshape(1, cout_pad).astype(jnp.float32)
    return w2, b2


def conv4x4_s2_p1_nhwc(x, w, b, *, apply_leaky_relu, out_dtype=jnp.bfloat16,
                       compute_dtype=jnp.bfloat16):
    """Conv2d(kernel=4, stride=2, padding=1) [+ LeakyReLU(0.2)] on NHWC input.

    Returns an NHWC activation whose channel dim is padded to a multiple of
    128 (padded channels are exactly zero)."""
    c_act = x.shape[-1]
    a, (n, ho, wo) = _extract_patches_nhwc(x)
    a = a.astype(compute_dtype)
    m, kdim = a.shape
    w2, b2 = _prep_weights(w, b, c_act, compute_dtype)
    cout_pad = w2.shape[1]

    # --- tiling ------------------------------------------------------------
    if m >= 1024:
        tm = 512                      # big tiles amortize per-step overhead
    elif m >= 512:
        tm = 256                      # still >=2 parallel M steps for megacore
    else:
        tm = _round_up(m, 8)          # small tail layers: one padded tile
    m_pad = _round_up(m, tm)
    if m_pad != m:
        a = jnp.pad(a, ((0, m_pad - m), (0, 0)))

    tk = kdim                         # full-K block when no nice divisor
    for cand in (2048, 1024, 512, 256, 128):
        if kdim % cand == 0:
            tk = cand
            break

    tn = 256 if cout_pad % 256 == 0 else 128

    grid = (m_pad // tm, cout_pad // tn, kdim // tk)

    kernel = functools.partial(_conv_mm_kernel, apply_leaky_relu=apply_leaky_relu)
    out = pl.pallas_call(
        kernel,
        out_shape=jax.ShapeDtypeStruct((m_pad, cout_pad), out_dtype),
        grid_spec=pltpu.PrefetchScalarGridSpec(
            num_scalar_prefetch=0,
            grid=grid,
            in_specs=[
                pl.BlockSpec((tm, tk), lambda i, j, k: (i, k)),
                pl.BlockSpec((tk, tn), lambda i, j, k: (k, j)),
                pl.BlockSpec((1, tn), lambda i, j, k: (0, j)),
            ],
            out_specs=pl.BlockSpec((tm, tn), lambda i, j, k: (i, j)),
            scratch_shapes=[pltpu.VMEM((tm, tn), jnp.float32)],
        ),
        compiler_params=pltpu.CompilerParams(
            dimension_semantics=("parallel", "parallel", "arbitrary"),
            vmem_limit_bytes=32 * 1024 * 1024,
        ),
    )(a, w2, b2)

    if m_pad != m:
        out = out[:m]
    return out.reshape(n, ho, wo, cout_pad)


# ---------------------------------------------------------------------------
# Model: parameters + forward.
# ---------------------------------------------------------------------------
def init_params(key, num_classes, ndf=64, dtype=jnp.float32):
    """Deterministic synthetic init; shapes match FCDiscriminator.__init__."""
    chans = [num_classes, ndf, ndf * 2, ndf * 4, ndf * 8, 1]
    params = []
    for i in range(5):
        cin, cout = chans[i], chans[i + 1]
        key, k_w, k_b = jax.random.split(key, 3)
        fan_in = cin * 4 * 4
        bound = 1.0 / (fan_in ** 0.5)
        w = jax.random.uniform(k_w, (cout, cin, 4, 4), dtype, -bound, bound)
        b = jax.random.uniform(k_b, (cout,), dtype, -bound, bound)
        params.append((w, b))
    return params


def fc_discriminator_forward(params, x):
    """x: (N, num_classes, H, W) NCHW -> (N, 1, H//32, W//32) NCHW."""
    x = jnp.transpose(x, (0, 2, 3, 1))            # NHWC once, at the boundary
    n_layers = len(params)
    for i, (w, b) in enumerate(params):
        last = i == n_layers - 1
        x = conv4x4_s2_p1_nhwc(
            x, w, b,
            apply_leaky_relu=not last,
            out_dtype=jnp.float32 if last else jnp.bfloat16)
    cout_true = params[-1][0].shape[0]            # classifier Cout == 1
    x = x[..., :cout_true]
    return jnp.transpose(x, (0, 3, 1, 2))         # back to NCHW


def _reference_forward(params, x):
    # Pure-JAX f32 reference mirroring PyTorch semantics.
    for i, (w, b) in enumerate(params):
        x = lax.conv_general_dilated(
            x, w, window_strides=(2, 2), padding=((1, 1), (1, 1)),
            dimension_numbers=("NCHW", "OIHW", "NCHW"))
        x = x + b.reshape(1, -1, 1, 1)
        if i < 4:
            x = jnp.where(x >= 0, x, NEG_SLOPE * x)
    return x


if __name__ == "__main__":
    key = jax.random.PRNGKey(0)
    kx, kp = jax.random.split(key)

    # Small shapes: batch=2, num_classes=4, spatial=32 (minimum that keeps all
    # five stride-2 convs valid: 32 -> 16 -> 8 -> 4 -> 2 -> 1), ndf=8.
    num_classes, ndf = 4, 8
    x = jax.random.normal(kx, (2, num_classes, 32, 32), jnp.float32)
    params = init_params(kp, num_classes, ndf)

    fwd = jax.jit(fc_discriminator_forward)
    out = jax.block_until_ready(fwd(params, x))
    ref = jax.block_until_ready(_reference_forward(params, x))

    assert out.shape == (2, 1, 1, 1), out.shape
    # bf16 matmul operands (f32 accumulate) -> loosened tolerance vs f32 ref.
    assert jnp.allclose(out, ref, rtol=2e-2, atol=2e-2), (out, ref)
    print("KERNEL_OK")
</pallas_src>

<mosaic_0001>
module attributes {stable_mosaic.version = 11 : i64} {
  func.func @_conv_mm_kernel(%arg0: i32, %arg1: i32, %arg2: i32, %arg3: memref<256x64xbf16, #tpu.memory_space<vmem>>, %arg4: memref<64x128xbf16, #tpu.memory_space<vmem>>, %arg5: memref<1x128xf32, #tpu.memory_space<vmem>>, %arg6: memref<256x128xbf16, #tpu.memory_space<vmem>>, %arg7: memref<256x128xf32, #tpu.memory_space<vmem>>) attributes {dimension_semantics = [#tpu.dimension_semantics<parallel>, #tpu.dimension_semantics<parallel>, #tpu.dimension_semantics<arbitrary>], iteration_bounds = array<i64: 2, 1, 1>, scalar_prefetch = 0 : i64, scratch_operands = 1 : i64, tpu.core_type = #tpu.core_type<tc>, window_params = [{transform_indices = @transform_0, window_bounds = array<i64: 256, 64>}, {transform_indices = @transform_1, window_bounds = array<i64: 64, 128>}, {transform_indices = @transform_2, window_bounds = array<i64: 1, 128>}, {transform_indices = @transform_3, window_bounds = array<i64: 256, 128>}]} {
    %c0_i32 = arith.constant 0 : i32
    %0 = arith.cmpi eq, %arg2, %c0_i32 : i32
    %1 = arith.extui %0 : i1 to i32
    %c0_i32_0 = arith.constant 0 : i32
    %2 = arith.cmpi ne, %1, %c0_i32_0 : i32
    scf.if %2 {
      %cst_10 = arith.constant 0.000000e+00 : f32
      %12 = vector.broadcast %cst_10 : f32 to vector<256x128xf32>
      %c0_11 = arith.constant 0 : index
      %c0_12 = arith.constant 0 : index
      %13 = vector.load %arg7[%c0_11, %c0_12] : memref<256x128xf32, #tpu.memory_space<vmem>>, vector<256x128xf32>
      tpu.vector_store %arg7[%c0_11, %c0_12], %12 {strides = array<i32>} : memref<256x128xf32, #tpu.memory_space<vmem>>, vector<256x128xf32>,
    } else {
    }
    %c0 = arith.constant 0 : index
    %c0_1 = arith.constant 0 : index
    %3 = vector.load %arg7[%c0, %c0_1] : memref<256x128xf32, #tpu.memory_space<vmem>>, vector<256x128xf32>
    %c0_2 = arith.constant 0 : index
    %c0_3 = arith.constant 0 : index
    %4 = vector.load %arg3[%c0_2, %c0_3] : memref<256x64xbf16, #tpu.memory_space<vmem>>, vector<256x64xbf16>
    %c0_4 = arith.constant 0 : index
    %c0_5 = arith.constant 0 : index
    %5 = vector.load %arg4[%c0_4, %c0_5] : memref<64x128xbf16, #tpu.memory_space<vmem>>, vector<64x128xbf16>
    %cst = arith.constant dense<0.000000e+00> : vector<256x128xf32>
    %6 = tpu.matmul %4, %5, %cst {dimension_numbers = #tpu.dot_dimension_numbers<[1], [0], [0], [1], [0, 0, 1, 1], [], []>} : vector<256x64xbf16>, vector<64x128xbf16>, vector<256x128xf32> -> vector<256x128xf32>
    %7 = arith.addf %3, %6 : vector<256x128xf32>
    %c0_6 = arith.constant 0 : index
    %c0_7 = arith.constant 0 : index
    %8 = vector.load %arg7[%c0_6, %c0_7] : memref<256x128xf32, #tpu.memory_space<vmem>>, vector<256x128xf32>
    tpu.vector_store %arg7[%c0_6, %c0_7], %7 {strides = array<i32>} : memref<256x128xf32, #tpu.memory_space<vmem>>, vector<256x128xf32>,
    %c0_i32_8 = arith.constant 0 : i32
    %9 = arith.cmpi eq, %arg2, %c0_i32_8 : i32
    %10 = arith.extui %9 : i1 to i32
    %c0_i32_9 = arith.constant 0 : i32
    %11 = arith.cmpi ne, %10, %c0_i32_9 : i32
    scf.if %11 {
      %c0_10 = arith.constant 0 : index
      %c0_11 = arith.constant 0 : index
      %12 = vector.load %arg7[%c0_10, %c0_11] : memref<256x128xf32, #tpu.memory_space<vmem>>, vector<256x128xf32>
      %c0_12 = arith.constant 0 : index
      %c0_13 = arith.constant 0 : index
      %13 = vector.load %arg5[%c0_12, %c0_13] : memref<1x128xf32, #tpu.memory_space<vmem>>, vector<1x128xf32>
      %14 = vector.broadcast %13 : vector<1x128xf32> to vector<256x128xf32>
      %15 = arith.addf %12, %14 : vector<256x128xf32>
      %cst_14 = arith.constant 0.000000e+00 : f32
      %16 = vector.broadcast %cst_14 : f32 to vector<256x128xf32>
      %17 = arith.cmpf oge, %15, %16 : vector<256x128xf32>
      %cst_15 = arith.constant 2.000000e-01 : f32
      %18 = vector.broadcast %cst_15 : f32 to vector<256x128xf32>
      %19 = arith.mulf %18, %15 : vector<256x128xf32>
      %20 = arith.select %17, %15, %19 : vector<256x128xi1>, vector<256x128xf32>
      %21 = arith.truncf %20 : vector<256x128xf32> to vector<256x128xbf16>
      %c0_16 = arith.constant 0 : index
      %c0_17 = arith.constant 0 : index
      %22 = vector.load %arg6[%c0_16, %c0_17] : memref<256x128xbf16, #tpu.memory_space<vmem>>, vector<256x128xbf16>
      tpu.vector_store %arg6[%c0_16, %c0_17], %21 {strides = array<i32>} : memref<256x128xbf16, #tpu.memory_space<vmem>>, vector<256x128xbf16>,
    } else {
    }
    return
  }
  func.func @transform_0(%arg0: i32, %arg1: i32, %arg2: i32) -> (i32, i32) {
    %c0_i32 = arith.constant 0 : i32
    return %arg0, %arg2 : i32, i32
  }
  func.func @transform_1(%arg0: i32, %arg1: i32, %arg2: i32) -> (i32, i32) {
    %c0_i32 = arith.constant 0 : i32
    return %arg2, %arg1 : i32, i32
  }
  func.func @transform_2(%arg0: i32, %arg1: i32, %arg2: i32) -> (i32, i32) {
    %c0_i32 = arith.constant 0 : i32
    %c0_i32_0 = arith.constant 0 : i32
    return %c0_i32, %arg1 : i32, i32
  }
  func.func @transform_3(%arg0: i32, %arg1: i32, %arg2: i32) -> (i32, i32) {
    %c0_i32 = arith.constant 0 : i32
    return %arg0, %arg1 : i32, i32
  }
}

module attributes {stable_mosaic.version = 11 : i64} {
  func.func @_conv_mm_kernel(%arg0: i32, %arg1: i32, %arg2: i32, %arg3: memref<128x2048xbf16, #tpu.memory_space<vmem>>, %arg4: memref<2048x128xbf16, #tpu.memory_space<vmem>>, %arg5: memref<1x128xf32, #tpu.memory_space<vmem>>, %arg6: memref<128x128xbf16, #tpu.memory_space<vmem>>, %arg7: memref<128x128xf32, #tpu.memory_space<vmem>>) attributes {dimension_semantics = [#tpu.dimension_semantics<parallel>, #tpu.dimension_semantics<parallel>, #tpu.dimension_semantics<arbitrary>], iteration_bounds = array<i64: 1, 1, 1>, scalar_prefetch = 0 : i64, scratch_operands = 1 : i64, tpu.core_type = #tpu.core_type<tc>, window_params = [{transform_indices = @transform_0, window_bounds = array<i64: 128, 2048>}, {transform_indices = @transform_1, window_bounds = array<i64: 2048, 128>}, {transform_indices = @transform_2, window_bounds = array<i64: 1, 128>}, {transform_indices = @transform_3, window_bounds = array<i64: 128, 128>}]} {
    %c0_i32 = arith.constant 0 : i32
    %0 = arith.cmpi eq, %arg2, %c0_i32 : i32
    %1 = arith.extui %0 : i1 to i32
    %c0_i32_0 = arith.constant 0 : i32
    %2 = arith.cmpi ne, %1, %c0_i32_0 : i32
    scf.if %2 {
      %cst_10 = arith.constant 0.000000e+00 : f32
      %12 = vector.broadcast %cst_10 : f32 to vector<128x128xf32>
      %c0_11 = arith.constant 0 : index
      %c0_12 = arith.constant 0 : index
      %13 = vector.load %arg7[%c0_11, %c0_12] : memref<128x128xf32, #tpu.memory_space<vmem>>, vector<128x128xf32>
      tpu.vector_store %arg7[%c0_11, %c0_12], %12 {strides = array<i32>} : memref<128x128xf32, #tpu.memory_space<vmem>>, vector<128x128xf32>,
    } else {
    }
    %c0 = arith.constant 0 : index
    %c0_1 = arith.constant 0 : index
    %3 = vector.load %arg7[%c0, %c0_1] : memref<128x128xf32, #tpu.memory_space<vmem>>, vector<128x128xf32>
    %c0_2 = arith.constant 0 : index
    %c0_3 = arith.constant 0 : index
    %4 = vector.load %arg3[%c0_2, %c0_3] : memref<128x2048xbf16, #tpu.memory_space<vmem>>, vector<128x2048xbf16>
    %c0_4 = arith.constant 0 : index
    %c0_5 = arith.constant 0 : index
    %5 = vector.load %arg4[%c0_4, %c0_5] : memref<2048x128xbf16, #tpu.memory_space<vmem>>, vector<2048x128xbf16>
    %cst = arith.constant dense<0.000000e+00> : vector<128x128xf32>
    %6 = tpu.matmul %4, %5, %cst {dimension_numbers = #tpu.dot_dimension_numbers<[1], [0], [0], [1], [0, 0, 1, 1], [], []>} : vector<128x2048xbf16>, vector<2048x128xbf16>, vector<128x128xf32> -> vector<128x128xf32>
    %7 = arith.addf %3, %6 : vector<128x128xf32>
    %c0_6 = arith.constant 0 : index
    %c0_7 = arith.constant 0 : index
    %8 = vector.load %arg7[%c0_6, %c0_7] : memref<128x128xf32, #tpu.memory_space<vmem>>, vector<128x128xf32>
    tpu.vector_store %arg7[%c0_6, %c0_7], %7 {strides = array<i32>} : memref<128x128xf32, #tpu.memory_space<vmem>>, vector<128x128xf32>,
    %c0_i32_8 = arith.constant 0 : i32
    %9 = arith.cmpi eq, %arg2, %c0_i32_8 : i32
    %10 = arith.extui %9 : i1 to i32
    %c0_i32_9 = arith.constant 0 : i32
    %11 = arith.cmpi ne, %10, %c0_i32_9 : i32
    scf.if %11 {
      %c0_10 = arith.constant 0 : index
      %c0_11 = arith.constant 0 : index
      %12 = vector.load %arg7[%c0_10, %c0_11] : memref<128x128xf32, #tpu.memory_space<vmem>>, vector<128x128xf32>
      %c0_12 = arith.constant 0 : index
      %c0_13 = arith.constant 0 : index
      %13 = vector.load %arg5[%c0_12, %c0_13] : memref<1x128xf32, #tpu.memory_space<vmem>>, vector<1x128xf32>
      %14 = vector.broadcast %13 : vector<1x128xf32> to vector<128x128xf32>
      %15 = arith.addf %12, %14 : vector<128x128xf32>
      %cst_14 = arith.constant 0.000000e+00 : f32
      %16 = vector.broadcast %cst_14 : f32 to vector<128x128xf32>
      %17 = arith.cmpf oge, %15, %16 : vector<128x128xf32>
      %cst_15 = arith.constant 2.000000e-01 : f32
      %18 = vector.broadcast %cst_15 : f32 to vector<128x128xf32>
      %19 = arith.mulf %18, %15 : vector<128x128xf32>
      %20 = arith.select %17, %15, %19 : vector<128x128xi1>, vector<128x128xf32>
      %21 = arith.truncf %20 : vector<128x128xf32> to vector<128x128xbf16>
      %c0_16 = arith.constant 0 : index
      %c0_17 = arith.constant 0 : index
      %22 = vector.load %arg6[%c0_16, %c0_17] : memref<128x128xbf16, #tpu.memory_space<vmem>>, vector<128x128xbf16>
      tpu.vector_store %arg6[%c0_16, %c0_17], %21 {strides = array<i32>} : memref<128x128xbf16, #tpu.memory_space<vmem>>, vector<128x128xbf16>,
    } else {
    }
    return
  }
  func.func @transform_0(%arg0: i32, %arg1: i32, %arg2: i32) -> (i32, i32) {
    %c0_i32 = arith.constant 0 : i32
    return %arg0, %arg2 : i32, i32
  }
  func.func @transform_1(%arg0: i32, %arg1: i32, %arg2: i32) -> (i32, i32) {
    %c0_i32 = arith.constant 0 : i32
    return %arg2, %arg1 : i32, i32
  }
  func.func @transform_2(%arg0: i32, %arg1: i32, %arg2: i32) -> (i32, i32) {
    %c0_i32 = arith.constant 0 : i32
    %c0_i32_0 = arith.constant 0 : i32
    return %c0_i32, %arg1 : i32, i32
  }
  func.func @transform_3(%arg0: i32, %arg1: i32, %arg2: i32) -> (i32, i32) {
    %c0_i32 = arith.constant 0 : i32
    return %arg0, %arg1 : i32, i32
  }
}

module attributes {stable_mosaic.version = 11 : i64} {
  func.func @_conv_mm_kernel(%arg0: i32, %arg1: i32, %arg2: i32, %arg3: memref<32x2048xbf16, #tpu.memory_space<vmem>>, %arg4: memref<2048x128xbf16, #tpu.memory_space<vmem>>, %arg5: memref<1x128xf32, #tpu.memory_space<vmem>>, %arg6: memref<32x128xbf16, #tpu.memory_space<vmem>>, %arg7: memref<32x128xf32, #tpu.memory_space<vmem>>) attributes {dimension_semantics = [#tpu.dimension_semantics<parallel>, #tpu.dimension_semantics<parallel>, #tpu.dimension_semantics<arbitrary>], iteration_bounds = array<i64: 1, 1, 1>, scalar_prefetch = 0 : i64, scratch_operands = 1 : i64, tpu.core_type = #tpu.core_type<tc>, window_params = [{transform_indices = @transform_0, window_bounds = array<i64: 32, 2048>}, {transform_indices = @transform_1, window_bounds = array<i64: 2048, 128>}, {transform_indices = @transform_2, window_bounds = array<i64: 1, 128>}, {transform_indices = @transform_3, window_bounds = array<i64: 32, 128>}]} {
    %c0_i32 = arith.constant 0 : i32
    %0 = arith.cmpi eq, %arg2, %c0_i32 : i32
    %1 = arith.extui %0 : i1 to i32
    %c0_i32_0 = arith.constant 0 : i32
    %2 = arith.cmpi ne, %1, %c0_i32_0 : i32
    scf.if %2 {
      %cst_10 = arith.constant 0.000000e+00 : f32
      %12 = vector.broadcast %cst_10 : f32 to vector<32x128xf32>
      %c0_11 = arith.constant 0 : index
      %c0_12 = arith.constant 0 : index
      %13 = vector.load %arg7[%c0_11, %c0_12] : memref<32x128xf32, #tpu.memory_space<vmem>>, vector<32x128xf32>
      tpu.vector_store %arg7[%c0_11, %c0_12], %12 {strides = array<i32>} : memref<32x128xf32, #tpu.memory_space<vmem>>, vector<32x128xf32>,
    } else {
    }
    %c0 = arith.constant 0 : index
    %c0_1 = arith.constant 0 : index
    %3 = vector.load %arg7[%c0, %c0_1] : memref<32x128xf32, #tpu.memory_space<vmem>>, vector<32x128xf32>
    %c0_2 = arith.constant 0 : index
    %c0_3 = arith.constant 0 : index
    %4 = vector.load %arg3[%c0_2, %c0_3] : memref<32x2048xbf16, #tpu.memory_space<vmem>>, vector<32x2048xbf16>
    %c0_4 = arith.constant 0 : index
    %c0_5 = arith.constant 0 : index
    %5 = vector.load %arg4[%c0_4, %c0_5] : memref<2048x128xbf16, #tpu.memory_space<vmem>>, vector<2048x128xbf16>
    %cst = arith.constant dense<0.000000e+00> : vector<32x128xf32>
    %6 = tpu.matmul %4, %5, %cst {dimension_numbers = #tpu.dot_dimension_numbers<[1], [0], [0], [1], [0, 0, 1, 1], [], []>} : vector<32x2048xbf16>, vector<2048x128xbf16>, vector<32x128xf32> -> vector<32x128xf32>
    %7 = arith.addf %3, %6 : vector<32x128xf32>
    %c0_6 = arith.constant 0 : index
    %c0_7 = arith.constant 0 : index
    %8 = vector.load %arg7[%c0_6, %c0_7] : memref<32x128xf32, #tpu.memory_space<vmem>>, vector<32x128xf32>
    tpu.vector_store %arg7[%c0_6, %c0_7], %7 {strides = array<i32>} : memref<32x128xf32, #tpu.memory_space<vmem>>, vector<32x128xf32>,
    %c0_i32_8 = arith.constant 0 : i32
    %9 = arith.cmpi eq, %arg2, %c0_i32_8 : i32
    %10 = arith.extui %9 : i1 to i32
    %c0_i32_9 = arith.constant 0 : i32
    %11 = arith.cmpi ne, %10, %c0_i32_9 : i32
    scf.if %11 {
      %c0_10 = arith.constant 0 : index
      %c0_11 = arith.constant 0 : index
      %12 = vector.load %arg7[%c0_10, %c0_11] : memref<32x128xf32, #tpu.memory_space<vmem>>, vector<32x128xf32>
      %c0_12 = arith.constant 0 : index
      %c0_13 = arith.constant 0 : index
      %13 = vector.load %arg5[%c0_12, %c0_13] : memref<1x128xf32, #tpu.memory_space<vmem>>, vector<1x128xf32>
      %14 = vector.broadcast %13 : vector<1x128xf32> to vector<32x128xf32>
      %15 = arith.addf %12, %14 : vector<32x128xf32>
      %cst_14 = arith.constant 0.000000e+00 : f32
      %16 = vector.broadcast %cst_14 : f32 to vector<32x128xf32>
      %17 = arith.cmpf oge, %15, %16 : vector<32x128xf32>
      %cst_15 = arith.constant 2.000000e-01 : f32
      %18 = vector.broadcast %cst_15 : f32 to vector<32x128xf32>
      %19 = arith.mulf %18, %15 : vector<32x128xf32>
      %20 = arith.select %17, %15, %19 : vector<32x128xi1>, vector<32x128xf32>
      %21 = arith.truncf %20 : vector<32x128xf32> to vector<32x128xbf16>
      %c0_16 = arith.constant 0 : index
      %c0_17 = arith.constant 0 : index
      %22 = vector.load %arg6[%c0_16, %c0_17] : memref<32x128xbf16, #tpu.memory_space<vmem>>, vector<32x128xbf16>
      tpu.vector_store %arg6[%c0_16, %c0_17], %21 {strides = array<i32>} : memref<32x128xbf16, #tpu.memory_space<vmem>>, vector<32x128xbf16>,
    } else {
    }
    return
  }
  func.func @transform_0(%arg0: i32, %arg1: i32, %arg2: i32) -> (i32, i32) {
    %c0_i32 = arith.constant 0 : i32
    return %arg0, %arg2 : i32, i32
  }
  func.func @transform_1(%arg0: i32, %arg1: i32, %arg2: i32) -> (i32, i32) {
    %c0_i32 = arith.constant 0 : i32
    return %arg2, %arg1 : i32, i32
  }
  func.func @transform_2(%arg0: i32, %arg1: i32, %arg2: i32) -> (i32, i32) {
    %c0_i32 = arith.constant 0 : i32
    %c0_i32_0 = arith.constant 0 : i32
    return %c0_i32, %arg1 : i32, i32
  }
  func.func @transform_3(%arg0: i32, %arg1: i32, %arg2: i32) -> (i32, i32) {
    %c0_i32 = arith.constant 0 : i32
    return %arg0, %arg1 : i32, i32
  }
}

module attributes {stable_mosaic.version = 11 : i64} {
  func.func @_conv_mm_kernel(%arg0: i32, %arg1: i32, %arg2: i32, %arg3: memref<8x2048xbf16, #tpu.memory_space<vmem>>, %arg4: memref<2048x128xbf16, #tpu.memory_space<vmem>>, %arg5: memref<1x128xf32, #tpu.memory_space<vmem>>, %arg6: memref<8x128xf32, #tpu.memory_space<vmem>>, %arg7: memref<8x128xf32, #tpu.memory_space<vmem>>) attributes {dimension_semantics = [#tpu.dimension_semantics<parallel>, #tpu.dimension_semantics<parallel>, #tpu.dimension_semantics<arbitrary>], iteration_bounds = array<i64: 1, 1, 1>, scalar_prefetch = 0 : i64, scratch_operands = 1 : i64, tpu.core_type = #tpu.core_type<tc>, window_params = [{transform_indices = @transform_0, window_bounds = array<i64: 8, 2048>}, {transform_indices = @transform_1, window_bounds = array<i64: 2048, 128>}, {transform_indices = @transform_2, window_bounds = array<i64: 1, 128>}, {transform_indices = @transform_3, window_bounds = array<i64: 8, 128>}]} {
    %c0_i32 = arith.constant 0 : i32
    %0 = arith.cmpi eq, %arg2, %c0_i32 : i32
    %1 = arith.extui %0 : i1 to i32
    %c0_i32_0 = arith.constant 0 : i32
    %2 = arith.cmpi ne, %1, %c0_i32_0 : i32
    scf.if %2 {
      %cst_10 = arith.constant 0.000000e+00 : f32
      %12 = vector.broadcast %cst_10 : f32 to vector<8x128xf32>
      %c0_11 = arith.constant 0 : index
      %c0_12 = arith.constant 0 : index
      %13 = vector.load %arg7[%c0_11, %c0_12] : memref<8x128xf32, #tpu.memory_space<vmem>>, vector<8x128xf32>
      tpu.vector_store %arg7[%c0_11, %c0_12], %12 {strides = array<i32>} : memref<8x128xf32, #tpu.memory_space<vmem>>, vector<8x128xf32>,
    } else {
    }
    %c0 = arith.constant 0 : index
    %c0_1 = arith.constant 0 : index
    %3 = vector.load %arg7[%c0, %c0_1] : memref<8x128xf32, #tpu.memory_space<vmem>>, vector<8x128xf32>
    %c0_2 = arith.constant 0 : index
    %c0_3 = arith.constant 0 : index
    %4 = vector.load %arg3[%c0_2, %c0_3] : memref<8x2048xbf16, #tpu.memory_space<vmem>>, vector<8x2048xbf16>
    %c0_4 = arith.constant 0 : index
    %c0_5 = arith.constant 0 : index
    %5 = vector.load %arg4[%c0_4, %c0_5] : memref<2048x128xbf16, #tpu.memory_space<vmem>>, vector<2048x128xbf16>
    %cst = arith.constant dense<0.000000e+00> : vector<8x128xf32>
    %6 = tpu.matmul %4, %5, %cst {dimension_numbers = #tpu.dot_dimension_numbers<[1], [0], [0], [1], [0, 0, 1, 1], [], []>} : vector<8x2048xbf16>, vector<2048x128xbf16>, vector<8x128xf32> -> vector<8x128xf32>
    %7 = arith.addf %3, %6 : vector<8x128xf32>
    %c0_6 = arith.constant 0 : index
    %c0_7 = arith.constant 0 : index
    %8 = vector.load %arg7[%c0_6, %c0_7] : memref<8x128xf32, #tpu.memory_space<vmem>>, vector<8x128xf32>
    tpu.vector_store %arg7[%c0_6, %c0_7], %7 {strides = array<i32>} : memref<8x128xf32, #tpu.memory_space<vmem>>, vector<8x128xf32>,
    %c0_i32_8 = arith.constant 0 : i32
    %9 = arith.cmpi eq, %arg2, %c0_i32_8 : i32
    %10 = arith.extui %9 : i1 to i32
    %c0_i32_9 = arith.constant 0 : i32
    %11 = arith.cmpi ne, %10, %c0_i32_9 : i32
    scf.if %11 {
      %c0_10 = arith.constant 0 : index
      %c0_11 = arith.constant 0 : index
      %12 = vector.load %arg7[%c0_10, %c0_11] : memref<8x128xf32, #tpu.memory_space<vmem>>, vector<8x128xf32>
      %c0_12 = arith.constant 0 : index
      %c0_13 = arith.constant 0 : index
      %13 = vector.load %arg5[%c0_12, %c0_13] : memref<1x128xf32, #tpu.memory_space<vmem>>, vector<1x128xf32>
      %14 = vector.broadcast %13 : vector<1x128xf32> to vector<8x128xf32>
      %15 = arith.addf %12, %14 : vector<8x128xf32>
      %c0_14 = arith.constant 0 : index
      %c0_15 = arith.constant 0 : index
      %16 = vector.load %arg6[%c0_14, %c0_15] : memref<8x128xf32, #tpu.memory_space<vmem>>, vector<8x128xf32>
      tpu.vector_store %arg6[%c0_14, %c0_15], %15 {strides = array<i32>} : memref<8x128xf32, #tpu.memory_space<vmem>>, vector<8x128xf32>,
    } else {
    }
    return
  }
  func.func @transform_0(%arg0: i32, %arg1: i32, %arg2: i32) -> (i32, i32) {
    %c0_i32 = arith.constant 0 : i32
    return %arg0, %arg2 : i32, i32
  }
  func.func @transform_1(%arg0: i32, %arg1: i32, %arg2: i32) -> (i32, i32) {
    %c0_i32 = arith.constant 0 : i32
    return %arg2, %arg1 : i32, i32
  }
  func.func @transform_2(%arg0: i32, %arg1: i32, %arg2: i32) -> (i32, i32) {
    %c0_i32 = arith.constant 0 : i32
    %c0_i32_0 = arith.constant 0 : i32
    return %c0_i32, %arg1 : i32, i32
  }
  func.func @transform_3(%arg0: i32, %arg1: i32, %arg2: i32) -> (i32, i32) {
    %c0_i32 = arith.constant 0 : i32
    return %arg0, %arg1 : i32, i32
  }
}

module attributes {stable_mosaic.version = 11 : i64} {
  func.func @_conv_mm_kernel(%arg0: i32, %arg1: i32, %arg2: i32, %arg3: memref<8x2048xbf16, #tpu.memory_space<vmem>>, %arg4: memref<2048x128xbf16, #tpu.memory_space<vmem>>, %arg5: memref<1x128xf32, #tpu.memory_space<vmem>>, %arg6: memref<8x128xbf16, #tpu.memory_space<vmem>>, %arg7: memref<8x128xf32, #tpu.memory_space<vmem>>) attributes {dimension_semantics = [#tpu.dimension_semantics<parallel>, #tpu.dimension_semantics<parallel>, #tpu.dimension_semantics<arbitrary>], iteration_bounds = array<i64: 1, 1, 1>, scalar_prefetch = 0 : i64, scratch_operands = 1 : i64, tpu.core_type = #tpu.core_type<tc>, window_params = [{transform_indices = @transform_0, window_bounds = array<i64: 8, 2048>}, {transform_indices = @transform_1, window_bounds = array<i64: 2048, 128>}, {transform_indices = @transform_2, window_bounds = array<i64: 1, 128>}, {transform_indices = @transform_3, window_bounds = array<i64: 8, 128>}]} {
    %c0_i32 = arith.constant 0 : i32
    %0 = arith.cmpi eq, %arg2, %c0_i32 : i32
    %1 = arith.extui %0 : i1 to i32
    %c0_i32_0 = arith.constant 0 : i32
    %2 = arith.cmpi ne, %1, %c0_i32_0 : i32
    scf.if %2 {
      %cst_10 = arith.constant 0.000000e+00 : f32
      %12 = vector.broadcast %cst_10 : f32 to vector<8x128xf32>
      %c0_11 = arith.constant 0 : index
      %c0_12 = arith.constant 0 : index
      %13 = vector.load %arg7[%c0_11, %c0_12] : memref<8x128xf32, #tpu.memory_space<vmem>>, vector<8x128xf32>
      tpu.vector_store %arg7[%c0_11, %c0_12], %12 {strides = array<i32>} : memref<8x128xf32, #tpu.memory_space<vmem>>, vector<8x128xf32>,
    } else {
    }
    %c0 = arith.constant 0 : index
    %c0_1 = arith.constant 0 : index
    %3 = vector.load %arg7[%c0, %c0_1] : memref<8x128xf32, #tpu.memory_space<vmem>>, vector<8x128xf32>
    %c0_2 = arith.constant 0 : index
    %c0_3 = arith.constant 0 : index
    %4 = vector.load %arg3[%c0_2, %c0_3] : memref<8x2048xbf16, #tpu.memory_space<vmem>>, vector<8x2048xbf16>
    %c0_4 = arith.constant 0 : index
    %c0_5 = arith.constant 0 : index
    %5 = vector.load %arg4[%c0_4, %c0_5] : memref<2048x128xbf16, #tpu.memory_space<vmem>>, vector<2048x128xbf16>
    %cst = arith.constant dense<0.000000e+00> : vector<8x128xf32>
    %6 = tpu.matmul %4, %5, %cst {dimension_numbers = #tpu.dot_dimension_numbers<[1], [0], [0], [1], [0, 0, 1, 1], [], []>} : vector<8x2048xbf16>, vector<2048x128xbf16>, vector<8x128xf32> -> vector<8x128xf32>
    %7 = arith.addf %3, %6 : vector<8x128xf32>
    %c0_6 = arith.constant 0 : index
    %c0_7 = arith.constant 0 : index
    %8 = vector.load %arg7[%c0_6, %c0_7] : memref<8x128xf32, #tpu.memory_space<vmem>>, vector<8x128xf32>
    tpu.vector_store %arg7[%c0_6, %c0_7], %7 {strides = array<i32>} : memref<8x128xf32, #tpu.memory_space<vmem>>, vector<8x128xf32>,
    %c0_i32_8 = arith.constant 0 : i32
    %9 = arith.cmpi eq, %arg2, %c0_i32_8 : i32
    %10 = arith.extui %9 : i1 to i32
    %c0_i32_9 = arith.constant 0 : i32
    %11 = arith.cmpi ne, %10, %c0_i32_9 : i32
    scf.if %11 {
      %c0_10 = arith.constant 0 : index
      %c0_11 = arith.constant 0 : index
      %12 = vector.load %arg7[%c0_10, %c0_11] : memref<8x128xf32, #tpu.memory_space<vmem>>, vector<8x128xf32>
      %c0_12 = arith.constant 0 : index
      %c0_13 = arith.constant 0 : index
      %13 = vector.load %arg5[%c0_12, %c0_13] : memref<1x128xf32, #tpu.memory_space<vmem>>, vector<1x128xf32>
      %14 = vector.broadcast %13 : vector<1x128xf32> to vector<8x128xf32>
      %15 = arith.addf %12, %14 : vector<8x128xf32>
      %cst_14 = arith.constant 0.000000e+00 : f32
      %16 = vector.broadcast %cst_14 : f32 to vector<8x128xf32>
      %17 = arith.cmpf oge, %15, %16 : vector<8x128xf32>
      %cst_15 = arith.constant 2.000000e-01 : f32
      %18 = vector.broadcast %cst_15 : f32 to vector<8x128xf32>
      %19 = arith.mulf %18, %15 : vector<8x128xf32>
      %20 = arith.select %17, %15, %19 : vector<8x128xi1>, vector<8x128xf32>
      %21 = arith.truncf %20 : vector<8x128xf32> to vector<8x128xbf16>
      %c0_16 = arith.constant 0 : index
      %c0_17 = arith.constant 0 : index
      %22 = vector.load %arg6[%c0_16, %c0_17] : memref<8x128xbf16, #tpu.memory_space<vmem>>, vector<8x128xbf16>
      tpu.vector_store %arg6[%c0_16, %c0_17], %21 {strides = array<i32>} : memref<8x128xbf16, #tpu.memory_space<vmem>>, vector<8x128xbf16>,
    } else {
    }
    return
  }
  func.func @transform_0(%arg0: i32, %arg1: i32, %arg2: i32) -> (i32, i32) {
    %c0_i32 = arith.constant 0 : i32
    return %arg0, %arg2 : i32, i32
  }
  func.func @transform_1(%arg0: i32, %arg1: i32, %arg2: i32) -> (i32, i32) {
    %c0_i32 = arith.constant 0 : i32
    return %arg2, %arg1 : i32, i32
  }
  func.func @transform_2(%arg0: i32, %arg1: i32, %arg2: i32) -> (i32, i32) {
    %c0_i32 = arith.constant 0 : i32
    %c0_i32_0 = arith.constant 0 : i32
    return %c0_i32, %arg1 : i32, i32
  }
  func.func @transform_3(%arg0: i32, %arg1: i32, %arg2: i32) -> (i32, i32) {
    %c0_i32 = arith.constant 0 : i32
    return %arg0, %arg1 : i32, i32
  }
}

</mosaic_0001>

<llo_original>
// kernel: fc_discriminator_forward.5
$region0: #{fc_discriminator_forward.5}
  #allocation0 [shape = 'u32[]', space=smem, size = 0x4, offset = 0x4, fixed_abs, tag = 'smem constant byte address 0x4 - core index']
  #allocation1 [shape = 'u32[144,128]{1,0:T(1,128)}', space=vmem, size = 0x12000, scoped, tag = 'internal scratch']
  #allocation2 [shape = 'f32[256,128]{1,0:T(8,128)}', space=vmem, size = 0x20000, scoped, tag = 'scratch operand']
  %s0 = inlined_call_operand.vmem [shape: bf16[512,64], index: 0, kind: input, shape index: {}]
  %s1 = inlined_call_operand.vmem [shape: bf16[64,128], index: 1, kind: input, shape index: {}]
  %s2 = inlined_call_operand.vmem [shape: f32[1,128], index: 2, kind: input, shape index: {}]
  %s3 = inlined_call_operand.vmem [shape: bf16[512,128], index: 3, kind: output, shape index: {}]
  %s4 = sld [smem:[#allocation0]]
  $region53: #{fc_discriminator_forward.5} parent=0
    _
  %s6 = ssub.s32 1, %s4
  %s7 = scalar_select 0, %s6, %s4
  loop: start=0, step=1, limit=4
  $region2: #{fc_discriminator_forward.5} parent=0 // loop_pre_header
    _
  $region3: #{fc_discriminator_forward.5} parent=0 // loop_header
    %s9 = sphi 0, %s13
    %p10 = scmp.ge.s32.totalorder %s9, 4
    %s16 = sphi 0, %s35
    %s17 = sphi 0, %s31
    %s18 = sphi 0, %s27
    %s19 = sphi 0, %s16
    %s20 = sphi 0, %s17
    %s21 = sphi 0, %s18
    %s22 = sphi 0, %s19
    %s23 = sphi 0, %s20
    %s24 = sphi 0, %s21
    %s40 = sphi 0, %s42
    %s43 = sphi 0, %s40
    %s44 = sphi 0, %s43
    %s60 = sphi 0, %s44
    %s68 = sphi 0, %s70
    %s71 = sphi 0, %s68
    %s72 = sphi 0, %s71
    %s88 = sphi 0, %s72
    %s94 = sphi 0, %s96
    %s97 = sphi 0, %s94
    %s98 = sphi 0, %s97
    %s114 = sphi 0, %s98
    %s122 = sphi 0, %s124
    %s125 = sphi 0, %s122
    %s126 = sphi 0, %s125
    %s142 = sphi 0, %s126
  $region4: #{fc_discriminator_forward.5} parent=0 // loop_header_branch
    %12 = sbr.rel (%p10) target = $region8
  $region5: #{fc_discriminator_forward.5} parent=0 // loop_body
    %s14 = ssub.s32 %s9, 1
    %s15 = ssub.s32 %s9, 2
    %s25 = sadd.s32 1, %s18
    %p26 = scmp.ge.s32.totalorder %s25, 1
    %s27 = scalar_select %p26, 0, %s25
    %s28 = sadd.s32 1, %s17
    %s29 = scalar_select %p26, %s28, %s17
    %p30 = scmp.ge.s32.totalorder %s29, 1
    %s31 = scalar_select %p30, 0, %s29
    %s32 = sadd.s32 1, %s16
    %s33 = scalar_select %p30, %s32, %s16
    %p34 = scmp.ge.s32.totalorder %s33, 2
    %s35 = scalar_select %p34, 0, %s33
    %s36 = ssub.s32 %s16, %s35
    %s37 = ssub.s32 %s18, %s27
    %s38 = sor.u32 %s36, %s37
    %p39 = scmp.eq.s32.totalorder %s38, 0
    %s41 = sadd.s32 %s40, 1
    %s42 = scalar_select %p39, %s40, %s41
    %p45 = pneg %p39
    %p46 = scmp.eq.s32.totalorder %s9, 1
    %p47 = por %p45, %p46
    %p48 = scmp.ne.s32.totalorder %s40, %s43
    %p49 = scmp.eq.s32.totalorder %s9, 0
    %p50 = por %p48, %p49
    %p51 = scmp.ne.s32.totalorder %s40, %s43
    %p52 = scmp.eq.s32.totalorder %s14, 1
    %p53 = por %p51, %p52
    %p54 = scmp.ne.s32.totalorder %s43, %s44
    %p55 = scmp.eq.s32.totalorder %s14, 0
    %p56 = por %p54, %p55
    %p57 = scmp.ne.s32.totalorder %s43, %s44
    %p58 = scmp.eq.s32.totalorder %s15, 1
    %p59 = por %p57, %p58
    %p61 = scmp.ne.s32.totalorder %s44, %s60
    %p62 = scmp.eq.s32.totalorder %s15, 0
    %p63 = por %p61, %p62
    %s64 = ssub.s32 %s18, %s27
    %s65 = ssub.s32 %s17, %s31
    %s66 = sor.u32 %s64, %s65
    %p67 = scmp.eq.s32.totalorder %s66, 0
    %s69 = sadd.s32 %s68, 1
    %s70 = scalar_select %p67, %s68, %s69
    %p73 = pneg %p67
    %p74 = scmp.eq.s32.totalorder %s9, 1
    %p75 = por %p73, %p74
    %p76 = scmp.ne.s32.totalorder %s68, %s71
    %p77 = scmp.eq.s32.totalorder %s9, 0
    %p78 = por %p76, %p77
    %p79 = scmp.ne.s32.totalorder %s68, %s71
    %p80 = scmp.eq.s32.totalorder %s14, 1
    %p81 = por %p79, %p80
    %p82 = scmp.ne.s32.totalorder %s71, %s72
    %p83 = scmp.eq.s32.totalorder %s14, 0
    %p84 = por %p82, %p83
    %p85 = scmp.ne.s32.totalorder %s71, %s72
    %p86 = scmp.eq.s32.totalorder %s15, 1
    %p87 = por %p85, %p86
    %p89 = scmp.ne.s32.totalorder %s72, %s88
    %p90 = scmp.eq.s32.totalorder %s15, 0
    %p91 = por %p89, %p90
    %s92 = ssub.s32 %s17, %s31
    %p93 = scmp.eq.s32.totalorder %s92, 0
    %s95 = sadd.s32 %s94, 1
    %s96 = scalar_select %p93, %s94, %s95
    %p99 = pneg %p93
    %p100 = scmp.eq.s32.totalorder %s9, 1
    %p101 = por %p99, %p100
    %p102 = scmp.ne.s32.totalorder %s94, %s97
    %p103 = scmp.eq.s32.totalorder %s9, 0
    %p104 = por %p102, %p103
    %p105 = scmp.ne.s32.totalorder %s94, %s97
    %p106 = scmp.eq.s32.totalorder %s14, 1
    %p107 = por %p105, %p106
    %p108 = scmp.ne.s32.totalorder %s97, %s98
    %p109 = scmp.eq.s32.totalorder %s14, 0
    %p110 = por %p108, %p109
    %p111 = scmp.ne.s32.totalorder %s97, %s98
    %p112 = scmp.eq.s32.totalorder %s15, 1
    %p113 = por %p111, %p112
    %p115 = scmp.ne.s32.totalorder %s98, %s114
    %p116 = scmp.eq.s32.totalorder %s15, 0
    %p117 = por %p115, %p116
    %s118 = ssub.s32 %s16, %s35
    %s119 = ssub.s32 %s17, %s31
    %s120 = sor.u32 %s118, %s119
    %p121 = scmp.eq.s32.totalorder %s120, 0
    %s123 = sadd.s32 %s122, 1
    %s124 = scalar_select %p121, %s122, %s123
    %p127 = pneg %p121
    %p128 = scmp.eq.s32.totalorder %s9, 1
    %p129 = por %p127, %p128
    %p130 = scmp.ne.s32.totalorder %s122, %s125
    %p131 = scmp.eq.s32.totalorder %s9, 0
    %p132 = por %p130, %p131
    %p133 = scmp.ne.s32.totalorder %s122, %s125
    %p134 = scmp.eq.s32.totalorder %s14, 1
    %p135 = por %p133, %p134
    %p136 = scmp.ne.s32.totalorder %s125, %s126
    %p137 = scmp.eq.s32.totalorder %s14, 0
    %p138 = por %p136, %p137
    %p139 = scmp.ne.s32.totalorder %s125, %s126
    %p140 = scmp.eq.s32.totalorder %s15, 1
    %p141 = por %p139, %p140
    %p143 = scmp.ne.s32.totalorder %s126, %s142
    %p144 = scmp.eq.s32.totalorder %s15, 0
    %p145 = por %p143, %p144
    %p146 = scmp.le.s32.totalorder 1, %s9
    %p147 = scmp.lt.s32.totalorder %s9, 3
    %p148 = pnand %p146, %p147
    %p149 = pneg %p148
    // Predicated region
    $region9: #{fc_discriminator_forward.5} parent=5 // pred_check
      _
    $region10: #{fc_discriminator_forward.5} parent=5 // pred_check_branch
      %151 = sbr.rel (%p148) target = $region12
    $region11: #{fc_discriminator_forward.5} parent=5 // pred_region
      %s152 = ssub.s32 %s9, 1
      // Predicated region
      $region13: #{fc_discriminator_forward.5} parent=11 // pred_check
        %p153 = pneg %p84
      $region14: #{fc_discriminator_forward.5} parent=11 // pred_check_branch
        %155 = sbr.rel (%p153) target = $region16
      $region15: #{fc_discriminator_forward.5} parent=11 // pred_region
        %s156 = smul.u32 8, %s21
        %p157 = scmp.lt.s32.totalorder %s156, 7
        %s158 = scalar_select %p157, %s156, 7
        %p159 = scmp.lt.s32.totalorder %s20, 0
        %s160 = scalar_select %p159, %s20, 0
        %s161 = sadd.s32 %s160, %s158
        %s162 = smul.addr %s161, 4
        %s163 = scalar_lea.vmem %s1, %s162
        %s164 = smul.u32 8, %s21
      $region16: #{fc_discriminator_forward.5} parent=11 // pred_fallthru
        _
      // Predicated region
      $region17: #{fc_discriminator_forward.5} parent=11 // pred_check
        %p165 = pneg %p110
      $region18: #{fc_discriminator_forward.5} parent=11 // pred_check_branch
        %167 = sbr.rel (%p165) target = $region20
      $region19: #{fc_discriminator_forward.5} parent=11 // pred_region
        %p168 = scmp.lt.s32.totalorder %s20, 0
        %s169 = scalar_select %p168, %s20, 0
        %s170 = scalar_lea.vmem %s2, %s169
      $region20: #{fc_discriminator_forward.5} parent=11 // pred_fallthru
        _
    $region12: #{fc_discriminator_forward.5} parent=5 // pred_fallthru
      _
    %p171 = scmp.lt.s32.totalorder %s9, 2
    // Predicated region
    $region21: #{fc_discriminator_forward.5} parent=5 // pred_check
      %p172 = pneg %p171
    $region22: #{fc_discriminator_forward.5} parent=5 // pred_check_branch
      %174 = sbr.rel (%p172) target = $region24
    $region23: #{fc_discriminator_forward.5} parent=5 // pred_region
      // Predicated region
      $region25: #{fc_discriminator_forward.5} parent=23 // pred_check
        %p175 = pneg %p50
      $region26: #{fc_discriminator_forward.5} parent=23 // pred_check_branch
        %177 = sbr.rel (%p175) target = $region28
      $region27: #{fc_discriminator_forward.5} parent=23 // pred_region
        %s178 = smul.u32 32, %s16
        %p179 = scmp.lt.s32.totalorder %s178, 63
        %s180 = scalar_select %p179, %s178, 63
        %p181 = scmp.lt.s32.totalorder %s18, 0
        %s182 = scalar_select %p181, %s18, 0
        %s183 = sadd.s32 %s182, %s180
        %s184 = smul.addr %s183, 4
        %s185 = scalar_lea.vmem %s0, %s184
        %s186 = smul.u32 32, %s16
      $region28: #{fc_discriminator_forward.5} parent=23 // pred_fallthru
        _
    $region24: #{fc_discriminator_forward.5} parent=5 // pred_fallthru
      _
    %p187 = scmp.le.s32.totalorder 1, %s9
    %p188 = scmp.lt.s32.totalorder %s9, 3
    %p189 = pnand %p187, %p188
    %p190 = pneg %p189
    // Predicated region
    $region29: #{fc_discriminator_forward.5} parent=5 // pred_check
      _
    $region30: #{fc_discriminator_forward.5} parent=5 // pred_check_branch
      %192 = sbr.rel (%p189) target = $region32
    $region31: #{fc_discriminator_forward.5} parent=5 // pred_region
      %s193 = ssub.s32 %s9, 1
      %s194 = smul.u32 32, %s19
      %p195 = scmp.lt.s32.totalorder %s194, 63
      %s196 = scalar_select %p195, %s194, 63
      %p197 = scmp.lt.s32.totalorder %s21, 0
      %s198 = scalar_select %p197, %s21, 0
      %s199 = sadd.s32 %s198, %s196
      %s200 = smul.addr %s199, 4
      %s201 = scalar_lea.vmem %s0, %s200
      %p202 = pneg %p56
      %p203 = pneg %p53
      %s204 = smul.u32 8, %s21
      %p205 = scmp.lt.s32.totalorder %s204, 7
      %s206 = scalar_select %p205, %s204, 7
      %p207 = scmp.lt.s32.totalorder %s20, 0
      %s208 = scalar_select %p207, %s20, 0
      %s209 = sadd.s32 %s208, %s206
      %s210 = smul.addr %s209, 4
      %s211 = scalar_lea.vmem %s1, %s210
      %p212 = pneg %p84
      %p213 = pneg %p81
      %p214 = scmp.lt.s32.totalorder %s20, 0
      %s215 = scalar_select %p214, %s20, 0
      %s216 = scalar_lea.vmem %s2, %s215
      %p217 = pneg %p110
      %p218 = pneg %p107
      %p219 = pneg %p138
      %p220 = pneg %p135
      %s221 = smul.u32 32, %s19
      %p222 = scmp.lt.s32.totalorder %s221, 63
      %s223 = scalar_select %p222, %s221, 63
      %p224 = scmp.lt.s32.totalorder %s20, 0
      %s225 = scalar_select %p224, %s20, 0
      %s226 = sadd.s32 %s225, %s223
      %s227 = smul.addr %s226, 4
      %s228 = scalar_lea.vmem %s3, %s227
      %s229 = smul.u32 32, %s19
      %p230 = scmp.lt.s32.totalorder %s229, 63
      %s231 = scalar_select %p230, %s229, 63
      %p232 = scmp.lt.s32.totalorder %s21, 0
      %s233 = scalar_select %p232, %s21, 0
      %s234 = sadd.s32 %s233, %s231
      %s235 = smul.addr %s234, 4
      %s236 = scalar_lea.vmem %s0, %s235
      %s237 = smul.u32 32, %s19
      %s238 = smul.u32 8, %s21
      %p239 = scmp.lt.s32.totalorder %s238, 7
      %s240 = scalar_select %p239, %s238, 7
      %p241 = scmp.lt.s32.totalorder %s20, 0
      %s242 = scalar_select %p241, %s20, 0
      %s243 = sadd.s32 %s242, %s240
      %s244 = smul.addr %s243, 4
      %s245 = scalar_lea.vmem %s1, %s244
      %s246 = smul.u32 8, %s21
      %p247 = scmp.lt.s32.totalorder %s20, 0
      %s248 = scalar_select %p247, %s20, 0
      %s249 = scalar_lea.vmem %s2, %s248
      %s250 = smul.u32 32, %s19
      %p251 = scmp.lt.s32.totalorder %s250, 63
      %s252 = scalar_select %p251, %s250, 63
      %p253 = scmp.lt.s32.totalorder %s20, 0
      %s254 = scalar_select %p253, %s20, 0
      %s255 = sadd.s32 %s254, %s252
      %s256 = smul.addr %s255, 4
      %s257 = scalar_lea.vmem %s3, %s256
      %s258 = smul.u32 32, %s19
      %p260 = scmp.eq.s32.totalorder %s21, 0
      // Predicated region
      $region33: #{fc_discriminator_forward.5} parent=31 // pred_check
        %p261 = pneg %p260
      $region34: #{fc_discriminator_forward.5} parent=31 // pred_check_branch
        %263 = sbr.rel (%p261) target = $region36
      $region35: #{fc_discriminator_forward.5} parent=31 // pred_region
        %264 = vst [vmem:[#allocation2] sm:$0xff] 0.0
        %265 = vst [vmem:[#allocation2 + $0x8] sm:$0xff] 0.0
        %266 = vst [vmem:[#allocation2 + $0x10] sm:$0xff] 0.0
        %267 = vst [vmem:[#allocation2 + $0x18] sm:$0xff] 0.0
        %268 = vst [vmem:[#allocation2 + $0x20] sm:$0xff] 0.0
        %269 = vst [vmem:[#allocation2 + $0x28] sm:$0xff] 0.0
        %270 = vst [vmem:[#allocation2 + $0x30] sm:$0xff] 0.0
        %271 = vst [vmem:[#allocation2 + $0x38] sm:$0xff] 0.0
        %272 = vst [vmem:[#allocation2 + $0x40] sm:$0xff] 0.0
        %273 = vst [vmem:[#allocation2 + $0x48] sm:$0xff] 0.0
        %274 = vst [vmem:[#allocation2 + $0x50] sm:$0xff] 0.0
        %275 = vst [vmem:[#allocation2 + $0x58] sm:$0xff] 0.0
        %276 = vst [vmem:[#allocation2 + $0x60] sm:$0xff] 0.0
        %277 = vst [vmem:[#allocation2 + $0x68] sm:$0xff] 0.0
        %278 = vst [vmem:[#allocation2 + $0x70] sm:$0xff] 0.0
        %279 = vst [vmem:[#allocation2 + $0x78] sm:$0xff] 0.0
        %280 = vst [vmem:[#allocation2 + $0x80] sm:$0xff] 0.0
        %281 = vst [vmem:[#allocation2 + $0x88] sm:$0xff] 0.0
        %282 = vst [vmem:[#allocation2 + $0x90] sm:$0xff] 0.0
        %283 = vst [vmem:[#allocation2 + $0x98] sm:$0xff] 0.0
        %284 = vst [vmem:[#allocation2 + $0xa0] sm:$0xff] 0.0
        %285 = vst [vmem:[#allocation2 + $0xa8] sm:$0xff] 0.0
        %286 = vst [vmem:[#allocation2 + $0xb0] sm:$0xff] 0.0
        %287 = vst [vmem:[#allocation2 + $0xb8] sm:$0xff] 0.0
        %288 = vst [vmem:[#allocation2 + $0xc0] sm:$0xff] 0.0
        %289 = vst [vmem:[#allocation2 + $0xc8] sm:$0xff] 0.0
        %290 = vst [vmem:[#allocation2 + $0xd0] sm:$0xff] 0.0
        %291 = vst [vmem:[#allocation2 + $0xd8] sm:$0xff] 0.0
        %292 = vst [vmem:[#allocation2 + $0xe0] sm:$0xff] 0.0
        %293 = vst [vmem:[#allocation2 + $0xe8] sm:$0xff] 0.0
        %294 = vst [vmem:[#allocation2 + $0xf0] sm:$0xff] 0.0
        %295 = vst [vmem:[#allocation2 + $0xf8] sm:$0xff] 0.0
      $region36: #{fc_discriminator_forward.5} parent=31 // pred_fallthru
        _
      %v296 = vld [vmem:[#allocation2] sm:$0xff]
      %v297 = vld [vmem:[#allocation2 + $0x8] sm:$0xff]
      %v298 = vld [vmem:[#allocation2 + $0x10] sm:$0xff]
      %v299 = vld [vmem:[#allocation2 + $0x18] sm:$0xff]
      %v300 = vld [vmem:[#allocation2 + $0x20] sm:$0xff]
      %v301 = vld [vmem:[#allocation2 + $0x28] sm:$0xff]
      %v302 = vld [vmem:[#allocation2 + $0x30] sm:$0xff]
      %v303 = vld [vmem:[#allocation2 + $0x38] sm:$0xff]
      %v304 = vld [vmem:[#allocation2 + $0x40] sm:$0xff]
      %v305 = vld [vmem:[#allocation2 + $0x48] sm:$0xff]
      %v306 = vld [vmem:[#allocation2 + $0x50] sm:$0xff]
      %v307 = vld [vmem:[#allocation2 + $0x58] sm:$0xff]
      %v308 = vld [vmem:[#allocation2 + $0x60] sm:$0xff]
      %v309 = vld [vmem:[#allocation2 + $0x68] sm:$0xff]
      %v310 = vld [vmem:[#allocation2 + $0x70] sm:$0xff]
      %v311 = vld [vmem:[#allocation2 + $0x78] sm:$0xff]
      %v312 = vld [vmem:[#allocation2 + $0x80] sm:$0xff]
      %v313 = vld [vmem:[#allocation2 + $0x88] sm:$0xff]
      %v314 = vld [vmem:[#allocation2 + $0x90] sm:$0xff]
      %v315 = vld [vmem:[#allocation2 + $0x98] sm:$0xff]
      %v316 = vld [vmem:[#allocation2 + $0xa0] sm:$0xff]
      %v317 = vld [vmem:[#allocation2 + $0xa8] sm:$0xff]
      %v318 = vld [vmem:[#allocation2 + $0xb0] sm:$0xff]
      %v319 = vld [vmem:[#allocation2 + $0xb8] sm:$0xff]
      %v320 = vld [vmem:[#allocation2 + $0xc0] sm:$0xff]
      %v321 = vld [vmem:[#allocation2 + $0xc8] sm:$0xff]
      %v322 = vld [vmem:[#allocation2 + $0xd0] sm:$0xff]
      %v323 = vld [vmem:[#allocation2 + $0xd8] sm:$0xff]
      %v324 = vld [vmem:[#allocation2 + $0xe0] sm:$0xff]
      %v325 = vld [vmem:[#allocation2 + $0xe8] sm:$0xff]
      %v326 = vld [vmem:[#allocation2 + $0xf0] sm:$0xff]
      %v327 = vld [vmem:[#allocation2 + $0xf8] sm:$0xff]
      %v328 = vld [vmem:[%s236] sm:$0xf]
      %v329 = vld [vmem:[%s236 + $0x4] sm:$0xf]
      %v330 = vld [vmem:[%s236 + $0x8] sm:$0xf]
      %v331 = vld [vmem:[%s236 + $0xc] sm:$0xf]
      %v332 = vld [vmem:[%s236 + $0x10] sm:$0xf]
      %v333 = vld [vmem:[%s236 + $0x14] sm:$0xf]
      %v334 = vld [vmem:[%s236 + $0x18] sm:$0xf]
      %v335 = vld [vmem:[%s236 + $0x1c] sm:$0xf]
      %v336 = vld [vmem:[%s236 + $0x20] sm:$0xf]
      %v337 = vld [vmem:[%s236 + $0x24] sm:$0xf]
      %v338 = vld [vmem:[%s236 + $0x28] sm:$0xf]
      %v339 = vld [vmem:[%s236 + $0x2c] sm:$0xf]
      %v340 = vld [vmem:[%s236 + $0x30] sm:$0xf]
      %v341 = vld [vmem:[%s236 + $0x34] sm:$0xf]
      %v342 = vld [vmem:[%s236 + $0x38] sm:$0xf]
      %v343 = vld [vmem:[%s236 + $0x3c] sm:$0xf]
      %v344 = vld [vmem:[%s236 + $0x40] sm:$0xf]
      %v345 = vld [vmem:[%s236 + $0x44] sm:$0xf]
      %v346 = vld [vmem:[%s236 + $0x48] sm:$0xf]
      %v347 = vld [vmem:[%s236 + $0x4c] sm:$0xf]
      %v348 = vld [vmem:[%s236 + $0x50] sm:$0xf]
      %v349 = vld [vmem:[%s236 + $0x54] sm:$0xf]
      %v350 = vld [vmem:[%s236 + $0x58] sm:$0xf]
      %v351 = vld [vmem:[%s236 + $0x5c] sm:$0xf]
      %v352 = vld [vmem:[%s236 + $0x60] sm:$0xf]
      %v353 = vld [vmem:[%s236 + $0x64] sm:$0xf]
      %v354 = vld [vmem:[%s236 + $0x68] sm:$0xf]
      %v355 = vld [vmem:[%s236 + $0x6c] sm:$0xf]
      %v356 = vld [vmem:[%s236 + $0x70] sm:$0xf]
      %v357 = vld [vmem:[%s236 + $0x74] sm:$0xf]
      %v358 = vld [vmem:[%s236 + $0x78] sm:$0xf]
      %v359 = vld [vmem:[%s236 + $0x7c] sm:$0xf]
      %v360 = vld [vmem:[%s245] sm:$0xf]
      %v361 = vld [vmem:[%s245 + $0x4] sm:$0xf]
      %v362 = vld [vmem:[%s245 + $0x8] sm:$0xf]
      %v363 = vld [vmem:[%s245 + $0xc] sm:$0xf]
      %v364 = vld [vmem:[%s245 + $0x10] sm:$0xf]
      %v365 = vld [vmem:[%s245 + $0x14] sm:$0xf]
      %v366 = vld [vmem:[%s245 + $0x18] sm:$0xf]
      %v367 = vld [vmem:[%s245 + $0x1c] sm:$0xf]
      %v400 = vunpack.c.l.b16 %v328
      %v401 = vunpack.c.l.b16 %v329
      %v402 = vunpack.c.l.b16 %v330
      %v403 = vunpack.c.l.b16 %v331
      %v404 = vunpack.c.l.b16 %v332
      %v405 = vunpack.c.l.b16 %v333
      %v406 = vunpack.c.l.b16 %v334
      %v407 = vunpack.c.l.b16 %v335
      %v408 = vunpack.c.l.b16 %v336
      %v409 = vunpack.c.l.b16 %v337
      %v410 = vunpack.c.l.b16 %v338
      %v411 = vunpack.c.l.b16 %v339
      %v412 = vunpack.c.l.b16 %v340
      %v413 = vunpack.c.l.b16 %v341
      %v414 = vunpack.c.l.b16 %v342
      %v415 = vunpack.c.l.b16 %v343
      %v416 = vunpack.c.l.b16 %v344
      %v417 = vunpack.c.l.b16 %v345
      %v418 = vunpack.c.l.b16 %v346
      %v419 = vunpack.c.l.b16 %v347
      %v420 = vunpack.c.l.b16 %v348
      %v421 = vunpack.c.l.b16 %v349
      %v422 = vunpack.c.l.b16 %v350
      %v423 = vunpack.c.l.b16 %v351
      %v424 = vunpack.c.l.b16 %v352
      %v425 = vunpack.c.l.b16 %v353
      %v426 = vunpack.c.l.b16 %v354
      %v427 = vunpack.c.l.b16 %v355
      %v428 = vunpack.c.l.b16 %v356
      %v429 = vunpack.c.l.b16 %v357
      %v430 = vunpack.c.l.b16 %v358
      %v431 = vunpack.c.l.b16 %v359
      %v432 = vpack.c.b16 %v401, %v400
      %v433 = vpack.c.b16 %v403, %v402
      %v434 = vpack.c.b16 %v405, %v404
      %v435 = vpack.c.b16 %v407, %v406
      %v436 = vpack.c.b16 %v409, %v408
      %v437 = vpack.c.b16 %v411, %v410
      %v438 = vpack.c.b16 %v413, %v412
      %v439 = vpack.c.b16 %v415, %v414
      %v440 = vpack.c.b16 %v417, %v416
      %v441 = vpack.c.b16 %v419, %v418
      %v442 = vpack.c.b16 %v421, %v420
      %v443 = vpack.c.b16 %v423, %v422
      %v444 = vpack.c.b16 %v425, %v424
      %v445 = vpack.c.b16 %v427, %v426
      %v446 = vpack.c.b16 %v429, %v428
      %v447 = vpack.c.b16 %v431, %v430
      %v456 = vunpack.c.l.b16 %v360
      %v457 = vunpack.c.l.b16 %v361
      %v458 = vunpack.c.l.b16 %v362
      %v459 = vunpack.c.l.b16 %v363
      %v460 = vunpack.c.l.b16 %v364
      %v461 = vunpack.c.l.b16 %v365
      %v462 = vunpack.c.l.b16 %v366
      %v463 = vunpack.c.l.b16 %v367
      %v464 = vpack.c.b16 %v457, %v456
      %v465 = vpack.c.b16 %v459, %v458
      %v466 = vpack.c.b16 %v461, %v460
      %v467 = vpack.c.b16 %v463, %v462
      %vm472 = vcmask 523264
      %v474 = vsel %vm472, %v432, 0
      %v477 = vsel %vm472, %v433, 0
      %v480 = vsel %vm472, %v434, 0
      %v483 = vsel %vm472, %v435, 0
      %v486 = vsel %vm472, %v436, 0
      %v489 = vsel %vm472, %v437, 0
      %v492 = vsel %vm472, %v438, 0
      %v495 = vsel %vm472, %v439, 0
      %v498 = vsel %vm472, %v440, 0
      %v501 = vsel %vm472, %v441, 0
      %v504 = vsel %vm472, %v442, 0
      %v507 = vsel %vm472, %v443, 0
      %v510 = vsel %vm472, %v444, 0
      %v513 = vsel %vm472, %v445, 0
      %v516 = vsel %vm472, %v446, 0
      %v519 = vsel %vm472, %v447, 0
      %521 = vmatprep.subr.bf16.mxu0 0
      %522 = vmatpush1.bf16.msra.mxu0 0
      %523 = vmatprep.subr.bf16.mxu0 0
      %524 = vmatpush1.bf16.msra.mxu0 0
      %525 = vmatprep.subr.bf16.mxu0 0
      %526 = vmatpush1.bf16.msra.mxu0 0
      %527 = vmatprep.subr.bf16.mxu0 0
      %528 = vmatpush1.bf16.msra.mxu0 0
      %529 = vmatprep.subr.bf16.mxu0 0
      %530 = vmatpush1.bf16.msra.mxu0 %v467
      %531 = vmatprep.subr.bf16.mxu0 0
      %532 = vmatpush1.bf16.msra.mxu0 %v466
      %533 = vmatprep.subr.bf16.mxu0 0
      %534 = vmatpush1.bf16.msra.mxu0 %v465
      %535 = vmatprep.subr.bf16.mxu0 0
      %536 = vmatpush1.bf16.msra.mxu0 %v464
      %537 = vmatprep.subr.bf16.mxu0 0
      %538 = vmatpush2.bf16.msra.mxu0 0
      %539 = vmatprep.subr.bf16.mxu0 0
      %540 = vmatpush2.bf16.msra.mxu0 0
      %541 = vmatprep.subr.bf16.mxu0 0
      %542 = vmatpush2.bf16.msra.mxu0 0
      %543 = vmatprep.subr.bf16.mxu0 0
      %544 = vmatpush2.bf16.msra.mxu0 0
      %545 = vmatprep.subr.bf16.mxu0 0
      %546 = vmatpush2.bf16.msra.mxu0 0
      %547 = vmatprep.subr.bf16.mxu0 0
      %548 = vmatpush2.bf16.msra.mxu0 0
      %549 = vmatprep.subr.bf16.mxu0 0
      %550 = vmatpush2.bf16.msra.mxu0 0
      %551 = vmatprep.subr.bf16.mxu0 0
      %552 = vmatpush2.bf16.msra.mxu0 0
      %553 = vmatprep.mubr.bf16.mxu0 0
      %554 = vmatmul.mubr.bf16.gmra.mxu0 %v474
      %v555 = vpop.f32.mrf.mxu0
      %v556 = vadd.f32 0.0, %v555
      %v557 = vpop.f32.mrf.mxu0
      %v558 = vpop.f32.mrf.mxu0
      %v559 = vadd.f32 0.0, %v558
      %v560 = vpop.f32.mrf.mxu0
      %561 = vmatprep.mubr.bf16.mxu0 0
      %562 = vmatmul.mubr.bf16.gmra.mxu0 %v477
      %v563 = vpop.f32.mrf.mxu0
      %v564 = vadd.f32 0.0, %v563
      %v565 = vpop.f32.mrf.mxu0
      %v566 = vpop.f32.mrf.mxu0
      %v567 = vadd.f32 0.0, %v566
      %v568 = vpop.f32.mrf.mxu0
      %569 = vmatprep.mubr.bf16.mxu0 0
      %570 = vmatmul.mubr.bf16.gmra.mxu0 %v480
      %v571 = vpop.f32.mrf.mxu0
      %v572 = vadd.f32 0.0, %v571
      %v573 = vpop.f32.mrf.mxu0
      %v574 = vpop.f32.mrf.mxu0
      %v575 = vadd.f32 0.0, %v574
      %v576 = vpop.f32.mrf.mxu0
      %577 = vmatprep.mubr.bf16.mxu0 0
      %578 = vmatmul.mubr.bf16.gmra.mxu0 %v483
      %v579 = vpop.f32.mrf.mxu0
      %v580 = vadd.f32 0.0, %v579
      %v581 = vpop.f32.mrf.mxu0
      %v582 = vpop.f32.mrf.mxu0
      %v583 = vadd.f32 0.0, %v582
      %v584 = vpop.f32.mrf.mxu0
      %585 = vmatprep.mubr.bf16.mxu0 0
      %586 = vmatmul.mubr.bf16.gmra.mxu0 %v486
      %v587 = vpop.f32.mrf.mxu0
      %v588 = vadd.f32 0.0, %v587
      %v589 = vpop.f32.mrf.mxu0
      %v590 = vpop.f32.mrf.mxu0
      %v591 = vadd.f32 0.0, %v590
      %v592 = vpop.f32.mrf.mxu0
      %593 = vmatprep.mubr.bf16.mxu0 0
      %594 = vmatmul.mubr.bf16.gmra.mxu0 %v489
      %v595 = vpop.f32.mrf.mxu0
      %v596 = vadd.f32 0.0, %v595
      %v597 = vpop.f32.mrf.mxu0
      %v598 = vpop.f32.mrf.mxu0
      %v599 = vadd.f32 0.0, %v598
      %v600 = vpop.f32.mrf.mxu0
      %601 = vmatprep.mubr.bf16.mxu0 0
      %602 = vmatmul.mubr.bf16.gmra.mxu0 %v492
      %v603 = vpop.f32.mrf.mxu0
      %v604 = vadd.f32 0.0, %v603
      %v605 = vpop.f32.mrf.mxu0
      %v606 = vpop.f32.mrf.mxu0
      %v607 = vadd.f32 0.0, %v606
      %v608 = vpop.f32.mrf.mxu0
      %609 = vmatprep.mubr.bf16.mxu0 0
      %610 = vmatmul.mubr.bf16.gmra.mxu0 %v495
      %v611 = vpop.f32.mrf.mxu0
      %v612 = vadd.f32 0.0, %v611
      %v613 = vpop.f32.mrf.mxu0
      %v614 = vpop.f32.mrf.mxu0
      %v615 = vadd.f32 0.0, %v614
      %v616 = vpop.f32.mrf.mxu0
      %617 = vmatprep.mubr.bf16.mxu0 0
      %618 = vmatmul.mubr.bf16.gmra.mxu0 %v498
      %v619 = vpop.f32.mrf.mxu0
      %v620 = vadd.f32 0.0, %v619
      %v621 = vpop.f32.mrf.mxu0
      %v622 = vpop.f32.mrf.mxu0
      %v623 = vadd.f32 0.0, %v622
      %v624 = vpop.f32.mrf.mxu0
      %625 = vmatprep.mubr.bf16.mxu0 0
      %626 = vmatmul.mubr.bf16.gmra.mxu0 %v501
      %v627 = vpop.f32.mrf.mxu0
      %v628 = vadd.f32 0.0, %v627
      %v629 = vpop.f32.mrf.mxu0
      %v630 = vpop.f32.mrf.mxu0
      %v631 = vadd.f32 0.0, %v630
      %v632 = vpop.f32.mrf.mxu0
      %633 = vmatprep.mubr.bf16.mxu0 0
      %634 = vmatmul.mubr.bf16.gmra.mxu0 %v504
      %v635 = vpop.f32.mrf.mxu0
      %v636 = vadd.f32 0.0, %v635
      %v637 = vpop.f32.mrf.mxu0
      %v638 = vpop.f32.mrf.mxu0
      %v639 = vadd.f32 0.0, %v638
      %v640 = vpop.f32.mrf.mxu0
      %641 = vmatprep.mubr.bf16.mxu0 0
      %642 = vmatmul.mubr.bf16.gmra.mxu0 %v507
      %v643 = vpop.f32.mrf.mxu0
      %v644 = vadd.f32 0.0, %v643
      %v645 = vpop.f32.mrf.mxu0
      %v646 = vpop.f32.mrf.mxu0
      %v647 = vadd.f32 0.0, %v646
      %v648 = vpop.f32.mrf.mxu0
      %649 = vmatprep.mubr.bf16.mxu0 0
      %650 = vmatmul.mubr.bf16.gmra.mxu0 %v510
      %v651 = vpop.f32.mrf.mxu0
      %v652 = vadd.f32 0.0, %v651
      %v653 = vpop.f32.mrf.mxu0
      %v654 = vpop.f32.mrf.mxu0
      %v655 = vadd.f32 0.0, %v654
      %v656 = vpop.f32.mrf.mxu0
      %657 = vmatprep.mubr.bf16.mxu0 0
      %658 = vmatmul.mubr.bf16.gmra.mxu0 %v513
      %v659 = vpop.f32.mrf.mxu0
      %v660 = vadd.f32 0.0, %v659
      %v661 = vpop.f32.mrf.mxu0
      %v662 = vpop.f32.mrf.mxu0
      %v663 = vadd.f32 0.0, %v662
      %v664 = vpop.f32.mrf.mxu0
      %665 = vmatprep.mubr.bf16.mxu0 0
      %666 = vmatmul.mubr.bf16.gmra.mxu0 %v516
      %v667 = vpop.f32.mrf.mxu0
      %v668 = vadd.f32 0.0, %v667
      %v669 = vpop.f32.mrf.mxu0
      %v670 = vpop.f32.mrf.mxu0
      %v671 = vadd.f32 0.0, %v670
      %v672 = vpop.f32.mrf.mxu0
      %673 = vmatprep.mubr.bf16.mxu0 0
      %674 = vmatmul.mubr.bf16.gmra.mxu0 %v519
      %v675 = vpop.f32.mrf.mxu0
      %v676 = vadd.f32 0.0, %v675
      %v677 = vpop.f32.mrf.mxu0
      %v678 = vpop.f32.mrf.mxu0
      %v679 = vadd.f32 0.0, %v678
      %v680 = vpop.f32.mrf.mxu0
      %681 = vdwg.mxu0
      %v682 = vadd.f32 %v296, %v556
      %v683 = vadd.f32 %v297, %v559
      %v684 = vadd.f32 %v298, %v564
      %v685 = vadd.f32 %v299, %v567
      %v686 = vadd.f32 %v300, %v572
      %v687 = vadd.f32 %v301, %v575
      %v688 = vadd.f32 %v302, %v580
      %v689 = vadd.f32 %v303, %v583
      %v690 = vadd.f32 %v304, %v588
      %v691 = vadd.f32 %v305, %v591
      %v692 = vadd.f32 %v306, %v596
      %v693 = vadd.f32 %v307, %v599
      %v694 = vadd.f32 %v308, %v604
      %v695 = vadd.f32 %v309, %v607
      %v696 = vadd.f32 %v310, %v612
      %v697 = vadd.f32 %v311, %v615
      %v698 = vadd.f32 %v312, %v620
      %v699 = vadd.f32 %v313, %v623
      %v700 = vadd.f32 %v314, %v628
      %v701 = vadd.f32 %v315, %v631
      %v702 = vadd.f32 %v316, %v636
      %v703 = vadd.f32 %v317, %v639
      %v704 = vadd.f32 %v318, %v644
      %v705 = vadd.f32 %v319, %v647
      %v706 = vadd.f32 %v320, %v652
      %v707 = vadd.f32 %v321, %v655
      %v708 = vadd.f32 %v322, %v660
      %v709 = vadd.f32 %v323, %v663
      %v710 = vadd.f32 %v324, %v668
      %v711 = vadd.f32 %v325, %v671
      %v712 = vadd.f32 %v326, %v676
      %v713 = vadd.f32 %v327, %v679
      %714 = vst [vmem:[#allocation2] sm:$0xff] %v682
      %715 = vst [vmem:[#allocation2 + $0x8] sm:$0xff] %v683
      %716 = vst [vmem:[#allocation2 + $0x10] sm:$0xff] %v684
      %717 = vst [vmem:[#allocation2 + $0x18] sm:$0xff] %v685
      %718 = vst [vmem:[#allocation2 + $0x20] sm:$0xff] %v686
      %719 = vst [vmem:[#allocation2 + $0x28] sm:$0xff] %v687
      %720 = vst [vmem:[#allocation2 + $0x30] sm:$0xff] %v688
      %721 = vst [vmem:[#allocation2 + $0x38] sm:$0xff] %v689
      %722 = vst [vmem:[#allocation2 + $0x40] sm:$0xff] %v690
      %723 = vst [vmem:[#allocation2 + $0x48] sm:$0xff] %v691
      %724 = vst [vmem:[#allocation2 + $0x50] sm:$0xff] %v692
      %725 = vst [vmem:[#allocation2 + $0x58] sm:$0xff] %v693
      %726 = vst [vmem:[#allocation2 + $0x60] sm:$0xff] %v694
      %727 = vst [vmem:[#allocation2 + $0x68] sm:$0xff] %v695
      %728 = vst [vmem:[#allocation2 + $0x70] sm:$0xff] %v696
      %729 = vst [vmem:[#allocation2 + $0x78] sm:$0xff] %v697
      %730 = vst [vmem:[#allocation2 + $0x80] sm:$0xff] %v698
      %731 = vst [vmem:[#allocation2 + $0x88] sm:$0xff] %v699
      %732 = vst [vmem:[#allocation2 + $0x90] sm:$0xff] %v700
      %733 = vst [vmem:[#allocation2 + $0x98] sm:$0xff] %v701
      %734 = vst [vmem:[#allocation2 + $0xa0] sm:$0xff] %v702
      %735 = vst [vmem:[#allocation2 + $0xa8] sm:$0xff] %v703
      %736 = vst [vmem:[#allocation2 + $0xb0] sm:$0xff] %v704
      %737 = vst [vmem:[#allocation2 + $0xb8] sm:$0xff] %v705
      %738 = vst [vmem:[#allocation2 + $0xc0] sm:$0xff] %v706
      %739 = vst [vmem:[#allocation2 + $0xc8] sm:$0xff] %v707
      %740 = vst [vmem:[#allocation2 + $0xd0] sm:$0xff] %v708
      %741 = vst [vmem:[#allocation2 + $0xd8] sm:$0xff] %v709
      %742 = vst [vmem:[#allocation2 + $0xe0] sm:$0xff] %v710
      %743 = vst [vmem:[#allocation2 + $0xe8] sm:$0xff] %v711
      %744 = vst [vmem:[#allocation2 + $0xf0] sm:$0xff] %v712
      %745 = vst [vmem:[#allocation2 + $0xf8] sm:$0xff] %v713
      // Predicated region
      $region37: #{fc_discriminator_forward.5} parent=31 // pred_check
        %p746 = pneg %p260
      $region38: #{fc_discriminator_forward.5} parent=31 // pred_check_branch
        %748 = sbr.rel (%p746) target = $region40
      $region39: #{fc_discriminator_forward.5} parent=31 // pred_region
        %v749 = vld [vmem:[#allocation2] sm:$0xff]
        %v750 = vld [vmem:[#allocation2 + $0x8] sm:$0xff]
        %v751 = vld [vmem:[#allocation2 + $0x10] sm:$0xff]
        %v752 = vld [vmem:[#allocation2 + $0x18] sm:$0xff]
        %v753 = vld [vmem:[#allocation2 + $0x20] sm:$0xff]
        %v754 = vld [vmem:[#allocation2 + $0x28] sm:$0xff]
        %v755 = vld [vmem:[#allocation2 + $0x30] sm:$0xff]
        %v756 = vld [vmem:[#allocation2 + $0x38] sm:$0xff]
        %v757 = vld [vmem:[#allocation2 + $0x40] sm:$0xff]
        %v758 = vld [vmem:[#allocation2 + $0x48] sm:$0xff]
        %v759 = vld [vmem:[#allocation2 + $0x50] sm:$0xff]
        %v760 = vld [vmem:[#allocation2 + $0x58] sm:$0xff]
        %v761 = vld [vmem:[#allocation2 + $0x60] sm:$0xff]
        %v762 = vld [vmem:[#allocation2 + $0x68] sm:$0xff]
        %v763 = vld [vmem:[#allocation2 + $0x70] sm:$0xff]
        %v764 = vld [vmem:[#allocation2 + $0x78] sm:$0xff]
        %v765 = vld [vmem:[#allocation2 + $0x80] sm:$0xff]
        %v766 = vld [vmem:[#allocation2 + $0x88] sm:$0xff]
        %v767 = vld [vmem:[#allocation2 + $0x90] sm:$0xff]
        %v768 = vld [vmem:[#allocation2 + $0x98] sm:$0xff]
        %v769 = vld [vmem:[#allocation2 + $0xa0] sm:$0xff]
        %v770 = vld [vmem:[#allocation2 + $0xa8] sm:$0xff]
        %v771 = vld [vmem:[#allocation2 + $0xb0] sm:$0xff]
        %v772 = vld [vmem:[#allocation2 + $0xb8] sm:$0xff]
        %v773 = vld [vmem:[#allocation2 + $0xc0] sm:$0xff]
        %v774 = vld [vmem:[#allocation2 + $0xc8] sm:$0xff]
        %v775 = vld [vmem:[#allocation2 + $0xd0] sm:$0xff]
        %v776 = vld [vmem:[#allocation2 + $0xd8] sm:$0xff]
        %v777 = vld [vmem:[#allocation2 + $0xe0] sm:$0xff]
        %v778 = vld [vmem:[#allocation2 + $0xe8] sm:$0xff]
        %v779 = vld [vmem:[#allocation2 + $0xf0] sm:$0xff]
        %v780 = vld [vmem:[#allocation2 + $0xf8] sm:$0xff]
        %v781 = vld [vmem:[%s249] sm:$0x1]
        %v783 = vlaneseq
        %v784 = vshrl.u32 %v783, 7
        %v785 = vsub.s32 0, %v784
        %v786 = vrot.slane %v781, %v785
        %v788 = vadd.f32 %v749, %v786
        %v789 = vadd.f32 %v750, %v786
        %v790 = vadd.f32 %v751, %v786
        %v791 = vadd.f32 %v752, %v786
        %v792 = vadd.f32 %v753, %v786
        %v793 = vadd.f32 %v754, %v786
        %v794 = vadd.f32 %v755, %v786
        %v795 = vadd.f32 %v756, %v786
        %v796 = vadd.f32 %v757, %v786
        %v797 = vadd.f32 %v758, %v786
        %v798 = vadd.f32 %v759, %v786
        %v799 = vadd.f32 %v760, %v786
        %v800 = vadd.f32 %v761, %v786
        %v801 = vadd.f32 %v762, %v786
        %v802 = vadd.f32 %v763, %v786
        %v803 = vadd.f32 %v764, %v786
        %v804 = vadd.f32 %v765, %v786
        %v805 = vadd.f32 %v766, %v786
        %v806 = vadd.f32 %v767, %v786
        %v807 = vadd.f32 %v768, %v786
        %v808 = vadd.f32 %v769, %v786
        %v809 = vadd.f32 %v770, %v786
        %v810 = vadd.f32 %v771, %v786
        %v811 = vadd.f32 %v772, %v786
        %v812 = vadd.f32 %v773, %v786
        %v813 = vadd.f32 %v774, %v786
        %v814 = vadd.f32 %v775, %v786
        %v815 = vadd.f32 %v776, %v786
        %v816 = vadd.f32 %v777, %v786
        %v817 = vadd.f32 %v778, %v786
        %v818 = vadd.f32 %v779, %v786
        %v819 = vadd.f32 %v780, %v786
        %vm820 = vcmp.ge.f32.partialorder %v788, 0.0
        %vm821 = vcmp.ge.f32.partialorder %v789, 0.0
        %vm822 = vcmp.ge.f32.partialorder %v790, 0.0
        %vm823 = vcmp.ge.f32.partialorder %v791, 0.0
        %vm824 = vcmp.ge.f32.partialorder %v792, 0.0
        %vm825 = vcmp.ge.f32.partialorder %v793, 0.0
        %vm826 = vcmp.ge.f32.partialorder %v794, 0.0
        %vm827 = vcmp.ge.f32.partialorder %v795, 0.0
        %vm828 = vcmp.ge.f32.partialorder %v796, 0.0
        %vm829 = vcmp.ge.f32.partialorder %v797, 0.0
        %vm830 = vcmp.ge.f32.partialorder %v798, 0.0
        %vm831 = vcmp.ge.f32.partialorder %v799, 0.0
        %vm832 = vcmp.ge.f32.partialorder %v800, 0.0
        %vm833 = vcmp.ge.f32.partialorder %v801, 0.0
        %vm834 = vcmp.ge.f32.partialorder %v802, 0.0
        %vm835 = vcmp.ge.f32.partialorder %v803, 0.0
        %vm836 = vcmp.ge.f32.partialorder %v804, 0.0
        %vm837 = vcmp.ge.f32.partialorder %v805, 0.0
        %vm838 = vcmp.ge.f32.partialorder %v806, 0.0
        %vm839 = vcmp.ge.f32.partialorder %v807, 0.0
        %vm840 = vcmp.ge.f32.partialorder %v808, 0.0
        %vm841 = vcmp.ge.f32.partialorder %v809, 0.0
        %vm842 = vcmp.ge.f32.partialorder %v810, 0.0
        %vm843 = vcmp.ge.f32.partialorder %v811, 0.0
        %vm844 = vcmp.ge.f32.partialorder %v812, 0.0
        %vm845 = vcmp.ge.f32.partialorder %v813, 0.0
        %vm846 = vcmp.ge.f32.partialorder %v814, 0.0
        %vm847 = vcmp.ge.f32.partialorder %v815, 0.0
        %vm848 = vcmp.ge.f32.partialorder %v816, 0.0
        %vm849 = vcmp.ge.f32.partialorder %v817, 0.0
        %vm850 = vcmp.ge.f32.partialorder %v818, 0.0
        %vm851 = vcmp.ge.f32.partialorder %v819, 0.0
        %v852 = vmul.f32 %v788, 0.2
        %v853 = vmul.f32 %v789, 0.2
        %v854 = vmul.f32 %v790, 0.2
        %v855 = vmul.f32 %v791, 0.2
        %v856 = vmul.f32 %v792, 0.2
        %v857 = vmul.f32 %v793, 0.2
        %v858 = vmul.f32 %v794, 0.2
        %v859 = vmul.f32 %v795, 0.2
        %v860 = vmul.f32 %v796, 0.2
        %v861 = vmul.f32 %v797, 0.2
        %v862 = vmul.f32 %v798, 0.2
        %v863 = vmul.f32 %v799, 0.2
        %v864 = vmul.f32 %v800, 0.2
        %v865 = vmul.f32 %v801, 0.2
        %v866 = vmul.f32 %v802, 0.2
        %v867 = vmul.f32 %v803, 0.2
        %v868 = vmul.f32 %v804, 0.2
        %v869 = vmul.f32 %v805, 0.2
        %v870 = vmul.f32 %v806, 0.2
        %v871 = vmul.f32 %v807, 0.2
        %v872 = vmul.f32 %v808, 0.2
        %v873 = vmul.f32 %v809, 0.2
        %v874 = vmul.f32 %v810, 0.2
        %v875 = vmul.f32 %v811, 0.2
        %v876 = vmul.f32 %v812, 0.2
        %v877 = vmul.f32 %v813, 0.2
        %v878 = vmul.f32 %v814, 0.2
        %v879 = vmul.f32 %v815, 0.2
        %v880 = vmul.f32 %v816, 0.2
        %v881 = vmul.f32 %v817, 0.2
        %v882 = vmul.f32 %v818, 0.2
        %v883 = vmul.f32 %v819, 0.2
        %v884 = vsel %vm820, %v788, %v852
        %v885 = vsel %vm821, %v789, %v853
        %v886 = vsel %vm822, %v790, %v854
        %v887 = vsel %vm823, %v791, %v855
        %v888 = vsel %vm824, %v792, %v856
        %v889 = vsel %vm825, %v793, %v857
        %v890 = vsel %vm826, %v794, %v858
        %v891 = vsel %vm827, %v795, %v859
        %v892 = vsel %vm828, %v796, %v860
        %v893 = vsel %vm829, %v797, %v861
        %v894 = vsel %vm830, %v798, %v862
        %v895 = vsel %vm831, %v799, %v863
        %v896 = vsel %vm832, %v800, %v864
        %v897 = vsel %vm833, %v801, %v865
        %v898 = vsel %vm834, %v802, %v866
        %v899 = vsel %vm835, %v803, %v867
        %v900 = vsel %vm836, %v804, %v868
        %v901 = vsel %vm837, %v805, %v869
        %v902 = vsel %vm838, %v806, %v870
        %v903 = vsel %vm839, %v807, %v871
        %v904 = vsel %vm840, %v808, %v872
        %v905 = vsel %vm841, %v809, %v873
        %v906 = vsel %vm842, %v810, %v874
        %v907 = vsel %vm843, %v811, %v875
        %v908 = vsel %vm844, %v812, %v876
        %v909 = vsel %vm845, %v813, %v877
        %v910 = vsel %vm846, %v814, %v878
        %v911 = vsel %vm847, %v815, %v879
        %v912 = vsel %vm848, %v816, %v880
        %v913 = vsel %vm849, %v817, %v881
        %v914 = vsel %vm850, %v818, %v882
        %v915 = vsel %vm851, %v819, %v883
        %v916 = vpack.c.bf16 %v885, %v884
        %v917 = vpack.c.bf16 %v887, %v886
        %v918 = vpack.c.bf16 %v889, %v888
        %v919 = vpack.c.bf16 %v891, %v890
        %v920 = vpack.c.bf16 %v893, %v892
        %v921 = vpack.c.bf16 %v895, %v894
        %v922 = vpack.c.bf16 %v897, %v896
        %v923 = vpack.c.bf16 %v899, %v898
        %v924 = vpack.c.bf16 %v901, %v900
        %v925 = vpack.c.bf16 %v903, %v902
        %v926 = vpack.c.bf16 %v905, %v904
        %v927 = vpack.c.bf16 %v907, %v906
        %v928 = vpack.c.bf16 %v909, %v908
        %v929 = vpack.c.bf16 %v911, %v910
        %v930 = vpack.c.bf16 %v913, %v912
        %v931 = vpack.c.bf16 %v915, %v914
        %v948 = vunpack.c.l.b16 %v916
        %v949 = vunpack.c.h.b16 %v916
        %v950 = vunpack.c.l.b16 %v917
        %v951 = vunpack.c.h.b16 %v917
        %v952 = vunpack.c.l.b16 %v918
        %v953 = vunpack.c.h.b16 %v918
        %v954 = vunpack.c.l.b16 %v919
        %v955 = vunpack.c.h.b16 %v919
        %v956 = vunpack.c.l.b16 %v920
        %v957 = vunpack.c.h.b16 %v920
        %v958 = vunpack.c.l.b16 %v921
        %v959 = vunpack.c.h.b16 %v921
        %v960 = vunpack.c.l.b16 %v922
        %v961 = vunpack.c.h.b16 %v922
        %v962 = vunpack.c.l.b16 %v923
        %v963 = vunpack.c.h.b16 %v923
        %v964 = vunpack.c.l.b16 %v924
        %v965 = vunpack.c.h.b16 %v924
        %v966 = vunpack.c.l.b16 %v925
        %v967 = vunpack.c.h.b16 %v925
        %v968 = vunpack.c.l.b16 %v926
        %v969 = vunpack.c.h.b16 %v926
        %v970 = vunpack.c.l.b16 %v927
        %v971 = vunpack.c.h.b16 %v927
        %v972 = vunpack.c.l.b16 %v928
        %v973 = vunpack.c.h.b16 %v928
        %v974 = vunpack.c.l.b16 %v929
        %v975 = vunpack.c.h.b16 %v929
        %v976 = vunpack.c.l.b16 %v930
        %v977 = vunpack.c.h.b16 %v930
        %v978 = vunpack.c.l.b16 %v931
        %v979 = vunpack.c.h.b16 %v931
        %v980 = vpack.c.b16 %v948, %v948
        %v981 = vpack.c.b16 %v949, %v949
        %v982 = vpack.c.b16 %v950, %v950
        %v983 = vpack.c.b16 %v951, %v951
        %v984 = vpack.c.b16 %v952, %v952
        %v985 = vpack.c.b16 %v953, %v953
        %v986 = vpack.c.b16 %v954, %v954
        %v987 = vpack.c.b16 %v955, %v955
        %v988 = vpack.c.b16 %v956, %v956
        %v989 = vpack.c.b16 %v957, %v957
        %v990 = vpack.c.b16 %v958, %v958
        %v991 = vpack.c.b16 %v959, %v959
        %v992 = vpack.c.b16 %v960, %v960
        %v993 = vpack.c.b16 %v961, %v961
        %v994 = vpack.c.b16 %v962, %v962
        %v995 = vpack.c.b16 %v963, %v963
        %v996 = vpack.c.b16 %v964, %v964
        %v997 = vpack.c.b16 %v965, %v965
        %v998 = vpack.c.b16 %v966, %v966
        %v999 = vpack.c.b16 %v967, %v967
        %v1000 = vpack.c.b16 %v968, %v968
        %v1001 = vpack.c.b16 %v969, %v969
        %v1002 = vpack.c.b16 %v970, %v970
        %v1003 = vpack.c.b16 %v971, %v971
        %v1004 = vpack.c.b16 %v972, %v972
        %v1005 = vpack.c.b16 %v973, %v973
        %v1006 = vpack.c.b16 %v974, %v974
        %v1007 = vpack.c.b16 %v975, %v975
        %v1008 = vpack.c.b16 %v976, %v976
        %v1009 = vpack.c.b16 %v977, %v977
        %v1010 = vpack.c.b16 %v978, %v978
        %v1011 = vpack.c.b16 %v979, %v979
        %1044 = vst [vmem:[%s257] sm:$0xf] %v980
        %1045 = vst [vmem:[%s257 + $0x4] sm:$0xf] %v981
        %1046 = vst [vmem:[%s257 + $0x8] sm:$0xf] %v982
        %1047 = vst [vmem:[%s257 + $0xc] sm:$0xf] %v983
        %1048 = vst [vmem:[%s257 + $0x10] sm:$0xf] %v984
        %1049 = vst [vmem:[%s257 + $0x14] sm:$0xf] %v985
        %1050 = vst [vmem:[%s257 + $0x18] sm:$0xf] %v986
        %1051 = vst [vmem:[%s257 + $0x1c] sm:$0xf] %v987
        %1052 = vst [vmem:[%s257 + $0x20] sm:$0xf] %v988
        %1053 = vst [vmem:[%s257 + $0x24] sm:$0xf] %v989
        %1054 = vst [vmem:[%s257 + $0x28] sm:$0xf] %v990
        %1055 = vst [vmem:[%s257 + $0x2c] sm:$0xf] %v991
        %1056 = vst [vmem:[%s257 + $0x30] sm:$0xf] %v992
        %1057 = vst [vmem:[%s257 + $0x34] sm:$0xf] %v993
        %1058 = vst [vmem:[%s257 + $0x38] sm:$0xf] %v994
        %1059 = vst [vmem:[%s257 + $0x3c] sm:$0xf] %v995
        %1060 = vst [vmem:[%s257 + $0x40] sm:$0xf] %v996
        %1061 = vst [vmem:[%s257 + $0x44] sm:$0xf] %v997
        %1062 = vst [vmem:[%s257 + $0x48] sm:$0xf] %v998
        %1063 = vst [vmem:[%s257 + $0x4c] sm:$0xf] %v999
        %1064 = vst [vmem:[%s257 + $0x50] sm:$0xf] %v1000
        %1065 = vst [vmem:[%s257 + $0x54] sm:$0xf] %v1001
        %1066 = vst [vmem:[%s257 + $0x58] sm:$0xf] %v1002
        %1067 = vst [vmem:[%s257 + $0x5c] sm:$0xf] %v1003
        %1068 = vst [vmem:[%s257 + $0x60] sm:$0xf] %v1004
        %1069 = vst [vmem:[%s257 + $0x64] sm:$0xf] %v1005
        %1070 = vst [vmem:[%s257 + $0x68] sm:$0xf] %v1006
        %1071 = vst [vmem:[%s257 + $0x6c] sm:$0xf] %v1007
        %1072 = vst [vmem:[%s257 + $0x70] sm:$0xf] %v1008
        %1073 = vst [vmem:[%s257 + $0x74] sm:$0xf] %v1009
        %1074 = vst [vmem:[%s257 + $0x78] sm:$0xf] %v1010
        %1075 = vst [vmem:[%s257 + $0x7c] sm:$0xf] %v1011
      $region40: #{fc_discriminator_forward.5} parent=31 // pred_fallthru
        _
      %s1076 = smul.u32 32, %s19
      %p1077 = scmp.lt.s32.totalorder %s1076, 63
      %s1078 = scalar_select %p1077, %s1076, 63
      %p1079 = scmp.lt.s32.totalorder %s20, 0
      %s1080 = scalar_select %p1079, %s20, 0
      %s1081 = sadd.s32 %s1080, %s1078
      %s1082 = smul.addr %s1081, 4
      %s1083 = scalar_lea.vmem %s3, %s1082
      // Predicated region
      $region41: #{fc_discriminator_forward.5} parent=31 // pred_check
        %p1084 = pneg %p135
      $region42: #{fc_discriminator_forward.5} parent=31 // pred_check_branch
        %1086 = sbr.rel (%p1084) target = $region44
      $region43: #{fc_discriminator_forward.5} parent=31 // pred_region
        %s1087 = smul.u32 32, %s19
      $region44: #{fc_discriminator_forward.5} parent=31 // pred_fallthru
        _
    $region32: #{fc_discriminator_forward.5} parent=5 // pred_fallthru
      _
    %p1088 = scmp.le.s32.totalorder 2, %s9
    // Predicated region
    $region45: #{fc_discriminator_forward.5} parent=5 // pred_check
      %p1089 = pneg %p1088
    $region46: #{fc_discriminator_forward.5} parent=5 // pred_check_branch
      %1091 = sbr.rel (%p1089) target = $region48
    $region47: #{fc_discriminator_forward.5} parent=5 // pred_region
      %s1092 = ssub.s32 %s9, 2
      // Predicated region
      $region49: #{fc_discriminator_forward.5} parent=47 // pred_check
        %p1093 = pneg %p141
      $region50: #{fc_discriminator_forward.5} parent=47 // pred_check_branch
        %1095 = sbr.rel (%p1093) target = $region52
      $region51: #{fc_discriminator_forward.5} parent=47 // pred_region
        %s1096 = smul.u32 32, %s22
        %p1097 = scmp.lt.s32.totalorder %s1096, 63
        %s1098 = scalar_select %p1097, %s1096, 63
        %p1099 = scmp.lt.s32.totalorder %s23, 0
        %s1100 = scalar_select %p1099, %s23, 0
        %s1101 = sadd.s32 %s1100, %s1098
        %s1102 = smul.addr %s1101, 4
        %s1103 = scalar_lea.vmem %s3, %s1102
      $region52: #{fc_discriminator_forward.5} parent=47 // pred_fallthru
        _
    $region48: #{fc_discriminator_forward.5} parent=5 // pred_fallthru
      _
  $region6: #{fc_discriminator_forward.5} parent=0 // loop_footer
    %s13 = sadd.s32 1, %s9
  $region7: #{fc_discriminator_forward.5} parent=0 // loop_footer_branch
    %8 = sbr.rel target = $region3
  $region8: #{fc_discriminator_forward.5} parent=0 // loop_exit
    _

// kernel: fc_discriminator_forward.6
$region0: #{fc_discriminator_forward.6}
  #allocation0 [shape = 'u32[]', space=smem, size = 0x4, offset = 0x4, fixed_abs, tag = 'smem constant byte address 0x4 - core index']
  #allocation1 [shape = 'u32[144,128]{1,0:T(1,128)}', space=vmem, size = 0x12000, scoped, tag = 'internal scratch']
  #allocation2 [shape = 'f32[128,128]{1,0:T(8,128)}', space=vmem, size = 0x10000, scoped, tag = 'scratch operand']
  %s0 = inlined_call_operand.vmem [shape: bf16[128,2048], index: 0, kind: input, shape index: {}]
  %s1 = inlined_call_operand.vmem [shape: bf16[2048,128], index: 1, kind: input, shape index: {}]
  %s2 = inlined_call_operand.vmem [shape: f32[1,128], index: 2, kind: input, shape index: {}]
  %s3 = inlined_call_operand.vmem [shape: bf16[128,128], index: 3, kind: output, shape index: {}]
  %s4 = sld [smem:[#allocation0]]
  $region30: #{fc_discriminator_forward.6} parent=0
    _
  %s6 = ssub.s32 1, %s4
  %s7 = scalar_select 0, %s6, %s4
  // Predicated region
  $region2: #{fc_discriminator_forward.6} parent=0 // pred_check
    _
  $region3: #{fc_discriminator_forward.6} parent=0 // pred_check_branch
    %9 = sbr.rel (0) target = $region5
  $region4: #{fc_discriminator_forward.6} parent=0 // pred_region
    _
  $region5: #{fc_discriminator_forward.6} parent=0 // pred_fallthru
    _
  // Predicated region
  $region6: #{fc_discriminator_forward.6} parent=0 // pred_check
    _
  $region7: #{fc_discriminator_forward.6} parent=0 // pred_check_branch
    %11 = sbr.rel (0) target = $region9
  $region8: #{fc_discriminator_forward.6} parent=0 // pred_region
    _
  $region9: #{fc_discriminator_forward.6} parent=0 // pred_fallthru
    _
  // Predicated region
  $region10: #{fc_discriminator_forward.6} parent=0 // pred_check
    _
  $region11: #{fc_discriminator_forward.6} parent=0 // pred_check_branch
    %13 = sbr.rel (0) target = $region13
  $region12: #{fc_discriminator_forward.6} parent=0 // pred_region
    _
  $region13: #{fc_discriminator_forward.6} parent=0 // pred_fallthru
    _
  %p15 = scmp.eq.s32.totalorder 0, 0
  // Predicated region
  $region14: #{fc_discriminator_forward.6} parent=0 // pred_check
    %p16 = pneg %p15
  $region15: #{fc_discriminator_forward.6} parent=0 // pred_check_branch
    %18 = sbr.rel (%p16) target = $region17
  $region16: #{fc_discriminator_forward.6} parent=0 // pred_region
    %19 = vst [vmem:[#allocation2] sm:$0xff] 0.0
    %20 = vst [vmem:[#allocation2 + $0x8] sm:$0xff] 0.0
    %21 = vst [vmem:[#allocation2 + $0x10] sm:$0xff] 0.0
    %22 = vst [vmem:[#allocation2 + $0x18] sm:$0xff] 0.0
    %23 = vst [vmem:[#allocation2 + $0x20] sm:$0xff] 0.0
    %24 = vst [vmem:[#allocation2 + $0x28] sm:$0xff] 0.0
    %25 = vst [vmem:[#allocation2 + $0x30] sm:$0xff] 0.0
    %26 = vst [vmem:[#allocation2 + $0x38] sm:$0xff] 0.0
    %27 = vst [vmem:[#allocation2 + $0x40] sm:$0xff] 0.0
    %28 = vst [vmem:[#allocation2 + $0x48] sm:$0xff] 0.0
    %29 = vst [vmem:[#allocation2 + $0x50] sm:$0xff] 0.0
    %30 = vst [vmem:[#allocation2 + $0x58] sm:$0xff] 0.0
    %31 = vst [vmem:[#allocation2 + $0x60] sm:$0xff] 0.0
    %32 = vst [vmem:[#allocation2 + $0x68] sm:$0xff] 0.0
    %33 = vst [vmem:[#allocation2 + $0x70] sm:$0xff] 0.0
    %34 = vst [vmem:[#allocation2 + $0x78] sm:$0xff] 0.0
  $region17: #{fc_discriminator_forward.6} parent=0 // pred_fallthru
    _
  %v35 = vld [vmem:[#allocation2] sm:$0xff]
  %v36 = vld [vmem:[#allocation2 + $0x8] sm:$0xff]
  %v37 = vld [vmem:[#allocation2 + $0x10] sm:$0xff]
  %v38 = vld [vmem:[#allocation2 + $0x18] sm:$0xff]
  %v39 = vld [vmem:[#allocation2 + $0x20] sm:$0xff]
  %v40 = vld [vmem:[#allocation2 + $0x28] sm:$0xff]
  %v41 = vld [vmem:[#allocation2 + $0x30] sm:$0xff]
  %v42 = vld [vmem:[#allocation2 + $0x38] sm:$0xff]
  %v43 = vld [vmem:[#allocation2 + $0x40] sm:$0xff]
  %v44 = vld [vmem:[#allocation2 + $0x48] sm:$0xff]
  %v45 = vld [vmem:[#allocation2 + $0x50] sm:$0xff]
  %v46 = vld [vmem:[#allocation2 + $0x58] sm:$0xff]
  %v47 = vld [vmem:[#allocation2 + $0x60] sm:$0xff]
  %v48 = vld [vmem:[#allocation2 + $0x68] sm:$0xff]
  %v49 = vld [vmem:[#allocation2 + $0x70] sm:$0xff]
  %v50 = vld [vmem:[#allocation2 + $0x78] sm:$0xff]
  %v51 = vld [vmem:[%s0] sm:$0xff]
  %v52 = vld [vmem:[%s0 + $0x8] sm:$0xff]
  %v53 = vld [vmem:[%s0 + $0x10] sm:$0xff]
  %v54 = vld [vmem:[%s0 + $0x18] sm:$0xff]
  %v55 = vld [vmem:[%s0 + $0x20] sm:$0xff]
  %v56 = vld [vmem:[%s0 + $0x28] sm:$0xff]
  %v57 = vld [vmem:[%s0 + $0x30] sm:$0xff]
  %v58 = vld [vmem:[%s0 + $0x38] sm:$0xff]
  %v59 = vld [vmem:[%s0 + $0x40] sm:$0xff]
  %v60 = vld [vmem:[%s0 + $0x48] sm:$0xff]
  %v61 = vld [vmem:[%s0 + $0x50] sm:$0xff]
  %v62 = vld [vmem:[%s0 + $0x58] sm:$0xff]
  %v63 = vld [vmem:[%s0 + $0x60] sm:$0xff]
  %v64 = vld [vmem:[%s0 + $0x68] sm:$0xff]
  %v65 = vld [vmem:[%s0 + $0x70] sm:$0xff]
  %v66 = vld [vmem:[%s0 + $0x78] sm:$0xff]
  %v67 = vld [vmem:[%s0 + $0x80] sm:$0xff]
  %v68 = vld [vmem:[%s0 + $0x88] sm:$0xff]
  %v69 = vld [vmem:[%s0 + $0x90] sm:$0xff]
  %v70 = vld [vmem:[%s0 + $0x98] sm:$0xff]
  %v71 = vld [vmem:[%s0 + $0xa0] sm:$0xff]
  %v72 = vld [vmem:[%s0 + $0xa8] sm:$0xff]
  %v73 = vld [vmem:[%s0 + $0xb0] sm:$0xff]
  %v74 = vld [vmem:[%s0 + $0xb8] sm:$0xff]
  %v75 = vld [vmem:[%s0 + $0xc0] sm:$0xff]
  %v76 = vld [vmem:[%s0 + $0xc8] sm:$0xff]
  %v77 = vld [vmem:[%s0 + $0xd0] sm:$0xff]
  %v78 = vld [vmem:[%s0 + $0xd8] sm:$0xff]
  %v79 = vld [vmem:[%s0 + $0xe0] sm:$0xff]
  %v80 = vld [vmem:[%s0 + $0xe8] sm:$0xff]
  %v81 = vld [vmem:[%s0 + $0xf0] sm:$0xff]
  %v82 = vld [vmem:[%s0 + $0xf8] sm:$0xff]
  %v83 = vld [vmem:[%s0 + $0x100] sm:$0xff]
  %v84 = vld [vmem:[%s0 + $0x108] sm:$0xff]
  %v85 = vld [vmem:[%s0 + $0x110] sm:$0xff]
  %v86 = vld [vmem:[%s0 + $0x118] sm:$0xff]
  %v87 = vld [vmem:[%s0 + $0x120] sm:$0xff]
  %v88 = vld [vmem:[%s0 + $0x128] sm:$0xff]
  %v89 = vld [vmem:[%s0 + $0x130] sm:$0xff]
  %v90 = vld [vmem:[%s0 + $0x138] sm:$0xff]
  %v91 = vld [vmem:[%s0 + $0x140] sm:$0xff]
  %v92 = vld [vmem:[%s0 + $0x148] sm:$0xff]
  %v93 = vld [vmem:[%s0 + $0x150] sm:$0xff]
  %v94 = vld [vmem:[%s0 + $0x158] sm:$0xff]
  %v95 = vld [vmem:[%s0 + $0x160] sm:$0xff]
  %v96 = vld [vmem:[%s0 + $0x168] sm:$0xff]
  %v97 = vld [vmem:[%s0 + $0x170] sm:$0xff]
  %v98 = vld [vmem:[%s0 + $0x178] sm:$0xff]
  %v99 = vld [vmem:[%s0 + $0x180] sm:$0xff]
  %v100 = vld [vmem:[%s0 + $0x188] sm:$0xff]
  %v101 = vld [vmem:[%s0 + $0x190] sm:$0xff]
  %v102 = vld [vmem:[%s0 + $0x198] sm:$0xff]
  %v103 = vld [vmem:[%s0 + $0x1a0] sm:$0xff]
  %v104 = vld [vmem:[%s0 + $0x1a8] sm:$0xff]
  %v105 = vld [vmem:[%s0 + $0x1b0] sm:$0xff]
  %v106 = vld [vmem:[%s0 + $0x1b8] sm:$0xff]
  %v107 = vld [vmem:[%s0 + $0x1c0] sm:$0xff]
  %v108 = vld [vmem:[%s0 + $0x1c8] sm:$0xff]
  %v109 = vld [vmem:[%s0 + $0x1d0] sm:$0xff]
  %v110 = vld [vmem:[%s0 + $0x1d8] sm:$0xff]
  %v111 = vld [vmem:[%s0 + $0x1e0] sm:$0xff]
  %v112 = vld [vmem:[%s0 + $0x1e8] sm:$0xff]
  %v113 = vld [vmem:[%s0 + $0x1f0] sm:$0xff]
  %v114 = vld [vmem:[%s0 + $0x1f8] sm:$0xff]
  %v115 = vld [vmem:[%s0 + $0x200] sm:$0xff]
  %v116 = vld [vmem:[%s0 + $0x208] sm:$0xff]
  %v117 = vld [vmem:[%s0 + $0x210] sm:$0xff]
  %v118 = vld [vmem:[%s0 + $0x218] sm:$0xff]
  %v119 = vld [vmem:[%s0 + $0x220] sm:$0xff]
  %v120 = vld [vmem:[%s0 + $0x228] sm:$0xff]
  %v121 = vld [vmem:[%s0 + $0x230] sm:$0xff]
  %v122 = vld [vmem:[%s0 + $0x238] sm:$0xff]
  %v123 = vld [vmem:[%s0 + $0x240] sm:$0xff]
  %v124 = vld [vmem:[%s0 + $0x248] sm:$0xff]
  %v125 = vld [vmem:[%s0 + $0x250] sm:$0xff]
  %v126 = vld [vmem:[%s0 + $0x258] sm:$0xff]
  %v127 = vld [vmem:[%s0 + $0x260] sm:$0xff]
  %v128 = vld [vmem:[%s0 + $0x268] sm:$0xff]
  %v129 = vld [vmem:[%s0 + $0x270] sm:$0xff]
  %v130 = vld [vmem:[%s0 + $0x278] sm:$0xff]
  %v131 = vld [vmem:[%s0 + $0x280] sm:$0xff]
  %v132 = vld [vmem:[%s0 + $0x288] sm:$0xff]
  %v133 = vld [vmem:[%s0 + $0x290] sm:$0xff]
  %v134 = vld [vmem:[%s0 + $0x298] sm:$0xff]
  %v135 = vld [vmem:[%s0 + $0x2a0] sm:$0xff]
  %v136 = vld [vmem:[%s0 + $0x2a8] sm:$0xff]
  %v137 = vld [vmem:[%s0 + $0x2b0] sm:$0xff]
  %v138 = vld [vmem:[%s0 + $0x2b8] sm:$0xff]
  %v139 = vld [vmem:[%s0 + $0x2c0] sm:$0xff]
  %v140 = vld [vmem:[%s0 + $0x2c8] sm:$0xff]
  %v141 = vld [vmem:[%s0 + $0x2d0] sm:$0xff]
  %v142 = vld [vmem:[%s0 + $0x2d8] sm:$0xff]
  %v143 = vld [vmem:[%s0 + $0x2e0] sm:$0xff]
  %v144 = vld [vmem:[%s0 + $0x2e8] sm:$0xff]
  %v145 = vld [vmem:[%s0 + $0x2f0] sm:$0xff]
  %v146 = vld [vmem:[%s0 + $0x2f8] sm:$0xff]
  %v147 = vld [vmem:[%s0 + $0x300] sm:$0xff]
  %v148 = vld [vmem:[%s0 + $0x308] sm:$0xff]
  %v149 = vld [vmem:[%s0 + $0x310] sm:$0xff]
  %v150 = vld [vmem:[%s0 + $0x318] sm:$0xff]
  %v151 = vld [vmem:[%s0 + $0x320] sm:$0xff]
  %v152 = vld [vmem:[%s0 + $0x328] sm:$0xff]
  %v153 = vld [vmem:[%s0 + $0x330] sm:$0xff]
  %v154 = vld [vmem:[%s0 + $0x338] sm:$0xff]
  %v155 = vld [vmem:[%s0 + $0x340] sm:$0xff]
  %v156 = vld [vmem:[%s0 + $0x348] sm:$0xff]
  %v157 = vld [vmem:[%s0 + $0x350] sm:$0xff]
  %v158 = vld [vmem:[%s0 + $0x358] sm:$0xff]
  %v159 = vld [vmem:[%s0 + $0x360] sm:$0xff]
  %v160 = vld [vmem:[%s0 + $0x368] sm:$0xff]
  %v161 = vld [vmem:[%s0 + $0x370] sm:$0xff]
  %v162 = vld [vmem:[%s0 + $0x378] sm:$0xff]
  %v163 = vld [vmem:[%s0 + $0x380] sm:$0xff]
  %v164 = vld [vmem:[%s0 + $0x388] sm:$0xff]
  %v165 = vld [vmem:[%s0 + $0x390] sm:$0xff]
  %v166 = vld [vmem:[%s0 + $0x398] sm:$0xff]
  %v167 = vld [vmem:[%s0 + $0x3a0] sm:$0xff]
  %v168 = vld [vmem:[%s0 + $0x3a8] sm:$0xff]
  %v169 = vld [vmem:[%s0 + $0x3b0] sm:$0xff]
  %v170 = vld [vmem:[%s0 + $0x3b8] sm:$0xff]
  %v171 = vld [vmem:[%s0 + $0x3c0] sm:$0xff]
  %v172 = vld [vmem:[%s0 + $0x3c8] sm:$0xff]
  %v173 = vld [vmem:[%s0 + $0x3d0] sm:$0xff]
  %v174 = vld [vmem:[%s0 + $0x3d8] sm:$0xff]
  %v175 = vld [vmem:[%s0 + $0x3e0] sm:$0xff]
  %v176 = vld [vmem:[%s0 + $0x3e8] sm:$0xff]
  %v177 = vld [vmem:[%s0 + $0x3f0] sm:$0xff]
  %v178 = vld [vmem:[%s0 + $0x3f8] sm:$0xff]
  %v179 = vld [vmem:[%s1] sm:$0xf]
  %v180 = vld [vmem:[%s1 + $0x4] sm:$0xf]
  %v181 = vld [vmem:[%s1 + $0x8] sm:$0xf]
  %v182 = vld [vmem:[%s1 + $0xc] sm:$0xf]
  %v183 = vld [vmem:[%s1 + $0x10] sm:$0xf]
  %v184 = vld [vmem:[%s1 + $0x14] sm:$0xf]
  %v185 = vld [vmem:[%s1 + $0x18] sm:$0xf]
  %v186 = vld [vmem:[%s1 + $0x1c] sm:$0xf]
  %v187 = vld [vmem:[%s1 + $0x20] sm:$0xf]
  %v188 = vld [vmem:[%s1 + $0x24] sm:$0xf]
  %v189 = vld [vmem:[%s1 + $0x28] sm:$0xf]
  %v190 = vld [vmem:[%s1 + $0x2c] sm:$0xf]
  %v191 = vld [vmem:[%s1 + $0x30] sm:$0xf]
  %v192 = vld [vmem:[%s1 + $0x34] sm:$0xf]
  %v193 = vld [vmem:[%s1 + $0x38] sm:$0xf]
  %v194 = vld [vmem:[%s1 + $0x3c] sm:$0xf]
  %v195 = vld [vmem:[%s1 + $0x40] sm:$0xf]
  %v196 = vld [vmem:[%s1 + $0x44] sm:$0xf]
  %v197 = vld [vmem:[%s1 + $0x48] sm:$0xf]
  %v198 = vld [vmem:[%s1 + $0x4c] sm:$0xf]
  %v199 = vld [vmem:[%s1 + $0x50] sm:$0xf]
  %v200 = vld [vmem:[%s1 + $0x54] sm:$0xf]
  %v201 = vld [vmem:[%s1 + $0x58] sm:$0xf]
  %v202 = vld [vmem:[%s1 + $0x5c] sm:$0xf]
  %v203 = vld [vmem:[%s1 + $0x60] sm:$0xf]
  %v204 = vld [vmem:[%s1 + $0x64] sm:$0xf]
  %v205 = vld [vmem:[%s1 + $0x68] sm:$0xf]
  %v206 = vld [vmem:[%s1 + $0x6c] sm:$0xf]
  %v207 = vld [vmem:[%s1 + $0x70] sm:$0xf]
  %v208 = vld [vmem:[%s1 + $0x74] sm:$0xf]
  %v209 = vld [vmem:[%s1 + $0x78] sm:$0xf]
  %v210 = vld [vmem:[%s1 + $0x7c] sm:$0xf]
  %v211 = vld [vmem:[%s1 + $0x80] sm:$0xf]
  %v212 = vld [vmem:[%s1 + $0x84] sm:$0xf]
  %v213 = vld [vmem:[%s1 + $0x88] sm:$0xf]
  %v214 = vld [vmem:[%s1 + $0x8c] sm:$0xf]
  %v215 = vld [vmem:[%s1 + $0x90] sm:$0xf]
  %v216 = vld [vmem:[%s1 + $0x94] sm:$0xf]
  %v217 = vld [vmem:[%s1 + $0x98] sm:$0xf]
  %v218 = vld [vmem:[%s1 + $0x9c] sm:$0xf]
  %v219 = vld [vmem:[%s1 + $0xa0] sm:$0xf]
  %v220 = vld [vmem:[%s1 + $0xa4] sm:$0xf]
  %v221 = vld [vmem:[%s1 + $0xa8] sm:$0xf]
  %v222 = vld [vmem:[%s1 + $0xac] sm:$0xf]
  %v223 = vld [vmem:[%s1 + $0xb0] sm:$0xf]
  %v224 = vld [vmem:[%s1 + $0xb4] sm:$0xf]
  %v225 = vld [vmem:[%s1 + $0xb8] sm:$0xf]
  %v226 = vld [vmem:[%s1 + $0xbc] sm:$0xf]
  %v227 = vld [vmem:[%s1 + $0xc0] sm:$0xf]
  %v228 = vld [vmem:[%s1 + $0xc4] sm:$0xf]
  %v229 = vld [vmem:[%s1 + $0xc8] sm:$0xf]
  %v230 = vld [vmem:[%s1 + $0xcc] sm:$0xf]
  %v231 = vld [vmem:[%s1 + $0xd0] sm:$0xf]
  %v232 = vld [vmem:[%s1 + $0xd4] sm:$0xf]
  %v233 = vld [vmem:[%s1 + $0xd8] sm:$0xf]
  %v234 = vld [vmem:[%s1 + $0xdc] sm:$0xf]
  %v235 = vld [vmem:[%s1 + $0xe0] sm:$0xf]
  %v236 = vld [vmem:[%s1 + $0xe4] sm:$0xf]
  %v237 = vld [vmem:[%s1 + $0xe8] sm:$0xf]
  %v238 = vld [vmem:[%s1 + $0xec] sm:$0xf]
  %v239 = vld [vmem:[%s1 + $0xf0] sm:$0xf]
  %v240 = vld [vmem:[%s1 + $0xf4] sm:$0xf]
  %v241 = vld [vmem:[%s1 + $0xf8] sm:$0xf]
  %v242 = vld [vmem:[%s1 + $0xfc] sm:$0xf]
  %v243 = vld [vmem:[%s1 + $0x100] sm:$0xf]
  %v244 = vld [vmem:[%s1 + $0x104] sm:$0xf]
  %v245 = vld [vmem:[%s1 + $0x108] sm:$0xf]
  %v246 = vld [vmem:[%s1 + $0x10c] sm:$0xf]
  %v247 = vld [vmem:[%s1 + $0x110] sm:$0xf]
  %v248 = vld [vmem:[%s1 + $0x114] sm:$0xf]
  %v249 = vld [vmem:[%s1 + $0x118] sm:$0xf]
  %v250 = vld [vmem:[%s1 + $0x11c] sm:$0xf]
  %v251 = vld [vmem:[%s1 + $0x120] sm:$0xf]
  %v252 = vld [vmem:[%s1 + $0x124] sm:$0xf]
  %v253 = vld [vmem:[%s1 + $0x128] sm:$0xf]
  %v254 = vld [vmem:[%s1 + $0x12c] sm:$0xf]
  %v255 = vld [vmem:[%s1 + $0x130] sm:$0xf]
  %v256 = vld [vmem:[%s1 + $0x134] sm:$0xf]
  %v257 = vld [vmem:[%s1 + $0x138] sm:$0xf]
  %v258 = vld [vmem:[%s1 + $0x13c] sm:$0xf]
  %v259 = vld [vmem:[%s1 + $0x140] sm:$0xf]
  %v260 = vld [vmem:[%s1 + $0x144] sm:$0xf]
  %v261 = vld [vmem:[%s1 + $0x148] sm:$0xf]
  %v262 = vld [vmem:[%s1 + $0x14c] sm:$0xf]
  %v263 = vld [vmem:[%s1 + $0x150] sm:$0xf]
  %v264 = vld [vmem:[%s1 + $0x154] sm:$0xf]
  %v265 = vld [vmem:[%s1 + $0x158] sm:$0xf]
  %v266 = vld [vmem:[%s1 + $0x15c] sm:$0xf]
  %v267 = vld [vmem:[%s1 + $0x160] sm:$0xf]
  %v268 = vld [vmem:[%s1 + $0x164] sm:$0xf]
  %v269 = vld [vmem:[%s1 + $0x168] sm:$0xf]
  %v270 = vld [vmem:[%s1 + $0x16c] sm:$0xf]
  %v271 = vld [vmem:[%s1 + $0x170] sm:$0xf]
  %v272 = vld [vmem:[%s1 + $0x174] sm:$0xf]
  %v273 = vld [vmem:[%s1 + $0x178] sm:$0xf]
  %v274 = vld [vmem:[%s1 + $0x17c] sm:$0xf]
  %v275 = vld [vmem:[%s1 + $0x180] sm:$0xf]
  %v276 = vld [vmem:[%s1 + $0x184] sm:$0xf]
  %v277 = vld [vmem:[%s1 + $0x188] sm:$0xf]
  %v278 = vld [vmem:[%s1 + $0x18c] sm:$0xf]
  %v279 = vld [vmem:[%s1 + $0x190] sm:$0xf]
  %v280 = vld [vmem:[%s1 + $0x194] sm:$0xf]
  %v281 = vld [vmem:[%s1 + $0x198] sm:$0xf]
  %v282 = vld [vmem:[%s1 + $0x19c] sm:$0xf]
  %v283 = vld [vmem:[%s1 + $0x1a0] sm:$0xf]
  %v284 = vld [vmem:[%s1 + $0x1a4] sm:$0xf]
  %v285 = vld [vmem:[%s1 + $0x1a8] sm:$0xf]
  %v286 = vld [vmem:[%s1 + $0x1ac] sm:$0xf]
  %v287 = vld [vmem:[%s1 + $0x1b0] sm:$0xf]
  %v288 = vld [vmem:[%s1 + $0x1b4] sm:$0xf]
  %v289 = vld [vmem:[%s1 + $0x1b8] sm:$0xf]
  %v290 = vld [vmem:[%s1 + $0x1bc] sm:$0xf]
  %v291 = vld [vmem:[%s1 + $0x1c0] sm:$0xf]
  %v292 = vld [vmem:[%s1 + $0x1c4] sm:$0xf]
  %v293 = vld [vmem:[%s1 + $0x1c8] sm:$0xf]
  %v294 = vld [vmem:[%s1 + $0x1cc] sm:$0xf]
  %v295 = vld [vmem:[%s1 + $0x1d0] sm:$0xf]
  %v296 = vld [vmem:[%s1 + $0x1d4] sm:$0xf]
  %v297 = vld [vmem:[%s1 + $0x1d8] sm:$0xf]
  %v298 = vld [vmem:[%s1 + $0x1dc] sm:$0xf]
  %v299 = vld [vmem:[%s1 + $0x1e0] sm:$0xf]
  %v300 = vld [vmem:[%s1 + $0x1e4] sm:$0xf]
  %v301 = vld [vmem:[%s1 + $0x1e8] sm:$0xf]
  %v302 = vld [vmem:[%s1 + $0x1ec] sm:$0xf]
  %v303 = vld [vmem:[%s1 + $0x1f0] sm:$0xf]
  %v304 = vld [vmem:[%s1 + $0x1f4] sm:$0xf]
  %v305 = vld [vmem:[%s1 + $0x1f8] sm:$0xf]
  %v306 = vld [vmem:[%s1 + $0x1fc] sm:$0xf]
  %v307 = vld [vmem:[%s1 + $0x200] sm:$0xf]
  %v308 = vld [vmem:[%s1 + $0x204] sm:$0xf]
  %v309 = vld [vmem:[%s1 + $0x208] sm:$0xf]
  %v310 = vld [vmem:[%s1 + $0x20c] sm:$0xf]
  %v311 = vld [vmem:[%s1 + $0x210] sm:$0xf]
  %v312 = vld [vmem:[%s1 + $0x214] sm:$0xf]
  %v313 = vld [vmem:[%s1 + $0x218] sm:$0xf]
  %v314 = vld [vmem:[%s1 + $0x21c] sm:$0xf]
  %v315 = vld [vmem:[%s1 + $0x220] sm:$0xf]
  %v316 = vld [vmem:[%s1 + $0x224] sm:$0xf]
  %v317 = vld [vmem:[%s1 + $0x228] sm:$0xf]
  %v318 = vld [vmem:[%s1 + $0x22c] sm:$0xf]
  %v319 = vld [vmem:[%s1 + $0x230] sm:$0xf]
  %v320 = vld [vmem:[%s1 + $0x234] sm:$0xf]
  %v321 = vld [vmem:[%s1 + $0x238] sm:$0xf]
  %v322 = vld [vmem:[%s1 + $0x23c] sm:$0xf]
  %v323 = vld [vmem:[%s1 + $0x240] sm:$0xf]
  %v324 = vld [vmem:[%s1 + $0x244] sm:$0xf]
  %v325 = vld [vmem:[%s1 + $0x248] sm:$0xf]
  %v326 = vld [vmem:[%s1 + $0x24c] sm:$0xf]
  %v327 = vld [vmem:[%s1 + $0x250] sm:$0xf]
  %v328 = vld [vmem:[%s1 + $0x254] sm:$0xf]
  %v329 = vld [vmem:[%s1 + $0x258] sm:$0xf]
  %v330 = vld [vmem:[%s1 + $0x25c] sm:$0xf]
  %v331 = vld [vmem:[%s1 + $0x260] sm:$0xf]
  %v332 = vld [vmem:[%s1 + $0x264] sm:$0xf]
  %v333 = vld [vmem:[%s1 + $0x268] sm:$0xf]
  %v334 = vld [vmem:[%s1 + $0x26c] sm:$0xf]
  %v335 = vld [vmem:[%s1 + $0x270] sm:$0xf]
  %v336 = vld [vmem:[%s1 + $0x274] sm:$0xf]
  %v337 = vld [vmem:[%s1 + $0x278] sm:$0xf]
  %v338 = vld [vmem:[%s1 + $0x27c] sm:$0xf]
  %v339 = vld [vmem:[%s1 + $0x280] sm:$0xf]
  %v340 = vld [vmem:[%s1 + $0x284] sm:$0xf]
  %v341 = vld [vmem:[%s1 + $0x288] sm:$0xf]
  %v342 = vld [vmem:[%s1 + $0x28c] sm:$0xf]
  %v343 = vld [vmem:[%s1 + $0x290] sm:$0xf]
  %v344 = vld [vmem:[%s1 + $0x294] sm:$0xf]
  %v345 = vld [vmem:[%s1 + $0x298] sm:$0xf]
  %v346 = vld [vmem:[%s1 + $0x29c] sm:$0xf]
  %v347 = vld [vmem:[%s1 + $0x2a0] sm:$0xf]
  %v348 = vld [vmem:[%s1 + $0x2a4] sm:$0xf]
  %v349 = vld [vmem:[%s1 + $0x2a8] sm:$0xf]
  %v350 = vld [vmem:[%s1 + $0x2ac] sm:$0xf]
  %v351 = vld [vmem:[%s1 + $0x2b0] sm:$0xf]
  %v352 = vld [vmem:[%s1 + $0x2b4] sm:$0xf]
  %v353 = vld [vmem:[%s1 + $0x2b8] sm:$0xf]
  %v354 = vld [vmem:[%s1 + $0x2bc] sm:$0xf]
  %v355 = vld [vmem:[%s1 + $0x2c0] sm:$0xf]
  %v356 = vld [vmem:[%s1 + $0x2c4] sm:$0xf]
  %v357 = vld [vmem:[%s1 + $0x2c8] sm:$0xf]
  %v358 = vld [vmem:[%s1 + $0x2cc] sm:$0xf]
  %v359 = vld [vmem:[%s1 + $0x2d0] sm:$0xf]
  %v360 = vld [vmem:[%s1 + $0x2d4] sm:$0xf]
  %v361 = vld [vmem:[%s1 + $0x2d8] sm:$0xf]
  %v362 = vld [vmem:[%s1 + $0x2dc] sm:$0xf]
  %v363 = vld [vmem:[%s1 + $0x2e0] sm:$0xf]
  %v364 = vld [vmem:[%s1 + $0x2e4] sm:$0xf]
  %v365 = vld [vmem:[%s1 + $0x2e8] sm:$0xf]
  %v366 = vld [vmem:[%s1 + $0x2ec] sm:$0xf]
  %v367 = vld [vmem:[%s1 + $0x2f0] sm:$0xf]
  %v368 = vld [vmem:[%s1 + $0x2f4] sm:$0xf]
  %v369 = vld [vmem:[%s1 + $0x2f8] sm:$0xf]
  %v370 = vld [vmem:[%s1 + $0x2fc] sm:$0xf]
  %v371 = vld [vmem:[%s1 + $0x300] sm:$0xf]
  %v372 = vld [vmem:[%s1 + $0x304] sm:$0xf]
  %v373 = vld [vmem:[%s1 + $0x308] sm:$0xf]
  %v374 = vld [vmem:[%s1 + $0x30c] sm:$0xf]
  %v375 = vld [vmem:[%s1 + $0x310] sm:$0xf]
  %v376 = vld [vmem:[%s1 + $0x314] sm:$0xf]
  %v377 = vld [vmem:[%s1 + $0x318] sm:$0xf]
  %v378 = vld [vmem:[%s1 + $0x31c] sm:$0xf]
  %v379 = vld [vmem:[%s1 + $0x320] sm:$0xf]
  %v380 = vld [vmem:[%s1 + $0x324] sm:$0xf]
  %v381 = vld [vmem:[%s1 + $0x328] sm:$0xf]
  %v382 = vld [vmem:[%s1 + $0x32c] sm:$0xf]
  %v383 = vld [vmem:[%s1 + $0x330] sm:$0xf]
  %v384 = vld [vmem:[%s1 + $0x334] sm:$0xf]
  %v385 = vld [vmem:[%s1 + $0x338] sm:$0xf]
  %v386 = vld [vmem:[%s1 + $0x33c] sm:$0xf]
  %v387 = vld [vmem:[%s1 + $0x340] sm:$0xf]
  %v388 = vld [vmem:[%s1 + $0x344] sm:$0xf]
  %v389 = vld [vmem:[%s1 + $0x348] sm:$0xf]
  %v390 = vld [vmem:[%s1 + $0x34c] sm:$0xf]
  %v391 = vld [vmem:[%s1 + $0x350] sm:$0xf]
  %v392 = vld [vmem:[%s1 + $0x354] sm:$0xf]
  %v393 = vld [vmem:[%s1 + $0x358] sm:$0xf]
  %v394 = vld [vmem:[%s1 + $0x35c] sm:$0xf]
  %v395 = vld [vmem:[%s1 + $0x360] sm:$0xf]
  %v396 = vld [vmem:[%s1 + $0x364] sm:$0xf]
  %v397 = vld [vmem:[%s1 + $0x368] sm:$0xf]
  %v398 = vld [vmem:[%s1 + $0x36c] sm:$0xf]
  %v399 = vld [vmem:[%s1 + $0x370] sm:$0xf]
  %v400 = vld [vmem:[%s1 + $0x374] sm:$0xf]
  %v401 = vld [vmem:[%s1 + $0x378] sm:$0xf]
  %v402 = vld [vmem:[%s1 + $0x37c] sm:$0xf]
  %v403 = vld [vmem:[%s1 + $0x380] sm:$0xf]
  %v404 = vld [vmem:[%s1 + $0x384] sm:$0xf]
  %v405 = vld [vmem:[%s1 + $0x388] sm:$0xf]
  %v406 = vld [vmem:[%s1 + $0x38c] sm:$0xf]
  %v407 = vld [vmem:[%s1 + $0x390] sm:$0xf]
  %v408 = vld [vmem:[%s1 + $0x394] sm:$0xf]
  %v409 = vld [vmem:[%s1 + $0x398] sm:$0xf]
  %v410 = vld [vmem:[%s1 + $0x39c] sm:$0xf]
  %v411 = vld [vmem:[%s1 + $0x3a0] sm:$0xf]
  %v412 = vld [vmem:[%s1 + $0x3a4] sm:$0xf]
  %v413 = vld [vmem:[%s1 + $0x3a8] sm:$0xf]
  %v414 = vld [vmem:[%s1 + $0x3ac] sm:$0xf]
  %v415 = vld [vmem:[%s1 + $0x3b0] sm:$0xf]
  %v416 = vld [vmem:[%s1 + $0x3b4] sm:$0xf]
  %v417 = vld [vmem:[%s1 + $0x3b8] sm:$0xf]
  %v418 = vld [vmem:[%s1 + $0x3bc] sm:$0xf]
  %v419 = vld [vmem:[%s1 + $0x3c0] sm:$0xf]
  %v420 = vld [vmem:[%s1 + $0x3c4] sm:$0xf]
  %v421 = vld [vmem:[%s1 + $0x3c8] sm:$0xf]
  %v422 = vld [vmem:[%s1 + $0x3cc] sm:$0xf]
  %v423 = vld [vmem:[%s1 + $0x3d0] sm:$0xf]
  %v424 = vld [vmem:[%s1 + $0x3d4] sm:$0xf]
  %v425 = vld [vmem:[%s1 + $0x3d8] sm:$0xf]
  %v426 = vld [vmem:[%s1 + $0x3dc] sm:$0xf]
  %v427 = vld [vmem:[%s1 + $0x3e0] sm:$0xf]
  %v428 = vld [vmem:[%s1 + $0x3e4] sm:$0xf]
  %v429 = vld [vmem:[%s1 + $0x3e8] sm:$0xf]
  %v430 = vld [vmem:[%s1 + $0x3ec] sm:$0xf]
  %v431 = vld [vmem:[%s1 + $0x3f0] sm:$0xf]
  %v432 = vld [vmem:[%s1 + $0x3f4] sm:$0xf]
  %v433 = vld [vmem:[%s1 + $0x3f8] sm:$0xf]
  %v434 = vld [vmem:[%s1 + $0x3fc] sm:$0xf]
  %v563 = vunpack.c.l.b16 %v51
  %v564 = vunpack.c.h.b16 %v51
  %v565 = vunpack.c.l.b16 %v52
  %v566 = vunpack.c.h.b16 %v52
  %v567 = vunpack.c.l.b16 %v53
  %v568 = vunpack.c.h.b16 %v53
  %v569 = vunpack.c.l.b16 %v54
  %v570 = vunpack.c.h.b16 %v54
  %v571 = vunpack.c.l.b16 %v55
  %v572 = vunpack.c.h.b16 %v55
  %v573 = vunpack.c.l.b16 %v56
  %v574 = vunpack.c.h.b16 %v56
  %v575 = vunpack.c.l.b16 %v57
  %v576 = vunpack.c.h.b16 %v57
  %v577 = vunpack.c.l.b16 %v58
  %v578 = vunpack.c.h.b16 %v58
  %v579 = vunpack.c.l.b16 %v59
  %v580 = vunpack.c.h.b16 %v59
  %v581 = vunpack.c.l.b16 %v60
  %v582 = vunpack.c.h.b16 %v60
  %v583 = vunpack.c.l.b16 %v61
  %v584 = vunpack.c.h.b16 %v61
  %v585 = vunpack.c.l.b16 %v62
  %v586 = vunpack.c.h.b16 %v62
  %v587 = vunpack.c.l.b16 %v63
  %v588 = vunpack.c.h.b16 %v63
  %v589 = vunpack.c.l.b16 %v64
  %v590 = vunpack.c.h.b16 %v64
  %v591 = vunpack.c.l.b16 %v65
  %v592 = vunpack.c.h.b16 %v65
  %v593 = vunpack.c.l.b16 %v66
  %v594 = vunpack.c.h.b16 %v66
  %v595 = vunpack.c.l.b16 %v67
  %v596 = vunpack.c.h.b16 %v67
  %v597 = vunpack.c.l.b16 %v68
  %v598 = vunpack.c.h.b16 %v68
  %v599 = vunpack.c.l.b16 %v69
  %v600 = vunpack.c.h.b16 %v69
  %v601 = vunpack.c.l.b16 %v70
  %v602 = vunpack.c.h.b16 %v70
  %v603 = vunpack.c.l.b16 %v71
  %v604 = vunpack.c.h.b16 %v71
  %v605 = vunpack.c.l.b16 %v72
  %v606 = vunpack.c.h.b16 %v72
  %v607 = vunpack.c.l.b16 %v73
  %v608 = vunpack.c.h.b16 %v73
  %v609 = vunpack.c.l.b16 %v74
  %v610 = vunpack.c.h.b16 %v74
  %v611 = vunpack.c.l.b16 %v75
  %v612 = vunpack.c.h.b16 %v75
  %v613 = vunpack.c.l.b16 %v76
  %v614 = vunpack.c.h.b16 %v76
  %v615 = vunpack.c.l.b16 %v77
  %v616 = vunpack.c.h.b16 %v77
  %v617 = vunpack.c.l.b16 %v78
  %v618 = vunpack.c.h.b16 %v78
  %v619 = vunpack.c.l.b16 %v79
  %v620 = vunpack.c.h.b16 %v79
  %v621 = vunpack.c.l.b16 %v80
  %v622 = vunpack.c.h.b16 %v80
  %v623 = vunpack.c.l.b16 %v81
  %v624 = vunpack.c.h.b16 %v81
  %v625 = vunpack.c.l.b16 %v82
  %v626 = vunpack.c.h.b16 %v82
  %v627 = vunpack.c.l.b16 %v83
  %v628 = vunpack.c.h.b16 %v83
  %v629 = vunpack.c.l.b16 %v84
  %v630 = vunpack.c.h.b16 %v84
  %v631 = vunpack.c.l.b16 %v85
  %v632 = vunpack.c.h.b16 %v85
  %v633 = vunpack.c.l.b16 %v86
  %v634 = vunpack.c.h.b16 %v86
  %v635 = vunpack.c.l.b16 %v87
  %v636 = vunpack.c.h.b16 %v87
  %v637 = vunpack.c.l.b16 %v88
  %v638 = vunpack.c.h.b16 %v88
  %v639 = vunpack.c.l.b16 %v89
  %v640 = vunpack.c.h.b16 %v89
  %v641 = vunpack.c.l.b16 %v90
  %v642 = vunpack.c.h.b16 %v90
  %v643 = vunpack.c.l.b16 %v91
  %v644 = vunpack.c.h.b16 %v91
  %v645 = vunpack.c.l.b16 %v92
  %v646 = vunpack.c.h.b16 %v92
  %v647 = vunpack.c.l.b16 %v93
  %v648 = vunpack.c.h.b16 %v93
  %v649 = vunpack.c.l.b16 %v94
  %v650 = vunpack.c.h.b16 %v94
  %v651 = vunpack.c.l.b16 %v95
  %v652 = vunpack.c.h.b16 %v95
  %v653 = vunpack.c.l.b16 %v96
  %v654 = vunpack.c.h.b16 %v96
  %v655 = vunpack.c.l.b16 %v97
  %v656 = vunpack.c.h.b16 %v97
  %v657 = vunpack.c.l.b16 %v98
  %v658 = vunpack.c.h.b16 %v98
  %v659 = vunpack.c.l.b16 %v99
  %v660 = vunpack.c.h.b16 %v99
  %v661 = vunpack.c.l.b16 %v100
  %v662 = vunpack.c.h.b16 %v100
  %v663 = vunpack.c.l.b16 %v101
  %v664 = vunpack.c.h.b16 %v101
  %v665 = vunpack.c.l.b16 %v102
  %v666 = vunpack.c.h.b16 %v102
  %v667 = vunpack.c.l.b16 %v103
  %v668 = vunpack.c.h.b16 %v103
  %v669 = vunpack.c.l.b16 %v104
  %v670 = vunpack.c.h.b16 %v104
  %v671 = vunpack.c.l.b16 %v105
  %v672 = vunpack.c.h.b16 %v105
  %v673 = vunpack.c.l.b16 %v106
  %v674 = vunpack.c.h.b16 %v106
  %v675 = vunpack.c.l.b16 %v107
  %v676 = vunpack.c.h.b16 %v107
  %v677 = vunpack.c.l.b16 %v108
  %v678 = vunpack.c.h.b16 %v108
  %v679 = vunpack.c.l.b16 %v109
  %v680 = vunpack.c.h.b16 %v109
  %v681 = vunpack.c.l.b16 %v110
  %v682 = vunpack.c.h.b16 %v110
  %v683 = vunpack.c.l.b16 %v111
  %v684 = vunpack.c.h.b16 %v111
  %v685 = vunpack.c.l.b16 %v112
  %v686 = vunpack.c.h.b16 %v112
  %v687 = vunpack.c.l.b16 %v113
  %v688 = vunpack.c.h.b16 %v113
  %v689 = vunpack.c.l.b16 %v114
  %v690 = vunpack.c.h.b16 %v114
  %v691 = vunpack.c.l.b16 %v115
  %v692 = vunpack.c.h.b16 %v115
  %v693 = vunpack.c.l.b16 %v116
  %v694 = vunpack.c.h.b16 %v116
  %v695 = vunpack.c.l.b16 %v117
  %v696 = vunpack.c.h.b16 %v117
  %v697 = vunpack.c.l.b16 %v118
  %v698 = vunpack.c.h.b16 %v118
  %v699 = vunpack.c.l.b16 %v119
  %v700 = vunpack.c.h.b16 %v119
  %v701 = vunpack.c.l.b16 %v120
  %v702 = vunpack.c.h.b16 %v120
  %v703 = vunpack.c.l.b16 %v121
  %v704 = vunpack.c.h.b16 %v121
  %v705 = vunpack.c.l.b16 %v122
  %v706 = vunpack.c.h.b16 %v122
  %v707 = vunpack.c.l.b16 %v123
  %v708 = vunpack.c.h.b16 %v123
  %v709 = vunpack.c.l.b16 %v124
  %v710 = vunpack.c.h.b16 %v124
  %v711 = vunpack.c.l.b16 %v125
  %v712 = vunpack.c.h.b16 %v125
  %v713 = vunpack.c.l.b16 %v126
  %v714 = vunpack.c.h.b16 %v126
  %v715 = vunpack.c.l.b16 %v127
  %v716 = vunpack.c.h.b16 %v127
  %v717 = vunpack.c.l.b16 %v128
  %v718 = vunpack.c.h.b16 %v128
  %v719 = vunpack.c.l.b16 %v129
  %v720 = vunpack.c.h.b16 %v129
  %v721 = vunpack.c.l.b16 %v130
  %v722 = vunpack.c.h.b16 %v130
  %v723 = vunpack.c.l.b16 %v131
  %v724 = vunpack.c.h.b16 %v131
  %v725 = vunpack.c.l.b16 %v132
  %v726 = vunpack.c.h.b16 %v132
  %v727 = vunpack.c.l.b16 %v133
  %v728 = vunpack.c.h.b16 %v133
  %v729 = vunpack.c.l.b16 %v134
  %v730 = vunpack.c.h.b16 %v134
  %v731 = vunpack.c.l.b16 %v135
  %v732 = vunpack.c.h.b16 %v135
  %v733 = vunpack.c.l.b16 %v136
  %v734 = vunpack.c.h.b16 %v136
  %v735 = vunpack.c.l.b16 %v137
  %v736 = vunpack.c.h.b16 %v137
  %v737 = vunpack.c.l.b16 %v138
  %v738 = vunpack.c.h.b16 %v138
  %v739 = vunpack.c.l.b16 %v139
  %v740 = vunpack.c.h.b16 %v139
  %v741 = vunpack.c.l.b16 %v140
  %v742 = vunpack.c.h.b16 %v140
  %v743 = vunpack.c.l.b16 %v141
  %v744 = vunpack.c.h.b16 %v141
  %v745 = vunpack.c.l.b16 %v142
  %v746 = vunpack.c.h.b16 %v142
  %v747 = vunpack.c.l.b16 %v143
  %v748 = vunpack.c.h.b16 %v143
  %v749 = vunpack.c.l.b16 %v144
  %v750 = vunpack.c.h.b16 %v144
  %v751 = vunpack.c.l.b16 %v145
  %v752 = vunpack.c.h.b16 %v145
  %v753 = vunpack.c.l.b16 %v146
  %v754 = vunpack.c.h.b16 %v146
  %v755 = vunpack.c.l.b16 %v147
  %v756 = vunpack.c.h.b16 %v147
  %v757 = vunpack.c.l.b16 %v148
  %v758 = vunpack.c.h.b16 %v148
  %v759 = vunpack.c.l.b16 %v149
  %v760 = vunpack.c.h.b16 %v149
  %v761 = vunpack.c.l.b16 %v150
  %v762 = vunpack.c.h.b16 %v150
  %v763 = vunpack.c.l.b16 %v151
  %v764 = vunpack.c.h.b16 %v151
  %v765 = vunpack.c.l.b16 %v152
  %v766 = vunpack.c.h.b16 %v152
  %v767 = vunpack.c.l.b16 %v153
  %v768 = vunpack.c.h.b16 %v153
  %v769 = vunpack.c.l.b16 %v154
  %v770 = vunpack.c.h.b16 %v154
  %v771 = vunpack.c.l.b16 %v155
  %v772 = vunpack.c.h.b16 %v155
  %v773 = vunpack.c.l.b16 %v156
  %v774 = vunpack.c.h.b16 %v156
  %v775 = vunpack.c.l.b16 %v157
  %v776 = vunpack.c.h.b16 %v157
  %v777 = vunpack.c.l.b16 %v158
  %v778 = vunpack.c.h.b16 %v158
  %v779 = vunpack.c.l.b16 %v159
  %v780 = vunpack.c.h.b16 %v159
  %v781 = vunpack.c.l.b16 %v160
  %v782 = vunpack.c.h.b16 %v160
  %v783 = vunpack.c.l.b16 %v161
  %v784 = vunpack.c.h.b16 %v161
  %v785 = vunpack.c.l.b16 %v162
  %v786 = vunpack.c.h.b16 %v162
  %v787 = vunpack.c.l.b16 %v163
  %v788 = vunpack.c.h.b16 %v163
  %v789 = vunpack.c.l.b16 %v164
  %v790 = vunpack.c.h.b16 %v164
  %v791 = vunpack.c.l.b16 %v165
  %v792 = vunpack.c.h.b16 %v165
  %v793 = vunpack.c.l.b16 %v166
  %v794 = vunpack.c.h.b16 %v166
  %v795 = vunpack.c.l.b16 %v167
  %v796 = vunpack.c.h.b16 %v167
  %v797 = vunpack.c.l.b16 %v168
  %v798 = vunpack.c.h.b16 %v168
  %v799 = vunpack.c.l.b16 %v169
  %v800 = vunpack.c.h.b16 %v169
  %v801 = vunpack.c.l.b16 %v170
  %v802 = vunpack.c.h.b16 %v170
  %v803 = vunpack.c.l.b16 %v171
  %v804 = vunpack.c.h.b16 %v171
  %v805 = vunpack.c.l.b16 %v172
  %v806 = vunpack.c.h.b16 %v172
  %v807 = vunpack.c.l.b16 %v173
  %v808 = vunpack.c.h.b16 %v173
  %v809 = vunpack.c.l.b16 %v174
  %v810 = vunpack.c.h.b16 %v174
  %v811 = vunpack.c.l.b16 %v175
  %v812 = vunpack.c.h.b16 %v175
  %v813 = vunpack.c.l.b16 %v176
  %v814 = vunpack.c.h.b16 %v176
  %v815 = vunpack.c.l.b16 %v177
  %v816 = vunpack.c.h.b16 %v177
  %v817 = vunpack.c.l.b16 %v178
  %v818 = vunpack.c.h.b16 %v178
  %v819 = vpack.c.b16 %v579, %v563
  %v820 = vpack.c.b16 %v580, %v564
  %v821 = vpack.c.b16 %v581, %v565
  %v822 = vpack.c.b16 %v582, %v566
  %v823 = vpack.c.b16 %v583, %v567
  %v824 = vpack.c.b16 %v584, %v568
  %v825 = vpack.c.b16 %v585, %v569
  %v826 = vpack.c.b16 %v586, %v570
  %v827 = vpack.c.b16 %v587, %v571
  %v828 = vpack.c.b16 %v588, %v572
  %v829 = vpack.c.b16 %v589, %v573
  %v830 = vpack.c.b16 %v590, %v574
  %v831 = vpack.c.b16 %v591, %v575
  %v832 = vpack.c.b16 %v592, %v576
  %v833 = vpack.c.b16 %v593, %v577
  %v834 = vpack.c.b16 %v594, %v578
  %v835 = vpack.c.b16 %v611, %v595
  %v836 = vpack.c.b16 %v612, %v596
  %v837 = vpack.c.b16 %v613, %v597
  %v838 = vpack.c.b16 %v614, %v598
  %v839 = vpack.c.b16 %v615, %v599
  %v840 = vpack.c.b16 %v616, %v600
  %v841 = vpack.c.b16 %v617, %v601
  %v842 = vpack.c.b16 %v618, %v602
  %v843 = vpack.c.b16 %v619, %v603
  %v844 = vpack.c.b16 %v620, %v604
  %v845 = vpack.c.b16 %v621, %v605
  %v846 = vpack.c.b16 %v622, %v606
  %v847 = vpack.c.b16 %v623, %v607
  %v848 = vpack.c.b16 %v624, %v608
  %v849 = vpack.c.b16 %v625, %v609
  %v850 = vpack.c.b16 %v626, %v610
  %v851 = vpack.c.b16 %v643, %v627
  %v852 = vpack.c.b16 %v644, %v628
  %v853 = vpack.c.b16 %v645, %v629
  %v854 = vpack.c.b16 %v646, %v630
  %v855 = vpack.c.b16 %v647, %v631
  %v856 = vpack.c.b16 %v648, %v632
  %v857 = vpack.c.b16 %v649, %v633
  %v858 = vpack.c.b16 %v650, %v634
  %v859 = vpack.c.b16 %v651, %v635
  %v860 = vpack.c.b16 %v652, %v636
  %v861 = vpack.c.b16 %v653, %v637
  %v862 = vpack.c.b16 %v654, %v638
  %v863 = vpack.c.b16 %v655, %v639
  %v864 = vpack.c.b16 %v656, %v640
  %v865 = vpack.c.b16 %v657, %v641
  %v866 = vpack.c.b16 %v658, %v642
  %v867 = vpack.c.b16 %v675, %v659
  %v868 = vpack.c.b16 %v676, %v660
  %v869 = vpack.c.b16 %v677, %v661
  %v870 = vpack.c.b16 %v678, %v662
  %v871 = vpack.c.b16 %v679, %v663
  %v872 = vpack.c.b16 %v680, %v664
  %v873 = vpack.c.b16 %v681, %v665
  %v874 = vpack.c.b16 %v682, %v666
  %v875 = vpack.c.b16 %v683, %v667
  %v876 = vpack.c.b16 %v684, %v668
  %v877 = vpack.c.b16 %v685, %v669
  %v878 = vpack.c.b16 %v686, %v670
  %v879 = vpack.c.b16 %v687, %v671
  %v880 = vpack.c.b16 %v688, %v672
  %v881 = vpack.c.b16 %v689, %v673
  %v882 = vpack.c.b16 %v690, %v674
  %v883 = vpack.c.b16 %v707, %v691
  %v884 = vpack.c.b16 %v708, %v692
  %v885 = vpack.c.b16 %v709, %v693
  %v886 = vpack.c.b16 %v710, %v694
  %v887 = vpack.c.b16 %v711, %v695
  %v888 = vpack.c.b16 %v712, %v696
  %v889 = vpack.c.b16 %v713, %v697
  %v890 = vpack.c.b16 %v714, %v698
  %v891 = vpack.c.b16 %v715, %v699
  %v892 = vpack.c.b16 %v716, %v700
  %v893 = vpack.c.b16 %v717, %v701
  %v894 = vpack.c.b16 %v718, %v702
  %v895 = vpack.c.b16 %v719, %v703
  %v896 = vpack.c.b16 %v720, %v704
  %v897 = vpack.c.b16 %v721, %v705
  %v898 = vpack.c.b16 %v722, %v706
  %v899 = vpack.c.b16 %v739, %v723
  %v900 = vpack.c.b16 %v740, %v724
  %v901 = vpack.c.b16 %v741, %v725
  %v902 = vpack.c.b16 %v742, %v726
  %v903 = vpack.c.b16 %v743, %v727
  %v904 = vpack.c.b16 %v744, %v728
  %v905 = vpack.c.b16 %v745, %v729
  %v906 = vpack.c.b16 %v746, %v730
  %v907 = vpack.c.b16 %v747, %v731
  %v908 = vpack.c.b16 %v748, %v732
  %v909 = vpack.c.b16 %v749, %v733
  %v910 = vpack.c.b16 %v750, %v734
  %v911 = vpack.c.b16 %v751, %v735
  %v912 = vpack.c.b16 %v752, %v736
  %v913 = vpack.c.b16 %v753, %v737
  %v914 = vpack.c.b16 %v754, %v738
  %v915 = vpack.c.b16 %v771, %v755
  %v916 = vpack.c.b16 %v772, %v756
  %v917 = vpack.c.b16 %v773, %v757
  %v918 = vpack.c.b16 %v774, %v758
  %v919 = vpack.c.b16 %v775, %v759
  %v920 = vpack.c.b16 %v776, %v760
  %v921 = vpack.c.b16 %v777, %v761
  %v922 = vpack.c.b16 %v778, %v762
  %v923 = vpack.c.b16 %v779, %v763
  %v924 = vpack.c.b16 %v780, %v764
  %v925 = vpack.c.b16 %v781, %v765
  %v926 = vpack.c.b16 %v782, %v766
  %v927 = vpack.c.b16 %v783, %v767
  %v928 = vpack.c.b16 %v784, %v768
  %v929 = vpack.c.b16 %v785, %v769
  %v930 = vpack.c.b16 %v786, %v770
  %v931 = vpack.c.b16 %v803, %v787
  %v932 = vpack.c.b16 %v804, %v788
  %v933 = vpack.c.b16 %v805, %v789
  %v934 = vpack.c.b16 %v806, %v790
  %v935 = vpack.c.b16 %v807, %v791
  %v936 = vpack.c.b16 %v808, %v792
  %v937 = vpack.c.b16 %v809, %v793
  %v938 = vpack.c.b16 %v810, %v794
  %v939 = vpack.c.b16 %v811, %v795
  %v940 = vpack.c.b16 %v812, %v796
  %v941 = vpack.c.b16 %v813, %v797
  %v942 = vpack.c.b16 %v814, %v798
  %v943 = vpack.c.b16 %v815, %v799
  %v944 = vpack.c.b16 %v816, %v800
  %v945 = vpack.c.b16 %v817, %v801
  %v946 = vpack.c.b16 %v818, %v802
  %v1331 = vunpack.c.l.b16 %v179
  %v1332 = vunpack.c.l.b16 %v180
  %v1333 = vunpack.c.l.b16 %v181
  %v1334 = vunpack.c.l.b16 %v182
  %v1335 = vunpack.c.l.b16 %v183
  %v1336 = vunpack.c.l.b16 %v184
  %v1337 = vunpack.c.l.b16 %v185
  %v1338 = vunpack.c.l.b16 %v186
  %v1339 = vunpack.c.l.b16 %v187
  %v1340 = vunpack.c.l.b16 %v188
  %v1341 = vunpack.c.l.b16 %v189
  %v1342 = vunpack.c.l.b16 %v190
  %v1343 = vunpack.c.l.b16 %v191
  %v1344 = vunpack.c.l.b16 %v192
  %v1345 = vunpack.c.l.b16 %v193
  %v1346 = vunpack.c.l.b16 %v194
  %v1347 = vunpack.c.l.b16 %v195
  %v1348 = vunpack.c.l.b16 %v196
  %v1349 = vunpack.c.l.b16 %v197
  %v1350 = vunpack.c.l.b16 %v198
  %v1351 = vunpack.c.l.b16 %v199
  %v1352 = vunpack.c.l.b16 %v200
  %v1353 = vunpack.c.l.b16 %v201
  %v1354 = vunpack.c.l.b16 %v202
  %v1355 = vunpack.c.l.b16 %v203
  %v1356 = vunpack.c.l.b16 %v204
  %v1357 = vunpack.c.l.b16 %v205
  %v1358 = vunpack.c.l.b16 %v206
  %v1359 = vunpack.c.l.b16 %v207
  %v1360 = vunpack.c.l.b16 %v208
  %v1361 = vunpack.c.l.b16 %v209
  %v1362 = vunpack.c.l.b16 %v210
  %v1363 = vunpack.c.l.b16 %v211
  %v1364 = vunpack.c.l.b16 %v212
  %v1365 = vunpack.c.l.b16 %v213
  %v1366 = vunpack.c.l.b16 %v214
  %v1367 = vunpack.c.l.b16 %v215
  %v1368 = vunpack.c.l.b16 %v216
  %v1369 = vunpack.c.l.b16 %v217
  %v1370 = vunpack.c.l.b16 %v218
  %v1371 = vunpack.c.l.b16 %v219
  %v1372 = vunpack.c.l.b16 %v220
  %v1373 = vunpack.c.l.b16 %v221
  %v1374 = vunpack.c.l.b16 %v222
  %v1375 = vunpack.c.l.b16 %v223
  %v1376 = vunpack.c.l.b16 %v224
  %v1377 = vunpack.c.l.b16 %v225
  %v1378 = vunpack.c.l.b16 %v226
  %v1379 = vunpack.c.l.b16 %v227
  %v1380 = vunpack.c.l.b16 %v228
  %v1381 = vunpack.c.l.b16 %v229
  %v1382 = vunpack.c.l.b16 %v230
  %v1383 = vunpack.c.l.b16 %v231
  %v1384 = vunpack.c.l.b16 %v232
  %v1385 = vunpack.c.l.b16 %v233
  %v1386 = vunpack.c.l.b16 %v234
  %v1387 = vunpack.c.l.b16 %v235
  %v1388 = vunpack.c.l.b16 %v236
  %v1389 = vunpack.c.l.b16 %v237
  %v1390 = vunpack.c.l.b16 %v238
  %v1391 = vunpack.c.l.b16 %v239
  %v1392 = vunpack.c.l.b16 %v240
  %v1393 = vunpack.c.l.b16 %v241
  %v1394 = vunpack.c.l.b16 %v242
  %v1395 = vunpack.c.l.b16 %v243
  %v1396 = vunpack.c.l.b16 %v244
  %v1397 = vunpack.c.l.b16 %v245
  %v1398 = vunpack.c.l.b16 %v246
  %v1399 = vunpack.c.l.b16 %v247
  %v1400 = vunpack.c.l.b16 %v248
  %v1401 = vunpack.c.l.b16 %v249
  %v1402 = vunpack.c.l.b16 %v250
  %v1403 = vunpack.c.l.b16 %v251
  %v1404 = vunpack.c.l.b16 %v252
  %v1405 = vunpack.c.l.b16 %v253
  %v1406 = vunpack.c.l.b16 %v254
  %v1407 = vunpack.c.l.b16 %v255
  %v1408 = vunpack.c.l.b16 %v256
  %v1409 = vunpack.c.l.b16 %v257
  %v1410 = vunpack.c.l.b16 %v258
  %v1411 = vunpack.c.l.b16 %v259
  %v1412 = vunpack.c.l.b16 %v260
  %v1413 = vunpack.c.l.b16 %v261
  %v1414 = vunpack.c.l.b16 %v262
  %v1415 = vunpack.c.l.b16 %v263
  %v1416 = vunpack.c.l.b16 %v264
  %v1417 = vunpack.c.l.b16 %v265
  %v1418 = vunpack.c.l.b16 %v266
  %v1419 = vunpack.c.l.b16 %v267
  %v1420 = vunpack.c.l.b16 %v268
  %v1421 = vunpack.c.l.b16 %v269
  %v1422 = vunpack.c.l.b16 %v270
  %v1423 = vunpack.c.l.b16 %v271
  %v1424 = vunpack.c.l.b16 %v272
  %v1425 = vunpack.c.l.b16 %v273
  %v1426 = vunpack.c.l.b16 %v274
  %v1427 = vunpack.c.l.b16 %v275
  %v1428 = vunpack.c.l.b16 %v276
  %v1429 = vunpack.c.l.b16 %v277
  %v1430 = vunpack.c.l.b16 %v278
  %v1431 = vunpack.c.l.b16 %v279
  %v1432 = vunpack.c.l.b16 %v280
  %v1433 = vunpack.c.l.b16 %v281
  %v1434 = vunpack.c.l.b16 %v282
  %v1435 = vunpack.c.l.b16 %v283
  %v1436 = vunpack.c.l.b16 %v284
  %v1437 = vunpack.c.l.b16 %v285
  %v1438 = vunpack.c.l.b16 %v286
  %v1439 = vunpack.c.l.b16 %v287
  %v1440 = vunpack.c.l.b16 %v288
  %v1441 = vunpack.c.l.b16 %v289
  %v1442 = vunpack.c.l.b16 %v290
  %v1443 = vunpack.c.l.b16 %v291
  %v1444 = vunpack.c.l.b16 %v292
  %v1445 = vunpack.c.l.b16 %v293
  %v1446 = vunpack.c.l.b16 %v294
  %v1447 = vunpack.c.l.b16 %v295
  %v1448 = vunpack.c.l.b16 %v296
  %v1449 = vunpack.c.l.b16 %v297
  %v1450 = vunpack.c.l.b16 %v298
  %v1451 = vunpack.c.l.b16 %v299
  %v1452 = vunpack.c.l.b16 %v300
  %v1453 = vunpack.c.l.b16 %v301
  %v1454 = vunpack.c.l.b16 %v302
  %v1455 = vunpack.c.l.b16 %v303
  %v1456 = vunpack.c.l.b16 %v304
  %v1457 = vunpack.c.l.b16 %v305
  %v1458 = vunpack.c.l.b16 %v306
  %v1459 = vunpack.c.l.b16 %v307
  %v1460 = vunpack.c.l.b16 %v308
  %v1461 = vunpack.c.l.b16 %v309
  %v1462 = vunpack.c.l.b16 %v310
  %v1463 = vunpack.c.l.b16 %v311
  %v1464 = vunpack.c.l.b16 %v312
  %v1465 = vunpack.c.l.b16 %v313
  %v1466 = vunpack.c.l.b16 %v314
  %v1467 = vunpack.c.l.b16 %v315
  %v1468 = vunpack.c.l.b16 %v316
  %v1469 = vunpack.c.l.b16 %v317
  %v1470 = vunpack.c.l.b16 %v318
  %v1471 = vunpack.c.l.b16 %v319
  %v1472 = vunpack.c.l.b16 %v320
  %v1473 = vunpack.c.l.b16 %v321
  %v1474 = vunpack.c.l.b16 %v322
  %v1475 = vunpack.c.l.b16 %v323
  %v1476 = vunpack.c.l.b16 %v324
  %v1477 = vunpack.c.l.b16 %v325
  %v1478 = vunpack.c.l.b16 %v326
  %v1479 = vunpack.c.l.b16 %v327
  %v1480 = vunpack.c.l.b16 %v328
  %v1481 = vunpack.c.l.b16 %v329
  %v1482 = vunpack.c.l.b16 %v330
  %v1483 = vunpack.c.l.b16 %v331
  %v1484 = vunpack.c.l.b16 %v332
  %v1485 = vunpack.c.l.b16 %v333
  %v1486 = vunpack.c.l.b16 %v334
  %v1487 = vunpack.c.l.b16 %v335
  %v1488 = vunpack.c.l.b16 %v336
  %v1489 = vunpack.c.l.b16 %v337
  %v1490 = vunpack.c.l.b16 %v338
  %v1491 = vunpack.c.l.b16 %v339
  %v1492 = vunpack.c.l.b16 %v340
  %v1493 = vunpack.c.l.b16 %v341
  %v1494 = vunpack.c.l.b16 %v342
  %v1495 = vunpack.c.l.b16 %v343
  %v1496 = vunpack.c.l.b16 %v344
  %v1497 = vunpack.c.l.b16 %v345
  %v1498 = vunpack.c.l.b16 %v346
  %v1499 = vunpack.c.l.b16 %v347
  %v1500 = vunpack.c.l.b16 %v348
  %v1501 = vunpack.c.l.b16 %v349
  %v1502 = vunpack.c.l.b16 %v350
  %v1503 = vunpack.c.l.b16 %v351
  %v1504 = vunpack.c.l.b16 %v352
  %v1505 = vunpack.c.l.b16 %v353
  %v1506 = vunpack.c.l.b16 %v354
  %v1507 = vunpack.c.l.b16 %v355
  %v1508 = vunpack.c.l.b16 %v356
  %v1509 = vunpack.c.l.b16 %v357
  %v1510 = vunpack.c.l.b16 %v358
  %v1511 = vunpack.c.l.b16 %v359
  %v1512 = vunpack.c.l.b16 %v360
  %v1513 = vunpack.c.l.b16 %v361
  %v1514 = vunpack.c.l.b16 %v362
  %v1515 = vunpack.c.l.b16 %v363
  %v1516 = vunpack.c.l.b16 %v364
  %v1517 = vunpack.c.l.b16 %v365
  %v1518 = vunpack.c.l.b16 %v366
  %v1519 = vunpack.c.l.b16 %v367
  %v1520 = vunpack.c.l.b16 %v368
  %v1521 = vunpack.c.l.b16 %v369
  %v1522 = vunpack.c.l.b16 %v370
  %v1523 = vunpack.c.l.b16 %v371
  %v1524 = vunpack.c.l.b16 %v372
  %v1525 = vunpack.c.l.b16 %v373
  %v1526 = vunpack.c.l.b16 %v374
  %v1527 = vunpack.c.l.b16 %v375
  %v1528 = vunpack.c.l.b16 %v376
  %v1529 = vunpack.c.l.b16 %v377
  %v1530 = vunpack.c.l.b16 %v378
  %v1531 = vunpack.c.l.b16 %v379
  %v1532 = vunpack.c.l.b16 %v380
  %v1533 = vunpack.c.l.b16 %v381
  %v1534 = vunpack.c.l.b16 %v382
  %v1535 = vunpack.c.l.b16 %v383
  %v1536 = vunpack.c.l.b16 %v384
  %v1537 = vunpack.c.l.b16 %v385
  %v1538 = vunpack.c.l.b16 %v386
  %v1539 = vunpack.c.l.b16 %v387
  %v1540 = vunpack.c.l.b16 %v388
  %v1541 = vunpack.c.l.b16 %v389
  %v1542 = vunpack.c.l.b16 %v390
  %v1543 = vunpack.c.l.b16 %v391
  %v1544 = vunpack.c.l.b16 %v392
  %v1545 = vunpack.c.l.b16 %v393
  %v1546 = vunpack.c.l.b16 %v394
  %v1547 = vunpack.c.l.b16 %v395
  %v1548 = vunpack.c.l.b16 %v396
  %v1549 = vunpack.c.l.b16 %v397
  %v1550 = vunpack.c.l.b16 %v398
  %v1551 = vunpack.c.l.b16 %v399
  %v1552 = vunpack.c.l.b16 %v400
  %v1553 = vunpack.c.l.b16 %v401
  %v1554 = vunpack.c.l.b16 %v402
  %v1555 = vunpack.c.l.b16 %v403
  %v1556 = vunpack.c.l.b16 %v404
  %v1557 = vunpack.c.l.b16 %v405
  %v1558 = vunpack.c.l.b16 %v406
  %v1559 = vunpack.c.l.b16 %v407
  %v1560 = vunpack.c.l.b16 %v408
  %v1561 = vunpack.c.l.b16 %v409
  %v1562 = vunpack.c.l.b16 %v410
  %v1563 = vunpack.c.l.b16 %v411
  %v1564 = vunpack.c.l.b16 %v412
  %v1565 = vunpack.c.l.b16 %v413
  %v1566 = vunpack.c.l.b16 %v414
  %v1567 = vunpack.c.l.b16 %v415
  %v1568 = vunpack.c.l.b16 %v416
  %v1569 = vunpack.c.l.b16 %v417
  %v1570 = vunpack.c.l.b16 %v418
  %v1571 = vunpack.c.l.b16 %v419
  %v1572 = vunpack.c.l.b16 %v420
  %v1573 = vunpack.c.l.b16 %v421
  %v1574 = vunpack.c.l.b16 %v422
  %v1575 = vunpack.c.l.b16 %v423
  %v1576 = vunpack.c.l.b16 %v424
  %v1577 = vunpack.c.l.b16 %v425
  %v1578 = vunpack.c.l.b16 %v426
  %v1579 = vunpack.c.l.b16 %v427
  %v1580 = vunpack.c.l.b16 %v428
  %v1581 = vunpack.c.l.b16 %v429
  %v1582 = vunpack.c.l.b16 %v430
  %v1583 = vunpack.c.l.b16 %v431
  %v1584 = vunpack.c.l.b16 %v432
  %v1585 = vunpack.c.l.b16 %v433
  %v1586 = vunpack.c.l.b16 %v434
  %v1587 = vpack.c.b16 %v1332, %v1331
  %v1588 = vpack.c.b16 %v1334, %v1333
  %v1589 = vpack.c.b16 %v1336, %v1335
  %v1590 = vpack.c.b16 %v1338, %v1337
  %v1591 = vpack.c.b16 %v1340, %v1339
  %v1592 = vpack.c.b16 %v1342, %v1341
  %v1593 = vpack.c.b16 %v1344, %v1343
  %v1594 = vpack.c.b16 %v1346, %v1345
  %v1595 = vpack.c.b16 %v1348, %v1347
  %v1596 = vpack.c.b16 %v1350, %v1349
  %v1597 = vpack.c.b16 %v1352, %v1351
  %v1598 = vpack.c.b16 %v1354, %v1353
  %v1599 = vpack.c.b16 %v1356, %v1355
  %v1600 = vpack.c.b16 %v1358, %v1357
  %v1601 = vpack.c.b16 %v1360, %v1359
  %v1602 = vpack.c.b16 %v1362, %v1361
  %v1603 = vpack.c.b16 %v1364, %v1363
  %v1604 = vpack.c.b16 %v1366, %v1365
  %v1605 = vpack.c.b16 %v1368, %v1367
  %v1606 = vpack.c.b16 %v1370, %v1369
  %v1607 = vpack.c.b16 %v1372, %v1371
  %v1608 = vpack.c.b16 %v1374, %v1373
  %v1609 = vpack.c.b16 %v1376, %v1375
  %v1610 = vpack.c.b16 %v1378, %v1377
  %v1611 = vpack.c.b16 %v1380, %v1379
  %v1612 = vpack.c.b16 %v1382, %v1381
  %v1613 = vpack.c.b16 %v1384, %v1383
  %v1614 = vpack.c.b16 %v1386, %v1385
  %v1615 = vpack.c.b16 %v1388, %v1387
  %v1616 = vpack.c.b16 %v1390, %v1389
  %v1617 = vpack.c.b16 %v1392, %v1391
  %v1618 = vpack.c.b16 %v1394, %v1393
  %v1619 = vpack.c.b16 %v1396, %v1395
  %v1620 = vpack.c.b16 %v1398, %v1397
  %v1621 = vpack.c.b16 %v1400, %v1399
  %v1622 = vpack.c.b16 %v1402, %v1401
  %v1623 = vpack.c.b16 %v1404, %v1403
  %v1624 = vpack.c.b16 %v1406, %v1405
  %v1625 = vpack.c.b16 %v1408, %v1407
  %v1626 = vpack.c.b16 %v1410, %v1409
  %v1627 = vpack.c.b16 %v1412, %v1411
  %v1628 = vpack.c.b16 %v1414, %v1413
  %v1629 = vpack.c.b16 %v1416, %v1415
  %v1630 = vpack.c.b16 %v1418, %v1417
  %v1631 = vpack.c.b16 %v1420, %v1419
  %v1632 = vpack.c.b16 %v1422, %v1421
  %v1633 = vpack.c.b16 %v1424, %v1423
  %v1634 = vpack.c.b16 %v1426, %v1425
  %v1635 = vpack.c.b16 %v1428, %v1427
  %v1636 = vpack.c.b16 %v1430, %v1429
  %v1637 = vpack.c.b16 %v1432, %v1431
  %v1638 = vpack.c.b16 %v1434, %v1433
  %v1639 = vpack.c.b16 %v1436, %v1435
  %v1640 = vpack.c.b16 %v1438, %v1437
  %v1641 = vpack.c.b16 %v1440, %v1439
  %v1642 = vpack.c.b16 %v1442, %v1441
  %v1643 = vpack.c.b16 %v1444, %v1443
  %v1644 = vpack.c.b16 %v1446, %v1445
  %v1645 = vpack.c.b16 %v1448, %v1447
  %v1646 = vpack.c.b16 %v1450, %v1449
  %v1647 = vpack.c.b16 %v1452, %v1451
  %v1648 = vpack.c.b16 %v1454, %v1453
  %v1649 = vpack.c.b16 %v1456, %v1455
  %v1650 = vpack.c.b16 %v1458, %v1457
  %v1651 = vpack.c.b16 %v1460, %v1459
  %v1652 = vpack.c.b16 %v1462, %v1461
  %v1653 = vpack.c.b16 %v1464, %v1463
  %v1654 = vpack.c.b16 %v1466, %v1465
  %v1655 = vpack.c.b16 %v1468, %v1467
  %v1656 = vpack.c.b16 %v1470, %v1469
  %v1657 = vpack.c.b16 %v1472, %v1471
  %v1658 = vpack.c.b16 %v1474, %v1473
  %v1659 = vpack.c.b16 %v1476, %v1475
  %v1660 = vpack.c.b16 %v1478, %v1477
  %v1661 = vpack.c.b16 %v1480, %v1479
  %v1662 = vpack.c.b16 %v1482, %v1481
  %v1663 = vpack.c.b16 %v1484, %v1483
  %v1664 = vpack.c.b16 %v1486, %v1485
  %v1665 = vpack.c.b16 %v1488, %v1487
  %v1666 = vpack.c.b16 %v1490, %v1489
  %v1667 = vpack.c.b16 %v1492, %v1491
  %v1668 = vpack.c.b16 %v1494, %v1493
  %v1669 = vpack.c.b16 %v1496, %v1495
  %v1670 = vpack.c.b16 %v1498, %v1497
  %v1671 = vpack.c.b16 %v1500, %v1499
  %v1672 = vpack.c.b16 %v1502, %v1501
  %v1673 = vpack.c.b16 %v1504, %v1503
  %v1674 = vpack.c.b16 %v1506, %v1505
  %v1675 = vpack.c.b16 %v1508, %v1507
  %v1676 = vpack.c.b16 %v1510, %v1509
  %v1677 = vpack.c.b16 %v1512, %v1511
  %v1678 = vpack.c.b16 %v1514, %v1513
  %v1679 = vpack.c.b16 %v1516, %v1515
  %v1680 = vpack.c.b16 %v1518, %v1517
  %v1681 = vpack.c.b16 %v1520, %v1519
  %v1682 = vpack.c.b16 %v1522, %v1521
  %v1683 = vpack.c.b16 %v1524, %v1523
  %v1684 = vpack.c.b16 %v1526, %v1525
  %v1685 = vpack.c.b16 %v1528, %v1527
  %v1686 = vpack.c.b16 %v1530, %v1529
  %v1687 = vpack.c.b16 %v1532, %v1531
  %v1688 = vpack.c.b16 %v1534, %v1533
  %v1689 = vpack.c.b16 %v1536, %v1535
  %v1690 = vpack.c.b16 %v1538, %v1537
  %v1691 = vpack.c.b16 %v1540, %v1539
  %v1692 = vpack.c.b16 %v1542, %v1541
  %v1693 = vpack.c.b16 %v1544, %v1543
  %v1694 = vpack.c.b16 %v1546, %v1545
  %v1695 = vpack.c.b16 %v1548, %v1547
  %v1696 = vpack.c.b16 %v1550, %v1549
  %v1697 = vpack.c.b16 %v1552, %v1551
  %v1698 = vpack.c.b16 %v1554, %v1553
  %v1699 = vpack.c.b16 %v1556, %v1555
  %v1700 = vpack.c.b16 %v1558, %v1557
  %v1701 = vpack.c.b16 %v1560, %v1559
  %v1702 = vpack.c.b16 %v1562, %v1561
  %v1703 = vpack.c.b16 %v1564, %v1563
  %v1704 = vpack.c.b16 %v1566, %v1565
  %v1705 = vpack.c.b16 %v1568, %v1567
  %v1706 = vpack.c.b16 %v1570, %v1569
  %v1707 = vpack.c.b16 %v1572, %v1571
  %v1708 = vpack.c.b16 %v1574, %v1573
  %v1709 = vpack.c.b16 %v1576, %v1575
  %v1710 = vpack.c.b16 %v1578, %v1577
  %v1711 = vpack.c.b16 %v1580, %v1579
  %v1712 = vpack.c.b16 %v1582, %v1581
  %v1713 = vpack.c.b16 %v1584, %v1583
  %v1714 = vpack.c.b16 %v1586, %v1585
  %1843 = vmatprep.subr.bf16.mxu0 0
  %1844 = vmatpush1.bf16.msra.mxu0 %v1594
  %1845 = vmatprep.subr.bf16.mxu0 0
  %1846 = vmatpush1.bf16.msra.mxu0 %v1593
  %1847 = vmatprep.subr.bf16.mxu0 0
  %1848 = vmatpush1.bf16.msra.mxu0 %v1592
  %1849 = vmatprep.subr.bf16.mxu0 0
  %1850 = vmatpush1.bf16.msra.mxu0 %v1591
  %1851 = vmatprep.subr.bf16.mxu0 0
  %1852 = vmatpush1.bf16.msra.mxu0 %v1590
  %1853 = vmatprep.subr.bf16.mxu0 0
  %1854 = vmatpush1.bf16.msra.mxu0 %v1589
  %1855 = vmatprep.subr.bf16.mxu0 0
  %1856 = vmatpush1.bf16.msra.mxu0 %v1588
  %1857 = vmatprep.subr.bf16.mxu0 0
  %1858 = vmatpush1.bf16.msra.mxu0 %v1587
  %1859 = vmatprep.subr.bf16.mxu0 0
  %1860 = vmatpush2.bf16.msra.mxu0 %v1602
  %1861 = vmatprep.subr.bf16.mxu0 0
  %1862 = vmatpush2.bf16.msra.mxu0 %v1601
  %1863 = vmatprep.subr.bf16.mxu0 0
  %1864 = vmatpush2.bf16.msra.mxu0 %v1600
  %1865 = vmatprep.subr.bf16.mxu0 0
  %1866 = vmatpush2.bf16.msra.mxu0 %v1599
  %1867 = vmatprep.subr.bf16.mxu0 0
  %1868 = vmatpush2.bf16.msra.mxu0 %v1598
  %1869 = vmatprep.subr.bf16.mxu0 0
  %1870 = vmatpush2.bf16.msra.mxu0 %v1597
  %1871 = vmatprep.subr.bf16.mxu0 0
  %1872 = vmatpush2.bf16.msra.mxu0 %v1596
  %1873 = vmatprep.subr.bf16.mxu0 0
  %1874 = vmatpush2.bf16.msra.mxu0 %v1595
  %1875 = vmatprep.mubr.bf16.mxu0 %v820
  %1876 = vmatmul.mubr.bf16.gmra.mxu0 %v819
  %v1877 = vpop.f32.mrf.mxu0
  %v1878 = vadd.f32 0.0, %v1877
  %v1879 = vpop.f32.mrf.mxu0
  %v1880 = vpop.f32.mrf.mxu0
  %v1881 = vadd.f32 0.0, %v1880
  %v1882 = vpop.f32.mrf.mxu0
  %1883 = vmatprep.mubr.bf16.mxu0 %v836
  %1884 = vmatmul.mubr.bf16.gmra.mxu0 %v835
  %v1885 = vpop.f32.mrf.mxu0
  %v1886 = vadd.f32 0.0, %v1885
  %v1887 = vpop.f32.mrf.mxu0
  %v1888 = vpop.f32.mrf.mxu0
  %v1889 = vadd.f32 0.0, %v1888
  %v1890 = vpop.f32.mrf.mxu0
  %1891 = vmatprep.mubr.bf16.mxu0 %v852
  %1892 = vmatmul.mubr.bf16.gmra.mxu0 %v851
  %v1893 = vpop.f32.mrf.mxu0
  %v1894 = vadd.f32 0.0, %v1893
  %v1895 = vpop.f32.mrf.mxu0
  %v1896 = vpop.f32.mrf.mxu0
  %v1897 = vadd.f32 0.0, %v1896
  %v1898 = vpop.f32.mrf.mxu0
  %1899 = vmatprep.mubr.bf16.mxu0 %v868
  %1900 = vmatmul.mubr.bf16.gmra.mxu0 %v867
  %v1901 = vpop.f32.mrf.mxu0
  %v1902 = vadd.f32 0.0, %v1901
  %v1903 = vpop.f32.mrf.mxu0
  %v1904 = vpop.f32.mrf.mxu0
  %v1905 = vadd.f32 0.0, %v1904
  %v1906 = vpop.f32.mrf.mxu0
  %1907 = vmatprep.mubr.bf16.mxu0 %v884
  %1908 = vmatmul.mubr.bf16.gmra.mxu0 %v883
  %v1909 = vpop.f32.mrf.mxu0
  %v1910 = vadd.f32 0.0, %v1909
  %v1911 = vpop.f32.mrf.mxu0
  %v1912 = vpop.f32.mrf.mxu0
  %v1913 = vadd.f32 0.0, %v1912
  %v1914 = vpop.f32.mrf.mxu0
  %1915 = vmatprep.mubr.bf16.mxu0 %v900
  %1916 = vmatmul.mubr.bf16.gmra.mxu0 %v899
  %v1917 = vpop.f32.mrf.mxu0
  %v1918 = vadd.f32 0.0, %v1917
  %v1919 = vpop.f32.mrf.mxu0
  %v1920 = vpop.f32.mrf.mxu0
  %v1921 = vadd.f32 0.0, %v1920
  %v1922 = vpop.f32.mrf.mxu0
  %1923 = vmatprep.mubr.bf16.mxu0 %v916
  %1924 = vmatmul.mubr.bf16.gmra.mxu0 %v915
  %v1925 = vpop.f32.mrf.mxu0
  %v1926 = vadd.f32 0.0, %v1925
  %v1927 = vpop.f32.mrf.mxu0
  %v1928 = vpop.f32.mrf.mxu0
  %v1929 = vadd.f32 0.0, %v1928
  %v1930 = vpop.f32.mrf.mxu0
  %1931 = vmatprep.mubr.bf16.mxu0 %v932
  %1932 = vmatmul.mubr.bf16.gmra.mxu0 %v931
  %v1933 = vpop.f32.mrf.mxu0
  %v1934 = vadd.f32 0.0, %v1933
  %v1935 = vpop.f32.mrf.mxu0
  %v1936 = vpop.f32.mrf.mxu0
  %v1937 = vadd.f32 0.0, %v1936
  %v1938 = vpop.f32.mrf.mxu0
  %1939 = vdwg.mxu0
  %1940 = vmatprep.subr.bf16.mxu0 0
  %1941 = vmatpush1.bf16.msra.mxu0 %v1610
  %1942 = vmatprep.subr.bf16.mxu0 0
  %1943 = vmatpush1.bf16.msra.mxu0 %v1609
  %1944 = vmatprep.subr.bf16.mxu0 0
  %1945 = vmatpush1.bf16.msra.mxu0 %v1608
  %1946 = vmatprep.subr.bf16.mxu0 0
  %1947 = vmatpush1.bf16.msra.mxu0 %v1607
  %1948 = vmatprep.subr.bf16.mxu0 0
  %1949 = vmatpush1.bf16.msra.mxu0 %v1606
  %1950 = vmatprep.subr.bf16.mxu0 0
  %1951 = vmatpush1.bf16.msra.mxu0 %v1605
  %1952 = vmatprep.subr.bf16.mxu0 0
  %1953 = vmatpush1.bf16.msra.mxu0 %v1604
  %1954 = vmatprep.subr.bf16.mxu0 0
  %1955 = vmatpush1.bf16.msra.mxu0 %v1603
  %1956 = vmatprep.subr.bf16.mxu0 0
  %1957 = vmatpush2.bf16.msra.mxu0 %v1618
  %1958 = vmatprep.subr.bf16.mxu0 0
  %1959 = vmatpush2.bf16.msra.mxu0 %v1617
  %1960 = vmatprep.subr.bf16.mxu0 0
  %1961 = vmatpush2.bf16.msra.mxu0 %v1616
  %1962 = vmatprep.subr.bf16.mxu0 0
  %1963 = vmatpush2.bf16.msra.mxu0 %v1615
  %1964 = vmatprep.subr.bf16.mxu0 0
  %1965 = vmatpush2.bf16.msra.mxu0 %v1614
  %1966 = vmatprep.subr.bf16.mxu0 0
  %1967 = vmatpush2.bf16.msra.mxu0 %v1613
  %1968 = vmatprep.subr.bf16.mxu0 0
  %1969 = vmatpush2.bf16.msra.mxu0 %v1612
  %1970 = vmatprep.subr.bf16.mxu0 0
  %1971 = vmatpush2.bf16.msra.mxu0 %v1611
  %1972 = vmatprep.mubr.bf16.mxu0 %v822
  %1973 = vmatmul.mubr.bf16.gmra.mxu0 %v821
  %v1974 = vpop.f32.mrf.mxu0
  %v1975 = vadd.f32 %v1878, %v1974
  %v1976 = vpop.f32.mrf.mxu0
  %v1977 = vpop.f32.mrf.mxu0
  %v1978 = vadd.f32 %v1881, %v1977
  %v1979 = vpop.f32.mrf.mxu0
  %1980 = vmatprep.mubr.bf16.mxu0 %v838
  %1981 = vmatmul.mubr.bf16.gmra.mxu0 %v837
  %v1982 = vpop.f32.mrf.mxu0
  %v1983 = vadd.f32 %v1886, %v1982
  %v1984 = vpop.f32.mrf.mxu0
  %v1985 = vpop.f32.mrf.mxu0
  %v1986 = vadd.f32 %v1889, %v1985
  %v1987 = vpop.f32.mrf.mxu0
  %1988 = vmatprep.mubr.bf16.mxu0 %v854
  %1989 = vmatmul.mubr.bf16.gmra.mxu0 %v853
  %v1990 = vpop.f32.mrf.mxu0
  %v1991 = vadd.f32 %v1894, %v1990
  %v1992 = vpop.f32.mrf.mxu0
  %v1993 = vpop.f32.mrf.mxu0
  %v1994 = vadd.f32 %v1897, %v1993
  %v1995 = vpop.f32.mrf.mxu0
  %1996 = vmatprep.mubr.bf16.mxu0 %v870
  %1997 = vmatmul.mubr.bf16.gmra.mxu0 %v869
  %v1998 = vpop.f32.mrf.mxu0
  %v1999 = vadd.f32 %v1902, %v1998
  %v2000 = vpop.f32.mrf.mxu0
  %v2001 = vpop.f32.mrf.mxu0
  %v2002 = vadd.f32 %v1905, %v2001
  %v2003 = vpop.f32.mrf.mxu0
  %2004 = vmatprep.mubr.bf16.mxu0 %v886
  %2005 = vmatmul.mubr.bf16.gmra.mxu0 %v885
  %v2006 = vpop.f32.mrf.mxu0
  %v2007 = vadd.f32 %v1910, %v2006
  %v2008 = vpop.f32.mrf.mxu0
  %v2009 = vpop.f32.mrf.mxu0
  %v2010 = vadd.f32 %v1913, %v2009
  %v2011 = vpop.f32.mrf.mxu0
  %2012 = vmatprep.mubr.bf16.mxu0 %v902
  %2013 = vmatmul.mubr.bf16.gmra.mxu0 %v901
  %v2014 = vpop.f32.mrf.mxu0
  %v2015 = vadd.f32 %v1918, %v2014
  %v2016 = vpop.f32.mrf.mxu0
  %v2017 = vpop.f32.mrf.mxu0
  %v2018 = vadd.f32 %v1921, %v2017
  %v2019 = vpop.f32.mrf.mxu0
  %2020 = vmatprep.mubr.bf16.mxu0 %v918
  %2021 = vmatmul.mubr.bf16.gmra.mxu0 %v917
  %v2022 = vpop.f32.mrf.mxu0
  %v2023 = vadd.f32 %v1926, %v2022
  %v2024 = vpop.f32.mrf.mxu0
  %v2025 = vpop.f32.mrf.mxu0
  %v2026 = vadd.f32 %v1929, %v2025
  %v2027 = vpop.f32.mrf.mxu0
  %2028 = vmatprep.mubr.bf16.mxu0 %v934
  %2029 = vmatmul.mubr.bf16.gmra.mxu0 %v933
  %v2030 = vpop.f32.mrf.mxu0
  %v2031 = vadd.f32 %v1934, %v2030
  %v2032 = vpop.f32.mrf.mxu0
  %v2033 = vpop.f32.mrf.mxu0
  %v2034 = vadd.f32 %v1937, %v2033
  %v2035 = vpop.f32.mrf.mxu0
  %2036 = vdwg.mxu0
  %2037 = vmatprep.subr.bf16.mxu0 0
  %2038 = vmatpush1.bf16.msra.mxu0 %v1626
  %2039 = vmatprep.subr.bf16.mxu0 0
  %2040 = vmatpush1.bf16.msra.mxu0 %v1625
  %2041 = vmatprep.subr.bf16.mxu0 0
  %2042 = vmatpush1.bf16.msra.mxu0 %v1624
  %2043 = vmatprep.subr.bf16.mxu0 0
  %2044 = vmatpush1.bf16.msra.mxu0 %v1623
  %2045 = vmatprep.subr.bf16.mxu0 0
  %2046 = vmatpush1.bf16.msra.mxu0 %v1622
  %2047 = vmatprep.subr.bf16.mxu0 0
  %2048 = vmatpush1.bf16.msra.mxu0 %v1621
  %2049 = vmatprep.subr.bf16.mxu0 0
  %2050 = vmatpush1.bf16.msra.mxu0 %v1620
  %2051 = vmatprep.subr.bf16.mxu0 0
  %2052 = vmatpush1.bf16.msra.mxu0 %v1619
  %2053 = vmatprep.subr.bf16.mxu0 0
  %2054 = vmatpush2.bf16.msra.mxu0 %v1634
  %2055 = vmatprep.subr.bf16.mxu0 0
  %2056 = vmatpush2.bf16.msra.mxu0 %v1633
  %2057 = vmatprep.subr.bf16.mxu0 0
  %2058 = vmatpush2.bf16.msra.mxu0 %v1632
  %2059 = vmatprep.subr.bf16.mxu0 0
  %2060 = vmatpush2.bf16.msra.mxu0 %v1631
  %2061 = vmatprep.subr.bf16.mxu0 0
  %2062 = vmatpush2.bf16.msra.mxu0 %v1630
  %2063 = vmatprep.subr.bf16.mxu0 0
  %2064 = vmatpush2.bf16.msra.mxu0 %v1629
  %2065 = vmatprep.subr.bf16.mxu0 0
  %2066 = vmatpush2.bf16.msra.mxu0 %v1628
  %2067 = vmatprep.subr.bf16.mxu0 0
  %2068 = vmatpush2.bf16.msra.mxu0 %v1627
  %2069 = vmatprep.mubr.bf16.mxu0 %v824
  %2070 = vmatmul.mubr.bf16.gmra.mxu0 %v823
  %v2071 = vpop.f32.mrf.mxu0
  %v2072 = vadd.f32 %v1975, %v2071
  %v2073 = vpop.f32.mrf.mxu0
  %v2074 = vpop.f32.mrf.mxu0
  %v2075 = vadd.f32 %v1978, %v2074
  %v2076 = vpop.f32.mrf.mxu0
  %2077 = vmatprep.mubr.bf16.mxu0 %v840
  %2078 = vmatmul.mubr.bf16.gmra.mxu0 %v839
  %v2079 = vpop.f32.mrf.mxu0
  %v2080 = vadd.f32 %v1983, %v2079
  %v2081 = vpop.f32.mrf.mxu0
  %v2082 = vpop.f32.mrf.mxu0
  %v2083 = vadd.f32 %v1986, %v2082
  %v2084 = vpop.f32.mrf.mxu0
  %2085 = vmatprep.mubr.bf16.mxu0 %v856
  %2086 = vmatmul.mubr.bf16.gmra.mxu0 %v855
  %v2087 = vpop.f32.mrf.mxu0
  %v2088 = vadd.f32 %v1991, %v2087
  %v2089 = vpop.f32.mrf.mxu0
  %v2090 = vpop.f32.mrf.mxu0
  %v2091 = vadd.f32 %v1994, %v2090
  %v2092 = vpop.f32.mrf.mxu0
  %2093 = vmatprep.mubr.bf16.mxu0 %v872
  %2094 = vmatmul.mubr.bf16.gmra.mxu0 %v871
  %v2095 = vpop.f32.mrf.mxu0
  %v2096 = vadd.f32 %v1999, %v2095
  %v2097 = vpop.f32.mrf.mxu0
  %v2098 = vpop.f32.mrf.mxu0
  %v2099 = vadd.f32 %v2002, %v2098
  %v2100 = vpop.f32.mrf.mxu0
  %2101 = vmatprep.mubr.bf16.mxu0 %v888
  %2102 = vmatmul.mubr.bf16.gmra.mxu0 %v887
  %v2103 = vpop.f32.mrf.mxu0
  %v2104 = vadd.f32 %v2007, %v2103
  %v2105 = vpop.f32.mrf.mxu0
  %v2106 = vpop.f32.mrf.mxu0
  %v2107 = vadd.f32 %v2010, %v2106
  %v2108 = vpop.f32.mrf.mxu0
  %2109 = vmatprep.mubr.bf16.mxu0 %v904
  %2110 = vmatmul.mubr.bf16.gmra.mxu0 %v903
  %v2111 = vpop.f32.mrf.mxu0
  %v2112 = vadd.f32 %v2015, %v2111
  %v2113 = vpop.f32.mrf.mxu0
  %v2114 = vpop.f32.mrf.mxu0
  %v2115 = vadd.f32 %v2018, %v2114
  %v2116 = vpop.f32.mrf.mxu0
  %2117 = vmatprep.mubr.bf16.mxu0 %v920
  %2118 = vmatmul.mubr.bf16.gmra.mxu0 %v919
  %v2119 = vpop.f32.mrf.mxu0
  %v2120 = vadd.f32 %v2023, %v2119
  %v2121 = vpop.f32.mrf.mxu0
  %v2122 = vpop.f32.mrf.mxu0
  %v2123 = vadd.f32 %v2026, %v2122
  %v2124 = vpop.f32.mrf.mxu0
  %2125 = vmatprep.mubr.bf16.mxu0 %v936
  %2126 = vmatmul.mubr.bf16.gmra.mxu0 %v935
  %v2127 = vpop.f32.mrf.mxu0
  %v2128 = vadd.f32 %v2031, %v2127
  %v2129 = vpop.f32.mrf.mxu0
  %v2130 = vpop.f32.mrf.mxu0
  %v2131 = vadd.f32 %v2034, %v2130
  %v2132 = vpop.f32.mrf.mxu0
  %2133 = vdwg.mxu0
  %2134 = vmatprep.subr.bf16.mxu0 0
  %2135 = vmatpush1.bf16.msra.mxu0 %v1642
  %2136 = vmatprep.subr.bf16.mxu0 0
  %2137 = vmatpush1.bf16.msra.mxu0 %v1641
  %2138 = vmatprep.subr.bf16.mxu0 0
  %2139 = vmatpush1.bf16.msra.mxu0 %v1640
  %2140 = vmatprep.subr.bf16.mxu0 0
  %2141 = vmatpush1.bf16.msra.mxu0 %v1639
  %2142 = vmatprep.subr.bf16.mxu0 0
  %2143 = vmatpush1.bf16.msra.mxu0 %v1638
  %2144 = vmatprep.subr.bf16.mxu0 0
  %2145 = vmatpush1.bf16.msra.mxu0 %v1637
  %2146 = vmatprep.subr.bf16.mxu0 0
  %2147 = vmatpush1.bf16.msra.mxu0 %v1636
  %2148 = vmatprep.subr.bf16.mxu0 0
  %2149 = vmatpush1.bf16.msra.mxu0 %v1635
  %2150 = vmatprep.subr.bf16.mxu0 0
  %2151 = vmatpush2.bf16.msra.mxu0 %v1650
  %2152 = vmatprep.subr.bf16.mxu0 0
  %2153 = vmatpush2.bf16.msra.mxu0 %v1649
  %2154 = vmatprep.subr.bf16.mxu0 0
  %2155 = vmatpush2.bf16.msra.mxu0 %v1648
  %2156 = vmatprep.subr.bf16.mxu0 0
  %2157 = vmatpush2.bf16.msra.mxu0 %v1647
  %2158 = vmatprep.subr.bf16.mxu0 0
  %2159 = vmatpush2.bf16.msra.mxu0 %v1646
  %2160 = vmatprep.subr.bf16.mxu0 0
  %2161 = vmatpush2.bf16.msra.mxu0 %v1645
  %2162 = vmatprep.subr.bf16.mxu0 0
  %2163 = vmatpush2.bf16.msra.mxu0 %v1644
  %2164 = vmatprep.subr.bf16.mxu0 0
  %2165 = vmatpush2.bf16.msra.mxu0 %v1643
  %2166 = vmatprep.mubr.bf16.mxu0 %v826
  %2167 = vmatmul.mubr.bf16.gmra.mxu0 %v825
  %v2168 = vpop.f32.mrf.mxu0
  %v2169 = vadd.f32 %v2072, %v2168
  %v2170 = vpop.f32.mrf.mxu0
  %v2171 = vpop.f32.mrf.mxu0
  %v2172 = vadd.f32 %v2075, %v2171
  %v2173 = vpop.f32.mrf.mxu0
  %2174 = vmatprep.mubr.bf16.mxu0 %v842
  %2175 = vmatmul.mubr.bf16.gmra.mxu0 %v841
  %v2176 = vpop.f32.mrf.mxu0
  %v2177 = vadd.f32 %v2080, %v2176
  %v2178 = vpop.f32.mrf.mxu0
  %v2179 = vpop.f32.mrf.mxu0
  %v2180 = vadd.f32 %v2083, %v2179
  %v2181 = vpop.f32.mrf.mxu0
  %2182 = vmatprep.mubr.bf16.mxu0 %v858
  %2183 = vmatmul.mubr.bf16.gmra.mxu0 %v857
  %v2184 = vpop.f32.mrf.mxu0
  %v2185 = vadd.f32 %v2088, %v2184
  %v2186 = vpop.f32.mrf.mxu0
  %v2187 = vpop.f32.mrf.mxu0
  %v2188 = vadd.f32 %v2091, %v2187
  %v2189 = vpop.f32.mrf.mxu0
  %2190 = vmatprep.mubr.bf16.mxu0 %v874
  %2191 = vmatmul.mubr.bf16.gmra.mxu0 %v873
  %v2192 = vpop.f32.mrf.mxu0
  %v2193 = vadd.f32 %v2096, %v2192
  %v2194 = vpop.f32.mrf.mxu0
  %v2195 = vpop.f32.mrf.mxu0
  %v2196 = vadd.f32 %v2099, %v2195
  %v2197 = vpop.f32.mrf.mxu0
  %2198 = vmatprep.mubr.bf16.mxu0 %v890
  %2199 = vmatmul.mubr.bf16.gmra.mxu0 %v889
  %v2200 = vpop.f32.mrf.mxu0
  %v2201 = vadd.f32 %v2104, %v2200
  %v2202 = vpop.f32.mrf.mxu0
  %v2203 = vpop.f32.mrf.mxu0
  %v2204 = vadd.f32 %v2107, %v2203
  %v2205 = vpop.f32.mrf.mxu0
  %2206 = vmatprep.mubr.bf16.mxu0 %v906
  %2207 = vmatmul.mubr.bf16.gmra.mxu0 %v905
  %v2208 = vpop.f32.mrf.mxu0
  %v2209 = vadd.f32 %v2112, %v2208
  %v2210 = vpop.f32.mrf.mxu0
  %v2211 = vpop.f32.mrf.mxu0
  %v2212 = vadd.f32 %v2115, %v2211
  %v2213 = vpop.f32.mrf.mxu0
  %2214 = vmatprep.mubr.bf16.mxu0 %v922
  %2215 = vmatmul.mubr.bf16.gmra.mxu0 %v921
  %v2216 = vpop.f32.mrf.mxu0
  %v2217 = vadd.f32 %v2120, %v2216
  %v2218 = vpop.f32.mrf.mxu0
  %v2219 = vpop.f32.mrf.mxu0
  %v2220 = vadd.f32 %v2123, %v2219
  %v2221 = vpop.f32.mrf.mxu0
  %2222 = vmatprep.mubr.bf16.mxu0 %v938
  %2223 = vmatmul.mubr.bf16.gmra.mxu0 %v937
  %v2224 = vpop.f32.mrf.mxu0
  %v2225 = vadd.f32 %v2128, %v2224
  %v2226 = vpop.f32.mrf.mxu0
  %v2227 = vpop.f32.mrf.mxu0
  %v2228 = vadd.f32 %v2131, %v2227
  %v2229 = vpop.f32.mrf.mxu0
  %2230 = vdwg.mxu0
  %2231 = vmatprep.subr.bf16.mxu0 0
  %2232 = vmatpush1.bf16.msra.mxu0 %v1658
  %2233 = vmatprep.subr.bf16.mxu0 0
  %2234 = vmatpush1.bf16.msra.mxu0 %v1657
  %2235 = vmatprep.subr.bf16.mxu0 0
  %2236 = vmatpush1.bf16.msra.mxu0 %v1656
  %2237 = vmatprep.subr.bf16.mxu0 0
  %2238 = vmatpush1.bf16.msra.mxu0 %v1655
  %2239 = vmatprep.subr.bf16.mxu0 0
  %2240 = vmatpush1.bf16.msra.mxu0 %v1654
  %2241 = vmatprep.subr.bf16.mxu0 0
  %2242 = vmatpush1.bf16.msra.mxu0 %v1653
  %2243 = vmatprep.subr.bf16.mxu0 0
  %2244 = vmatpush1.bf16.msra.mxu0 %v1652
  %2245 = vmatprep.subr.bf16.mxu0 0
  %2246 = vmatpush1.bf16.msra.mxu0 %v1651
  %2247 = vmatprep.subr.bf16.mxu0 0
  %2248 = vmatpush2.bf16.msra.mxu0 %v1666
  %2249 = vmatprep.subr.bf16.mxu0 0
  %2250 = vmatpush2.bf16.msra.mxu0 %v1665
  %2251 = vmatprep.subr.bf16.mxu0 0
  %2252 = vmatpush2.bf16.msra.mxu0 %v1664
  %2253 = vmatprep.subr.bf16.mxu0 0
  %2254 = vmatpush2.bf16.msra.mxu0 %v1663
  %2255 = vmatprep.subr.bf16.mxu0 0
  %2256 = vmatpush2.bf16.msra.mxu0 %v1662
  %2257 = vmatprep.subr.bf16.mxu0 0
  %2258 = vmatpush2.bf16.msra.mxu0 %v1661
  %2259 = vmatprep.subr.bf16.mxu0 0
  %2260 = vmatpush2.bf16.msra.mxu0 %v1660
  %2261 = vmatprep.subr.bf16.mxu0 0
  %2262 = vmatpush2.bf16.msra.mxu0 %v1659
  %2263 = vmatprep.mubr.bf16.mxu0 %v828
  %2264 = vmatmul.mubr.bf16.gmra.mxu0 %v827
  %v2265 = vpop.f32.mrf.mxu0
  %v2266 = vadd.f32 %v2169, %v2265
  %v2267 = vpop.f32.mrf.mxu0
  %v2268 = vpop.f32.mrf.mxu0
  %v2269 = vadd.f32 %v2172, %v2268
  %v2270 = vpop.f32.mrf.mxu0
  %2271 = vmatprep.mubr.bf16.mxu0 %v844
  %2272 = vmatmul.mubr.bf16.gmra.mxu0 %v843
  %v2273 = vpop.f32.mrf.mxu0
  %v2274 = vadd.f32 %v2177, %v2273
  %v2275 = vpop.f32.mrf.mxu0
  %v2276 = vpop.f32.mrf.mxu0
  %v2277 = vadd.f32 %v2180, %v2276
  %v2278 = vpop.f32.mrf.mxu0
  %2279 = vmatprep.mubr.bf16.mxu0 %v860
  %2280 = vmatmul.mubr.bf16.gmra.mxu0 %v859
  %v2281 = vpop.f32.mrf.mxu0
  %v2282 = vadd.f32 %v2185, %v2281
  %v2283 = vpop.f32.mrf.mxu0
  %v2284 = vpop.f32.mrf.mxu0
  %v2285 = vadd.f32 %v2188, %v2284
  %v2286 = vpop.f32.mrf.mxu0
  %2287 = vmatprep.mubr.bf16.mxu0 %v876
  %2288 = vmatmul.mubr.bf16.gmra.mxu0 %v875
  %v2289 = vpop.f32.mrf.mxu0
  %v2290 = vadd.f32 %v2193, %v2289
  %v2291 = vpop.f32.mrf.mxu0
  %v2292 = vpop.f32.mrf.mxu0
  %v2293 = vadd.f32 %v2196, %v2292
  %v2294 = vpop.f32.mrf.mxu0
  %2295 = vmatprep.mubr.bf16.mxu0 %v892
  %2296 = vmatmul.mubr.bf16.gmra.mxu0 %v891
  %v2297 = vpop.f32.mrf.mxu0
  %v2298 = vadd.f32 %v2201, %v2297
  %v2299 = vpop.f32.mrf.mxu0
  %v2300 = vpop.f32.mrf.mxu0
  %v2301 = vadd.f32 %v2204, %v2300
  %v2302 = vpop.f32.mrf.mxu0
  %2303 = vmatprep.mubr.bf16.mxu0 %v908
  %2304 = vmatmul.mubr.bf16.gmra.mxu0 %v907
  %v2305 = vpop.f32.mrf.mxu0
  %v2306 = vadd.f32 %v2209, %v2305
  %v2307 = vpop.f32.mrf.mxu0
  %v2308 = vpop.f32.mrf.mxu0
  %v2309 = vadd.f32 %v2212, %v2308
  %v2310 = vpop.f32.mrf.mxu0
  %2311 = vmatprep.mubr.bf16.mxu0 %v924
  %2312 = vmatmul.mubr.bf16.gmra.mxu0 %v923
  %v2313 = vpop.f32.mrf.mxu0
  %v2314 = vadd.f32 %v2217, %v2313
  %v2315 = vpop.f32.mrf.mxu0
  %v2316 = vpop.f32.mrf.mxu0
  %v2317 = vadd.f32 %v2220, %v2316
  %v2318 = vpop.f32.mrf.mxu0
  %2319 = vmatprep.mubr.bf16.mxu0 %v940
  %2320 = vmatmul.mubr.bf16.gmra.mxu0 %v939
  %v2321 = vpop.f32.mrf.mxu0
  %v2322 = vadd.f32 %v2225, %v2321
  %v2323 = vpop.f32.mrf.mxu0
  %v2324 = vpop.f32.mrf.mxu0
  %v2325 = vadd.f32 %v2228, %v2324
  %v2326 = vpop.f32.mrf.mxu0
  %2327 = vdwg.mxu0
  %2328 = vmatprep.subr.bf16.mxu0 0
  %2329 = vmatpush1.bf16.msra.mxu0 %v1674
  %2330 = vmatprep.subr.bf16.mxu0 0
  %2331 = vmatpush1.bf16.msra.mxu0 %v1673
  %2332 = vmatprep.subr.bf16.mxu0 0
  %2333 = vmatpush1.bf16.msra.mxu0 %v1672
  %2334 = vmatprep.subr.bf16.mxu0 0
  %2335 = vmatpush1.bf16.msra.mxu0 %v1671
  %2336 = vmatprep.subr.bf16.mxu0 0
  %2337 = vmatpush1.bf16.msra.mxu0 %v1670
  %2338 = vmatprep.subr.bf16.mxu0 0
  %2339 = vmatpush1.bf16.msra.mxu0 %v1669
  %2340 = vmatprep.subr.bf16.mxu0 0
  %2341 = vmatpush1.bf16.msra.mxu0 %v1668
  %2342 = vmatprep.subr.bf16.mxu0 0
  %2343 = vmatpush1.bf16.msra.mxu0 %v1667
  %2344 = vmatprep.subr.bf16.mxu0 0
  %2345 = vmatpush2.bf16.msra.mxu0 %v1682
  %2346 = vmatprep.subr.bf16.mxu0 0
  %2347 = vmatpush2.bf16.msra.mxu0 %v1681
  %2348 = vmatprep.subr.bf16.mxu0 0
  %2349 = vmatpush2.bf16.msra.mxu0 %v1680
  %2350 = vmatprep.subr.bf16.mxu0 0
  %2351 = vmatpush2.bf16.msra.mxu0 %v1679
  %2352 = vmatprep.subr.bf16.mxu0 0
  %2353 = vmatpush2.bf16.msra.mxu0 %v1678
  %2354 = vmatprep.subr.bf16.mxu0 0
  %2355 = vmatpush2.bf16.msra.mxu0 %v1677
  %2356 = vmatprep.subr.bf16.mxu0 0
  %2357 = vmatpush2.bf16.msra.mxu0 %v1676
  %2358 = vmatprep.subr.bf16.mxu0 0
  %2359 = vmatpush2.bf16.msra.mxu0 %v1675
  %2360 = vmatprep.mubr.bf16.mxu0 %v830
  %2361 = vmatmul.mubr.bf16.gmra.mxu0 %v829
  %v2362 = vpop.f32.mrf.mxu0
  %v2363 = vadd.f32 %v2266, %v2362
  %v2364 = vpop.f32.mrf.mxu0
  %v2365 = vpop.f32.mrf.mxu0
  %v2366 = vadd.f32 %v2269, %v2365
  %v2367 = vpop.f32.mrf.mxu0
  %2368 = vmatprep.mubr.bf16.mxu0 %v846
  %2369 = vmatmul.mubr.bf16.gmra.mxu0 %v845
  %v2370 = vpop.f32.mrf.mxu0
  %v2371 = vadd.f32 %v2274, %v2370
  %v2372 = vpop.f32.mrf.mxu0
  %v2373 = vpop.f32.mrf.mxu0
  %v2374 = vadd.f32 %v2277, %v2373
  %v2375 = vpop.f32.mrf.mxu0
  %2376 = vmatprep.mubr.bf16.mxu0 %v862
  %2377 = vmatmul.mubr.bf16.gmra.mxu0 %v861
  %v2378 = vpop.f32.mrf.mxu0
  %v2379 = vadd.f32 %v2282, %v2378
  %v2380 = vpop.f32.mrf.mxu0
  %v2381 = vpop.f32.mrf.mxu0
  %v2382 = vadd.f32 %v2285, %v2381
  %v2383 = vpop.f32.mrf.mxu0
  %2384 = vmatprep.mubr.bf16.mxu0 %v878
  %2385 = vmatmul.mubr.bf16.gmra.mxu0 %v877
  %v2386 = vpop.f32.mrf.mxu0
  %v2387 = vadd.f32 %v2290, %v2386
  %v2388 = vpop.f32.mrf.mxu0
  %v2389 = vpop.f32.mrf.mxu0
  %v2390 = vadd.f32 %v2293, %v2389
  %v2391 = vpop.f32.mrf.mxu0
  %2392 = vmatprep.mubr.bf16.mxu0 %v894
  %2393 = vmatmul.mubr.bf16.gmra.mxu0 %v893
  %v2394 = vpop.f32.mrf.mxu0
  %v2395 = vadd.f32 %v2298, %v2394
  %v2396 = vpop.f32.mrf.mxu0
  %v2397 = vpop.f32.mrf.mxu0
  %v2398 = vadd.f32 %v2301, %v2397
  %v2399 = vpop.f32.mrf.mxu0
  %2400 = vmatprep.mubr.bf16.mxu0 %v910
  %2401 = vmatmul.mubr.bf16.gmra.mxu0 %v909
  %v2402 = vpop.f32.mrf.mxu0
  %v2403 = vadd.f32 %v2306, %v2402
  %v2404 = vpop.f32.mrf.mxu0
  %v2405 = vpop.f32.mrf.mxu0
  %v2406 = vadd.f32 %v2309, %v2405
  %v2407 = vpop.f32.mrf.mxu0
  %2408 = vmatprep.mubr.bf16.mxu0 %v926
  %2409 = vmatmul.mubr.bf16.gmra.mxu0 %v925
  %v2410 = vpop.f32.mrf.mxu0
  %v2411 = vadd.f32 %v2314, %v2410
  %v2412 = vpop.f32.mrf.mxu0
  %v2413 = vpop.f32.mrf.mxu0
  %v2414 = vadd.f32 %v2317, %v2413
  %v2415 = vpop.f32.mrf.mxu0
  %2416 = vmatprep.mubr.bf16.mxu0 %v942
  %2417 = vmatmul.mubr.bf16.gmra.mxu0 %v941
  %v2418 = vpop.f32.mrf.mxu0
  %v2419 = vadd.f32 %v2322, %v2418
  %v2420 = vpop.f32.mrf.mxu0
  %v2421 = vpop.f32.mrf.mxu0
  %v2422 = vadd.f32 %v2325, %v2421
  %v2423 = vpop.f32.mrf.mxu0
  %2424 = vdwg.mxu0
  %2425 = vmatprep.subr.bf16.mxu0 0
  %2426 = vmatpush1.bf16.msra.mxu0 %v1690
  %2427 = vmatprep.subr.bf16.mxu0 0
  %2428 = vmatpush1.bf16.msra.mxu0 %v1689
  %2429 = vmatprep.subr.bf16.mxu0 0
  %2430 = vmatpush1.bf16.msra.mxu0 %v1688
  %2431 = vmatprep.subr.bf16.mxu0 0
  %2432 = vmatpush1.bf16.msra.mxu0 %v1687
  %2433 = vmatprep.subr.bf16.mxu0 0
  %2434 = vmatpush1.bf16.msra.mxu0 %v1686
  %2435 = vmatprep.subr.bf16.mxu0 0
  %2436 = vmatpush1.bf16.msra.mxu0 %v1685
  %2437 = vmatprep.subr.bf16.mxu0 0
  %2438 = vmatpush1.bf16.msra.mxu0 %v1684
  %2439 = vmatprep.subr.bf16.mxu0 0
  %2440 = vmatpush1.bf16.msra.mxu0 %v1683
  %2441 = vmatprep.subr.bf16.mxu0 0
  %2442 = vmatpush2.bf16.msra.mxu0 %v1698
  %2443 = vmatprep.subr.bf16.mxu0 0
  %2444 = vmatpush2.bf16.msra.mxu0 %v1697
  %2445 = vmatprep.subr.bf16.mxu0 0
  %2446 = vmatpush2.bf16.msra.mxu0 %v1696
  %2447 = vmatprep.subr.bf16.mxu0 0
  %2448 = vmatpush2.bf16.msra.mxu0 %v1695
  %2449 = vmatprep.subr.bf16.mxu0 0
  %2450 = vmatpush2.bf16.msra.mxu0 %v1694
  %2451 = vmatprep.subr.bf16.mxu0 0
  %2452 = vmatpush2.bf16.msra.mxu0 %v1693
  %2453 = vmatprep.subr.bf16.mxu0 0
  %2454 = vmatpush2.bf16.msra.mxu0 %v1692
  %2455 = vmatprep.subr.bf16.mxu0 0
  %2456 = vmatpush2.bf16.msra.mxu0 %v1691
  %2457 = vmatprep.mubr.bf16.mxu0 %v832
  %2458 = vmatmul.mubr.bf16.gmra.mxu0 %v831
  %v2459 = vpop.f32.mrf.mxu0
  %v2460 = vadd.f32 %v2363, %v2459
  %v2461 = vpop.f32.mrf.mxu0
  %v2462 = vpop.f32.mrf.mxu0
  %v2463 = vadd.f32 %v2366, %v2462
  %v2464 = vpop.f32.mrf.mxu0
  %2465 = vmatprep.mubr.bf16.mxu0 %v848
  %2466 = vmatmul.mubr.bf16.gmra.mxu0 %v847
  %v2467 = vpop.f32.mrf.mxu0
  %v2468 = vadd.f32 %v2371, %v2467
  %v2469 = vpop.f32.mrf.mxu0
  %v2470 = vpop.f32.mrf.mxu0
  %v2471 = vadd.f32 %v2374, %v2470
  %v2472 = vpop.f32.mrf.mxu0
  %2473 = vmatprep.mubr.bf16.mxu0 %v864
  %2474 = vmatmul.mubr.bf16.gmra.mxu0 %v863
  %v2475 = vpop.f32.mrf.mxu0
  %v2476 = vadd.f32 %v2379, %v2475
  %v2477 = vpop.f32.mrf.mxu0
  %v2478 = vpop.f32.mrf.mxu0
  %v2479 = vadd.f32 %v2382, %v2478
  %v2480 = vpop.f32.mrf.mxu0
  %2481 = vmatprep.mubr.bf16.mxu0 %v880
  %2482 = vmatmul.mubr.bf16.gmra.mxu0 %v879
  %v2483 = vpop.f32.mrf.mxu0
  %v2484 = vadd.f32 %v2387, %v2483
  %v2485 = vpop.f32.mrf.mxu0
  %v2486 = vpop.f32.mrf.mxu0
  %v2487 = vadd.f32 %v2390, %v2486
  %v2488 = vpop.f32.mrf.mxu0
  %2489 = vmatprep.mubr.bf16.mxu0 %v896
  %2490 = vmatmul.mubr.bf16.gmra.mxu0 %v895
  %v2491 = vpop.f32.mrf.mxu0
  %v2492 = vadd.f32 %v2395, %v2491
  %v2493 = vpop.f32.mrf.mxu0
  %v2494 = vpop.f32.mrf.mxu0
  %v2495 = vadd.f32 %v2398, %v2494
  %v2496 = vpop.f32.mrf.mxu0
  %2497 = vmatprep.mubr.bf16.mxu0 %v912
  %2498 = vmatmul.mubr.bf16.gmra.mxu0 %v911
  %v2499 = vpop.f32.mrf.mxu0
  %v2500 = vadd.f32 %v2403, %v2499
  %v2501 = vpop.f32.mrf.mxu0
  %v2502 = vpop.f32.mrf.mxu0
  %v2503 = vadd.f32 %v2406, %v2502
  %v2504 = vpop.f32.mrf.mxu0
  %2505 = vmatprep.mubr.bf16.mxu0 %v928
  %2506 = vmatmul.mubr.bf16.gmra.mxu0 %v927
  %v2507 = vpop.f32.mrf.mxu0
  %v2508 = vadd.f32 %v2411, %v2507
  %v2509 = vpop.f32.mrf.mxu0
  %v2510 = vpop.f32.mrf.mxu0
  %v2511 = vadd.f32 %v2414, %v2510
  %v2512 = vpop.f32.mrf.mxu0
  %2513 = vmatprep.mubr.bf16.mxu0 %v944
  %2514 = vmatmul.mubr.bf16.gmra.mxu0 %v943
  %v2515 = vpop.f32.mrf.mxu0
  %v2516 = vadd.f32 %v2419, %v2515
  %v2517 = vpop.f32.mrf.mxu0
  %v2518 = vpop.f32.mrf.mxu0
  %v2519 = vadd.f32 %v2422, %v2518
  %v2520 = vpop.f32.mrf.mxu0
  %2521 = vdwg.mxu0
  %2522 = vmatprep.subr.bf16.mxu0 0
  %2523 = vmatpush1.bf16.msra.mxu0 %v1706
  %2524 = vmatprep.subr.bf16.mxu0 0
  %2525 = vmatpush1.bf16.msra.mxu0 %v1705
  %2526 = vmatprep.subr.bf16.mxu0 0
  %2527 = vmatpush1.bf16.msra.mxu0 %v1704
  %2528 = vmatprep.subr.bf16.mxu0 0
  %2529 = vmatpush1.bf16.msra.mxu0 %v1703
  %2530 = vmatprep.subr.bf16.mxu0 0
  %2531 = vmatpush1.bf16.msra.mxu0 %v1702
  %2532 = vmatprep.subr.bf16.mxu0 0
  %2533 = vmatpush1.bf16.msra.mxu0 %v1701
  %2534 = vmatprep.subr.bf16.mxu0 0
  %2535 = vmatpush1.bf16.msra.mxu0 %v1700
  %2536 = vmatprep.subr.bf16.mxu0 0
  %2537 = vmatpush1.bf16.msra.mxu0 %v1699
  %2538 = vmatprep.subr.bf16.mxu0 0
  %2539 = vmatpush2.bf16.msra.mxu0 %v1714
  %2540 = vmatprep.subr.bf16.mxu0 0
  %2541 = vmatpush2.bf16.msra.mxu0 %v1713
  %2542 = vmatprep.subr.bf16.mxu0 0
  %2543 = vmatpush2.bf16.msra.mxu0 %v1712
  %2544 = vmatprep.subr.bf16.mxu0 0
  %2545 = vmatpush2.bf16.msra.mxu0 %v1711
  %2546 = vmatprep.subr.bf16.mxu0 0
  %2547 = vmatpush2.bf16.msra.mxu0 %v1710
  %2548 = vmatprep.subr.bf16.mxu0 0
  %2549 = vmatpush2.bf16.msra.mxu0 %v1709
  %2550 = vmatprep.subr.bf16.mxu0 0
  %2551 = vmatpush2.bf16.msra.mxu0 %v1708
  %2552 = vmatprep.subr.bf16.mxu0 0
  %2553 = vmatpush2.bf16.msra.mxu0 %v1707
  %2554 = vmatprep.mubr.bf16.mxu0 %v834
  %2555 = vmatmul.mubr.bf16.gmra.mxu0 %v833
  %v2556 = vpop.f32.mrf.mxu0
  %v2557 = vadd.f32 %v2460, %v2556
  %v2558 = vpop.f32.mrf.mxu0
  %v2559 = vpop.f32.mrf.mxu0
  %v2560 = vadd.f32 %v2463, %v2559
  %v2561 = vpop.f32.mrf.mxu0
  %2562 = vmatprep.mubr.bf16.mxu0 %v850
  %2563 = vmatmul.mubr.bf16.gmra.mxu0 %v849
  %v2564 = vpop.f32.mrf.mxu0
  %v2565 = vadd.f32 %v2468, %v2564
  %v2566 = vpop.f32.mrf.mxu0
  %v2567 = vpop.f32.mrf.mxu0
  %v2568 = vadd.f32 %v2471, %v2567
  %v2569 = vpop.f32.mrf.mxu0
  %2570 = vmatprep.mubr.bf16.mxu0 %v866
  %2571 = vmatmul.mubr.bf16.gmra.mxu0 %v865
  %v2572 = vpop.f32.mrf.mxu0
  %v2573 = vadd.f32 %v2476, %v2572
  %v2574 = vpop.f32.mrf.mxu0
  %v2575 = vpop.f32.mrf.mxu0
  %v2576 = vadd.f32 %v2479, %v2575
  %v2577 = vpop.f32.mrf.mxu0
  %2578 = vmatprep.mubr.bf16.mxu0 %v882
  %2579 = vmatmul.mubr.bf16.gmra.mxu0 %v881
  %v2580 = vpop.f32.mrf.mxu0
  %v2581 = vadd.f32 %v2484, %v2580
  %v2582 = vpop.f32.mrf.mxu0
  %v2583 = vpop.f32.mrf.mxu0
  %v2584 = vadd.f32 %v2487, %v2583
  %v2585 = vpop.f32.mrf.mxu0
  %2586 = vmatprep.mubr.bf16.mxu0 %v898
  %2587 = vmatmul.mubr.bf16.gmra.mxu0 %v897
  %v2588 = vpop.f32.mrf.mxu0
  %v2589 = vadd.f32 %v2492, %v2588
  %v2590 = vpop.f32.mrf.mxu0
  %v2591 = vpop.f32.mrf.mxu0
  %v2592 = vadd.f32 %v2495, %v2591
  %v2593 = vpop.f32.mrf.mxu0
  %2594 = vmatprep.mubr.bf16.mxu0 %v914
  %2595 = vmatmul.mubr.bf16.gmra.mxu0 %v913
  %v2596 = vpop.f32.mrf.mxu0
  %v2597 = vadd.f32 %v2500, %v2596
  %v2598 = vpop.f32.mrf.mxu0
  %v2599 = vpop.f32.mrf.mxu0
  %v2600 = vadd.f32 %v2503, %v2599
  %v2601 = vpop.f32.mrf.mxu0
  %2602 = vmatprep.mubr.bf16.mxu0 %v930
  %2603 = vmatmul.mubr.bf16.gmra.mxu0 %v929
  %v2604 = vpop.f32.mrf.mxu0
  %v2605 = vadd.f32 %v2508, %v2604
  %v2606 = vpop.f32.mrf.mxu0
  %v2607 = vpop.f32.mrf.mxu0
  %v2608 = vadd.f32 %v2511, %v2607
  %v2609 = vpop.f32.mrf.mxu0
  %2610 = vmatprep.mubr.bf16.mxu0 %v946
  %2611 = vmatmul.mubr.bf16.gmra.mxu0 %v945
  %v2612 = vpop.f32.mrf.mxu0
  %v2613 = vadd.f32 %v2516, %v2612
  %v2614 = vpop.f32.mrf.mxu0
  %v2615 = vpop.f32.mrf.mxu0
  %v2616 = vadd.f32 %v2519, %v2615
  %v2617 = vpop.f32.mrf.mxu0
  %2618 = vdwg.mxu0
  %v2619 = vadd.f32 %v35, %v2557
  %v2620 = vadd.f32 %v36, %v2560
  %v2621 = vadd.f32 %v37, %v2565
  %v2622 = vadd.f32 %v38, %v2568
  %v2623 = vadd.f32 %v39, %v2573
  %v2624 = vadd.f32 %v40, %v2576
  %v2625 = vadd.f32 %v41, %v2581
  %v2626 = vadd.f32 %v42, %v2584
  %v2627 = vadd.f32 %v43, %v2589
  %v2628 = vadd.f32 %v44, %v2592
  %v2629 = vadd.f32 %v45, %v2597
  %v2630 = vadd.f32 %v46, %v2600
  %v2631 = vadd.f32 %v47, %v2605
  %v2632 = vadd.f32 %v48, %v2608
  %v2633 = vadd.f32 %v49, %v2613
  %v2634 = vadd.f32 %v50, %v2616
  %2635 = vst [vmem:[#allocation2] sm:$0xff] %v2619
  %2636 = vst [vmem:[#allocation2 + $0x8] sm:$0xff] %v2620
  %2637 = vst [vmem:[#allocation2 + $0x10] sm:$0xff] %v2621
  %2638 = vst [vmem:[#allocation2 + $0x18] sm:$0xff] %v2622
  %2639 = vst [vmem:[#allocation2 + $0x20] sm:$0xff] %v2623
  %2640 = vst [vmem:[#allocation2 + $0x28] sm:$0xff] %v2624
  %2641 = vst [vmem:[#allocation2 + $0x30] sm:$0xff] %v2625
  %2642 = vst [vmem:[#allocation2 + $0x38] sm:$0xff] %v2626
  %2643 = vst [vmem:[#allocation2 + $0x40] sm:$0xff] %v2627
  %2644 = vst [vmem:[#allocation2 + $0x48] sm:$0xff] %v2628
  %2645 = vst [vmem:[#allocation2 + $0x50] sm:$0xff] %v2629
  %2646 = vst [vmem:[#allocation2 + $0x58] sm:$0xff] %v2630
  %2647 = vst [vmem:[#allocation2 + $0x60] sm:$0xff] %v2631
  %2648 = vst [vmem:[#allocation2 + $0x68] sm:$0xff] %v2632
  %2649 = vst [vmem:[#allocation2 + $0x70] sm:$0xff] %v2633
  %2650 = vst [vmem:[#allocation2 + $0x78] sm:$0xff] %v2634
  // Predicated region
  $region18: #{fc_discriminator_forward.6} parent=0 // pred_check
    %p2651 = pneg %p15
  $region19: #{fc_discriminator_forward.6} parent=0 // pred_check_branch
    %2653 = sbr.rel (%p2651) target = $region21
  $region20: #{fc_discriminator_forward.6} parent=0 // pred_region
    %v2654 = vld [vmem:[#allocation2] sm:$0xff]
    %v2655 = vld [vmem:[#allocation2 + $0x8] sm:$0xff]
    %v2656 = vld [vmem:[#allocation2 + $0x10] sm:$0xff]
    %v2657 = vld [vmem:[#allocation2 + $0x18] sm:$0xff]
    %v2658 = vld [vmem:[#allocation2 + $0x20] sm:$0xff]
    %v2659 = vld [vmem:[#allocation2 + $0x28] sm:$0xff]
    %v2660 = vld [vmem:[#allocation2 + $0x30] sm:$0xff]
    %v2661 = vld [vmem:[#allocation2 + $0x38] sm:$0xff]
    %v2662 = vld [vmem:[#allocation2 + $0x40] sm:$0xff]
    %v2663 = vld [vmem:[#allocation2 + $0x48] sm:$0xff]
    %v2664 = vld [vmem:[#allocation2 + $0x50] sm:$0xff]
    %v2665 = vld [vmem:[#allocation2 + $0x58] sm:$0xff]
    %v2666 = vld [vmem:[#allocation2 + $0x60] sm:$0xff]
    %v2667 = vld [vmem:[#allocation2 + $0x68] sm:$0xff]
    %v2668 = vld [vmem:[#allocation2 + $0x70] sm:$0xff]
    %v2669 = vld [vmem:[#allocation2 + $0x78] sm:$0xff]
    %v2670 = vld [vmem:[%s2] sm:$0x1]
    %v2672 = vlaneseq
    %v2673 = vshrl.u32 %v2672, 7
    %v2674 = vsub.s32 0, %v2673
    %v2675 = vrot.slane %v2670, %v2674
    %v2677 = vadd.f32 %v2654, %v2675
    %v2678 = vadd.f32 %v2655, %v2675
    %v2679 = vadd.f32 %v2656, %v2675
    %v2680 = vadd.f32 %v2657, %v2675
    %v2681 = vadd.f32 %v2658, %v2675
    %v2682 = vadd.f32 %v2659, %v2675
    %v2683 = vadd.f32 %v2660, %v2675
    %v2684 = vadd.f32 %v2661, %v2675
    %v2685 = vadd.f32 %v2662, %v2675
    %v2686 = vadd.f32 %v2663, %v2675
    %v2687 = vadd.f32 %v2664, %v2675
    %v2688 = vadd.f32 %v2665, %v2675
    %v2689 = vadd.f32 %v2666, %v2675
    %v2690 = vadd.f32 %v2667, %v2675
    %v2691 = vadd.f32 %v2668, %v2675
    %v2692 = vadd.f32 %v2669, %v2675
    %vm2693 = vcmp.ge.f32.partialorder %v2677, 0.0
    %vm2694 = vcmp.ge.f32.partialorder %v2678, 0.0
    %vm2695 = vcmp.ge.f32.partialorder %v2679, 0.0
    %vm2696 = vcmp.ge.f32.partialorder %v2680, 0.0
    %vm2697 = vcmp.ge.f32.partialorder %v2681, 0.0
    %vm2698 = vcmp.ge.f32.partialorder %v2682, 0.0
    %vm2699 = vcmp.ge.f32.partialorder %v2683, 0.0
    %vm2700 = vcmp.ge.f32.partialorder %v2684, 0.0
    %vm2701 = vcmp.ge.f32.partialorder %v2685, 0.0
    %vm2702 = vcmp.ge.f32.partialorder %v2686, 0.0
    %vm2703 = vcmp.ge.f32.partialorder %v2687, 0.0
    %vm2704 = vcmp.ge.f32.partialorder %v2688, 0.0
    %vm2705 = vcmp.ge.f32.partialorder %v2689, 0.0
    %vm2706 = vcmp.ge.f32.partialorder %v2690, 0.0
    %vm2707 = vcmp.ge.f32.partialorder %v2691, 0.0
    %vm2708 = vcmp.ge.f32.partialorder %v2692, 0.0
    %v2709 = vmul.f32 %v2677, 0.2
    %v2710 = vmul.f32 %v2678, 0.2
    %v2711 = vmul.f32 %v2679, 0.2
    %v2712 = vmul.f32 %v2680, 0.2
    %v2713 = vmul.f32 %v2681, 0.2
    %v2714 = vmul.f32 %v2682, 0.2
    %v2715 = vmul.f32 %v2683, 0.2
    %v2716 = vmul.f32 %v2684, 0.2
    %v2717 = vmul.f32 %v2685, 0.2
    %v2718 = vmul.f32 %v2686, 0.2
    %v2719 = vmul.f32 %v2687, 0.2
    %v2720 = vmul.f32 %v2688, 0.2
    %v2721 = vmul.f32 %v2689, 0.2
    %v2722 = vmul.f32 %v2690, 0.2
    %v2723 = vmul.f32 %v2691, 0.2
    %v2724 = vmul.f32 %v2692, 0.2
    %v2725 = vsel %vm2693, %v2677, %v2709
    %v2726 = vsel %vm2694, %v2678, %v2710
    %v2727 = vsel %vm2695, %v2679, %v2711
    %v2728 = vsel %vm2696, %v2680, %v2712
    %v2729 = vsel %vm2697, %v2681, %v2713
    %v2730 = vsel %vm2698, %v2682, %v2714
    %v2731 = vsel %vm2699, %v2683, %v2715
    %v2732 = vsel %vm2700, %v2684, %v2716
    %v2733 = vsel %vm2701, %v2685, %v2717
    %v2734 = vsel %vm2702, %v2686, %v2718
    %v2735 = vsel %vm2703, %v2687, %v2719
    %v2736 = vsel %vm2704, %v2688, %v2720
    %v2737 = vsel %vm2705, %v2689, %v2721
    %v2738 = vsel %vm2706, %v2690, %v2722
    %v2739 = vsel %vm2707, %v2691, %v2723
    %v2740 = vsel %vm2708, %v2692, %v2724
    %v2741 = vpack.c.bf16 %v2726, %v2725
    %v2742 = vpack.c.bf16 %v2728, %v2727
    %v2743 = vpack.c.bf16 %v2730, %v2729
    %v2744 = vpack.c.bf16 %v2732, %v2731
    %v2745 = vpack.c.bf16 %v2734, %v2733
    %v2746 = vpack.c.bf16 %v2736, %v2735
    %v2747 = vpack.c.bf16 %v2738, %v2737
    %v2748 = vpack.c.bf16 %v2740, %v2739
    %v2757 = vunpack.c.l.b16 %v2741
    %v2758 = vunpack.c.h.b16 %v2741
    %v2759 = vunpack.c.l.b16 %v2742
    %v2760 = vunpack.c.h.b16 %v2742
    %v2761 = vunpack.c.l.b16 %v2743
    %v2762 = vunpack.c.h.b16 %v2743
    %v2763 = vunpack.c.l.b16 %v2744
    %v2764 = vunpack.c.h.b16 %v2744
    %v2765 = vunpack.c.l.b16 %v2745
    %v2766 = vunpack.c.h.b16 %v2745
    %v2767 = vunpack.c.l.b16 %v2746
    %v2768 = vunpack.c.h.b16 %v2746
    %v2769 = vunpack.c.l.b16 %v2747
    %v2770 = vunpack.c.h.b16 %v2747
    %v2771 = vunpack.c.l.b16 %v2748
    %v2772 = vunpack.c.h.b16 %v2748
    %v2773 = vpack.c.b16 %v2757, %v2757
    %v2774 = vpack.c.b16 %v2758, %v2758
    %v2775 = vpack.c.b16 %v2759, %v2759
    %v2776 = vpack.c.b16 %v2760, %v2760
    %v2777 = vpack.c.b16 %v2761, %v2761
    %v2778 = vpack.c.b16 %v2762, %v2762
    %v2779 = vpack.c.b16 %v2763, %v2763
    %v2780 = vpack.c.b16 %v2764, %v2764
    %v2781 = vpack.c.b16 %v2765, %v2765
    %v2782 = vpack.c.b16 %v2766, %v2766
    %v2783 = vpack.c.b16 %v2767, %v2767
    %v2784 = vpack.c.b16 %v2768, %v2768
    %v2785 = vpack.c.b16 %v2769, %v2769
    %v2786 = vpack.c.b16 %v2770, %v2770
    %v2787 = vpack.c.b16 %v2771, %v2771
    %v2788 = vpack.c.b16 %v2772, %v2772
    %2805 = vst [vmem:[%s3] sm:$0xf] %v2773
    %2806 = vst [vmem:[%s3 + $0x4] sm:$0xf] %v2774
    %2807 = vst [vmem:[%s3 + $0x8] sm:$0xf] %v2775
    %2808 = vst [vmem:[%s3 + $0xc] sm:$0xf] %v2776
    %2809 = vst [vmem:[%s3 + $0x10] sm:$0xf] %v2777
    %2810 = vst [vmem:[%s3 + $0x14] sm:$0xf] %v2778
    %2811 = vst [vmem:[%s3 + $0x18] sm:$0xf] %v2779
    %2812 = vst [vmem:[%s3 + $0x1c] sm:$0xf] %v2780
    %2813 = vst [vmem:[%s3 + $0x20] sm:$0xf] %v2781
    %2814 = vst [vmem:[%s3 + $0x24] sm:$0xf] %v2782
    %2815 = vst [vmem:[%s3 + $0x28] sm:$0xf] %v2783
    %2816 = vst [vmem:[%s3 + $0x2c] sm:$0xf] %v2784
    %2817 = vst [vmem:[%s3 + $0x30] sm:$0xf] %v2785
    %2818 = vst [vmem:[%s3 + $0x34] sm:$0xf] %v2786
    %2819 = vst [vmem:[%s3 + $0x38] sm:$0xf] %v2787
    %2820 = vst [vmem:[%s3 + $0x3c] sm:$0xf] %v2788
  $region21: #{fc_discriminator_forward.6} parent=0 // pred_fallthru
    _
  // Predicated region
  $region22: #{fc_discriminator_forward.6} parent=0 // pred_check
    _
  $region23: #{fc_discriminator_forward.6} parent=0 // pred_check_branch
    %2822 = sbr.rel (0) target = $region25
  $region24: #{fc_discriminator_forward.6} parent=0 // pred_region
    _
  $region25: #{fc_discriminator_forward.6} parent=0 // pred_fallthru
    _
  // Predicated region
  $region26: #{fc_discriminator_forward.6} parent=0 // pred_check
    _
  $region27: #{fc_discriminator_forward.6} parent=0 // pred_check_branch
    %2824 = sbr.rel (0) target = $region29
  $region28: #{fc_discriminator_forward.6} parent=0 // pred_region
    _
  $region29: #{fc_discriminator_forward.6} parent=0 // pred_fallthru
    _

// kernel: fc_discriminator_forward.7
$region0: #{fc_discriminator_forward.7}
  #allocation0 [shape = 'u32[]', space=smem, size = 0x4, offset = 0x4, fixed_abs, tag = 'smem constant byte address 0x4 - core index']
  #allocation1 [shape = 'u32[144,128]{1,0:T(1,128)}', space=vmem, size = 0x12000, scoped, tag = 'internal scratch']
  #allocation2 [shape = 'f32[32,128]{1,0:T(8,128)}', space=vmem, size = 0x4000, scoped, tag = 'scratch operand']
  %s0 = inlined_call_operand.vmem [shape: bf16[32,2048], index: 0, kind: input, shape index: {}]
  %s1 = inlined_call_operand.vmem [shape: bf16[2048,128], index: 1, kind: input, shape index: {}]
  %s2 = inlined_call_operand.vmem [shape: f32[1,128], index: 2, kind: input, shape index: {}]
  %s3 = inlined_call_operand.vmem [shape: bf16[32,128], index: 3, kind: output, shape index: {}]
  %s4 = sld [smem:[#allocation0]]
  $region30: #{fc_discriminator_forward.7} parent=0
    _
  %s6 = ssub.s32 1, %s4
  %s7 = scalar_select 0, %s6, %s4
  // Predicated region
  $region2: #{fc_discriminator_forward.7} parent=0 // pred_check
    _
  $region3: #{fc_discriminator_forward.7} parent=0 // pred_check_branch
    %9 = sbr.rel (0) target = $region5
  $region4: #{fc_discriminator_forward.7} parent=0 // pred_region
    _
  $region5: #{fc_discriminator_forward.7} parent=0 // pred_fallthru
    _
  // Predicated region
  $region6: #{fc_discriminator_forward.7} parent=0 // pred_check
    _
  $region7: #{fc_discriminator_forward.7} parent=0 // pred_check_branch
    %11 = sbr.rel (0) target = $region9
  $region8: #{fc_discriminator_forward.7} parent=0 // pred_region
    _
  $region9: #{fc_discriminator_forward.7} parent=0 // pred_fallthru
    _
  // Predicated region
  $region10: #{fc_discriminator_forward.7} parent=0 // pred_check
    _
  $region11: #{fc_discriminator_forward.7} parent=0 // pred_check_branch
    %13 = sbr.rel (0) target = $region13
  $region12: #{fc_discriminator_forward.7} parent=0 // pred_region
    _
  $region13: #{fc_discriminator_forward.7} parent=0 // pred_fallthru
    _
  %p15 = scmp.eq.s32.totalorder 0, 0
  // Predicated region
  $region14: #{fc_discriminator_forward.7} parent=0 // pred_check
    %p16 = pneg %p15
  $region15: #{fc_discriminator_forward.7} parent=0 // pred_check_branch
    %18 = sbr.rel (%p16) target = $region17
  $region16: #{fc_discriminator_forward.7} parent=0 // pred_region
    %19 = vst [vmem:[#allocation2] sm:$0xff] 0.0
    %20 = vst [vmem:[#allocation2 + $0x8] sm:$0xff] 0.0
    %21 = vst [vmem:[#allocation2 + $0x10] sm:$0xff] 0.0
    %22 = vst [vmem:[#allocation2 + $0x18] sm:$0xff] 0.0
  $region17: #{fc_discriminator_forward.7} parent=0 // pred_fallthru
    _
  %v23 = vld [vmem:[#allocation2] sm:$0xff]
  %v24 = vld [vmem:[#allocation2 + $0x8] sm:$0xff]
  %v25 = vld [vmem:[#allocation2 + $0x10] sm:$0xff]
  %v26 = vld [vmem:[#allocation2 + $0x18] sm:$0xff]
  %v27 = vld [vmem:[%s0] sm:$0xff]
  %v28 = vld [vmem:[%s0 + $0x8] sm:$0xff]
  %v29 = vld [vmem:[%s0 + $0x10] sm:$0xff]
  %v30 = vld [vmem:[%s0 + $0x18] sm:$0xff]
  %v31 = vld [vmem:[%s0 + $0x20] sm:$0xff]
  %v32 = vld [vmem:[%s0 + $0x28] sm:$0xff]
  %v33 = vld [vmem:[%s0 + $0x30] sm:$0xff]
  %v34 = vld [vmem:[%s0 + $0x38] sm:$0xff]
  %v35 = vld [vmem:[%s0 + $0x40] sm:$0xff]
  %v36 = vld [vmem:[%s0 + $0x48] sm:$0xff]
  %v37 = vld [vmem:[%s0 + $0x50] sm:$0xff]
  %v38 = vld [vmem:[%s0 + $0x58] sm:$0xff]
  %v39 = vld [vmem:[%s0 + $0x60] sm:$0xff]
  %v40 = vld [vmem:[%s0 + $0x68] sm:$0xff]
  %v41 = vld [vmem:[%s0 + $0x70] sm:$0xff]
  %v42 = vld [vmem:[%s0 + $0x78] sm:$0xff]
  %v43 = vld [vmem:[%s0 + $0x80] sm:$0xff]
  %v44 = vld [vmem:[%s0 + $0x88] sm:$0xff]
  %v45 = vld [vmem:[%s0 + $0x90] sm:$0xff]
  %v46 = vld [vmem:[%s0 + $0x98] sm:$0xff]
  %v47 = vld [vmem:[%s0 + $0xa0] sm:$0xff]
  %v48 = vld [vmem:[%s0 + $0xa8] sm:$0xff]
  %v49 = vld [vmem:[%s0 + $0xb0] sm:$0xff]
  %v50 = vld [vmem:[%s0 + $0xb8] sm:$0xff]
  %v51 = vld [vmem:[%s0 + $0xc0] sm:$0xff]
  %v52 = vld [vmem:[%s0 + $0xc8] sm:$0xff]
  %v53 = vld [vmem:[%s0 + $0xd0] sm:$0xff]
  %v54 = vld [vmem:[%s0 + $0xd8] sm:$0xff]
  %v55 = vld [vmem:[%s0 + $0xe0] sm:$0xff]
  %v56 = vld [vmem:[%s0 + $0xe8] sm:$0xff]
  %v57 = vld [vmem:[%s0 + $0xf0] sm:$0xff]
  %v58 = vld [vmem:[%s0 + $0xf8] sm:$0xff]
  %v59 = vld [vmem:[%s1] sm:$0xf]
  %v60 = vld [vmem:[%s1 + $0x4] sm:$0xf]
  %v61 = vld [vmem:[%s1 + $0x8] sm:$0xf]
  %v62 = vld [vmem:[%s1 + $0xc] sm:$0xf]
  %v63 = vld [vmem:[%s1 + $0x10] sm:$0xf]
  %v64 = vld [vmem:[%s1 + $0x14] sm:$0xf]
  %v65 = vld [vmem:[%s1 + $0x18] sm:$0xf]
  %v66 = vld [vmem:[%s1 + $0x1c] sm:$0xf]
  %v67 = vld [vmem:[%s1 + $0x20] sm:$0xf]
  %v68 = vld [vmem:[%s1 + $0x24] sm:$0xf]
  %v69 = vld [vmem:[%s1 + $0x28] sm:$0xf]
  %v70 = vld [vmem:[%s1 + $0x2c] sm:$0xf]
  %v71 = vld [vmem:[%s1 + $0x30] sm:$0xf]
  %v72 = vld [vmem:[%s1 + $0x34] sm:$0xf]
  %v73 = vld [vmem:[%s1 + $0x38] sm:$0xf]
  %v74 = vld [vmem:[%s1 + $0x3c] sm:$0xf]
  %v75 = vld [vmem:[%s1 + $0x40] sm:$0xf]
  %v76 = vld [vmem:[%s1 + $0x44] sm:$0xf]
  %v77 = vld [vmem:[%s1 + $0x48] sm:$0xf]
  %v78 = vld [vmem:[%s1 + $0x4c] sm:$0xf]
  %v79 = vld [vmem:[%s1 + $0x50] sm:$0xf]
  %v80 = vld [vmem:[%s1 + $0x54] sm:$0xf]
  %v81 = vld [vmem:[%s1 + $0x58] sm:$0xf]
  %v82 = vld [vmem:[%s1 + $0x5c] sm:$0xf]
  %v83 = vld [vmem:[%s1 + $0x60] sm:$0xf]
  %v84 = vld [vmem:[%s1 + $0x64] sm:$0xf]
  %v85 = vld [vmem:[%s1 + $0x68] sm:$0xf]
  %v86 = vld [vmem:[%s1 + $0x6c] sm:$0xf]
  %v87 = vld [vmem:[%s1 + $0x70] sm:$0xf]
  %v88 = vld [vmem:[%s1 + $0x74] sm:$0xf]
  %v89 = vld [vmem:[%s1 + $0x78] sm:$0xf]
  %v90 = vld [vmem:[%s1 + $0x7c] sm:$0xf]
  %v91 = vld [vmem:[%s1 + $0x80] sm:$0xf]
  %v92 = vld [vmem:[%s1 + $0x84] sm:$0xf]
  %v93 = vld [vmem:[%s1 + $0x88] sm:$0xf]
  %v94 = vld [vmem:[%s1 + $0x8c] sm:$0xf]
  %v95 = vld [vmem:[%s1 + $0x90] sm:$0xf]
  %v96 = vld [vmem:[%s1 + $0x94] sm:$0xf]
  %v97 = vld [vmem:[%s1 + $0x98] sm:$0xf]
  %v98 = vld [vmem:[%s1 + $0x9c] sm:$0xf]
  %v99 = vld [vmem:[%s1 + $0xa0] sm:$0xf]
  %v100 = vld [vmem:[%s1 + $0xa4] sm:$0xf]
  %v101 = vld [vmem:[%s1 + $0xa8] sm:$0xf]
  %v102 = vld [vmem:[%s1 + $0xac] sm:$0xf]
  %v103 = vld [vmem:[%s1 + $0xb0] sm:$0xf]
  %v104 = vld [vmem:[%s1 + $0xb4] sm:$0xf]
  %v105 = vld [vmem:[%s1 + $0xb8] sm:$0xf]
  %v106 = vld [vmem:[%s1 + $0xbc] sm:$0xf]
  %v107 = vld [vmem:[%s1 + $0xc0] sm:$0xf]
  %v108 = vld [vmem:[%s1 + $0xc4] sm:$0xf]
  %v109 = vld [vmem:[%s1 + $0xc8] sm:$0xf]
  %v110 = vld [vmem:[%s1 + $0xcc] sm:$0xf]
  %v111 = vld [vmem:[%s1 + $0xd0] sm:$0xf]
  %v112 = vld [vmem:[%s1 + $0xd4] sm:$0xf]
  %v113 = vld [vmem:[%s1 + $0xd8] sm:$0xf]
  %v114 = vld [vmem:[%s1 + $0xdc] sm:$0xf]
  %v115 = vld [vmem:[%s1 + $0xe0] sm:$0xf]
  %v116 = vld [vmem:[%s1 + $0xe4] sm:$0xf]
  %v117 = vld [vmem:[%s1 + $0xe8] sm:$0xf]
  %v118 = vld [vmem:[%s1 + $0xec] sm:$0xf]
  %v119 = vld [vmem:[%s1 + $0xf0] sm:$0xf]
  %v120 = vld [vmem:[%s1 + $0xf4] sm:$0xf]
  %v121 = vld [vmem:[%s1 + $0xf8] sm:$0xf]
  %v122 = vld [vmem:[%s1 + $0xfc] sm:$0xf]
  %v123 = vld [vmem:[%s1 + $0x100] sm:$0xf]
  %v124 = vld [vmem:[%s1 + $0x104] sm:$0xf]
  %v125 = vld [vmem:[%s1 + $0x108] sm:$0xf]
  %v126 = vld [vmem:[%s1 + $0x10c] sm:$0xf]
  %v127 = vld [vmem:[%s1 + $0x110] sm:$0xf]
  %v128 = vld [vmem:[%s1 + $0x114] sm:$0xf]
  %v129 = vld [vmem:[%s1 + $0x118] sm:$0xf]
  %v130 = vld [vmem:[%s1 + $0x11c] sm:$0xf]
  %v131 = vld [vmem:[%s1 + $0x120] sm:$0xf]
  %v132 = vld [vmem:[%s1 + $0x124] sm:$0xf]
  %v133 = vld [vmem:[%s1 + $0x128] sm:$0xf]
  %v134 = vld [vmem:[%s1 + $0x12c] sm:$0xf]
  %v135 = vld [vmem:[%s1 + $0x130] sm:$0xf]
  %v136 = vld [vmem:[%s1 + $0x134] sm:$0xf]
  %v137 = vld [vmem:[%s1 + $0x138] sm:$0xf]
  %v138 = vld [vmem:[%s1 + $0x13c] sm:$0xf]
  %v139 = vld [vmem:[%s1 + $0x140] sm:$0xf]
  %v140 = vld [vmem:[%s1 + $0x144] sm:$0xf]
  %v141 = vld [vmem:[%s1 + $0x148] sm:$0xf]
  %v142 = vld [vmem:[%s1 + $0x14c] sm:$0xf]
  %v143 = vld [vmem:[%s1 + $0x150] sm:$0xf]
  %v144 = vld [vmem:[%s1 + $0x154] sm:$0xf]
  %v145 = vld [vmem:[%s1 + $0x158] sm:$0xf]
  %v146 = vld [vmem:[%s1 + $0x15c] sm:$0xf]
  %v147 = vld [vmem:[%s1 + $0x160] sm:$0xf]
  %v148 = vld [vmem:[%s1 + $0x164] sm:$0xf]
  %v149 = vld [vmem:[%s1 + $0x168] sm:$0xf]
  %v150 = vld [vmem:[%s1 + $0x16c] sm:$0xf]
  %v151 = vld [vmem:[%s1 + $0x170] sm:$0xf]
  %v152 = vld [vmem:[%s1 + $0x174] sm:$0xf]
  %v153 = vld [vmem:[%s1 + $0x178] sm:$0xf]
  %v154 = vld [vmem:[%s1 + $0x17c] sm:$0xf]
  %v155 = vld [vmem:[%s1 + $0x180] sm:$0xf]
  %v156 = vld [vmem:[%s1 + $0x184] sm:$0xf]
  %v157 = vld [vmem:[%s1 + $0x188] sm:$0xf]
  %v158 = vld [vmem:[%s1 + $0x18c] sm:$0xf]
  %v159 = vld [vmem:[%s1 + $0x190] sm:$0xf]
  %v160 = vld [vmem:[%s1 + $0x194] sm:$0xf]
  %v161 = vld [vmem:[%s1 + $0x198] sm:$0xf]
  %v162 = vld [vmem:[%s1 + $0x19c] sm:$0xf]
  %v163 = vld [vmem:[%s1 + $0x1a0] sm:$0xf]
  %v164 = vld [vmem:[%s1 + $0x1a4] sm:$0xf]
  %v165 = vld [vmem:[%s1 + $0x1a8] sm:$0xf]
  %v166 = vld [vmem:[%s1 + $0x1ac] sm:$0xf]
  %v167 = vld [vmem:[%s1 + $0x1b0] sm:$0xf]
  %v168 = vld [vmem:[%s1 + $0x1b4] sm:$0xf]
  %v169 = vld [vmem:[%s1 + $0x1b8] sm:$0xf]
  %v170 = vld [vmem:[%s1 + $0x1bc] sm:$0xf]
  %v171 = vld [vmem:[%s1 + $0x1c0] sm:$0xf]
  %v172 = vld [vmem:[%s1 + $0x1c4] sm:$0xf]
  %v173 = vld [vmem:[%s1 + $0x1c8] sm:$0xf]
  %v174 = vld [vmem:[%s1 + $0x1cc] sm:$0xf]
  %v175 = vld [vmem:[%s1 + $0x1d0] sm:$0xf]
  %v176 = vld [vmem:[%s1 + $0x1d4] sm:$0xf]
  %v177 = vld [vmem:[%s1 + $0x1d8] sm:$0xf]
  %v178 = vld [vmem:[%s1 + $0x1dc] sm:$0xf]
  %v179 = vld [vmem:[%s1 + $0x1e0] sm:$0xf]
  %v180 = vld [vmem:[%s1 + $0x1e4] sm:$0xf]
  %v181 = vld [vmem:[%s1 + $0x1e8] sm:$0xf]
  %v182 = vld [vmem:[%s1 + $0x1ec] sm:$0xf]
  %v183 = vld [vmem:[%s1 + $0x1f0] sm:$0xf]
  %v184 = vld [vmem:[%s1 + $0x1f4] sm:$0xf]
  %v185 = vld [vmem:[%s1 + $0x1f8] sm:$0xf]
  %v186 = vld [vmem:[%s1 + $0x1fc] sm:$0xf]
  %v187 = vld [vmem:[%s1 + $0x200] sm:$0xf]
  %v188 = vld [vmem:[%s1 + $0x204] sm:$0xf]
  %v189 = vld [vmem:[%s1 + $0x208] sm:$0xf]
  %v190 = vld [vmem:[%s1 + $0x20c] sm:$0xf]
  %v191 = vld [vmem:[%s1 + $0x210] sm:$0xf]
  %v192 = vld [vmem:[%s1 + $0x214] sm:$0xf]
  %v193 = vld [vmem:[%s1 + $0x218] sm:$0xf]
  %v194 = vld [vmem:[%s1 + $0x21c] sm:$0xf]
  %v195 = vld [vmem:[%s1 + $0x220] sm:$0xf]
  %v196 = vld [vmem:[%s1 + $0x224] sm:$0xf]
  %v197 = vld [vmem:[%s1 + $0x228] sm:$0xf]
  %v198 = vld [vmem:[%s1 + $0x22c] sm:$0xf]
  %v199 = vld [vmem:[%s1 + $0x230] sm:$0xf]
  %v200 = vld [vmem:[%s1 + $0x234] sm:$0xf]
  %v201 = vld [vmem:[%s1 + $0x238] sm:$0xf]
  %v202 = vld [vmem:[%s1 + $0x23c] sm:$0xf]
  %v203 = vld [vmem:[%s1 + $0x240] sm:$0xf]
  %v204 = vld [vmem:[%s1 + $0x244] sm:$0xf]
  %v205 = vld [vmem:[%s1 + $0x248] sm:$0xf]
  %v206 = vld [vmem:[%s1 + $0x24c] sm:$0xf]
  %v207 = vld [vmem:[%s1 + $0x250] sm:$0xf]
  %v208 = vld [vmem:[%s1 + $0x254] sm:$0xf]
  %v209 = vld [vmem:[%s1 + $0x258] sm:$0xf]
  %v210 = vld [vmem:[%s1 + $0x25c] sm:$0xf]
  %v211 = vld [vmem:[%s1 + $0x260] sm:$0xf]
  %v212 = vld [vmem:[%s1 + $0x264] sm:$0xf]
  %v213 = vld [vmem:[%s1 + $0x268] sm:$0xf]
  %v214 = vld [vmem:[%s1 + $0x26c] sm:$0xf]
  %v215 = vld [vmem:[%s1 + $0x270] sm:$0xf]
  %v216 = vld [vmem:[%s1 + $0x274] sm:$0xf]
  %v217 = vld [vmem:[%s1 + $0x278] sm:$0xf]
  %v218 = vld [vmem:[%s1 + $0x27c] sm:$0xf]
  %v219 = vld [vmem:[%s1 + $0x280] sm:$0xf]
  %v220 = vld [vmem:[%s1 + $0x284] sm:$0xf]
  %v221 = vld [vmem:[%s1 + $0x288] sm:$0xf]
  %v222 = vld [vmem:[%s1 + $0x28c] sm:$0xf]
  %v223 = vld [vmem:[%s1 + $0x290] sm:$0xf]
  %v224 = vld [vmem:[%s1 + $0x294] sm:$0xf]
  %v225 = vld [vmem:[%s1 + $0x298] sm:$0xf]
  %v226 = vld [vmem:[%s1 + $0x29c] sm:$0xf]
  %v227 = vld [vmem:[%s1 + $0x2a0] sm:$0xf]
  %v228 = vld [vmem:[%s1 + $0x2a4] sm:$0xf]
  %v229 = vld [vmem:[%s1 + $0x2a8] sm:$0xf]
  %v230 = vld [vmem:[%s1 + $0x2ac] sm:$0xf]
  %v231 = vld [vmem:[%s1 + $0x2b0] sm:$0xf]
  %v232 = vld [vmem:[%s1 + $0x2b4] sm:$0xf]
  %v233 = vld [vmem:[%s1 + $0x2b8] sm:$0xf]
  %v234 = vld [vmem:[%s1 + $0x2bc] sm:$0xf]
  %v235 = vld [vmem:[%s1 + $0x2c0] sm:$0xf]
  %v236 = vld [vmem:[%s1 + $0x2c4] sm:$0xf]
  %v237 = vld [vmem:[%s1 + $0x2c8] sm:$0xf]
  %v238 = vld [vmem:[%s1 + $0x2cc] sm:$0xf]
  %v239 = vld [vmem:[%s1 + $0x2d0] sm:$0xf]
  %v240 = vld [vmem:[%s1 + $0x2d4] sm:$0xf]
  %v241 = vld [vmem:[%s1 + $0x2d8] sm:$0xf]
  %v242 = vld [vmem:[%s1 + $0x2dc] sm:$0xf]
  %v243 = vld [vmem:[%s1 + $0x2e0] sm:$0xf]
  %v244 = vld [vmem:[%s1 + $0x2e4] sm:$0xf]
  %v245 = vld [vmem:[%s1 + $0x2e8] sm:$0xf]
  %v246 = vld [vmem:[%s1 + $0x2ec] sm:$0xf]
  %v247 = vld [vmem:[%s1 + $0x2f0] sm:$0xf]
  %v248 = vld [vmem:[%s1 + $0x2f4] sm:$0xf]
  %v249 = vld [vmem:[%s1 + $0x2f8] sm:$0xf]
  %v250 = vld [vmem:[%s1 + $0x2fc] sm:$0xf]
  %v251 = vld [vmem:[%s1 + $0x300] sm:$0xf]
  %v252 = vld [vmem:[%s1 + $0x304] sm:$0xf]
  %v253 = vld [vmem:[%s1 + $0x308] sm:$0xf]
  %v254 = vld [vmem:[%s1 + $0x30c] sm:$0xf]
  %v255 = vld [vmem:[%s1 + $0x310] sm:$0xf]
  %v256 = vld [vmem:[%s1 + $0x314] sm:$0xf]
  %v257 = vld [vmem:[%s1 + $0x318] sm:$0xf]
  %v258 = vld [vmem:[%s1 + $0x31c] sm:$0xf]
  %v259 = vld [vmem:[%s1 + $0x320] sm:$0xf]
  %v260 = vld [vmem:[%s1 + $0x324] sm:$0xf]
  %v261 = vld [vmem:[%s1 + $0x328] sm:$0xf]
  %v262 = vld [vmem:[%s1 + $0x32c] sm:$0xf]
  %v263 = vld [vmem:[%s1 + $0x330] sm:$0xf]
  %v264 = vld [vmem:[%s1 + $0x334] sm:$0xf]
  %v265 = vld [vmem:[%s1 + $0x338] sm:$0xf]
  %v266 = vld [vmem:[%s1 + $0x33c] sm:$0xf]
  %v267 = vld [vmem:[%s1 + $0x340] sm:$0xf]
  %v268 = vld [vmem:[%s1 + $0x344] sm:$0xf]
  %v269 = vld [vmem:[%s1 + $0x348] sm:$0xf]
  %v270 = vld [vmem:[%s1 + $0x34c] sm:$0xf]
  %v271 = vld [vmem:[%s1 + $0x350] sm:$0xf]
  %v272 = vld [vmem:[%s1 + $0x354] sm:$0xf]
  %v273 = vld [vmem:[%s1 + $0x358] sm:$0xf]
  %v274 = vld [vmem:[%s1 + $0x35c] sm:$0xf]
  %v275 = vld [vmem:[%s1 + $0x360] sm:$0xf]
  %v276 = vld [vmem:[%s1 + $0x364] sm:$0xf]
  %v277 = vld [vmem:[%s1 + $0x368] sm:$0xf]
  %v278 = vld [vmem:[%s1 + $0x36c] sm:$0xf]
  %v279 = vld [vmem:[%s1 + $0x370] sm:$0xf]
  %v280 = vld [vmem:[%s1 + $0x374] sm:$0xf]
  %v281 = vld [vmem:[%s1 + $0x378] sm:$0xf]
  %v282 = vld [vmem:[%s1 + $0x37c] sm:$0xf]
  %v283 = vld [vmem:[%s1 + $0x380] sm:$0xf]
  %v284 = vld [vmem:[%s1 + $0x384] sm:$0xf]
  %v285 = vld [vmem:[%s1 + $0x388] sm:$0xf]
  %v286 = vld [vmem:[%s1 + $0x38c] sm:$0xf]
  %v287 = vld [vmem:[%s1 + $0x390] sm:$0xf]
  %v288 = vld [vmem:[%s1 + $0x394] sm:$0xf]
  %v289 = vld [vmem:[%s1 + $0x398] sm:$0xf]
  %v290 = vld [vmem:[%s1 + $0x39c] sm:$0xf]
  %v291 = vld [vmem:[%s1 + $0x3a0] sm:$0xf]
  %v292 = vld [vmem:[%s1 + $0x3a4] sm:$0xf]
  %v293 = vld [vmem:[%s1 + $0x3a8] sm:$0xf]
  %v294 = vld [vmem:[%s1 + $0x3ac] sm:$0xf]
  %v295 = vld [vmem:[%s1 + $0x3b0] sm:$0xf]
  %v296 = vld [vmem:[%s1 + $0x3b4] sm:$0xf]
  %v297 = vld [vmem:[%s1 + $0x3b8] sm:$0xf]
  %v298 = vld [vmem:[%s1 + $0x3bc] sm:$0xf]
  %v299 = vld [vmem:[%s1 + $0x3c0] sm:$0xf]
  %v300 = vld [vmem:[%s1 + $0x3c4] sm:$0xf]
  %v301 = vld [vmem:[%s1 + $0x3c8] sm:$0xf]
  %v302 = vld [vmem:[%s1 + $0x3cc] sm:$0xf]
  %v303 = vld [vmem:[%s1 + $0x3d0] sm:$0xf]
  %v304 = vld [vmem:[%s1 + $0x3d4] sm:$0xf]
  %v305 = vld [vmem:[%s1 + $0x3d8] sm:$0xf]
  %v306 = vld [vmem:[%s1 + $0x3dc] sm:$0xf]
  %v307 = vld [vmem:[%s1 + $0x3e0] sm:$0xf]
  %v308 = vld [vmem:[%s1 + $0x3e4] sm:$0xf]
  %v309 = vld [vmem:[%s1 + $0x3e8] sm:$0xf]
  %v310 = vld [vmem:[%s1 + $0x3ec] sm:$0xf]
  %v311 = vld [vmem:[%s1 + $0x3f0] sm:$0xf]
  %v312 = vld [vmem:[%s1 + $0x3f4] sm:$0xf]
  %v313 = vld [vmem:[%s1 + $0x3f8] sm:$0xf]
  %v314 = vld [vmem:[%s1 + $0x3fc] sm:$0xf]
  %v347 = vunpack.c.l.b16 %v27
  %v348 = vunpack.c.h.b16 %v27
  %v349 = vunpack.c.l.b16 %v28
  %v350 = vunpack.c.h.b16 %v28
  %v351 = vunpack.c.l.b16 %v29
  %v352 = vunpack.c.h.b16 %v29
  %v353 = vunpack.c.l.b16 %v30
  %v354 = vunpack.c.h.b16 %v30
  %v355 = vunpack.c.l.b16 %v31
  %v356 = vunpack.c.h.b16 %v31
  %v357 = vunpack.c.l.b16 %v32
  %v358 = vunpack.c.h.b16 %v32
  %v359 = vunpack.c.l.b16 %v33
  %v360 = vunpack.c.h.b16 %v33
  %v361 = vunpack.c.l.b16 %v34
  %v362 = vunpack.c.h.b16 %v34
  %v363 = vunpack.c.l.b16 %v35
  %v364 = vunpack.c.h.b16 %v35
  %v365 = vunpack.c.l.b16 %v36
  %v366 = vunpack.c.h.b16 %v36
  %v367 = vunpack.c.l.b16 %v37
  %v368 = vunpack.c.h.b16 %v37
  %v369 = vunpack.c.l.b16 %v38
  %v370 = vunpack.c.h.b16 %v38
  %v371 = vunpack.c.l.b16 %v39
  %v372 = vunpack.c.h.b16 %v39
  %v373 = vunpack.c.l.b16 %v40
  %v374 = vunpack.c.h.b16 %v40
  %v375 = vunpack.c.l.b16 %v41
  %v376 = vunpack.c.h.b16 %v41
  %v377 = vunpack.c.l.b16 %v42
  %v378 = vunpack.c.h.b16 %v42
  %v379 = vunpack.c.l.b16 %v43
  %v380 = vunpack.c.h.b16 %v43
  %v381 = vunpack.c.l.b16 %v44
  %v382 = vunpack.c.h.b16 %v44
  %v383 = vunpack.c.l.b16 %v45
  %v384 = vunpack.c.h.b16 %v45
  %v385 = vunpack.c.l.b16 %v46
  %v386 = vunpack.c.h.b16 %v46
  %v387 = vunpack.c.l.b16 %v47
  %v388 = vunpack.c.h.b16 %v47
  %v389 = vunpack.c.l.b16 %v48
  %v390 = vunpack.c.h.b16 %v48
  %v391 = vunpack.c.l.b16 %v49
  %v392 = vunpack.c.h.b16 %v49
  %v393 = vunpack.c.l.b16 %v50
  %v394 = vunpack.c.h.b16 %v50
  %v395 = vunpack.c.l.b16 %v51
  %v396 = vunpack.c.h.b16 %v51
  %v397 = vunpack.c.l.b16 %v52
  %v398 = vunpack.c.h.b16 %v52
  %v399 = vunpack.c.l.b16 %v53
  %v400 = vunpack.c.h.b16 %v53
  %v401 = vunpack.c.l.b16 %v54
  %v402 = vunpack.c.h.b16 %v54
  %v403 = vunpack.c.l.b16 %v55
  %v404 = vunpack.c.h.b16 %v55
  %v405 = vunpack.c.l.b16 %v56
  %v406 = vunpack.c.h.b16 %v56
  %v407 = vunpack.c.l.b16 %v57
  %v408 = vunpack.c.h.b16 %v57
  %v409 = vunpack.c.l.b16 %v58
  %v410 = vunpack.c.h.b16 %v58
  %v411 = vpack.c.b16 %v363, %v347
  %v412 = vpack.c.b16 %v364, %v348
  %v413 = vpack.c.b16 %v365, %v349
  %v414 = vpack.c.b16 %v366, %v350
  %v415 = vpack.c.b16 %v367, %v351
  %v416 = vpack.c.b16 %v368, %v352
  %v417 = vpack.c.b16 %v369, %v353
  %v418 = vpack.c.b16 %v370, %v354
  %v419 = vpack.c.b16 %v371, %v355
  %v420 = vpack.c.b16 %v372, %v356
  %v421 = vpack.c.b16 %v373, %v357
  %v422 = vpack.c.b16 %v374, %v358
  %v423 = vpack.c.b16 %v375, %v359
  %v424 = vpack.c.b16 %v376, %v360
  %v425 = vpack.c.b16 %v377, %v361
  %v426 = vpack.c.b16 %v378, %v362
  %v427 = vpack.c.b16 %v395, %v379
  %v428 = vpack.c.b16 %v396, %v380
  %v429 = vpack.c.b16 %v397, %v381
  %v430 = vpack.c.b16 %v398, %v382
  %v431 = vpack.c.b16 %v399, %v383
  %v432 = vpack.c.b16 %v400, %v384
  %v433 = vpack.c.b16 %v401, %v385
  %v434 = vpack.c.b16 %v402, %v386
  %v435 = vpack.c.b16 %v403, %v387
  %v436 = vpack.c.b16 %v404, %v388
  %v437 = vpack.c.b16 %v405, %v389
  %v438 = vpack.c.b16 %v406, %v390
  %v439 = vpack.c.b16 %v407, %v391
  %v440 = vpack.c.b16 %v408, %v392
  %v441 = vpack.c.b16 %v409, %v393
  %v442 = vpack.c.b16 %v410, %v394
  %v731 = vunpack.c.l.b16 %v59
  %v732 = vunpack.c.l.b16 %v60
  %v733 = vunpack.c.l.b16 %v61
  %v734 = vunpack.c.l.b16 %v62
  %v735 = vunpack.c.l.b16 %v63
  %v736 = vunpack.c.l.b16 %v64
  %v737 = vunpack.c.l.b16 %v65
  %v738 = vunpack.c.l.b16 %v66
  %v739 = vunpack.c.l.b16 %v67
  %v740 = vunpack.c.l.b16 %v68
  %v741 = vunpack.c.l.b16 %v69
  %v742 = vunpack.c.l.b16 %v70
  %v743 = vunpack.c.l.b16 %v71
  %v744 = vunpack.c.l.b16 %v72
  %v745 = vunpack.c.l.b16 %v73
  %v746 = vunpack.c.l.b16 %v74
  %v747 = vunpack.c.l.b16 %v75
  %v748 = vunpack.c.l.b16 %v76
  %v749 = vunpack.c.l.b16 %v77
  %v750 = vunpack.c.l.b16 %v78
  %v751 = vunpack.c.l.b16 %v79
  %v752 = vunpack.c.l.b16 %v80
  %v753 = vunpack.c.l.b16 %v81
  %v754 = vunpack.c.l.b16 %v82
  %v755 = vunpack.c.l.b16 %v83
  %v756 = vunpack.c.l.b16 %v84
  %v757 = vunpack.c.l.b16 %v85
  %v758 = vunpack.c.l.b16 %v86
  %v759 = vunpack.c.l.b16 %v87
  %v760 = vunpack.c.l.b16 %v88
  %v761 = vunpack.c.l.b16 %v89
  %v762 = vunpack.c.l.b16 %v90
  %v763 = vunpack.c.l.b16 %v91
  %v764 = vunpack.c.l.b16 %v92
  %v765 = vunpack.c.l.b16 %v93
  %v766 = vunpack.c.l.b16 %v94
  %v767 = vunpack.c.l.b16 %v95
  %v768 = vunpack.c.l.b16 %v96
  %v769 = vunpack.c.l.b16 %v97
  %v770 = vunpack.c.l.b16 %v98
  %v771 = vunpack.c.l.b16 %v99
  %v772 = vunpack.c.l.b16 %v100
  %v773 = vunpack.c.l.b16 %v101
  %v774 = vunpack.c.l.b16 %v102
  %v775 = vunpack.c.l.b16 %v103
  %v776 = vunpack.c.l.b16 %v104
  %v777 = vunpack.c.l.b16 %v105
  %v778 = vunpack.c.l.b16 %v106
  %v779 = vunpack.c.l.b16 %v107
  %v780 = vunpack.c.l.b16 %v108
  %v781 = vunpack.c.l.b16 %v109
  %v782 = vunpack.c.l.b16 %v110
  %v783 = vunpack.c.l.b16 %v111
  %v784 = vunpack.c.l.b16 %v112
  %v785 = vunpack.c.l.b16 %v113
  %v786 = vunpack.c.l.b16 %v114
  %v787 = vunpack.c.l.b16 %v115
  %v788 = vunpack.c.l.b16 %v116
  %v789 = vunpack.c.l.b16 %v117
  %v790 = vunpack.c.l.b16 %v118
  %v791 = vunpack.c.l.b16 %v119
  %v792 = vunpack.c.l.b16 %v120
  %v793 = vunpack.c.l.b16 %v121
  %v794 = vunpack.c.l.b16 %v122
  %v795 = vunpack.c.l.b16 %v123
  %v796 = vunpack.c.l.b16 %v124
  %v797 = vunpack.c.l.b16 %v125
  %v798 = vunpack.c.l.b16 %v126
  %v799 = vunpack.c.l.b16 %v127
  %v800 = vunpack.c.l.b16 %v128
  %v801 = vunpack.c.l.b16 %v129
  %v802 = vunpack.c.l.b16 %v130
  %v803 = vunpack.c.l.b16 %v131
  %v804 = vunpack.c.l.b16 %v132
  %v805 = vunpack.c.l.b16 %v133
  %v806 = vunpack.c.l.b16 %v134
  %v807 = vunpack.c.l.b16 %v135
  %v808 = vunpack.c.l.b16 %v136
  %v809 = vunpack.c.l.b16 %v137
  %v810 = vunpack.c.l.b16 %v138
  %v811 = vunpack.c.l.b16 %v139
  %v812 = vunpack.c.l.b16 %v140
  %v813 = vunpack.c.l.b16 %v141
  %v814 = vunpack.c.l.b16 %v142
  %v815 = vunpack.c.l.b16 %v143
  %v816 = vunpack.c.l.b16 %v144
  %v817 = vunpack.c.l.b16 %v145
  %v818 = vunpack.c.l.b16 %v146
  %v819 = vunpack.c.l.b16 %v147
  %v820 = vunpack.c.l.b16 %v148
  %v821 = vunpack.c.l.b16 %v149
  %v822 = vunpack.c.l.b16 %v150
  %v823 = vunpack.c.l.b16 %v151
  %v824 = vunpack.c.l.b16 %v152
  %v825 = vunpack.c.l.b16 %v153
  %v826 = vunpack.c.l.b16 %v154
  %v827 = vunpack.c.l.b16 %v155
  %v828 = vunpack.c.l.b16 %v156
  %v829 = vunpack.c.l.b16 %v157
  %v830 = vunpack.c.l.b16 %v158
  %v831 = vunpack.c.l.b16 %v159
  %v832 = vunpack.c.l.b16 %v160
  %v833 = vunpack.c.l.b16 %v161
  %v834 = vunpack.c.l.b16 %v162
  %v835 = vunpack.c.l.b16 %v163
  %v836 = vunpack.c.l.b16 %v164
  %v837 = vunpack.c.l.b16 %v165
  %v838 = vunpack.c.l.b16 %v166
  %v839 = vunpack.c.l.b16 %v167
  %v840 = vunpack.c.l.b16 %v168
  %v841 = vunpack.c.l.b16 %v169
  %v842 = vunpack.c.l.b16 %v170
  %v843 = vunpack.c.l.b16 %v171
  %v844 = vunpack.c.l.b16 %v172
  %v845 = vunpack.c.l.b16 %v173
  %v846 = vunpack.c.l.b16 %v174
  %v847 = vunpack.c.l.b16 %v175
  %v848 = vunpack.c.l.b16 %v176
  %v849 = vunpack.c.l.b16 %v177
  %v850 = vunpack.c.l.b16 %v178
  %v851 = vunpack.c.l.b16 %v179
  %v852 = vunpack.c.l.b16 %v180
  %v853 = vunpack.c.l.b16 %v181
  %v854 = vunpack.c.l.b16 %v182
  %v855 = vunpack.c.l.b16 %v183
  %v856 = vunpack.c.l.b16 %v184
  %v857 = vunpack.c.l.b16 %v185
  %v858 = vunpack.c.l.b16 %v186
  %v859 = vunpack.c.l.b16 %v187
  %v860 = vunpack.c.l.b16 %v188
  %v861 = vunpack.c.l.b16 %v189
  %v862 = vunpack.c.l.b16 %v190
  %v863 = vunpack.c.l.b16 %v191
  %v864 = vunpack.c.l.b16 %v192
  %v865 = vunpack.c.l.b16 %v193
  %v866 = vunpack.c.l.b16 %v194
  %v867 = vunpack.c.l.b16 %v195
  %v868 = vunpack.c.l.b16 %v196
  %v869 = vunpack.c.l.b16 %v197
  %v870 = vunpack.c.l.b16 %v198
  %v871 = vunpack.c.l.b16 %v199
  %v872 = vunpack.c.l.b16 %v200
  %v873 = vunpack.c.l.b16 %v201
  %v874 = vunpack.c.l.b16 %v202
  %v875 = vunpack.c.l.b16 %v203
  %v876 = vunpack.c.l.b16 %v204
  %v877 = vunpack.c.l.b16 %v205
  %v878 = vunpack.c.l.b16 %v206
  %v879 = vunpack.c.l.b16 %v207
  %v880 = vunpack.c.l.b16 %v208
  %v881 = vunpack.c.l.b16 %v209
  %v882 = vunpack.c.l.b16 %v210
  %v883 = vunpack.c.l.b16 %v211
  %v884 = vunpack.c.l.b16 %v212
  %v885 = vunpack.c.l.b16 %v213
  %v886 = vunpack.c.l.b16 %v214
  %v887 = vunpack.c.l.b16 %v215
  %v888 = vunpack.c.l.b16 %v216
  %v889 = vunpack.c.l.b16 %v217
  %v890 = vunpack.c.l.b16 %v218
  %v891 = vunpack.c.l.b16 %v219
  %v892 = vunpack.c.l.b16 %v220
  %v893 = vunpack.c.l.b16 %v221
  %v894 = vunpack.c.l.b16 %v222
  %v895 = vunpack.c.l.b16 %v223
  %v896 = vunpack.c.l.b16 %v224
  %v897 = vunpack.c.l.b16 %v225
  %v898 = vunpack.c.l.b16 %v226
  %v899 = vunpack.c.l.b16 %v227
  %v900 = vunpack.c.l.b16 %v228
  %v901 = vunpack.c.l.b16 %v229
  %v902 = vunpack.c.l.b16 %v230
  %v903 = vunpack.c.l.b16 %v231
  %v904 = vunpack.c.l.b16 %v232
  %v905 = vunpack.c.l.b16 %v233
  %v906 = vunpack.c.l.b16 %v234
  %v907 = vunpack.c.l.b16 %v235
  %v908 = vunpack.c.l.b16 %v236
  %v909 = vunpack.c.l.b16 %v237
  %v910 = vunpack.c.l.b16 %v238
  %v911 = vunpack.c.l.b16 %v239
  %v912 = vunpack.c.l.b16 %v240
  %v913 = vunpack.c.l.b16 %v241
  %v914 = vunpack.c.l.b16 %v242
  %v915 = vunpack.c.l.b16 %v243
  %v916 = vunpack.c.l.b16 %v244
  %v917 = vunpack.c.l.b16 %v245
  %v918 = vunpack.c.l.b16 %v246
  %v919 = vunpack.c.l.b16 %v247
  %v920 = vunpack.c.l.b16 %v248
  %v921 = vunpack.c.l.b16 %v249
  %v922 = vunpack.c.l.b16 %v250
  %v923 = vunpack.c.l.b16 %v251
  %v924 = vunpack.c.l.b16 %v252
  %v925 = vunpack.c.l.b16 %v253
  %v926 = vunpack.c.l.b16 %v254
  %v927 = vunpack.c.l.b16 %v255
  %v928 = vunpack.c.l.b16 %v256
  %v929 = vunpack.c.l.b16 %v257
  %v930 = vunpack.c.l.b16 %v258
  %v931 = vunpack.c.l.b16 %v259
  %v932 = vunpack.c.l.b16 %v260
  %v933 = vunpack.c.l.b16 %v261
  %v934 = vunpack.c.l.b16 %v262
  %v935 = vunpack.c.l.b16 %v263
  %v936 = vunpack.c.l.b16 %v264
  %v937 = vunpack.c.l.b16 %v265
  %v938 = vunpack.c.l.b16 %v266
  %v939 = vunpack.c.l.b16 %v267
  %v940 = vunpack.c.l.b16 %v268
  %v941 = vunpack.c.l.b16 %v269
  %v942 = vunpack.c.l.b16 %v270
  %v943 = vunpack.c.l.b16 %v271
  %v944 = vunpack.c.l.b16 %v272
  %v945 = vunpack.c.l.b16 %v273
  %v946 = vunpack.c.l.b16 %v274
  %v947 = vunpack.c.l.b16 %v275
  %v948 = vunpack.c.l.b16 %v276
  %v949 = vunpack.c.l.b16 %v277
  %v950 = vunpack.c.l.b16 %v278
  %v951 = vunpack.c.l.b16 %v279
  %v952 = vunpack.c.l.b16 %v280
  %v953 = vunpack.c.l.b16 %v281
  %v954 = vunpack.c.l.b16 %v282
  %v955 = vunpack.c.l.b16 %v283
  %v956 = vunpack.c.l.b16 %v284
  %v957 = vunpack.c.l.b16 %v285
  %v958 = vunpack.c.l.b16 %v286
  %v959 = vunpack.c.l.b16 %v287
  %v960 = vunpack.c.l.b16 %v288
  %v961 = vunpack.c.l.b16 %v289
  %v962 = vunpack.c.l.b16 %v290
  %v963 = vunpack.c.l.b16 %v291
  %v964 = vunpack.c.l.b16 %v292
  %v965 = vunpack.c.l.b16 %v293
  %v966 = vunpack.c.l.b16 %v294
  %v967 = vunpack.c.l.b16 %v295
  %v968 = vunpack.c.l.b16 %v296
  %v969 = vunpack.c.l.b16 %v297
  %v970 = vunpack.c.l.b16 %v298
  %v971 = vunpack.c.l.b16 %v299
  %v972 = vunpack.c.l.b16 %v300
  %v973 = vunpack.c.l.b16 %v301
  %v974 = vunpack.c.l.b16 %v302
  %v975 = vunpack.c.l.b16 %v303
  %v976 = vunpack.c.l.b16 %v304
  %v977 = vunpack.c.l.b16 %v305
  %v978 = vunpack.c.l.b16 %v306
  %v979 = vunpack.c.l.b16 %v307
  %v980 = vunpack.c.l.b16 %v308
  %v981 = vunpack.c.l.b16 %v309
  %v982 = vunpack.c.l.b16 %v310
  %v983 = vunpack.c.l.b16 %v311
  %v984 = vunpack.c.l.b16 %v312
  %v985 = vunpack.c.l.b16 %v313
  %v986 = vunpack.c.l.b16 %v314
  %v987 = vpack.c.b16 %v732, %v731
  %v988 = vpack.c.b16 %v734, %v733
  %v989 = vpack.c.b16 %v736, %v735
  %v990 = vpack.c.b16 %v738, %v737
  %v991 = vpack.c.b16 %v740, %v739
  %v992 = vpack.c.b16 %v742, %v741
  %v993 = vpack.c.b16 %v744, %v743
  %v994 = vpack.c.b16 %v746, %v745
  %v995 = vpack.c.b16 %v748, %v747
  %v996 = vpack.c.b16 %v750, %v749
  %v997 = vpack.c.b16 %v752, %v751
  %v998 = vpack.c.b16 %v754, %v753
  %v999 = vpack.c.b16 %v756, %v755
  %v1000 = vpack.c.b16 %v758, %v757
  %v1001 = vpack.c.b16 %v760, %v759
  %v1002 = vpack.c.b16 %v762, %v761
  %v1003 = vpack.c.b16 %v764, %v763
  %v1004 = vpack.c.b16 %v766, %v765
  %v1005 = vpack.c.b16 %v768, %v767
  %v1006 = vpack.c.b16 %v770, %v769
  %v1007 = vpack.c.b16 %v772, %v771
  %v1008 = vpack.c.b16 %v774, %v773
  %v1009 = vpack.c.b16 %v776, %v775
  %v1010 = vpack.c.b16 %v778, %v777
  %v1011 = vpack.c.b16 %v780, %v779
  %v1012 = vpack.c.b16 %v782, %v781
  %v1013 = vpack.c.b16 %v784, %v783
  %v1014 = vpack.c.b16 %v786, %v785
  %v1015 = vpack.c.b16 %v788, %v787
  %v1016 = vpack.c.b16 %v790, %v789
  %v1017 = vpack.c.b16 %v792, %v791
  %v1018 = vpack.c.b16 %v794, %v793
  %v1019 = vpack.c.b16 %v796, %v795
  %v1020 = vpack.c.b16 %v798, %v797
  %v1021 = vpack.c.b16 %v800, %v799
  %v1022 = vpack.c.b16 %v802, %v801
  %v1023 = vpack.c.b16 %v804, %v803
  %v1024 = vpack.c.b16 %v806, %v805
  %v1025 = vpack.c.b16 %v808, %v807
  %v1026 = vpack.c.b16 %v810, %v809
  %v1027 = vpack.c.b16 %v812, %v811
  %v1028 = vpack.c.b16 %v814, %v813
  %v1029 = vpack.c.b16 %v816, %v815
  %v1030 = vpack.c.b16 %v818, %v817
  %v1031 = vpack.c.b16 %v820, %v819
  %v1032 = vpack.c.b16 %v822, %v821
  %v1033 = vpack.c.b16 %v824, %v823
  %v1034 = vpack.c.b16 %v826, %v825
  %v1035 = vpack.c.b16 %v828, %v827
  %v1036 = vpack.c.b16 %v830, %v829
  %v1037 = vpack.c.b16 %v832, %v831
  %v1038 = vpack.c.b16 %v834, %v833
  %v1039 = vpack.c.b16 %v836, %v835
  %v1040 = vpack.c.b16 %v838, %v837
  %v1041 = vpack.c.b16 %v840, %v839
  %v1042 = vpack.c.b16 %v842, %v841
  %v1043 = vpack.c.b16 %v844, %v843
  %v1044 = vpack.c.b16 %v846, %v845
  %v1045 = vpack.c.b16 %v848, %v847
  %v1046 = vpack.c.b16 %v850, %v849
  %v1047 = vpack.c.b16 %v852, %v851
  %v1048 = vpack.c.b16 %v854, %v853
  %v1049 = vpack.c.b16 %v856, %v855
  %v1050 = vpack.c.b16 %v858, %v857
  %v1051 = vpack.c.b16 %v860, %v859
  %v1052 = vpack.c.b16 %v862, %v861
  %v1053 = vpack.c.b16 %v864, %v863
  %v1054 = vpack.c.b16 %v866, %v865
  %v1055 = vpack.c.b16 %v868, %v867
  %v1056 = vpack.c.b16 %v870, %v869
  %v1057 = vpack.c.b16 %v872, %v871
  %v1058 = vpack.c.b16 %v874, %v873
  %v1059 = vpack.c.b16 %v876, %v875
  %v1060 = vpack.c.b16 %v878, %v877
  %v1061 = vpack.c.b16 %v880, %v879
  %v1062 = vpack.c.b16 %v882, %v881
  %v1063 = vpack.c.b16 %v884, %v883
  %v1064 = vpack.c.b16 %v886, %v885
  %v1065 = vpack.c.b16 %v888, %v887
  %v1066 = vpack.c.b16 %v890, %v889
  %v1067 = vpack.c.b16 %v892, %v891
  %v1068 = vpack.c.b16 %v894, %v893
  %v1069 = vpack.c.b16 %v896, %v895
  %v1070 = vpack.c.b16 %v898, %v897
  %v1071 = vpack.c.b16 %v900, %v899
  %v1072 = vpack.c.b16 %v902, %v901
  %v1073 = vpack.c.b16 %v904, %v903
  %v1074 = vpack.c.b16 %v906, %v905
  %v1075 = vpack.c.b16 %v908, %v907
  %v1076 = vpack.c.b16 %v910, %v909
  %v1077 = vpack.c.b16 %v912, %v911
  %v1078 = vpack.c.b16 %v914, %v913
  %v1079 = vpack.c.b16 %v916, %v915
  %v1080 = vpack.c.b16 %v918, %v917
  %v1081 = vpack.c.b16 %v920, %v919
  %v1082 = vpack.c.b16 %v922, %v921
  %v1083 = vpack.c.b16 %v924, %v923
  %v1084 = vpack.c.b16 %v926, %v925
  %v1085 = vpack.c.b16 %v928, %v927
  %v1086 = vpack.c.b16 %v930, %v929
  %v1087 = vpack.c.b16 %v932, %v931
  %v1088 = vpack.c.b16 %v934, %v933
  %v1089 = vpack.c.b16 %v936, %v935
  %v1090 = vpack.c.b16 %v938, %v937
  %v1091 = vpack.c.b16 %v940, %v939
  %v1092 = vpack.c.b16 %v942, %v941
  %v1093 = vpack.c.b16 %v944, %v943
  %v1094 = vpack.c.b16 %v946, %v945
  %v1095 = vpack.c.b16 %v948, %v947
  %v1096 = vpack.c.b16 %v950, %v949
  %v1097 = vpack.c.b16 %v952, %v951
  %v1098 = vpack.c.b16 %v954, %v953
  %v1099 = vpack.c.b16 %v956, %v955
  %v1100 = vpack.c.b16 %v958, %v957
  %v1101 = vpack.c.b16 %v960, %v959
  %v1102 = vpack.c.b16 %v962, %v961
  %v1103 = vpack.c.b16 %v964, %v963
  %v1104 = vpack.c.b16 %v966, %v965
  %v1105 = vpack.c.b16 %v968, %v967
  %v1106 = vpack.c.b16 %v970, %v969
  %v1107 = vpack.c.b16 %v972, %v971
  %v1108 = vpack.c.b16 %v974, %v973
  %v1109 = vpack.c.b16 %v976, %v975
  %v1110 = vpack.c.b16 %v978, %v977
  %v1111 = vpack.c.b16 %v980, %v979
  %v1112 = vpack.c.b16 %v982, %v981
  %v1113 = vpack.c.b16 %v984, %v983
  %v1114 = vpack.c.b16 %v986, %v985
  %1243 = vmatprep.subr.bf16.mxu0 0
  %1244 = vmatpush1.bf16.msra.mxu0 %v994
  %1245 = vmatprep.subr.bf16.mxu0 0
  %1246 = vmatpush1.bf16.msra.mxu0 %v993
  %1247 = vmatprep.subr.bf16.mxu0 0
  %1248 = vmatpush1.bf16.msra.mxu0 %v992
  %1249 = vmatprep.subr.bf16.mxu0 0
  %1250 = vmatpush1.bf16.msra.mxu0 %v991
  %1251 = vmatprep.subr.bf16.mxu0 0
  %1252 = vmatpush1.bf16.msra.mxu0 %v990
  %1253 = vmatprep.subr.bf16.mxu0 0
  %1254 = vmatpush1.bf16.msra.mxu0 %v989
  %1255 = vmatprep.subr.bf16.mxu0 0
  %1256 = vmatpush1.bf16.msra.mxu0 %v988
  %1257 = vmatprep.subr.bf16.mxu0 0
  %1258 = vmatpush1.bf16.msra.mxu0 %v987
  %1259 = vmatprep.subr.bf16.mxu0 0
  %1260 = vmatpush2.bf16.msra.mxu0 %v1002
  %1261 = vmatprep.subr.bf16.mxu0 0
  %1262 = vmatpush2.bf16.msra.mxu0 %v1001
  %1263 = vmatprep.subr.bf16.mxu0 0
  %1264 = vmatpush2.bf16.msra.mxu0 %v1000
  %1265 = vmatprep.subr.bf16.mxu0 0
  %1266 = vmatpush2.bf16.msra.mxu0 %v999
  %1267 = vmatprep.subr.bf16.mxu0 0
  %1268 = vmatpush2.bf16.msra.mxu0 %v998
  %1269 = vmatprep.subr.bf16.mxu0 0
  %1270 = vmatpush2.bf16.msra.mxu0 %v997
  %1271 = vmatprep.subr.bf16.mxu0 0
  %1272 = vmatpush2.bf16.msra.mxu0 %v996
  %1273 = vmatprep.subr.bf16.mxu0 0
  %1274 = vmatpush2.bf16.msra.mxu0 %v995
  %1275 = vmatprep.mubr.bf16.mxu0 %v412
  %1276 = vmatmul.mubr.bf16.gmra.mxu0 %v411
  %v1277 = vpop.f32.mrf.mxu0
  %v1278 = vadd.f32 0.0, %v1277
  %v1279 = vpop.f32.mrf.mxu0
  %v1280 = vpop.f32.mrf.mxu0
  %v1281 = vadd.f32 0.0, %v1280
  %v1282 = vpop.f32.mrf.mxu0
  %1283 = vmatprep.mubr.bf16.mxu0 %v428
  %1284 = vmatmul.mubr.bf16.gmra.mxu0 %v427
  %v1285 = vpop.f32.mrf.mxu0
  %v1286 = vadd.f32 0.0, %v1285
  %v1287 = vpop.f32.mrf.mxu0
  %v1288 = vpop.f32.mrf.mxu0
  %v1289 = vadd.f32 0.0, %v1288
  %v1290 = vpop.f32.mrf.mxu0
  %1291 = vdwg.mxu0
  %1292 = vmatprep.subr.bf16.mxu0 0
  %1293 = vmatpush1.bf16.msra.mxu0 %v1010
  %1294 = vmatprep.subr.bf16.mxu0 0
  %1295 = vmatpush1.bf16.msra.mxu0 %v1009
  %1296 = vmatprep.subr.bf16.mxu0 0
  %1297 = vmatpush1.bf16.msra.mxu0 %v1008
  %1298 = vmatprep.subr.bf16.mxu0 0
  %1299 = vmatpush1.bf16.msra.mxu0 %v1007
  %1300 = vmatprep.subr.bf16.mxu0 0
  %1301 = vmatpush1.bf16.msra.mxu0 %v1006
  %1302 = vmatprep.subr.bf16.mxu0 0
  %1303 = vmatpush1.bf16.msra.mxu0 %v1005
  %1304 = vmatprep.subr.bf16.mxu0 0
  %1305 = vmatpush1.bf16.msra.mxu0 %v1004
  %1306 = vmatprep.subr.bf16.mxu0 0
  %1307 = vmatpush1.bf16.msra.mxu0 %v1003
  %1308 = vmatprep.subr.bf16.mxu0 0
  %1309 = vmatpush2.bf16.msra.mxu0 %v1018
  %1310 = vmatprep.subr.bf16.mxu0 0
  %1311 = vmatpush2.bf16.msra.mxu0 %v1017
  %1312 = vmatprep.subr.bf16.mxu0 0
  %1313 = vmatpush2.bf16.msra.mxu0 %v1016
  %1314 = vmatprep.subr.bf16.mxu0 0
  %1315 = vmatpush2.bf16.msra.mxu0 %v1015
  %1316 = vmatprep.subr.bf16.mxu0 0
  %1317 = vmatpush2.bf16.msra.mxu0 %v1014
  %1318 = vmatprep.subr.bf16.mxu0 0
  %1319 = vmatpush2.bf16.msra.mxu0 %v1013
  %1320 = vmatprep.subr.bf16.mxu0 0
  %1321 = vmatpush2.bf16.msra.mxu0 %v1012
  %1322 = vmatprep.subr.bf16.mxu0 0
  %1323 = vmatpush2.bf16.msra.mxu0 %v1011
  %1324 = vmatprep.mubr.bf16.mxu0 %v414
  %1325 = vmatmul.mubr.bf16.gmra.mxu0 %v413
  %v1326 = vpop.f32.mrf.mxu0
  %v1327 = vadd.f32 %v1278, %v1326
  %v1328 = vpop.f32.mrf.mxu0
  %v1329 = vpop.f32.mrf.mxu0
  %v1330 = vadd.f32 %v1281, %v1329
  %v1331 = vpop.f32.mrf.mxu0
  %1332 = vmatprep.mubr.bf16.mxu0 %v430
  %1333 = vmatmul.mubr.bf16.gmra.mxu0 %v429
  %v1334 = vpop.f32.mrf.mxu0
  %v1335 = vadd.f32 %v1286, %v1334
  %v1336 = vpop.f32.mrf.mxu0
  %v1337 = vpop.f32.mrf.mxu0
  %v1338 = vadd.f32 %v1289, %v1337
  %v1339 = vpop.f32.mrf.mxu0
  %1340 = vdwg.mxu0
  %1341 = vmatprep.subr.bf16.mxu0 0
  %1342 = vmatpush1.bf16.msra.mxu0 %v1026
  %1343 = vmatprep.subr.bf16.mxu0 0
  %1344 = vmatpush1.bf16.msra.mxu0 %v1025
  %1345 = vmatprep.subr.bf16.mxu0 0
  %1346 = vmatpush1.bf16.msra.mxu0 %v1024
  %1347 = vmatprep.subr.bf16.mxu0 0
  %1348 = vmatpush1.bf16.msra.mxu0 %v1023
  %1349 = vmatprep.subr.bf16.mxu0 0
  %1350 = vmatpush1.bf16.msra.mxu0 %v1022
  %1351 = vmatprep.subr.bf16.mxu0 0
  %1352 = vmatpush1.bf16.msra.mxu0 %v1021
  %1353 = vmatprep.subr.bf16.mxu0 0
  %1354 = vmatpush1.bf16.msra.mxu0 %v1020
  %1355 = vmatprep.subr.bf16.mxu0 0
  %1356 = vmatpush1.bf16.msra.mxu0 %v1019
  %1357 = vmatprep.subr.bf16.mxu0 0
  %1358 = vmatpush2.bf16.msra.mxu0 %v1034
  %1359 = vmatprep.subr.bf16.mxu0 0
  %1360 = vmatpush2.bf16.msra.mxu0 %v1033
  %1361 = vmatprep.subr.bf16.mxu0 0
  %1362 = vmatpush2.bf16.msra.mxu0 %v1032
  %1363 = vmatprep.subr.bf16.mxu0 0
  %1364 = vmatpush2.bf16.msra.mxu0 %v1031
  %1365 = vmatprep.subr.bf16.mxu0 0
  %1366 = vmatpush2.bf16.msra.mxu0 %v1030
  %1367 = vmatprep.subr.bf16.mxu0 0
  %1368 = vmatpush2.bf16.msra.mxu0 %v1029
  %1369 = vmatprep.subr.bf16.mxu0 0
  %1370 = vmatpush2.bf16.msra.mxu0 %v1028
  %1371 = vmatprep.subr.bf16.mxu0 0
  %1372 = vmatpush2.bf16.msra.mxu0 %v1027
  %1373 = vmatprep.mubr.bf16.mxu0 %v416
  %1374 = vmatmul.mubr.bf16.gmra.mxu0 %v415
  %v1375 = vpop.f32.mrf.mxu0
  %v1376 = vadd.f32 %v1327, %v1375
  %v1377 = vpop.f32.mrf.mxu0
  %v1378 = vpop.f32.mrf.mxu0
  %v1379 = vadd.f32 %v1330, %v1378
  %v1380 = vpop.f32.mrf.mxu0
  %1381 = vmatprep.mubr.bf16.mxu0 %v432
  %1382 = vmatmul.mubr.bf16.gmra.mxu0 %v431
  %v1383 = vpop.f32.mrf.mxu0
  %v1384 = vadd.f32 %v1335, %v1383
  %v1385 = vpop.f32.mrf.mxu0
  %v1386 = vpop.f32.mrf.mxu0
  %v1387 = vadd.f32 %v1338, %v1386
  %v1388 = vpop.f32.mrf.mxu0
  %1389 = vdwg.mxu0
  %1390 = vmatprep.subr.bf16.mxu0 0
  %1391 = vmatpush1.bf16.msra.mxu0 %v1042
  %1392 = vmatprep.subr.bf16.mxu0 0
  %1393 = vmatpush1.bf16.msra.mxu0 %v1041
  %1394 = vmatprep.subr.bf16.mxu0 0
  %1395 = vmatpush1.bf16.msra.mxu0 %v1040
  %1396 = vmatprep.subr.bf16.mxu0 0
  %1397 = vmatpush1.bf16.msra.mxu0 %v1039
  %1398 = vmatprep.subr.bf16.mxu0 0
  %1399 = vmatpush1.bf16.msra.mxu0 %v1038
  %1400 = vmatprep.subr.bf16.mxu0 0
  %1401 = vmatpush1.bf16.msra.mxu0 %v1037
  %1402 = vmatprep.subr.bf16.mxu0 0
  %1403 = vmatpush1.bf16.msra.mxu0 %v1036
  %1404 = vmatprep.subr.bf16.mxu0 0
  %1405 = vmatpush1.bf16.msra.mxu0 %v1035
  %1406 = vmatprep.subr.bf16.mxu0 0
  %1407 = vmatpush2.bf16.msra.mxu0 %v1050
  %1408 = vmatprep.subr.bf16.mxu0 0
  %1409 = vmatpush2.bf16.msra.mxu0 %v1049
  %1410 = vmatprep.subr.bf16.mxu0 0
  %1411 = vmatpush2.bf16.msra.mxu0 %v1048
  %1412 = vmatprep.subr.bf16.mxu0 0
  %1413 = vmatpush2.bf16.msra.mxu0 %v1047
  %1414 = vmatprep.subr.bf16.mxu0 0
  %1415 = vmatpush2.bf16.msra.mxu0 %v1046
  %1416 = vmatprep.subr.bf16.mxu0 0
  %1417 = vmatpush2.bf16.msra.mxu0 %v1045
  %1418 = vmatprep.subr.bf16.mxu0 0
  %1419 = vmatpush2.bf16.msra.mxu0 %v1044
  %1420 = vmatprep.subr.bf16.mxu0 0
  %1421 = vmatpush2.bf16.msra.mxu0 %v1043
  %1422 = vmatprep.mubr.bf16.mxu0 %v418
  %1423 = vmatmul.mubr.bf16.gmra.mxu0 %v417
  %v1424 = vpop.f32.mrf.mxu0
  %v1425 = vadd.f32 %v1376, %v1424
  %v1426 = vpop.f32.mrf.mxu0
  %v1427 = vpop.f32.mrf.mxu0
  %v1428 = vadd.f32 %v1379, %v1427
  %v1429 = vpop.f32.mrf.mxu0
  %1430 = vmatprep.mubr.bf16.mxu0 %v434
  %1431 = vmatmul.mubr.bf16.gmra.mxu0 %v433
  %v1432 = vpop.f32.mrf.mxu0
  %v1433 = vadd.f32 %v1384, %v1432
  %v1434 = vpop.f32.mrf.mxu0
  %v1435 = vpop.f32.mrf.mxu0
  %v1436 = vadd.f32 %v1387, %v1435
  %v1437 = vpop.f32.mrf.mxu0
  %1438 = vdwg.mxu0
  %1439 = vmatprep.subr.bf16.mxu0 0
  %1440 = vmatpush1.bf16.msra.mxu0 %v1058
  %1441 = vmatprep.subr.bf16.mxu0 0
  %1442 = vmatpush1.bf16.msra.mxu0 %v1057
  %1443 = vmatprep.subr.bf16.mxu0 0
  %1444 = vmatpush1.bf16.msra.mxu0 %v1056
  %1445 = vmatprep.subr.bf16.mxu0 0
  %1446 = vmatpush1.bf16.msra.mxu0 %v1055
  %1447 = vmatprep.subr.bf16.mxu0 0
  %1448 = vmatpush1.bf16.msra.mxu0 %v1054
  %1449 = vmatprep.subr.bf16.mxu0 0
  %1450 = vmatpush1.bf16.msra.mxu0 %v1053
  %1451 = vmatprep.subr.bf16.mxu0 0
  %1452 = vmatpush1.bf16.msra.mxu0 %v1052
  %1453 = vmatprep.subr.bf16.mxu0 0
  %1454 = vmatpush1.bf16.msra.mxu0 %v1051
  %1455 = vmatprep.subr.bf16.mxu0 0
  %1456 = vmatpush2.bf16.msra.mxu0 %v1066
  %1457 = vmatprep.subr.bf16.mxu0 0
  %1458 = vmatpush2.bf16.msra.mxu0 %v1065
  %1459 = vmatprep.subr.bf16.mxu0 0
  %1460 = vmatpush2.bf16.msra.mxu0 %v1064
  %1461 = vmatprep.subr.bf16.mxu0 0
  %1462 = vmatpush2.bf16.msra.mxu0 %v1063
  %1463 = vmatprep.subr.bf16.mxu0 0
  %1464 = vmatpush2.bf16.msra.mxu0 %v1062
  %1465 = vmatprep.subr.bf16.mxu0 0
  %1466 = vmatpush2.bf16.msra.mxu0 %v1061
  %1467 = vmatprep.subr.bf16.mxu0 0
  %1468 = vmatpush2.bf16.msra.mxu0 %v1060
  %1469 = vmatprep.subr.bf16.mxu0 0
  %1470 = vmatpush2.bf16.msra.mxu0 %v1059
  %1471 = vmatprep.mubr.bf16.mxu0 %v420
  %1472 = vmatmul.mubr.bf16.gmra.mxu0 %v419
  %v1473 = vpop.f32.mrf.mxu0
  %v1474 = vadd.f32 %v1425, %v1473
  %v1475 = vpop.f32.mrf.mxu0
  %v1476 = vpop.f32.mrf.mxu0
  %v1477 = vadd.f32 %v1428, %v1476
  %v1478 = vpop.f32.mrf.mxu0
  %1479 = vmatprep.mubr.bf16.mxu0 %v436
  %1480 = vmatmul.mubr.bf16.gmra.mxu0 %v435
  %v1481 = vpop.f32.mrf.mxu0
  %v1482 = vadd.f32 %v1433, %v1481
  %v1483 = vpop.f32.mrf.mxu0
  %v1484 = vpop.f32.mrf.mxu0
  %v1485 = vadd.f32 %v1436, %v1484
  %v1486 = vpop.f32.mrf.mxu0
  %1487 = vdwg.mxu0
  %1488 = vmatprep.subr.bf16.mxu0 0
  %1489 = vmatpush1.bf16.msra.mxu0 %v1074
  %1490 = vmatprep.subr.bf16.mxu0 0
  %1491 = vmatpush1.bf16.msra.mxu0 %v1073
  %1492 = vmatprep.subr.bf16.mxu0 0
  %1493 = vmatpush1.bf16.msra.mxu0 %v1072
  %1494 = vmatprep.subr.bf16.mxu0 0
  %1495 = vmatpush1.bf16.msra.mxu0 %v1071
  %1496 = vmatprep.subr.bf16.mxu0 0
  %1497 = vmatpush1.bf16.msra.mxu0 %v1070
  %1498 = vmatprep.subr.bf16.mxu0 0
  %1499 = vmatpush1.bf16.msra.mxu0 %v1069
  %1500 = vmatprep.subr.bf16.mxu0 0
  %1501 = vmatpush1.bf16.msra.mxu0 %v1068
  %1502 = vmatprep.subr.bf16.mxu0 0
  %1503 = vmatpush1.bf16.msra.mxu0 %v1067
  %1504 = vmatprep.subr.bf16.mxu0 0
  %1505 = vmatpush2.bf16.msra.mxu0 %v1082
  %1506 = vmatprep.subr.bf16.mxu0 0
  %1507 = vmatpush2.bf16.msra.mxu0 %v1081
  %1508 = vmatprep.subr.bf16.mxu0 0
  %1509 = vmatpush2.bf16.msra.mxu0 %v1080
  %1510 = vmatprep.subr.bf16.mxu0 0
  %1511 = vmatpush2.bf16.msra.mxu0 %v1079
  %1512 = vmatprep.subr.bf16.mxu0 0
  %1513 = vmatpush2.bf16.msra.mxu0 %v1078
  %1514 = vmatprep.subr.bf16.mxu0 0
  %1515 = vmatpush2.bf16.msra.mxu0 %v1077
  %1516 = vmatprep.subr.bf16.mxu0 0
  %1517 = vmatpush2.bf16.msra.mxu0 %v1076
  %1518 = vmatprep.subr.bf16.mxu0 0
  %1519 = vmatpush2.bf16.msra.mxu0 %v1075
  %1520 = vmatprep.mubr.bf16.mxu0 %v422
  %1521 = vmatmul.mubr.bf16.gmra.mxu0 %v421
  %v1522 = vpop.f32.mrf.mxu0
  %v1523 = vadd.f32 %v1474, %v1522
  %v1524 = vpop.f32.mrf.mxu0
  %v1525 = vpop.f32.mrf.mxu0
  %v1526 = vadd.f32 %v1477, %v1525
  %v1527 = vpop.f32.mrf.mxu0
  %1528 = vmatprep.mubr.bf16.mxu0 %v438
  %1529 = vmatmul.mubr.bf16.gmra.mxu0 %v437
  %v1530 = vpop.f32.mrf.mxu0
  %v1531 = vadd.f32 %v1482, %v1530
  %v1532 = vpop.f32.mrf.mxu0
  %v1533 = vpop.f32.mrf.mxu0
  %v1534 = vadd.f32 %v1485, %v1533
  %v1535 = vpop.f32.mrf.mxu0
  %1536 = vdwg.mxu0
  %1537 = vmatprep.subr.bf16.mxu0 0
  %1538 = vmatpush1.bf16.msra.mxu0 %v1090
  %1539 = vmatprep.subr.bf16.mxu0 0
  %1540 = vmatpush1.bf16.msra.mxu0 %v1089
  %1541 = vmatprep.subr.bf16.mxu0 0
  %1542 = vmatpush1.bf16.msra.mxu0 %v1088
  %1543 = vmatprep.subr.bf16.mxu0 0
  %1544 = vmatpush1.bf16.msra.mxu0 %v1087
  %1545 = vmatprep.subr.bf16.mxu0 0
  %1546 = vmatpush1.bf16.msra.mxu0 %v1086
  %1547 = vmatprep.subr.bf16.mxu0 0
  %1548 = vmatpush1.bf16.msra.mxu0 %v1085
  %1549 = vmatprep.subr.bf16.mxu0 0
  %1550 = vmatpush1.bf16.msra.mxu0 %v1084
  %1551 = vmatprep.subr.bf16.mxu0 0
  %1552 = vmatpush1.bf16.msra.mxu0 %v1083
  %1553 = vmatprep.subr.bf16.mxu0 0
  %1554 = vmatpush2.bf16.msra.mxu0 %v1098
  %1555 = vmatprep.subr.bf16.mxu0 0
  %1556 = vmatpush2.bf16.msra.mxu0 %v1097
  %1557 = vmatprep.subr.bf16.mxu0 0
  %1558 = vmatpush2.bf16.msra.mxu0 %v1096
  %1559 = vmatprep.subr.bf16.mxu0 0
  %1560 = vmatpush2.bf16.msra.mxu0 %v1095
  %1561 = vmatprep.subr.bf16.mxu0 0
  %1562 = vmatpush2.bf16.msra.mxu0 %v1094
  %1563 = vmatprep.subr.bf16.mxu0 0
  %1564 = vmatpush2.bf16.msra.mxu0 %v1093
  %1565 = vmatprep.subr.bf16.mxu0 0
  %1566 = vmatpush2.bf16.msra.mxu0 %v1092
  %1567 = vmatprep.subr.bf16.mxu0 0
  %1568 = vmatpush2.bf16.msra.mxu0 %v1091
  %1569 = vmatprep.mubr.bf16.mxu0 %v424
  %1570 = vmatmul.mubr.bf16.gmra.mxu0 %v423
  %v1571 = vpop.f32.mrf.mxu0
  %v1572 = vadd.f32 %v1523, %v1571
  %v1573 = vpop.f32.mrf.mxu0
  %v1574 = vpop.f32.mrf.mxu0
  %v1575 = vadd.f32 %v1526, %v1574
  %v1576 = vpop.f32.mrf.mxu0
  %1577 = vmatprep.mubr.bf16.mxu0 %v440
  %1578 = vmatmul.mubr.bf16.gmra.mxu0 %v439
  %v1579 = vpop.f32.mrf.mxu0
  %v1580 = vadd.f32 %v1531, %v1579
  %v1581 = vpop.f32.mrf.mxu0
  %v1582 = vpop.f32.mrf.mxu0
  %v1583 = vadd.f32 %v1534, %v1582
  %v1584 = vpop.f32.mrf.mxu0
  %1585 = vdwg.mxu0
  %1586 = vmatprep.subr.bf16.mxu0 0
  %1587 = vmatpush1.bf16.msra.mxu0 %v1106
  %1588 = vmatprep.subr.bf16.mxu0 0
  %1589 = vmatpush1.bf16.msra.mxu0 %v1105
  %1590 = vmatprep.subr.bf16.mxu0 0
  %1591 = vmatpush1.bf16.msra.mxu0 %v1104
  %1592 = vmatprep.subr.bf16.mxu0 0
  %1593 = vmatpush1.bf16.msra.mxu0 %v1103
  %1594 = vmatprep.subr.bf16.mxu0 0
  %1595 = vmatpush1.bf16.msra.mxu0 %v1102
  %1596 = vmatprep.subr.bf16.mxu0 0
  %1597 = vmatpush1.bf16.msra.mxu0 %v1101
  %1598 = vmatprep.subr.bf16.mxu0 0
  %1599 = vmatpush1.bf16.msra.mxu0 %v1100
  %1600 = vmatprep.subr.bf16.mxu0 0
  %1601 = vmatpush1.bf16.msra.mxu0 %v1099
  %1602 = vmatprep.subr.bf16.mxu0 0
  %1603 = vmatpush2.bf16.msra.mxu0 %v1114
  %1604 = vmatprep.subr.bf16.mxu0 0
  %1605 = vmatpush2.bf16.msra.mxu0 %v1113
  %1606 = vmatprep.subr.bf16.mxu0 0
  %1607 = vmatpush2.bf16.msra.mxu0 %v1112
  %1608 = vmatprep.subr.bf16.mxu0 0
  %1609 = vmatpush2.bf16.msra.mxu0 %v1111
  %1610 = vmatprep.subr.bf16.mxu0 0
  %1611 = vmatpush2.bf16.msra.mxu0 %v1110
  %1612 = vmatprep.subr.bf16.mxu0 0
  %1613 = vmatpush2.bf16.msra.mxu0 %v1109
  %1614 = vmatprep.subr.bf16.mxu0 0
  %1615 = vmatpush2.bf16.msra.mxu0 %v1108
  %1616 = vmatprep.subr.bf16.mxu0 0
  %1617 = vmatpush2.bf16.msra.mxu0 %v1107
  %1618 = vmatprep.mubr.bf16.mxu0 %v426
  %1619 = vmatmul.mubr.bf16.gmra.mxu0 %v425
  %v1620 = vpop.f32.mrf.mxu0
  %v1621 = vadd.f32 %v1572, %v1620
  %v1622 = vpop.f32.mrf.mxu0
  %v1623 = vpop.f32.mrf.mxu0
  %v1624 = vadd.f32 %v1575, %v1623
  %v1625 = vpop.f32.mrf.mxu0
  %1626 = vmatprep.mubr.bf16.mxu0 %v442
  %1627 = vmatmul.mubr.bf16.gmra.mxu0 %v441
  %v1628 = vpop.f32.mrf.mxu0
  %v1629 = vadd.f32 %v1580, %v1628
  %v1630 = vpop.f32.mrf.mxu0
  %v1631 = vpop.f32.mrf.mxu0
  %v1632 = vadd.f32 %v1583, %v1631
  %v1633 = vpop.f32.mrf.mxu0
  %1634 = vdwg.mxu0
  %v1635 = vadd.f32 %v23, %v1621
  %v1636 = vadd.f32 %v24, %v1624
  %v1637 = vadd.f32 %v25, %v1629
  %v1638 = vadd.f32 %v26, %v1632
  %1639 = vst [vmem:[#allocation2] sm:$0xff] %v1635
  %1640 = vst [vmem:[#allocation2 + $0x8] sm:$0xff] %v1636
  %1641 = vst [vmem:[#allocation2 + $0x10] sm:$0xff] %v1637
  %1642 = vst [vmem:[#allocation2 + $0x18] sm:$0xff] %v1638
  // Predicated region
  $region18: #{fc_discriminator_forward.7} parent=0 // pred_check
    %p1643 = pneg %p15
  $region19: #{fc_discriminator_forward.7} parent=0 // pred_check_branch
    %1645 = sbr.rel (%p1643) target = $region21
  $region20: #{fc_discriminator_forward.7} parent=0 // pred_region
    %v1646 = vld [vmem:[#allocation2] sm:$0xff]
    %v1647 = vld [vmem:[#allocation2 + $0x8] sm:$0xff]
    %v1648 = vld [vmem:[#allocation2 + $0x10] sm:$0xff]
    %v1649 = vld [vmem:[#allocation2 + $0x18] sm:$0xff]
    %v1650 = vld [vmem:[%s2] sm:$0x1]
    %v1652 = vlaneseq
    %v1653 = vshrl.u32 %v1652, 7
    %v1654 = vsub.s32 0, %v1653
    %v1655 = vrot.slane %v1650, %v1654
    %v1657 = vadd.f32 %v1646, %v1655
    %v1658 = vadd.f32 %v1647, %v1655
    %v1659 = vadd.f32 %v1648, %v1655
    %v1660 = vadd.f32 %v1649, %v1655
    %vm1661 = vcmp.ge.f32.partialorder %v1657, 0.0
    %vm1662 = vcmp.ge.f32.partialorder %v1658, 0.0
    %vm1663 = vcmp.ge.f32.partialorder %v1659, 0.0
    %vm1664 = vcmp.ge.f32.partialorder %v1660, 0.0
    %v1665 = vmul.f32 %v1657, 0.2
    %v1666 = vmul.f32 %v1658, 0.2
    %v1667 = vmul.f32 %v1659, 0.2
    %v1668 = vmul.f32 %v1660, 0.2
    %v1669 = vsel %vm1661, %v1657, %v1665
    %v1670 = vsel %vm1662, %v1658, %v1666
    %v1671 = vsel %vm1663, %v1659, %v1667
    %v1672 = vsel %vm1664, %v1660, %v1668
    %v1673 = vpack.c.bf16 %v1670, %v1669
    %v1674 = vpack.c.bf16 %v1672, %v1671
    %v1677 = vunpack.c.l.b16 %v1673
    %v1678 = vunpack.c.h.b16 %v1673
    %v1679 = vunpack.c.l.b16 %v1674
    %v1680 = vunpack.c.h.b16 %v1674
    %v1681 = vpack.c.b16 %v1677, %v1677
    %v1682 = vpack.c.b16 %v1678, %v1678
    %v1683 = vpack.c.b16 %v1679, %v1679
    %v1684 = vpack.c.b16 %v1680, %v1680
    %1689 = vst [vmem:[%s3] sm:$0xf] %v1681
    %1690 = vst [vmem:[%s3 + $0x4] sm:$0xf] %v1682
    %1691 = vst [vmem:[%s3 + $0x8] sm:$0xf] %v1683
    %1692 = vst [vmem:[%s3 + $0xc] sm:$0xf] %v1684
  $region21: #{fc_discriminator_forward.7} parent=0 // pred_fallthru
    _
  // Predicated region
  $region22: #{fc_discriminator_forward.7} parent=0 // pred_check
    _
  $region23: #{fc_discriminator_forward.7} parent=0 // pred_check_branch
    %1694 = sbr.rel (0) target = $region25
  $region24: #{fc_discriminator_forward.7} parent=0 // pred_region
    _
  $region25: #{fc_discriminator_forward.7} parent=0 // pred_fallthru
    _
  // Predicated region
  $region26: #{fc_discriminator_forward.7} parent=0 // pred_check
    _
  $region27: #{fc_discriminator_forward.7} parent=0 // pred_check_branch
    %1696 = sbr.rel (0) target = $region29
  $region28: #{fc_discriminator_forward.7} parent=0 // pred_region
    _
  $region29: #{fc_discriminator_forward.7} parent=0 // pred_fallthru
    _

// kernel: fc_discriminator_forward.9
$region0: #{fc_discriminator_forward.9}
  #allocation0 [shape = 'u32[]', space=smem, size = 0x4, offset = 0x4, fixed_abs, tag = 'smem constant byte address 0x4 - core index']
  #allocation1 [shape = 'u32[144,128]{1,0:T(1,128)}', space=vmem, size = 0x12000, scoped, tag = 'internal scratch']
  #allocation2 [shape = 'f32[8,128]{1,0:T(8,128)}', space=vmem, size = 0x1000, scoped, tag = 'scratch operand']
  %s0 = inlined_call_operand.vmem [shape: bf16[8,2048], index: 0, kind: input, shape index: {}]
  %s1 = inlined_call_operand.vmem [shape: bf16[2048,128], index: 1, kind: input, shape index: {}]
  %s2 = inlined_call_operand.vmem [shape: f32[1,128], index: 2, kind: input, shape index: {}]
  %s3 = inlined_call_operand.vmem [shape: f32[8,128], index: 3, kind: output, shape index: {}]
  %s4 = sld [smem:[#allocation0]]
  $region30: #{fc_discriminator_forward.9} parent=0
    _
  %s6 = ssub.s32 1, %s4
  %s7 = scalar_select 0, %s6, %s4
  // Predicated region
  $region2: #{fc_discriminator_forward.9} parent=0 // pred_check
    _
  $region3: #{fc_discriminator_forward.9} parent=0 // pred_check_branch
    %9 = sbr.rel (0) target = $region5
  $region4: #{fc_discriminator_forward.9} parent=0 // pred_region
    _
  $region5: #{fc_discriminator_forward.9} parent=0 // pred_fallthru
    _
  // Predicated region
  $region6: #{fc_discriminator_forward.9} parent=0 // pred_check
    _
  $region7: #{fc_discriminator_forward.9} parent=0 // pred_check_branch
    %11 = sbr.rel (0) target = $region9
  $region8: #{fc_discriminator_forward.9} parent=0 // pred_region
    _
  $region9: #{fc_discriminator_forward.9} parent=0 // pred_fallthru
    _
  // Predicated region
  $region10: #{fc_discriminator_forward.9} parent=0 // pred_check
    _
  $region11: #{fc_discriminator_forward.9} parent=0 // pred_check_branch
    %13 = sbr.rel (0) target = $region13
  $region12: #{fc_discriminator_forward.9} parent=0 // pred_region
    _
  $region13: #{fc_discriminator_forward.9} parent=0 // pred_fallthru
    _
  %p15 = scmp.eq.s32.totalorder 0, 0
  // Predicated region
  $region14: #{fc_discriminator_forward.9} parent=0 // pred_check
    %p16 = pneg %p15
  $region15: #{fc_discriminator_forward.9} parent=0 // pred_check_branch
    %18 = sbr.rel (%p16) target = $region17
  $region16: #{fc_discriminator_forward.9} parent=0 // pred_region
    %19 = vst [vmem:[#allocation2] sm:$0xff] 0.0
  $region17: #{fc_discriminator_forward.9} parent=0 // pred_fallthru
    _
  %v20 = vld [vmem:[#allocation2] sm:$0xff]
  %v21 = vld [vmem:[%s0] sm:$0xff]
  %v22 = vld [vmem:[%s0 + $0x8] sm:$0xff]
  %v23 = vld [vmem:[%s0 + $0x10] sm:$0xff]
  %v24 = vld [vmem:[%s0 + $0x18] sm:$0xff]
  %v25 = vld [vmem:[%s0 + $0x20] sm:$0xff]
  %v26 = vld [vmem:[%s0 + $0x28] sm:$0xff]
  %v27 = vld [vmem:[%s0 + $0x30] sm:$0xff]
  %v28 = vld [vmem:[%s0 + $0x38] sm:$0xff]
  %v29 = vld [vmem:[%s1] sm:$0xf]
  %v30 = vld [vmem:[%s1 + $0x4] sm:$0xf]
  %v31 = vld [vmem:[%s1 + $0x8] sm:$0xf]
  %v32 = vld [vmem:[%s1 + $0xc] sm:$0xf]
  %v33 = vld [vmem:[%s1 + $0x10] sm:$0xf]
  %v34 = vld [vmem:[%s1 + $0x14] sm:$0xf]
  %v35 = vld [vmem:[%s1 + $0x18] sm:$0xf]
  %v36 = vld [vmem:[%s1 + $0x1c] sm:$0xf]
  %v37 = vld [vmem:[%s1 + $0x20] sm:$0xf]
  %v38 = vld [vmem:[%s1 + $0x24] sm:$0xf]
  %v39 = vld [vmem:[%s1 + $0x28] sm:$0xf]
  %v40 = vld [vmem:[%s1 + $0x2c] sm:$0xf]
  %v41 = vld [vmem:[%s1 + $0x30] sm:$0xf]
  %v42 = vld [vmem:[%s1 + $0x34] sm:$0xf]
  %v43 = vld [vmem:[%s1 + $0x38] sm:$0xf]
  %v44 = vld [vmem:[%s1 + $0x3c] sm:$0xf]
  %v45 = vld [vmem:[%s1 + $0x40] sm:$0xf]
  %v46 = vld [vmem:[%s1 + $0x44] sm:$0xf]
  %v47 = vld [vmem:[%s1 + $0x48] sm:$0xf]
  %v48 = vld [vmem:[%s1 + $0x4c] sm:$0xf]
  %v49 = vld [vmem:[%s1 + $0x50] sm:$0xf]
  %v50 = vld [vmem:[%s1 + $0x54] sm:$0xf]
  %v51 = vld [vmem:[%s1 + $0x58] sm:$0xf]
  %v52 = vld [vmem:[%s1 + $0x5c] sm:$0xf]
  %v53 = vld [vmem:[%s1 + $0x60] sm:$0xf]
  %v54 = vld [vmem:[%s1 + $0x64] sm:$0xf]
  %v55 = vld [vmem:[%s1 + $0x68] sm:$0xf]
  %v56 = vld [vmem:[%s1 + $0x6c] sm:$0xf]
  %v57 = vld [vmem:[%s1 + $0x70] sm:$0xf]
  %v58 = vld [vmem:[%s1 + $0x74] sm:$0xf]
  %v59 = vld [vmem:[%s1 + $0x78] sm:$0xf]
  %v60 = vld [vmem:[%s1 + $0x7c] sm:$0xf]
  %v61 = vld [vmem:[%s1 + $0x80] sm:$0xf]
  %v62 = vld [vmem:[%s1 + $0x84] sm:$0xf]
  %v63 = vld [vmem:[%s1 + $0x88] sm:$0xf]
  %v64 = vld [vmem:[%s1 + $0x8c] sm:$0xf]
  %v65 = vld [vmem:[%s1 + $0x90] sm:$0xf]
  %v66 = vld [vmem:[%s1 + $0x94] sm:$0xf]
  %v67 = vld [vmem:[%s1 + $0x98] sm:$0xf]
  %v68 = vld [vmem:[%s1 + $0x9c] sm:$0xf]
  %v69 = vld [vmem:[%s1 + $0xa0] sm:$0xf]
  %v70 = vld [vmem:[%s1 + $0xa4] sm:$0xf]
  %v71 = vld [vmem:[%s1 + $0xa8] sm:$0xf]
  %v72 = vld [vmem:[%s1 + $0xac] sm:$0xf]
  %v73 = vld [vmem:[%s1 + $0xb0] sm:$0xf]
  %v74 = vld [vmem:[%s1 + $0xb4] sm:$0xf]
  %v75 = vld [vmem:[%s1 + $0xb8] sm:$0xf]
  %v76 = vld [vmem:[%s1 + $0xbc] sm:$0xf]
  %v77 = vld [vmem:[%s1 + $0xc0] sm:$0xf]
  %v78 = vld [vmem:[%s1 + $0xc4] sm:$0xf]
  %v79 = vld [vmem:[%s1 + $0xc8] sm:$0xf]
  %v80 = vld [vmem:[%s1 + $0xcc] sm:$0xf]
  %v81 = vld [vmem:[%s1 + $0xd0] sm:$0xf]
  %v82 = vld [vmem:[%s1 + $0xd4] sm:$0xf]
  %v83 = vld [vmem:[%s1 + $0xd8] sm:$0xf]
  %v84 = vld [vmem:[%s1 + $0xdc] sm:$0xf]
  %v85 = vld [vmem:[%s1 + $0xe0] sm:$0xf]
  %v86 = vld [vmem:[%s1 + $0xe4] sm:$0xf]
  %v87 = vld [vmem:[%s1 + $0xe8] sm:$0xf]
  %v88 = vld [vmem:[%s1 + $0xec] sm:$0xf]
  %v89 = vld [vmem:[%s1 + $0xf0] sm:$0xf]
  %v90 = vld [vmem:[%s1 + $0xf4] sm:$0xf]
  %v91 = vld [vmem:[%s1 + $0xf8] sm:$0xf]
  %v92 = vld [vmem:[%s1 + $0xfc] sm:$0xf]
  %v93 = vld [vmem:[%s1 + $0x100] sm:$0xf]
  %v94 = vld [vmem:[%s1 + $0x104] sm:$0xf]
  %v95 = vld [vmem:[%s1 + $0x108] sm:$0xf]
  %v96 = vld [vmem:[%s1 + $0x10c] sm:$0xf]
  %v97 = vld [vmem:[%s1 + $0x110] sm:$0xf]
  %v98 = vld [vmem:[%s1 + $0x114] sm:$0xf]
  %v99 = vld [vmem:[%s1 + $0x118] sm:$0xf]
  %v100 = vld [vmem:[%s1 + $0x11c] sm:$0xf]
  %v101 = vld [vmem:[%s1 + $0x120] sm:$0xf]
  %v102 = vld [vmem:[%s1 + $0x124] sm:$0xf]
  %v103 = vld [vmem:[%s1 + $0x128] sm:$0xf]
  %v104 = vld [vmem:[%s1 + $0x12c] sm:$0xf]
  %v105 = vld [vmem:[%s1 + $0x130] sm:$0xf]
  %v106 = vld [vmem:[%s1 + $0x134] sm:$0xf]
  %v107 = vld [vmem:[%s1 + $0x138] sm:$0xf]
  %v108 = vld [vmem:[%s1 + $0x13c] sm:$0xf]
  %v109 = vld [vmem:[%s1 + $0x140] sm:$0xf]
  %v110 = vld [vmem:[%s1 + $0x144] sm:$0xf]
  %v111 = vld [vmem:[%s1 + $0x148] sm:$0xf]
  %v112 = vld [vmem:[%s1 + $0x14c] sm:$0xf]
  %v113 = vld [vmem:[%s1 + $0x150] sm:$0xf]
  %v114 = vld [vmem:[%s1 + $0x154] sm:$0xf]
  %v115 = vld [vmem:[%s1 + $0x158] sm:$0xf]
  %v116 = vld [vmem:[%s1 + $0x15c] sm:$0xf]
  %v117 = vld [vmem:[%s1 + $0x160] sm:$0xf]
  %v118 = vld [vmem:[%s1 + $0x164] sm:$0xf]
  %v119 = vld [vmem:[%s1 + $0x168] sm:$0xf]
  %v120 = vld [vmem:[%s1 + $0x16c] sm:$0xf]
  %v121 = vld [vmem:[%s1 + $0x170] sm:$0xf]
  %v122 = vld [vmem:[%s1 + $0x174] sm:$0xf]
  %v123 = vld [vmem:[%s1 + $0x178] sm:$0xf]
  %v124 = vld [vmem:[%s1 + $0x17c] sm:$0xf]
  %v125 = vld [vmem:[%s1 + $0x180] sm:$0xf]
  %v126 = vld [vmem:[%s1 + $0x184] sm:$0xf]
  %v127 = vld [vmem:[%s1 + $0x188] sm:$0xf]
  %v128 = vld [vmem:[%s1 + $0x18c] sm:$0xf]
  %v129 = vld [vmem:[%s1 + $0x190] sm:$0xf]
  %v130 = vld [vmem:[%s1 + $0x194] sm:$0xf]
  %v131 = vld [vmem:[%s1 + $0x198] sm:$0xf]
  %v132 = vld [vmem:[%s1 + $0x19c] sm:$0xf]
  %v133 = vld [vmem:[%s1 + $0x1a0] sm:$0xf]
  %v134 = vld [vmem:[%s1 + $0x1a4] sm:$0xf]
  %v135 = vld [vmem:[%s1 + $0x1a8] sm:$0xf]
  %v136 = vld [vmem:[%s1 + $0x1ac] sm:$0xf]
  %v137 = vld [vmem:[%s1 + $0x1b0] sm:$0xf]
  %v138 = vld [vmem:[%s1 + $0x1b4] sm:$0xf]
  %v139 = vld [vmem:[%s1 + $0x1b8] sm:$0xf]
  %v140 = vld [vmem:[%s1 + $0x1bc] sm:$0xf]
  %v141 = vld [vmem:[%s1 + $0x1c0] sm:$0xf]
  %v142 = vld [vmem:[%s1 + $0x1c4] sm:$0xf]
  %v143 = vld [vmem:[%s1 + $0x1c8] sm:$0xf]
  %v144 = vld [vmem:[%s1 + $0x1cc] sm:$0xf]
  %v145 = vld [vmem:[%s1 + $0x1d0] sm:$0xf]
  %v146 = vld [vmem:[%s1 + $0x1d4] sm:$0xf]
  %v147 = vld [vmem:[%s1 + $0x1d8] sm:$0xf]
  %v148 = vld [vmem:[%s1 + $0x1dc] sm:$0xf]
  %v149 = vld [vmem:[%s1 + $0x1e0] sm:$0xf]
  %v150 = vld [vmem:[%s1 + $0x1e4] sm:$0xf]
  %v151 = vld [vmem:[%s1 + $0x1e8] sm:$0xf]
  %v152 = vld [vmem:[%s1 + $0x1ec] sm:$0xf]
  %v153 = vld [vmem:[%s1 + $0x1f0] sm:$0xf]
  %v154 = vld [vmem:[%s1 + $0x1f4] sm:$0xf]
  %v155 = vld [vmem:[%s1 + $0x1f8] sm:$0xf]
  %v156 = vld [vmem:[%s1 + $0x1fc] sm:$0xf]
  %v157 = vld [vmem:[%s1 + $0x200] sm:$0xf]
  %v158 = vld [vmem:[%s1 + $0x204] sm:$0xf]
  %v159 = vld [vmem:[%s1 + $0x208] sm:$0xf]
  %v160 = vld [vmem:[%s1 + $0x20c] sm:$0xf]
  %v161 = vld [vmem:[%s1 + $0x210] sm:$0xf]
  %v162 = vld [vmem:[%s1 + $0x214] sm:$0xf]
  %v163 = vld [vmem:[%s1 + $0x218] sm:$0xf]
  %v164 = vld [vmem:[%s1 + $0x21c] sm:$0xf]
  %v165 = vld [vmem:[%s1 + $0x220] sm:$0xf]
  %v166 = vld [vmem:[%s1 + $0x224] sm:$0xf]
  %v167 = vld [vmem:[%s1 + $0x228] sm:$0xf]
  %v168 = vld [vmem:[%s1 + $0x22c] sm:$0xf]
  %v169 = vld [vmem:[%s1 + $0x230] sm:$0xf]
  %v170 = vld [vmem:[%s1 + $0x234] sm:$0xf]
  %v171 = vld [vmem:[%s1 + $0x238] sm:$0xf]
  %v172 = vld [vmem:[%s1 + $0x23c] sm:$0xf]
  %v173 = vld [vmem:[%s1 + $0x240] sm:$0xf]
  %v174 = vld [vmem:[%s1 + $0x244] sm:$0xf]
  %v175 = vld [vmem:[%s1 + $0x248] sm:$0xf]
  %v176 = vld [vmem:[%s1 + $0x24c] sm:$0xf]
  %v177 = vld [vmem:[%s1 + $0x250] sm:$0xf]
  %v178 = vld [vmem:[%s1 + $0x254] sm:$0xf]
  %v179 = vld [vmem:[%s1 + $0x258] sm:$0xf]
  %v180 = vld [vmem:[%s1 + $0x25c] sm:$0xf]
  %v181 = vld [vmem:[%s1 + $0x260] sm:$0xf]
  %v182 = vld [vmem:[%s1 + $0x264] sm:$0xf]
  %v183 = vld [vmem:[%s1 + $0x268] sm:$0xf]
  %v184 = vld [vmem:[%s1 + $0x26c] sm:$0xf]
  %v185 = vld [vmem:[%s1 + $0x270] sm:$0xf]
  %v186 = vld [vmem:[%s1 + $0x274] sm:$0xf]
  %v187 = vld [vmem:[%s1 + $0x278] sm:$0xf]
  %v188 = vld [vmem:[%s1 + $0x27c] sm:$0xf]
  %v189 = vld [vmem:[%s1 + $0x280] sm:$0xf]
  %v190 = vld [vmem:[%s1 + $0x284] sm:$0xf]
  %v191 = vld [vmem:[%s1 + $0x288] sm:$0xf]
  %v192 = vld [vmem:[%s1 + $0x28c] sm:$0xf]
  %v193 = vld [vmem:[%s1 + $0x290] sm:$0xf]
  %v194 = vld [vmem:[%s1 + $0x294] sm:$0xf]
  %v195 = vld [vmem:[%s1 + $0x298] sm:$0xf]
  %v196 = vld [vmem:[%s1 + $0x29c] sm:$0xf]
  %v197 = vld [vmem:[%s1 + $0x2a0] sm:$0xf]
  %v198 = vld [vmem:[%s1 + $0x2a4] sm:$0xf]
  %v199 = vld [vmem:[%s1 + $0x2a8] sm:$0xf]
  %v200 = vld [vmem:[%s1 + $0x2ac] sm:$0xf]
  %v201 = vld [vmem:[%s1 + $0x2b0] sm:$0xf]
  %v202 = vld [vmem:[%s1 + $0x2b4] sm:$0xf]
  %v203 = vld [vmem:[%s1 + $0x2b8] sm:$0xf]
  %v204 = vld [vmem:[%s1 + $0x2bc] sm:$0xf]
  %v205 = vld [vmem:[%s1 + $0x2c0] sm:$0xf]
  %v206 = vld [vmem:[%s1 + $0x2c4] sm:$0xf]
  %v207 = vld [vmem:[%s1 + $0x2c8] sm:$0xf]
  %v208 = vld [vmem:[%s1 + $0x2cc] sm:$0xf]
  %v209 = vld [vmem:[%s1 + $0x2d0] sm:$0xf]
  %v210 = vld [vmem:[%s1 + $0x2d4] sm:$0xf]
  %v211 = vld [vmem:[%s1 + $0x2d8] sm:$0xf]
  %v212 = vld [vmem:[%s1 + $0x2dc] sm:$0xf]
  %v213 = vld [vmem:[%s1 + $0x2e0] sm:$0xf]
  %v214 = vld [vmem:[%s1 + $0x2e4] sm:$0xf]
  %v215 = vld [vmem:[%s1 + $0x2e8] sm:$0xf]
  %v216 = vld [vmem:[%s1 + $0x2ec] sm:$0xf]
  %v217 = vld [vmem:[%s1 + $0x2f0] sm:$0xf]
  %v218 = vld [vmem:[%s1 + $0x2f4] sm:$0xf]
  %v219 = vld [vmem:[%s1 + $0x2f8] sm:$0xf]
  %v220 = vld [vmem:[%s1 + $0x2fc] sm:$0xf]
  %v221 = vld [vmem:[%s1 + $0x300] sm:$0xf]
  %v222 = vld [vmem:[%s1 + $0x304] sm:$0xf]
  %v223 = vld [vmem:[%s1 + $0x308] sm:$0xf]
  %v224 = vld [vmem:[%s1 + $0x30c] sm:$0xf]
  %v225 = vld [vmem:[%s1 + $0x310] sm:$0xf]
  %v226 = vld [vmem:[%s1 + $0x314] sm:$0xf]
  %v227 = vld [vmem:[%s1 + $0x318] sm:$0xf]
  %v228 = vld [vmem:[%s1 + $0x31c] sm:$0xf]
  %v229 = vld [vmem:[%s1 + $0x320] sm:$0xf]
  %v230 = vld [vmem:[%s1 + $0x324] sm:$0xf]
  %v231 = vld [vmem:[%s1 + $0x328] sm:$0xf]
  %v232 = vld [vmem:[%s1 + $0x32c] sm:$0xf]
  %v233 = vld [vmem:[%s1 + $0x330] sm:$0xf]
  %v234 = vld [vmem:[%s1 + $0x334] sm:$0xf]
  %v235 = vld [vmem:[%s1 + $0x338] sm:$0xf]
  %v236 = vld [vmem:[%s1 + $0x33c] sm:$0xf]
  %v237 = vld [vmem:[%s1 + $0x340] sm:$0xf]
  %v238 = vld [vmem:[%s1 + $0x344] sm:$0xf]
  %v239 = vld [vmem:[%s1 + $0x348] sm:$0xf]
  %v240 = vld [vmem:[%s1 + $0x34c] sm:$0xf]
  %v241 = vld [vmem:[%s1 + $0x350] sm:$0xf]
  %v242 = vld [vmem:[%s1 + $0x354] sm:$0xf]
  %v243 = vld [vmem:[%s1 + $0x358] sm:$0xf]
  %v244 = vld [vmem:[%s1 + $0x35c] sm:$0xf]
  %v245 = vld [vmem:[%s1 + $0x360] sm:$0xf]
  %v246 = vld [vmem:[%s1 + $0x364] sm:$0xf]
  %v247 = vld [vmem:[%s1 + $0x368] sm:$0xf]
  %v248 = vld [vmem:[%s1 + $0x36c] sm:$0xf]
  %v249 = vld [vmem:[%s1 + $0x370] sm:$0xf]
  %v250 = vld [vmem:[%s1 + $0x374] sm:$0xf]
  %v251 = vld [vmem:[%s1 + $0x378] sm:$0xf]
  %v252 = vld [vmem:[%s1 + $0x37c] sm:$0xf]
  %v253 = vld [vmem:[%s1 + $0x380] sm:$0xf]
  %v254 = vld [vmem:[%s1 + $0x384] sm:$0xf]
  %v255 = vld [vmem:[%s1 + $0x388] sm:$0xf]
  %v256 = vld [vmem:[%s1 + $0x38c] sm:$0xf]
  %v257 = vld [vmem:[%s1 + $0x390] sm:$0xf]
  %v258 = vld [vmem:[%s1 + $0x394] sm:$0xf]
  %v259 = vld [vmem:[%s1 + $0x398] sm:$0xf]
  %v260 = vld [vmem:[%s1 + $0x39c] sm:$0xf]
  %v261 = vld [vmem:[%s1 + $0x3a0] sm:$0xf]
  %v262 = vld [vmem:[%s1 + $0x3a4] sm:$0xf]
  %v263 = vld [vmem:[%s1 + $0x3a8] sm:$0xf]
  %v264 = vld [vmem:[%s1 + $0x3ac] sm:$0xf]
  %v265 = vld [vmem:[%s1 + $0x3b0] sm:$0xf]
  %v266 = vld [vmem:[%s1 + $0x3b4] sm:$0xf]
  %v267 = vld [vmem:[%s1 + $0x3b8] sm:$0xf]
  %v268 = vld [vmem:[%s1 + $0x3bc] sm:$0xf]
  %v269 = vld [vmem:[%s1 + $0x3c0] sm:$0xf]
  %v270 = vld [vmem:[%s1 + $0x3c4] sm:$0xf]
  %v271 = vld [vmem:[%s1 + $0x3c8] sm:$0xf]
  %v272 = vld [vmem:[%s1 + $0x3cc] sm:$0xf]
  %v273 = vld [vmem:[%s1 + $0x3d0] sm:$0xf]
  %v274 = vld [vmem:[%s1 + $0x3d4] sm:$0xf]
  %v275 = vld [vmem:[%s1 + $0x3d8] sm:$0xf]
  %v276 = vld [vmem:[%s1 + $0x3dc] sm:$0xf]
  %v277 = vld [vmem:[%s1 + $0x3e0] sm:$0xf]
  %v278 = vld [vmem:[%s1 + $0x3e4] sm:$0xf]
  %v279 = vld [vmem:[%s1 + $0x3e8] sm:$0xf]
  %v280 = vld [vmem:[%s1 + $0x3ec] sm:$0xf]
  %v281 = vld [vmem:[%s1 + $0x3f0] sm:$0xf]
  %v282 = vld [vmem:[%s1 + $0x3f4] sm:$0xf]
  %v283 = vld [vmem:[%s1 + $0x3f8] sm:$0xf]
  %v284 = vld [vmem:[%s1 + $0x3fc] sm:$0xf]
  %v293 = vunpack.c.l.b16 %v21
  %v294 = vunpack.c.h.b16 %v21
  %v295 = vunpack.c.l.b16 %v22
  %v296 = vunpack.c.h.b16 %v22
  %v297 = vunpack.c.l.b16 %v23
  %v298 = vunpack.c.h.b16 %v23
  %v299 = vunpack.c.l.b16 %v24
  %v300 = vunpack.c.h.b16 %v24
  %v301 = vunpack.c.l.b16 %v25
  %v302 = vunpack.c.h.b16 %v25
  %v303 = vunpack.c.l.b16 %v26
  %v304 = vunpack.c.h.b16 %v26
  %v305 = vunpack.c.l.b16 %v27
  %v306 = vunpack.c.h.b16 %v27
  %v307 = vunpack.c.l.b16 %v28
  %v308 = vunpack.c.h.b16 %v28
  %v309 = vpack.c.b16 %v293, %v293
  %v310 = vpack.c.b16 %v294, %v294
  %v311 = vpack.c.b16 %v295, %v295
  %v312 = vpack.c.b16 %v296, %v296
  %v313 = vpack.c.b16 %v297, %v297
  %v314 = vpack.c.b16 %v298, %v298
  %v315 = vpack.c.b16 %v299, %v299
  %v316 = vpack.c.b16 %v300, %v300
  %v317 = vpack.c.b16 %v301, %v301
  %v318 = vpack.c.b16 %v302, %v302
  %v319 = vpack.c.b16 %v303, %v303
  %v320 = vpack.c.b16 %v304, %v304
  %v321 = vpack.c.b16 %v305, %v305
  %v322 = vpack.c.b16 %v306, %v306
  %v323 = vpack.c.b16 %v307, %v307
  %v324 = vpack.c.b16 %v308, %v308
  %v597 = vunpack.c.l.b16 %v29
  %v598 = vunpack.c.l.b16 %v30
  %v599 = vunpack.c.l.b16 %v31
  %v600 = vunpack.c.l.b16 %v32
  %v601 = vunpack.c.l.b16 %v33
  %v602 = vunpack.c.l.b16 %v34
  %v603 = vunpack.c.l.b16 %v35
  %v604 = vunpack.c.l.b16 %v36
  %v605 = vunpack.c.l.b16 %v37
  %v606 = vunpack.c.l.b16 %v38
  %v607 = vunpack.c.l.b16 %v39
  %v608 = vunpack.c.l.b16 %v40
  %v609 = vunpack.c.l.b16 %v41
  %v610 = vunpack.c.l.b16 %v42
  %v611 = vunpack.c.l.b16 %v43
  %v612 = vunpack.c.l.b16 %v44
  %v613 = vunpack.c.l.b16 %v45
  %v614 = vunpack.c.l.b16 %v46
  %v615 = vunpack.c.l.b16 %v47
  %v616 = vunpack.c.l.b16 %v48
  %v617 = vunpack.c.l.b16 %v49
  %v618 = vunpack.c.l.b16 %v50
  %v619 = vunpack.c.l.b16 %v51
  %v620 = vunpack.c.l.b16 %v52
  %v621 = vunpack.c.l.b16 %v53
  %v622 = vunpack.c.l.b16 %v54
  %v623 = vunpack.c.l.b16 %v55
  %v624 = vunpack.c.l.b16 %v56
  %v625 = vunpack.c.l.b16 %v57
  %v626 = vunpack.c.l.b16 %v58
  %v627 = vunpack.c.l.b16 %v59
  %v628 = vunpack.c.l.b16 %v60
  %v629 = vunpack.c.l.b16 %v61
  %v630 = vunpack.c.l.b16 %v62
  %v631 = vunpack.c.l.b16 %v63
  %v632 = vunpack.c.l.b16 %v64
  %v633 = vunpack.c.l.b16 %v65
  %v634 = vunpack.c.l.b16 %v66
  %v635 = vunpack.c.l.b16 %v67
  %v636 = vunpack.c.l.b16 %v68
  %v637 = vunpack.c.l.b16 %v69
  %v638 = vunpack.c.l.b16 %v70
  %v639 = vunpack.c.l.b16 %v71
  %v640 = vunpack.c.l.b16 %v72
  %v641 = vunpack.c.l.b16 %v73
  %v642 = vunpack.c.l.b16 %v74
  %v643 = vunpack.c.l.b16 %v75
  %v644 = vunpack.c.l.b16 %v76
  %v645 = vunpack.c.l.b16 %v77
  %v646 = vunpack.c.l.b16 %v78
  %v647 = vunpack.c.l.b16 %v79
  %v648 = vunpack.c.l.b16 %v80
  %v649 = vunpack.c.l.b16 %v81
  %v650 = vunpack.c.l.b16 %v82
  %v651 = vunpack.c.l.b16 %v83
  %v652 = vunpack.c.l.b16 %v84
  %v653 = vunpack.c.l.b16 %v85
  %v654 = vunpack.c.l.b16 %v86
  %v655 = vunpack.c.l.b16 %v87
  %v656 = vunpack.c.l.b16 %v88
  %v657 = vunpack.c.l.b16 %v89
  %v658 = vunpack.c.l.b16 %v90
  %v659 = vunpack.c.l.b16 %v91
  %v660 = vunpack.c.l.b16 %v92
  %v661 = vunpack.c.l.b16 %v93
  %v662 = vunpack.c.l.b16 %v94
  %v663 = vunpack.c.l.b16 %v95
  %v664 = vunpack.c.l.b16 %v96
  %v665 = vunpack.c.l.b16 %v97
  %v666 = vunpack.c.l.b16 %v98
  %v667 = vunpack.c.l.b16 %v99
  %v668 = vunpack.c.l.b16 %v100
  %v669 = vunpack.c.l.b16 %v101
  %v670 = vunpack.c.l.b16 %v102
  %v671 = vunpack.c.l.b16 %v103
  %v672 = vunpack.c.l.b16 %v104
  %v673 = vunpack.c.l.b16 %v105
  %v674 = vunpack.c.l.b16 %v106
  %v675 = vunpack.c.l.b16 %v107
  %v676 = vunpack.c.l.b16 %v108
  %v677 = vunpack.c.l.b16 %v109
  %v678 = vunpack.c.l.b16 %v110
  %v679 = vunpack.c.l.b16 %v111
  %v680 = vunpack.c.l.b16 %v112
  %v681 = vunpack.c.l.b16 %v113
  %v682 = vunpack.c.l.b16 %v114
  %v683 = vunpack.c.l.b16 %v115
  %v684 = vunpack.c.l.b16 %v116
  %v685 = vunpack.c.l.b16 %v117
  %v686 = vunpack.c.l.b16 %v118
  %v687 = vunpack.c.l.b16 %v119
  %v688 = vunpack.c.l.b16 %v120
  %v689 = vunpack.c.l.b16 %v121
  %v690 = vunpack.c.l.b16 %v122
  %v691 = vunpack.c.l.b16 %v123
  %v692 = vunpack.c.l.b16 %v124
  %v693 = vunpack.c.l.b16 %v125
  %v694 = vunpack.c.l.b16 %v126
  %v695 = vunpack.c.l.b16 %v127
  %v696 = vunpack.c.l.b16 %v128
  %v697 = vunpack.c.l.b16 %v129
  %v698 = vunpack.c.l.b16 %v130
  %v699 = vunpack.c.l.b16 %v131
  %v700 = vunpack.c.l.b16 %v132
  %v701 = vunpack.c.l.b16 %v133
  %v702 = vunpack.c.l.b16 %v134
  %v703 = vunpack.c.l.b16 %v135
  %v704 = vunpack.c.l.b16 %v136
  %v705 = vunpack.c.l.b16 %v137
  %v706 = vunpack.c.l.b16 %v138
  %v707 = vunpack.c.l.b16 %v139
  %v708 = vunpack.c.l.b16 %v140
  %v709 = vunpack.c.l.b16 %v141
  %v710 = vunpack.c.l.b16 %v142
  %v711 = vunpack.c.l.b16 %v143
  %v712 = vunpack.c.l.b16 %v144
  %v713 = vunpack.c.l.b16 %v145
  %v714 = vunpack.c.l.b16 %v146
  %v715 = vunpack.c.l.b16 %v147
  %v716 = vunpack.c.l.b16 %v148
  %v717 = vunpack.c.l.b16 %v149
  %v718 = vunpack.c.l.b16 %v150
  %v719 = vunpack.c.l.b16 %v151
  %v720 = vunpack.c.l.b16 %v152
  %v721 = vunpack.c.l.b16 %v153
  %v722 = vunpack.c.l.b16 %v154
  %v723 = vunpack.c.l.b16 %v155
  %v724 = vunpack.c.l.b16 %v156
  %v725 = vunpack.c.l.b16 %v157
  %v726 = vunpack.c.l.b16 %v158
  %v727 = vunpack.c.l.b16 %v159
  %v728 = vunpack.c.l.b16 %v160
  %v729 = vunpack.c.l.b16 %v161
  %v730 = vunpack.c.l.b16 %v162
  %v731 = vunpack.c.l.b16 %v163
  %v732 = vunpack.c.l.b16 %v164
  %v733 = vunpack.c.l.b16 %v165
  %v734 = vunpack.c.l.b16 %v166
  %v735 = vunpack.c.l.b16 %v167
  %v736 = vunpack.c.l.b16 %v168
  %v737 = vunpack.c.l.b16 %v169
  %v738 = vunpack.c.l.b16 %v170
  %v739 = vunpack.c.l.b16 %v171
  %v740 = vunpack.c.l.b16 %v172
  %v741 = vunpack.c.l.b16 %v173
  %v742 = vunpack.c.l.b16 %v174
  %v743 = vunpack.c.l.b16 %v175
  %v744 = vunpack.c.l.b16 %v176
  %v745 = vunpack.c.l.b16 %v177
  %v746 = vunpack.c.l.b16 %v178
  %v747 = vunpack.c.l.b16 %v179
  %v748 = vunpack.c.l.b16 %v180
  %v749 = vunpack.c.l.b16 %v181
  %v750 = vunpack.c.l.b16 %v182
  %v751 = vunpack.c.l.b16 %v183
  %v752 = vunpack.c.l.b16 %v184
  %v753 = vunpack.c.l.b16 %v185
  %v754 = vunpack.c.l.b16 %v186
  %v755 = vunpack.c.l.b16 %v187
  %v756 = vunpack.c.l.b16 %v188
  %v757 = vunpack.c.l.b16 %v189
  %v758 = vunpack.c.l.b16 %v190
  %v759 = vunpack.c.l.b16 %v191
  %v760 = vunpack.c.l.b16 %v192
  %v761 = vunpack.c.l.b16 %v193
  %v762 = vunpack.c.l.b16 %v194
  %v763 = vunpack.c.l.b16 %v195
  %v764 = vunpack.c.l.b16 %v196
  %v765 = vunpack.c.l.b16 %v197
  %v766 = vunpack.c.l.b16 %v198
  %v767 = vunpack.c.l.b16 %v199
  %v768 = vunpack.c.l.b16 %v200
  %v769 = vunpack.c.l.b16 %v201
  %v770 = vunpack.c.l.b16 %v202
  %v771 = vunpack.c.l.b16 %v203
  %v772 = vunpack.c.l.b16 %v204
  %v773 = vunpack.c.l.b16 %v205
  %v774 = vunpack.c.l.b16 %v206
  %v775 = vunpack.c.l.b16 %v207
  %v776 = vunpack.c.l.b16 %v208
  %v777 = vunpack.c.l.b16 %v209
  %v778 = vunpack.c.l.b16 %v210
  %v779 = vunpack.c.l.b16 %v211
  %v780 = vunpack.c.l.b16 %v212
  %v781 = vunpack.c.l.b16 %v213
  %v782 = vunpack.c.l.b16 %v214
  %v783 = vunpack.c.l.b16 %v215
  %v784 = vunpack.c.l.b16 %v216
  %v785 = vunpack.c.l.b16 %v217
  %v786 = vunpack.c.l.b16 %v218
  %v787 = vunpack.c.l.b16 %v219
  %v788 = vunpack.c.l.b16 %v220
  %v789 = vunpack.c.l.b16 %v221
  %v790 = vunpack.c.l.b16 %v222
  %v791 = vunpack.c.l.b16 %v223
  %v792 = vunpack.c.l.b16 %v224
  %v793 = vunpack.c.l.b16 %v225
  %v794 = vunpack.c.l.b16 %v226
  %v795 = vunpack.c.l.b16 %v227
  %v796 = vunpack.c.l.b16 %v228
  %v797 = vunpack.c.l.b16 %v229
  %v798 = vunpack.c.l.b16 %v230
  %v799 = vunpack.c.l.b16 %v231
  %v800 = vunpack.c.l.b16 %v232
  %v801 = vunpack.c.l.b16 %v233
  %v802 = vunpack.c.l.b16 %v234
  %v803 = vunpack.c.l.b16 %v235
  %v804 = vunpack.c.l.b16 %v236
  %v805 = vunpack.c.l.b16 %v237
  %v806 = vunpack.c.l.b16 %v238
  %v807 = vunpack.c.l.b16 %v239
  %v808 = vunpack.c.l.b16 %v240
  %v809 = vunpack.c.l.b16 %v241
  %v810 = vunpack.c.l.b16 %v242
  %v811 = vunpack.c.l.b16 %v243
  %v812 = vunpack.c.l.b16 %v244
  %v813 = vunpack.c.l.b16 %v245
  %v814 = vunpack.c.l.b16 %v246
  %v815 = vunpack.c.l.b16 %v247
  %v816 = vunpack.c.l.b16 %v248
  %v817 = vunpack.c.l.b16 %v249
  %v818 = vunpack.c.l.b16 %v250
  %v819 = vunpack.c.l.b16 %v251
  %v820 = vunpack.c.l.b16 %v252
  %v821 = vunpack.c.l.b16 %v253
  %v822 = vunpack.c.l.b16 %v254
  %v823 = vunpack.c.l.b16 %v255
  %v824 = vunpack.c.l.b16 %v256
  %v825 = vunpack.c.l.b16 %v257
  %v826 = vunpack.c.l.b16 %v258
  %v827 = vunpack.c.l.b16 %v259
  %v828 = vunpack.c.l.b16 %v260
  %v829 = vunpack.c.l.b16 %v261
  %v830 = vunpack.c.l.b16 %v262
  %v831 = vunpack.c.l.b16 %v263
  %v832 = vunpack.c.l.b16 %v264
  %v833 = vunpack.c.l.b16 %v265
  %v834 = vunpack.c.l.b16 %v266
  %v835 = vunpack.c.l.b16 %v267
  %v836 = vunpack.c.l.b16 %v268
  %v837 = vunpack.c.l.b16 %v269
  %v838 = vunpack.c.l.b16 %v270
  %v839 = vunpack.c.l.b16 %v271
  %v840 = vunpack.c.l.b16 %v272
  %v841 = vunpack.c.l.b16 %v273
  %v842 = vunpack.c.l.b16 %v274
  %v843 = vunpack.c.l.b16 %v275
  %v844 = vunpack.c.l.b16 %v276
  %v845 = vunpack.c.l.b16 %v277
  %v846 = vunpack.c.l.b16 %v278
  %v847 = vunpack.c.l.b16 %v279
  %v848 = vunpack.c.l.b16 %v280
  %v849 = vunpack.c.l.b16 %v281
  %v850 = vunpack.c.l.b16 %v282
  %v851 = vunpack.c.l.b16 %v283
  %v852 = vunpack.c.l.b16 %v284
  %v853 = vpack.c.b16 %v598, %v597
  %v854 = vpack.c.b16 %v600, %v599
  %v855 = vpack.c.b16 %v602, %v601
  %v856 = vpack.c.b16 %v604, %v603
  %v857 = vpack.c.b16 %v606, %v605
  %v858 = vpack.c.b16 %v608, %v607
  %v859 = vpack.c.b16 %v610, %v609
  %v860 = vpack.c.b16 %v612, %v611
  %v861 = vpack.c.b16 %v614, %v613
  %v862 = vpack.c.b16 %v616, %v615
  %v863 = vpack.c.b16 %v618, %v617
  %v864 = vpack.c.b16 %v620, %v619
  %v865 = vpack.c.b16 %v622, %v621
  %v866 = vpack.c.b16 %v624, %v623
  %v867 = vpack.c.b16 %v626, %v625
  %v868 = vpack.c.b16 %v628, %v627
  %v869 = vpack.c.b16 %v630, %v629
  %v870 = vpack.c.b16 %v632, %v631
  %v871 = vpack.c.b16 %v634, %v633
  %v872 = vpack.c.b16 %v636, %v635
  %v873 = vpack.c.b16 %v638, %v637
  %v874 = vpack.c.b16 %v640, %v639
  %v875 = vpack.c.b16 %v642, %v641
  %v876 = vpack.c.b16 %v644, %v643
  %v877 = vpack.c.b16 %v646, %v645
  %v878 = vpack.c.b16 %v648, %v647
  %v879 = vpack.c.b16 %v650, %v649
  %v880 = vpack.c.b16 %v652, %v651
  %v881 = vpack.c.b16 %v654, %v653
  %v882 = vpack.c.b16 %v656, %v655
  %v883 = vpack.c.b16 %v658, %v657
  %v884 = vpack.c.b16 %v660, %v659
  %v885 = vpack.c.b16 %v662, %v661
  %v886 = vpack.c.b16 %v664, %v663
  %v887 = vpack.c.b16 %v666, %v665
  %v888 = vpack.c.b16 %v668, %v667
  %v889 = vpack.c.b16 %v670, %v669
  %v890 = vpack.c.b16 %v672, %v671
  %v891 = vpack.c.b16 %v674, %v673
  %v892 = vpack.c.b16 %v676, %v675
  %v893 = vpack.c.b16 %v678, %v677
  %v894 = vpack.c.b16 %v680, %v679
  %v895 = vpack.c.b16 %v682, %v681
  %v896 = vpack.c.b16 %v684, %v683
  %v897 = vpack.c.b16 %v686, %v685
  %v898 = vpack.c.b16 %v688, %v687
  %v899 = vpack.c.b16 %v690, %v689
  %v900 = vpack.c.b16 %v692, %v691
  %v901 = vpack.c.b16 %v694, %v693
  %v902 = vpack.c.b16 %v696, %v695
  %v903 = vpack.c.b16 %v698, %v697
  %v904 = vpack.c.b16 %v700, %v699
  %v905 = vpack.c.b16 %v702, %v701
  %v906 = vpack.c.b16 %v704, %v703
  %v907 = vpack.c.b16 %v706, %v705
  %v908 = vpack.c.b16 %v708, %v707
  %v909 = vpack.c.b16 %v710, %v709
  %v910 = vpack.c.b16 %v712, %v711
  %v911 = vpack.c.b16 %v714, %v713
  %v912 = vpack.c.b16 %v716, %v715
  %v913 = vpack.c.b16 %v718, %v717
  %v914 = vpack.c.b16 %v720, %v719
  %v915 = vpack.c.b16 %v722, %v721
  %v916 = vpack.c.b16 %v724, %v723
  %v917 = vpack.c.b16 %v726, %v725
  %v918 = vpack.c.b16 %v728, %v727
  %v919 = vpack.c.b16 %v730, %v729
  %v920 = vpack.c.b16 %v732, %v731
  %v921 = vpack.c.b16 %v734, %v733
  %v922 = vpack.c.b16 %v736, %v735
  %v923 = vpack.c.b16 %v738, %v737
  %v924 = vpack.c.b16 %v740, %v739
  %v925 = vpack.c.b16 %v742, %v741
  %v926 = vpack.c.b16 %v744, %v743
  %v927 = vpack.c.b16 %v746, %v745
  %v928 = vpack.c.b16 %v748, %v747
  %v929 = vpack.c.b16 %v750, %v749
  %v930 = vpack.c.b16 %v752, %v751
  %v931 = vpack.c.b16 %v754, %v753
  %v932 = vpack.c.b16 %v756, %v755
  %v933 = vpack.c.b16 %v758, %v757
  %v934 = vpack.c.b16 %v760, %v759
  %v935 = vpack.c.b16 %v762, %v761
  %v936 = vpack.c.b16 %v764, %v763
  %v937 = vpack.c.b16 %v766, %v765
  %v938 = vpack.c.b16 %v768, %v767
  %v939 = vpack.c.b16 %v770, %v769
  %v940 = vpack.c.b16 %v772, %v771
  %v941 = vpack.c.b16 %v774, %v773
  %v942 = vpack.c.b16 %v776, %v775
  %v943 = vpack.c.b16 %v778, %v777
  %v944 = vpack.c.b16 %v780, %v779
  %v945 = vpack.c.b16 %v782, %v781
  %v946 = vpack.c.b16 %v784, %v783
  %v947 = vpack.c.b16 %v786, %v785
  %v948 = vpack.c.b16 %v788, %v787
  %v949 = vpack.c.b16 %v790, %v789
  %v950 = vpack.c.b16 %v792, %v791
  %v951 = vpack.c.b16 %v794, %v793
  %v952 = vpack.c.b16 %v796, %v795
  %v953 = vpack.c.b16 %v798, %v797
  %v954 = vpack.c.b16 %v800, %v799
  %v955 = vpack.c.b16 %v802, %v801
  %v956 = vpack.c.b16 %v804, %v803
  %v957 = vpack.c.b16 %v806, %v805
  %v958 = vpack.c.b16 %v808, %v807
  %v959 = vpack.c.b16 %v810, %v809
  %v960 = vpack.c.b16 %v812, %v811
  %v961 = vpack.c.b16 %v814, %v813
  %v962 = vpack.c.b16 %v816, %v815
  %v963 = vpack.c.b16 %v818, %v817
  %v964 = vpack.c.b16 %v820, %v819
  %v965 = vpack.c.b16 %v822, %v821
  %v966 = vpack.c.b16 %v824, %v823
  %v967 = vpack.c.b16 %v826, %v825
  %v968 = vpack.c.b16 %v828, %v827
  %v969 = vpack.c.b16 %v830, %v829
  %v970 = vpack.c.b16 %v832, %v831
  %v971 = vpack.c.b16 %v834, %v833
  %v972 = vpack.c.b16 %v836, %v835
  %v973 = vpack.c.b16 %v838, %v837
  %v974 = vpack.c.b16 %v840, %v839
  %v975 = vpack.c.b16 %v842, %v841
  %v976 = vpack.c.b16 %v844, %v843
  %v977 = vpack.c.b16 %v846, %v845
  %v978 = vpack.c.b16 %v848, %v847
  %v979 = vpack.c.b16 %v850, %v849
  %v980 = vpack.c.b16 %v852, %v851
  %1109 = vmatprep.subr.bf16.mxu0 0
  %1110 = vmatpush1.bf16.msra.mxu0 %v860
  %1111 = vmatprep.subr.bf16.mxu0 0
  %1112 = vmatpush1.bf16.msra.mxu0 %v859
  %1113 = vmatprep.subr.bf16.mxu0 0
  %1114 = vmatpush1.bf16.msra.mxu0 %v858
  %1115 = vmatprep.subr.bf16.mxu0 0
  %1116 = vmatpush1.bf16.msra.mxu0 %v857
  %1117 = vmatprep.subr.bf16.mxu0 0
  %1118 = vmatpush1.bf16.msra.mxu0 %v856
  %1119 = vmatprep.subr.bf16.mxu0 0
  %1120 = vmatpush1.bf16.msra.mxu0 %v855
  %1121 = vmatprep.subr.bf16.mxu0 0
  %1122 = vmatpush1.bf16.msra.mxu0 %v854
  %1123 = vmatprep.subr.bf16.mxu0 0
  %1124 = vmatpush1.bf16.msra.mxu0 %v853
  %1125 = vmatprep.subr.bf16.mxu0 0
  %1126 = vmatpush2.bf16.msra.mxu0 %v868
  %1127 = vmatprep.subr.bf16.mxu0 0
  %1128 = vmatpush2.bf16.msra.mxu0 %v867
  %1129 = vmatprep.subr.bf16.mxu0 0
  %1130 = vmatpush2.bf16.msra.mxu0 %v866
  %1131 = vmatprep.subr.bf16.mxu0 0
  %1132 = vmatpush2.bf16.msra.mxu0 %v865
  %1133 = vmatprep.subr.bf16.mxu0 0
  %1134 = vmatpush2.bf16.msra.mxu0 %v864
  %1135 = vmatprep.subr.bf16.mxu0 0
  %1136 = vmatpush2.bf16.msra.mxu0 %v863
  %1137 = vmatprep.subr.bf16.mxu0 0
  %1138 = vmatpush2.bf16.msra.mxu0 %v862
  %1139 = vmatprep.subr.bf16.mxu0 0
  %1140 = vmatpush2.bf16.msra.mxu0 %v861
  %1141 = vmatprep.mubr.bf16.mxu0 %v310
  %1142 = vmatmul.mubr.bf16.gmra.mxu0 %v309
  %v1143 = vpop.f32.mrf.mxu0
  %v1144 = vadd.f32 0.0, %v1143
  %v1145 = vpop.f32.mrf.mxu0
  %v1146 = vpop.f32.mrf.mxu0
  %v1147 = vpop.f32.mrf.mxu0
  %1148 = vdwg.mxu0
  %1149 = vmatprep.subr.bf16.mxu0 0
  %1150 = vmatpush1.bf16.msra.mxu0 %v876
  %1151 = vmatprep.subr.bf16.mxu0 0
  %1152 = vmatpush1.bf16.msra.mxu0 %v875
  %1153 = vmatprep.subr.bf16.mxu0 0
  %1154 = vmatpush1.bf16.msra.mxu0 %v874
  %1155 = vmatprep.subr.bf16.mxu0 0
  %1156 = vmatpush1.bf16.msra.mxu0 %v873
  %1157 = vmatprep.subr.bf16.mxu0 0
  %1158 = vmatpush1.bf16.msra.mxu0 %v872
  %1159 = vmatprep.subr.bf16.mxu0 0
  %1160 = vmatpush1.bf16.msra.mxu0 %v871
  %1161 = vmatprep.subr.bf16.mxu0 0
  %1162 = vmatpush1.bf16.msra.mxu0 %v870
  %1163 = vmatprep.subr.bf16.mxu0 0
  %1164 = vmatpush1.bf16.msra.mxu0 %v869
  %1165 = vmatprep.subr.bf16.mxu0 0
  %1166 = vmatpush2.bf16.msra.mxu0 %v884
  %1167 = vmatprep.subr.bf16.mxu0 0
  %1168 = vmatpush2.bf16.msra.mxu0 %v883
  %1169 = vmatprep.subr.bf16.mxu0 0
  %1170 = vmatpush2.bf16.msra.mxu0 %v882
  %1171 = vmatprep.subr.bf16.mxu0 0
  %1172 = vmatpush2.bf16.msra.mxu0 %v881
  %1173 = vmatprep.subr.bf16.mxu0 0
  %1174 = vmatpush2.bf16.msra.mxu0 %v880
  %1175 = vmatprep.subr.bf16.mxu0 0
  %1176 = vmatpush2.bf16.msra.mxu0 %v879
  %1177 = vmatprep.subr.bf16.mxu0 0
  %1178 = vmatpush2.bf16.msra.mxu0 %v878
  %1179 = vmatprep.subr.bf16.mxu0 0
  %1180 = vmatpush2.bf16.msra.mxu0 %v877
  %1181 = vmatprep.mubr.bf16.mxu0 %v312
  %1182 = vmatmul.mubr.bf16.gmra.mxu0 %v311
  %v1183 = vpop.f32.mrf.mxu0
  %v1184 = vadd.f32 %v1144, %v1183
  %v1185 = vpop.f32.mrf.mxu0
  %v1186 = vpop.f32.mrf.mxu0
  %v1187 = vpop.f32.mrf.mxu0
  %1188 = vdwg.mxu0
  %1189 = vmatprep.subr.bf16.mxu0 0
  %1190 = vmatpush1.bf16.msra.mxu0 %v892
  %1191 = vmatprep.subr.bf16.mxu0 0
  %1192 = vmatpush1.bf16.msra.mxu0 %v891
  %1193 = vmatprep.subr.bf16.mxu0 0
  %1194 = vmatpush1.bf16.msra.mxu0 %v890
  %1195 = vmatprep.subr.bf16.mxu0 0
  %1196 = vmatpush1.bf16.msra.mxu0 %v889
  %1197 = vmatprep.subr.bf16.mxu0 0
  %1198 = vmatpush1.bf16.msra.mxu0 %v888
  %1199 = vmatprep.subr.bf16.mxu0 0
  %1200 = vmatpush1.bf16.msra.mxu0 %v887
  %1201 = vmatprep.subr.bf16.mxu0 0
  %1202 = vmatpush1.bf16.msra.mxu0 %v886
  %1203 = vmatprep.subr.bf16.mxu0 0
  %1204 = vmatpush1.bf16.msra.mxu0 %v885
  %1205 = vmatprep.subr.bf16.mxu0 0
  %1206 = vmatpush2.bf16.msra.mxu0 %v900
  %1207 = vmatprep.subr.bf16.mxu0 0
  %1208 = vmatpush2.bf16.msra.mxu0 %v899
  %1209 = vmatprep.subr.bf16.mxu0 0
  %1210 = vmatpush2.bf16.msra.mxu0 %v898
  %1211 = vmatprep.subr.bf16.mxu0 0
  %1212 = vmatpush2.bf16.msra.mxu0 %v897
  %1213 = vmatprep.subr.bf16.mxu0 0
  %1214 = vmatpush2.bf16.msra.mxu0 %v896
  %1215 = vmatprep.subr.bf16.mxu0 0
  %1216 = vmatpush2.bf16.msra.mxu0 %v895
  %1217 = vmatprep.subr.bf16.mxu0 0
  %1218 = vmatpush2.bf16.msra.mxu0 %v894
  %1219 = vmatprep.subr.bf16.mxu0 0
  %1220 = vmatpush2.bf16.msra.mxu0 %v893
  %1221 = vmatprep.mubr.bf16.mxu0 %v314
  %1222 = vmatmul.mubr.bf16.gmra.mxu0 %v313
  %v1223 = vpop.f32.mrf.mxu0
  %v1224 = vadd.f32 %v1184, %v1223
  %v1225 = vpop.f32.mrf.mxu0
  %v1226 = vpop.f32.mrf.mxu0
  %v1227 = vpop.f32.mrf.mxu0
  %1228 = vdwg.mxu0
  %1229 = vmatprep.subr.bf16.mxu0 0
  %1230 = vmatpush1.bf16.msra.mxu0 %v908
  %1231 = vmatprep.subr.bf16.mxu0 0
  %1232 = vmatpush1.bf16.msra.mxu0 %v907
  %1233 = vmatprep.subr.bf16.mxu0 0
  %1234 = vmatpush1.bf16.msra.mxu0 %v906
  %1235 = vmatprep.subr.bf16.mxu0 0
  %1236 = vmatpush1.bf16.msra.mxu0 %v905
  %1237 = vmatprep.subr.bf16.mxu0 0
  %1238 = vmatpush1.bf16.msra.mxu0 %v904
  %1239 = vmatprep.subr.bf16.mxu0 0
  %1240 = vmatpush1.bf16.msra.mxu0 %v903
  %1241 = vmatprep.subr.bf16.mxu0 0
  %1242 = vmatpush1.bf16.msra.mxu0 %v902
  %1243 = vmatprep.subr.bf16.mxu0 0
  %1244 = vmatpush1.bf16.msra.mxu0 %v901
  %1245 = vmatprep.subr.bf16.mxu0 0
  %1246 = vmatpush2.bf16.msra.mxu0 %v916
  %1247 = vmatprep.subr.bf16.mxu0 0
  %1248 = vmatpush2.bf16.msra.mxu0 %v915
  %1249 = vmatprep.subr.bf16.mxu0 0
  %1250 = vmatpush2.bf16.msra.mxu0 %v914
  %1251 = vmatprep.subr.bf16.mxu0 0
  %1252 = vmatpush2.bf16.msra.mxu0 %v913
  %1253 = vmatprep.subr.bf16.mxu0 0
  %1254 = vmatpush2.bf16.msra.mxu0 %v912
  %1255 = vmatprep.subr.bf16.mxu0 0
  %1256 = vmatpush2.bf16.msra.mxu0 %v911
  %1257 = vmatprep.subr.bf16.mxu0 0
  %1258 = vmatpush2.bf16.msra.mxu0 %v910
  %1259 = vmatprep.subr.bf16.mxu0 0
  %1260 = vmatpush2.bf16.msra.mxu0 %v909
  %1261 = vmatprep.mubr.bf16.mxu0 %v316
  %1262 = vmatmul.mubr.bf16.gmra.mxu0 %v315
  %v1263 = vpop.f32.mrf.mxu0
  %v1264 = vadd.f32 %v1224, %v1263
  %v1265 = vpop.f32.mrf.mxu0
  %v1266 = vpop.f32.mrf.mxu0
  %v1267 = vpop.f32.mrf.mxu0
  %1268 = vdwg.mxu0
  %1269 = vmatprep.subr.bf16.mxu0 0
  %1270 = vmatpush1.bf16.msra.mxu0 %v924
  %1271 = vmatprep.subr.bf16.mxu0 0
  %1272 = vmatpush1.bf16.msra.mxu0 %v923
  %1273 = vmatprep.subr.bf16.mxu0 0
  %1274 = vmatpush1.bf16.msra.mxu0 %v922
  %1275 = vmatprep.subr.bf16.mxu0 0
  %1276 = vmatpush1.bf16.msra.mxu0 %v921
  %1277 = vmatprep.subr.bf16.mxu0 0
  %1278 = vmatpush1.bf16.msra.mxu0 %v920
  %1279 = vmatprep.subr.bf16.mxu0 0
  %1280 = vmatpush1.bf16.msra.mxu0 %v919
  %1281 = vmatprep.subr.bf16.mxu0 0
  %1282 = vmatpush1.bf16.msra.mxu0 %v918
  %1283 = vmatprep.subr.bf16.mxu0 0
  %1284 = vmatpush1.bf16.msra.mxu0 %v917
  %1285 = vmatprep.subr.bf16.mxu0 0
  %1286 = vmatpush2.bf16.msra.mxu0 %v932
  %1287 = vmatprep.subr.bf16.mxu0 0
  %1288 = vmatpush2.bf16.msra.mxu0 %v931
  %1289 = vmatprep.subr.bf16.mxu0 0
  %1290 = vmatpush2.bf16.msra.mxu0 %v930
  %1291 = vmatprep.subr.bf16.mxu0 0
  %1292 = vmatpush2.bf16.msra.mxu0 %v929
  %1293 = vmatprep.subr.bf16.mxu0 0
  %1294 = vmatpush2.bf16.msra.mxu0 %v928
  %1295 = vmatprep.subr.bf16.mxu0 0
  %1296 = vmatpush2.bf16.msra.mxu0 %v927
  %1297 = vmatprep.subr.bf16.mxu0 0
  %1298 = vmatpush2.bf16.msra.mxu0 %v926
  %1299 = vmatprep.subr.bf16.mxu0 0
  %1300 = vmatpush2.bf16.msra.mxu0 %v925
  %1301 = vmatprep.mubr.bf16.mxu0 %v318
  %1302 = vmatmul.mubr.bf16.gmra.mxu0 %v317
  %v1303 = vpop.f32.mrf.mxu0
  %v1304 = vadd.f32 %v1264, %v1303
  %v1305 = vpop.f32.mrf.mxu0
  %v1306 = vpop.f32.mrf.mxu0
  %v1307 = vpop.f32.mrf.mxu0
  %1308 = vdwg.mxu0
  %1309 = vmatprep.subr.bf16.mxu0 0
  %1310 = vmatpush1.bf16.msra.mxu0 %v940
  %1311 = vmatprep.subr.bf16.mxu0 0
  %1312 = vmatpush1.bf16.msra.mxu0 %v939
  %1313 = vmatprep.subr.bf16.mxu0 0
  %1314 = vmatpush1.bf16.msra.mxu0 %v938
  %1315 = vmatprep.subr.bf16.mxu0 0
  %1316 = vmatpush1.bf16.msra.mxu0 %v937
  %1317 = vmatprep.subr.bf16.mxu0 0
  %1318 = vmatpush1.bf16.msra.mxu0 %v936
  %1319 = vmatprep.subr.bf16.mxu0 0
  %1320 = vmatpush1.bf16.msra.mxu0 %v935
  %1321 = vmatprep.subr.bf16.mxu0 0
  %1322 = vmatpush1.bf16.msra.mxu0 %v934
  %1323 = vmatprep.subr.bf16.mxu0 0
  %1324 = vmatpush1.bf16.msra.mxu0 %v933
  %1325 = vmatprep.subr.bf16.mxu0 0
  %1326 = vmatpush2.bf16.msra.mxu0 %v948
  %1327 = vmatprep.subr.bf16.mxu0 0
  %1328 = vmatpush2.bf16.msra.mxu0 %v947
  %1329 = vmatprep.subr.bf16.mxu0 0
  %1330 = vmatpush2.bf16.msra.mxu0 %v946
  %1331 = vmatprep.subr.bf16.mxu0 0
  %1332 = vmatpush2.bf16.msra.mxu0 %v945
  %1333 = vmatprep.subr.bf16.mxu0 0
  %1334 = vmatpush2.bf16.msra.mxu0 %v944
  %1335 = vmatprep.subr.bf16.mxu0 0
  %1336 = vmatpush2.bf16.msra.mxu0 %v943
  %1337 = vmatprep.subr.bf16.mxu0 0
  %1338 = vmatpush2.bf16.msra.mxu0 %v942
  %1339 = vmatprep.subr.bf16.mxu0 0
  %1340 = vmatpush2.bf16.msra.mxu0 %v941
  %1341 = vmatprep.mubr.bf16.mxu0 %v320
  %1342 = vmatmul.mubr.bf16.gmra.mxu0 %v319
  %v1343 = vpop.f32.mrf.mxu0
  %v1344 = vadd.f32 %v1304, %v1343
  %v1345 = vpop.f32.mrf.mxu0
  %v1346 = vpop.f32.mrf.mxu0
  %v1347 = vpop.f32.mrf.mxu0
  %1348 = vdwg.mxu0
  %1349 = vmatprep.subr.bf16.mxu0 0
  %1350 = vmatpush1.bf16.msra.mxu0 %v956
  %1351 = vmatprep.subr.bf16.mxu0 0
  %1352 = vmatpush1.bf16.msra.mxu0 %v955
  %1353 = vmatprep.subr.bf16.mxu0 0
  %1354 = vmatpush1.bf16.msra.mxu0 %v954
  %1355 = vmatprep.subr.bf16.mxu0 0
  %1356 = vmatpush1.bf16.msra.mxu0 %v953
  %1357 = vmatprep.subr.bf16.mxu0 0
  %1358 = vmatpush1.bf16.msra.mxu0 %v952
  %1359 = vmatprep.subr.bf16.mxu0 0
  %1360 = vmatpush1.bf16.msra.mxu0 %v951
  %1361 = vmatprep.subr.bf16.mxu0 0
  %1362 = vmatpush1.bf16.msra.mxu0 %v950
  %1363 = vmatprep.subr.bf16.mxu0 0
  %1364 = vmatpush1.bf16.msra.mxu0 %v949
  %1365 = vmatprep.subr.bf16.mxu0 0
  %1366 = vmatpush2.bf16.msra.mxu0 %v964
  %1367 = vmatprep.subr.bf16.mxu0 0
  %1368 = vmatpush2.bf16.msra.mxu0 %v963
  %1369 = vmatprep.subr.bf16.mxu0 0
  %1370 = vmatpush2.bf16.msra.mxu0 %v962
  %1371 = vmatprep.subr.bf16.mxu0 0
  %1372 = vmatpush2.bf16.msra.mxu0 %v961
  %1373 = vmatprep.subr.bf16.mxu0 0
  %1374 = vmatpush2.bf16.msra.mxu0 %v960
  %1375 = vmatprep.subr.bf16.mxu0 0
  %1376 = vmatpush2.bf16.msra.mxu0 %v959
  %1377 = vmatprep.subr.bf16.mxu0 0
  %1378 = vmatpush2.bf16.msra.mxu0 %v958
  %1379 = vmatprep.subr.bf16.mxu0 0
  %1380 = vmatpush2.bf16.msra.mxu0 %v957
  %1381 = vmatprep.mubr.bf16.mxu0 %v322
  %1382 = vmatmul.mubr.bf16.gmra.mxu0 %v321
  %v1383 = vpop.f32.mrf.mxu0
  %v1384 = vadd.f32 %v1344, %v1383
  %v1385 = vpop.f32.mrf.mxu0
  %v1386 = vpop.f32.mrf.mxu0
  %v1387 = vpop.f32.mrf.mxu0
  %1388 = vdwg.mxu0
  %1389 = vmatprep.subr.bf16.mxu0 0
  %1390 = vmatpush1.bf16.msra.mxu0 %v972
  %1391 = vmatprep.subr.bf16.mxu0 0
  %1392 = vmatpush1.bf16.msra.mxu0 %v971
  %1393 = vmatprep.subr.bf16.mxu0 0
  %1394 = vmatpush1.bf16.msra.mxu0 %v970
  %1395 = vmatprep.subr.bf16.mxu0 0
  %1396 = vmatpush1.bf16.msra.mxu0 %v969
  %1397 = vmatprep.subr.bf16.mxu0 0
  %1398 = vmatpush1.bf16.msra.mxu0 %v968
  %1399 = vmatprep.subr.bf16.mxu0 0
  %1400 = vmatpush1.bf16.msra.mxu0 %v967
  %1401 = vmatprep.subr.bf16.mxu0 0
  %1402 = vmatpush1.bf16.msra.mxu0 %v966
  %1403 = vmatprep.subr.bf16.mxu0 0
  %1404 = vmatpush1.bf16.msra.mxu0 %v965
  %1405 = vmatprep.subr.bf16.mxu0 0
  %1406 = vmatpush2.bf16.msra.mxu0 %v980
  %1407 = vmatprep.subr.bf16.mxu0 0
  %1408 = vmatpush2.bf16.msra.mxu0 %v979
  %1409 = vmatprep.subr.bf16.mxu0 0
  %1410 = vmatpush2.bf16.msra.mxu0 %v978
  %1411 = vmatprep.subr.bf16.mxu0 0
  %1412 = vmatpush2.bf16.msra.mxu0 %v977
  %1413 = vmatprep.subr.bf16.mxu0 0
  %1414 = vmatpush2.bf16.msra.mxu0 %v976
  %1415 = vmatprep.subr.bf16.mxu0 0
  %1416 = vmatpush2.bf16.msra.mxu0 %v975
  %1417 = vmatprep.subr.bf16.mxu0 0
  %1418 = vmatpush2.bf16.msra.mxu0 %v974
  %1419 = vmatprep.subr.bf16.mxu0 0
  %1420 = vmatpush2.bf16.msra.mxu0 %v973
  %1421 = vmatprep.mubr.bf16.mxu0 %v324
  %1422 = vmatmul.mubr.bf16.gmra.mxu0 %v323
  %v1423 = vpop.f32.mrf.mxu0
  %v1424 = vadd.f32 %v1384, %v1423
  %v1425 = vpop.f32.mrf.mxu0
  %v1426 = vpop.f32.mrf.mxu0
  %v1427 = vpop.f32.mrf.mxu0
  %1428 = vdwg.mxu0
  %v1429 = vadd.f32 %v20, %v1424
  %1430 = vst [vmem:[#allocation2] sm:$0xff] %v1429
  // Predicated region
  $region18: #{fc_discriminator_forward.9} parent=0 // pred_check
    %p1431 = pneg %p15
  $region19: #{fc_discriminator_forward.9} parent=0 // pred_check_branch
    %1433 = sbr.rel (%p1431) target = $region21
  $region20: #{fc_discriminator_forward.9} parent=0 // pred_region
    %v1434 = vld [vmem:[#allocation2] sm:$0xff]
    %v1435 = vld [vmem:[%s2] sm:$0x1]
    %v1437 = vlaneseq
    %v1438 = vshrl.u32 %v1437, 7
    %v1439 = vsub.s32 0, %v1438
    %v1440 = vrot.slane %v1435, %v1439
    %v1442 = vadd.f32 %v1434, %v1440
    %1443 = vst [vmem:[%s3] sm:$0xff] %v1442
  $region21: #{fc_discriminator_forward.9} parent=0 // pred_fallthru
    _
  // Predicated region
  $region22: #{fc_discriminator_forward.9} parent=0 // pred_check
    _
  $region23: #{fc_discriminator_forward.9} parent=0 // pred_check_branch
    %1445 = sbr.rel (0) target = $region25
  $region24: #{fc_discriminator_forward.9} parent=0 // pred_region
    _
  $region25: #{fc_discriminator_forward.9} parent=0 // pred_fallthru
    _
  // Predicated region
  $region26: #{fc_discriminator_forward.9} parent=0 // pred_check
    _
  $region27: #{fc_discriminator_forward.9} parent=0 // pred_check_branch
    %1447 = sbr.rel (0) target = $region29
  $region28: #{fc_discriminator_forward.9} parent=0 // pred_region
    _
  $region29: #{fc_discriminator_forward.9} parent=0 // pred_fallthru
    _

// kernel: fc_discriminator_forward.8
$region0: #{fc_discriminator_forward.8}
  #allocation0 [shape = 'u32[]', space=smem, size = 0x4, offset = 0x4, fixed_abs, tag = 'smem constant byte address 0x4 - core index']
  #allocation1 [shape = 'u32[144,128]{1,0:T(1,128)}', space=vmem, size = 0x12000, scoped, tag = 'internal scratch']
  #allocation2 [shape = 'f32[8,128]{1,0:T(8,128)}', space=vmem, size = 0x1000, scoped, tag = 'scratch operand']
  %s0 = inlined_call_operand.vmem [shape: bf16[8,2048], index: 0, kind: input, shape index: {}]
  %s1 = inlined_call_operand.vmem [shape: bf16[2048,128], index: 1, kind: input, shape index: {}]
  %s2 = inlined_call_operand.vmem [shape: f32[1,128], index: 2, kind: input, shape index: {}]
  %s3 = inlined_call_operand.vmem [shape: bf16[8,128], index: 3, kind: output, shape index: {}]
  %s4 = sld [smem:[#allocation0]]
  $region30: #{fc_discriminator_forward.8} parent=0
    _
  %s6 = ssub.s32 1, %s4
  %s7 = scalar_select 0, %s6, %s4
  // Predicated region
  $region2: #{fc_discriminator_forward.8} parent=0 // pred_check
    _
  $region3: #{fc_discriminator_forward.8} parent=0 // pred_check_branch
    %9 = sbr.rel (0) target = $region5
  $region4: #{fc_discriminator_forward.8} parent=0 // pred_region
    _
  $region5: #{fc_discriminator_forward.8} parent=0 // pred_fallthru
    _
  // Predicated region
  $region6: #{fc_discriminator_forward.8} parent=0 // pred_check
    _
  $region7: #{fc_discriminator_forward.8} parent=0 // pred_check_branch
    %11 = sbr.rel (0) target = $region9
  $region8: #{fc_discriminator_forward.8} parent=0 // pred_region
    _
  $region9: #{fc_discriminator_forward.8} parent=0 // pred_fallthru
    _
  // Predicated region
  $region10: #{fc_discriminator_forward.8} parent=0 // pred_check
    _
  $region11: #{fc_discriminator_forward.8} parent=0 // pred_check_branch
    %13 = sbr.rel (0) target = $region13
  $region12: #{fc_discriminator_forward.8} parent=0 // pred_region
    _
  $region13: #{fc_discriminator_forward.8} parent=0 // pred_fallthru
    _
  %p15 = scmp.eq.s32.totalorder 0, 0
  // Predicated region
  $region14: #{fc_discriminator_forward.8} parent=0 // pred_check
    %p16 = pneg %p15
  $region15: #{fc_discriminator_forward.8} parent=0 // pred_check_branch
    %18 = sbr.rel (%p16) target = $region17
  $region16: #{fc_discriminator_forward.8} parent=0 // pred_region
    %19 = vst [vmem:[#allocation2] sm:$0xff] 0.0
  $region17: #{fc_discriminator_forward.8} parent=0 // pred_fallthru
    _
  %v20 = vld [vmem:[#allocation2] sm:$0xff]
  %v21 = vld [vmem:[%s0] sm:$0xff]
  %v22 = vld [vmem:[%s0 + $0x8] sm:$0xff]
  %v23 = vld [vmem:[%s0 + $0x10] sm:$0xff]
  %v24 = vld [vmem:[%s0 + $0x18] sm:$0xff]
  %v25 = vld [vmem:[%s0 + $0x20] sm:$0xff]
  %v26 = vld [vmem:[%s0 + $0x28] sm:$0xff]
  %v27 = vld [vmem:[%s0 + $0x30] sm:$0xff]
  %v28 = vld [vmem:[%s0 + $0x38] sm:$0xff]
  %v29 = vld [vmem:[%s1] sm:$0xf]
  %v30 = vld [vmem:[%s1 + $0x4] sm:$0xf]
  %v31 = vld [vmem:[%s1 + $0x8] sm:$0xf]
  %v32 = vld [vmem:[%s1 + $0xc] sm:$0xf]
  %v33 = vld [vmem:[%s1 + $0x10] sm:$0xf]
  %v34 = vld [vmem:[%s1 + $0x14] sm:$0xf]
  %v35 = vld [vmem:[%s1 + $0x18] sm:$0xf]
  %v36 = vld [vmem:[%s1 + $0x1c] sm:$0xf]
  %v37 = vld [vmem:[%s1 + $0x20] sm:$0xf]
  %v38 = vld [vmem:[%s1 + $0x24] sm:$0xf]
  %v39 = vld [vmem:[%s1 + $0x28] sm:$0xf]
  %v40 = vld [vmem:[%s1 + $0x2c] sm:$0xf]
  %v41 = vld [vmem:[%s1 + $0x30] sm:$0xf]
  %v42 = vld [vmem:[%s1 + $0x34] sm:$0xf]
  %v43 = vld [vmem:[%s1 + $0x38] sm:$0xf]
  %v44 = vld [vmem:[%s1 + $0x3c] sm:$0xf]
  %v45 = vld [vmem:[%s1 + $0x40] sm:$0xf]
  %v46 = vld [vmem:[%s1 + $0x44] sm:$0xf]
  %v47 = vld [vmem:[%s1 + $0x48] sm:$0xf]
  %v48 = vld [vmem:[%s1 + $0x4c] sm:$0xf]
  %v49 = vld [vmem:[%s1 + $0x50] sm:$0xf]
  %v50 = vld [vmem:[%s1 + $0x54] sm:$0xf]
  %v51 = vld [vmem:[%s1 + $0x58] sm:$0xf]
  %v52 = vld [vmem:[%s1 + $0x5c] sm:$0xf]
  %v53 = vld [vmem:[%s1 + $0x60] sm:$0xf]
  %v54 = vld [vmem:[%s1 + $0x64] sm:$0xf]
  %v55 = vld [vmem:[%s1 + $0x68] sm:$0xf]
  %v56 = vld [vmem:[%s1 + $0x6c] sm:$0xf]
  %v57 = vld [vmem:[%s1 + $0x70] sm:$0xf]
  %v58 = vld [vmem:[%s1 + $0x74] sm:$0xf]
  %v59 = vld [vmem:[%s1 + $0x78] sm:$0xf]
  %v60 = vld [vmem:[%s1 + $0x7c] sm:$0xf]
  %v61 = vld [vmem:[%s1 + $0x80] sm:$0xf]
  %v62 = vld [vmem:[%s1 + $0x84] sm:$0xf]
  %v63 = vld [vmem:[%s1 + $0x88] sm:$0xf]
  %v64 = vld [vmem:[%s1 + $0x8c] sm:$0xf]
  %v65 = vld [vmem:[%s1 + $0x90] sm:$0xf]
  %v66 = vld [vmem:[%s1 + $0x94] sm:$0xf]
  %v67 = vld [vmem:[%s1 + $0x98] sm:$0xf]
  %v68 = vld [vmem:[%s1 + $0x9c] sm:$0xf]
  %v69 = vld [vmem:[%s1 + $0xa0] sm:$0xf]
  %v70 = vld [vmem:[%s1 + $0xa4] sm:$0xf]
  %v71 = vld [vmem:[%s1 + $0xa8] sm:$0xf]
  %v72 = vld [vmem:[%s1 + $0xac] sm:$0xf]
  %v73 = vld [vmem:[%s1 + $0xb0] sm:$0xf]
  %v74 = vld [vmem:[%s1 + $0xb4] sm:$0xf]
  %v75 = vld [vmem:[%s1 + $0xb8] sm:$0xf]
  %v76 = vld [vmem:[%s1 + $0xbc] sm:$0xf]
  %v77 = vld [vmem:[%s1 + $0xc0] sm:$0xf]
  %v78 = vld [vmem:[%s1 + $0xc4] sm:$0xf]
  %v79 = vld [vmem:[%s1 + $0xc8] sm:$0xf]
  %v80 = vld [vmem:[%s1 + $0xcc] sm:$0xf]
  %v81 = vld [vmem:[%s1 + $0xd0] sm:$0xf]
  %v82 = vld [vmem:[%s1 + $0xd4] sm:$0xf]
  %v83 = vld [vmem:[%s1 + $0xd8] sm:$0xf]
  %v84 = vld [vmem:[%s1 + $0xdc] sm:$0xf]
  %v85 = vld [vmem:[%s1 + $0xe0] sm:$0xf]
  %v86 = vld [vmem:[%s1 + $0xe4] sm:$0xf]
  %v87 = vld [vmem:[%s1 + $0xe8] sm:$0xf]
  %v88 = vld [vmem:[%s1 + $0xec] sm:$0xf]
  %v89 = vld [vmem:[%s1 + $0xf0] sm:$0xf]
  %v90 = vld [vmem:[%s1 + $0xf4] sm:$0xf]
  %v91 = vld [vmem:[%s1 + $0xf8] sm:$0xf]
  %v92 = vld [vmem:[%s1 + $0xfc] sm:$0xf]
  %v93 = vld [vmem:[%s1 + $0x100] sm:$0xf]
  %v94 = vld [vmem:[%s1 + $0x104] sm:$0xf]
  %v95 = vld [vmem:[%s1 + $0x108] sm:$0xf]
  %v96 = vld [vmem:[%s1 + $0x10c] sm:$0xf]
  %v97 = vld [vmem:[%s1 + $0x110] sm:$0xf]
  %v98 = vld [vmem:[%s1 + $0x114] sm:$0xf]
  %v99 = vld [vmem:[%s1 + $0x118] sm:$0xf]
  %v100 = vld [vmem:[%s1 + $0x11c] sm:$0xf]
  %v101 = vld [vmem:[%s1 + $0x120] sm:$0xf]
  %v102 = vld [vmem:[%s1 + $0x124] sm:$0xf]
  %v103 = vld [vmem:[%s1 + $0x128] sm:$0xf]
  %v104 = vld [vmem:[%s1 + $0x12c] sm:$0xf]
  %v105 = vld [vmem:[%s1 + $0x130] sm:$0xf]
  %v106 = vld [vmem:[%s1 + $0x134] sm:$0xf]
  %v107 = vld [vmem:[%s1 + $0x138] sm:$0xf]
  %v108 = vld [vmem:[%s1 + $0x13c] sm:$0xf]
  %v109 = vld [vmem:[%s1 + $0x140] sm:$0xf]
  %v110 = vld [vmem:[%s1 + $0x144] sm:$0xf]
  %v111 = vld [vmem:[%s1 + $0x148] sm:$0xf]
  %v112 = vld [vmem:[%s1 + $0x14c] sm:$0xf]
  %v113 = vld [vmem:[%s1 + $0x150] sm:$0xf]
  %v114 = vld [vmem:[%s1 + $0x154] sm:$0xf]
  %v115 = vld [vmem:[%s1 + $0x158] sm:$0xf]
  %v116 = vld [vmem:[%s1 + $0x15c] sm:$0xf]
  %v117 = vld [vmem:[%s1 + $0x160] sm:$0xf]
  %v118 = vld [vmem:[%s1 + $0x164] sm:$0xf]
  %v119 = vld [vmem:[%s1 + $0x168] sm:$0xf]
  %v120 = vld [vmem:[%s1 + $0x16c] sm:$0xf]
  %v121 = vld [vmem:[%s1 + $0x170] sm:$0xf]
  %v122 = vld [vmem:[%s1 + $0x174] sm:$0xf]
  %v123 = vld [vmem:[%s1 + $0x178] sm:$0xf]
  %v124 = vld [vmem:[%s1 + $0x17c] sm:$0xf]
  %v125 = vld [vmem:[%s1 + $0x180] sm:$0xf]
  %v126 = vld [vmem:[%s1 + $0x184] sm:$0xf]
  %v127 = vld [vmem:[%s1 + $0x188] sm:$0xf]
  %v128 = vld [vmem:[%s1 + $0x18c] sm:$0xf]
  %v129 = vld [vmem:[%s1 + $0x190] sm:$0xf]
  %v130 = vld [vmem:[%s1 + $0x194] sm:$0xf]
  %v131 = vld [vmem:[%s1 + $0x198] sm:$0xf]
  %v132 = vld [vmem:[%s1 + $0x19c] sm:$0xf]
  %v133 = vld [vmem:[%s1 + $0x1a0] sm:$0xf]
  %v134 = vld [vmem:[%s1 + $0x1a4] sm:$0xf]
  %v135 = vld [vmem:[%s1 + $0x1a8] sm:$0xf]
  %v136 = vld [vmem:[%s1 + $0x1ac] sm:$0xf]
  %v137 = vld [vmem:[%s1 + $0x1b0] sm:$0xf]
  %v138 = vld [vmem:[%s1 + $0x1b4] sm:$0xf]
  %v139 = vld [vmem:[%s1 + $0x1b8] sm:$0xf]
  %v140 = vld [vmem:[%s1 + $0x1bc] sm:$0xf]
  %v141 = vld [vmem:[%s1 + $0x1c0] sm:$0xf]
  %v142 = vld [vmem:[%s1 + $0x1c4] sm:$0xf]
  %v143 = vld [vmem:[%s1 + $0x1c8] sm:$0xf]
  %v144 = vld [vmem:[%s1 + $0x1cc] sm:$0xf]
  %v145 = vld [vmem:[%s1 + $0x1d0] sm:$0xf]
  %v146 = vld [vmem:[%s1 + $0x1d4] sm:$0xf]
  %v147 = vld [vmem:[%s1 + $0x1d8] sm:$0xf]
  %v148 = vld [vmem:[%s1 + $0x1dc] sm:$0xf]
  %v149 = vld [vmem:[%s1 + $0x1e0] sm:$0xf]
  %v150 = vld [vmem:[%s1 + $0x1e4] sm:$0xf]
  %v151 = vld [vmem:[%s1 + $0x1e8] sm:$0xf]
  %v152 = vld [vmem:[%s1 + $0x1ec] sm:$0xf]
  %v153 = vld [vmem:[%s1 + $0x1f0] sm:$0xf]
  %v154 = vld [vmem:[%s1 + $0x1f4] sm:$0xf]
  %v155 = vld [vmem:[%s1 + $0x1f8] sm:$0xf]
  %v156 = vld [vmem:[%s1 + $0x1fc] sm:$0xf]
  %v157 = vld [vmem:[%s1 + $0x200] sm:$0xf]
  %v158 = vld [vmem:[%s1 + $0x204] sm:$0xf]
  %v159 = vld [vmem:[%s1 + $0x208] sm:$0xf]
  %v160 = vld [vmem:[%s1 + $0x20c] sm:$0xf]
  %v161 = vld [vmem:[%s1 + $0x210] sm:$0xf]
  %v162 = vld [vmem:[%s1 + $0x214] sm:$0xf]
  %v163 = vld [vmem:[%s1 + $0x218] sm:$0xf]
  %v164 = vld [vmem:[%s1 + $0x21c] sm:$0xf]
  %v165 = vld [vmem:[%s1 + $0x220] sm:$0xf]
  %v166 = vld [vmem:[%s1 + $0x224] sm:$0xf]
  %v167 = vld [vmem:[%s1 + $0x228] sm:$0xf]
  %v168 = vld [vmem:[%s1 + $0x22c] sm:$0xf]
  %v169 = vld [vmem:[%s1 + $0x230] sm:$0xf]
  %v170 = vld [vmem:[%s1 + $0x234] sm:$0xf]
  %v171 = vld [vmem:[%s1 + $0x238] sm:$0xf]
  %v172 = vld [vmem:[%s1 + $0x23c] sm:$0xf]
  %v173 = vld [vmem:[%s1 + $0x240] sm:$0xf]
  %v174 = vld [vmem:[%s1 + $0x244] sm:$0xf]
  %v175 = vld [vmem:[%s1 + $0x248] sm:$0xf]
  %v176 = vld [vmem:[%s1 + $0x24c] sm:$0xf]
  %v177 = vld [vmem:[%s1 + $0x250] sm:$0xf]
  %v178 = vld [vmem:[%s1 + $0x254] sm:$0xf]
  %v179 = vld [vmem:[%s1 + $0x258] sm:$0xf]
  %v180 = vld [vmem:[%s1 + $0x25c] sm:$0xf]
  %v181 = vld [vmem:[%s1 + $0x260] sm:$0xf]
  %v182 = vld [vmem:[%s1 + $0x264] sm:$0xf]
  %v183 = vld [vmem:[%s1 + $0x268] sm:$0xf]
  %v184 = vld [vmem:[%s1 + $0x26c] sm:$0xf]
  %v185 = vld [vmem:[%s1 + $0x270] sm:$0xf]
  %v186 = vld [vmem:[%s1 + $0x274] sm:$0xf]
  %v187 = vld [vmem:[%s1 + $0x278] sm:$0xf]
  %v188 = vld [vmem:[%s1 + $0x27c] sm:$0xf]
  %v189 = vld [vmem:[%s1 + $0x280] sm:$0xf]
  %v190 = vld [vmem:[%s1 + $0x284] sm:$0xf]
  %v191 = vld [vmem:[%s1 + $0x288] sm:$0xf]
  %v192 = vld [vmem:[%s1 + $0x28c] sm:$0xf]
  %v193 = vld [vmem:[%s1 + $0x290] sm:$0xf]
  %v194 = vld [vmem:[%s1 + $0x294] sm:$0xf]
  %v195 = vld [vmem:[%s1 + $0x298] sm:$0xf]
  %v196 = vld [vmem:[%s1 + $0x29c] sm:$0xf]
  %v197 = vld [vmem:[%s1 + $0x2a0] sm:$0xf]
  %v198 = vld [vmem:[%s1 + $0x2a4] sm:$0xf]
  %v199 = vld [vmem:[%s1 + $0x2a8] sm:$0xf]
  %v200 = vld [vmem:[%s1 + $0x2ac] sm:$0xf]
  %v201 = vld [vmem:[%s1 + $0x2b0] sm:$0xf]
  %v202 = vld [vmem:[%s1 + $0x2b4] sm:$0xf]
  %v203 = vld [vmem:[%s1 + $0x2b8] sm:$0xf]
  %v204 = vld [vmem:[%s1 + $0x2bc] sm:$0xf]
  %v205 = vld [vmem:[%s1 + $0x2c0] sm:$0xf]
  %v206 = vld [vmem:[%s1 + $0x2c4] sm:$0xf]
  %v207 = vld [vmem:[%s1 + $0x2c8] sm:$0xf]
  %v208 = vld [vmem:[%s1 + $0x2cc] sm:$0xf]
  %v209 = vld [vmem:[%s1 + $0x2d0] sm:$0xf]
  %v210 = vld [vmem:[%s1 + $0x2d4] sm:$0xf]
  %v211 = vld [vmem:[%s1 + $0x2d8] sm:$0xf]
  %v212 = vld [vmem:[%s1 + $0x2dc] sm:$0xf]
  %v213 = vld [vmem:[%s1 + $0x2e0] sm:$0xf]
  %v214 = vld [vmem:[%s1 + $0x2e4] sm:$0xf]
  %v215 = vld [vmem:[%s1 + $0x2e8] sm:$0xf]
  %v216 = vld [vmem:[%s1 + $0x2ec] sm:$0xf]
  %v217 = vld [vmem:[%s1 + $0x2f0] sm:$0xf]
  %v218 = vld [vmem:[%s1 + $0x2f4] sm:$0xf]
  %v219 = vld [vmem:[%s1 + $0x2f8] sm:$0xf]
  %v220 = vld [vmem:[%s1 + $0x2fc] sm:$0xf]
  %v221 = vld [vmem:[%s1 + $0x300] sm:$0xf]
  %v222 = vld [vmem:[%s1 + $0x304] sm:$0xf]
  %v223 = vld [vmem:[%s1 + $0x308] sm:$0xf]
  %v224 = vld [vmem:[%s1 + $0x30c] sm:$0xf]
  %v225 = vld [vmem:[%s1 + $0x310] sm:$0xf]
  %v226 = vld [vmem:[%s1 + $0x314] sm:$0xf]
  %v227 = vld [vmem:[%s1 + $0x318] sm:$0xf]
  %v228 = vld [vmem:[%s1 + $0x31c] sm:$0xf]
  %v229 = vld [vmem:[%s1 + $0x320] sm:$0xf]
  %v230 = vld [vmem:[%s1 + $0x324] sm:$0xf]
  %v231 = vld [vmem:[%s1 + $0x328] sm:$0xf]
  %v232 = vld [vmem:[%s1 + $0x32c] sm:$0xf]
  %v233 = vld [vmem:[%s1 + $0x330] sm:$0xf]
  %v234 = vld [vmem:[%s1 + $0x334] sm:$0xf]
  %v235 = vld [vmem:[%s1 + $0x338] sm:$0xf]
  %v236 = vld [vmem:[%s1 + $0x33c] sm:$0xf]
  %v237 = vld [vmem:[%s1 + $0x340] sm:$0xf]
  %v238 = vld [vmem:[%s1 + $0x344] sm:$0xf]
  %v239 = vld [vmem:[%s1 + $0x348] sm:$0xf]
  %v240 = vld [vmem:[%s1 + $0x34c] sm:$0xf]
  %v241 = vld [vmem:[%s1 + $0x350] sm:$0xf]
  %v242 = vld [vmem:[%s1 + $0x354] sm:$0xf]
  %v243 = vld [vmem:[%s1 + $0x358] sm:$0xf]
  %v244 = vld [vmem:[%s1 + $0x35c] sm:$0xf]
  %v245 = vld [vmem:[%s1 + $0x360] sm:$0xf]
  %v246 = vld [vmem:[%s1 + $0x364] sm:$0xf]
  %v247 = vld [vmem:[%s1 + $0x368] sm:$0xf]
  %v248 = vld [vmem:[%s1 + $0x36c] sm:$0xf]
  %v249 = vld [vmem:[%s1 + $0x370] sm:$0xf]
  %v250 = vld [vmem:[%s1 + $0x374] sm:$0xf]
  %v251 = vld [vmem:[%s1 + $0x378] sm:$0xf]
  %v252 = vld [vmem:[%s1 + $0x37c] sm:$0xf]
  %v253 = vld [vmem:[%s1 + $0x380] sm:$0xf]
  %v254 = vld [vmem:[%s1 + $0x384] sm:$0xf]
  %v255 = vld [vmem:[%s1 + $0x388] sm:$0xf]
  %v256 = vld [vmem:[%s1 + $0x38c] sm:$0xf]
  %v257 = vld [vmem:[%s1 + $0x390] sm:$0xf]
  %v258 = vld [vmem:[%s1 + $0x394] sm:$0xf]
  %v259 = vld [vmem:[%s1 + $0x398] sm:$0xf]
  %v260 = vld [vmem:[%s1 + $0x39c] sm:$0xf]
  %v261 = vld [vmem:[%s1 + $0x3a0] sm:$0xf]
  %v262 = vld [vmem:[%s1 + $0x3a4] sm:$0xf]
  %v263 = vld [vmem:[%s1 + $0x3a8] sm:$0xf]
  %v264 = vld [vmem:[%s1 + $0x3ac] sm:$0xf]
  %v265 = vld [vmem:[%s1 + $0x3b0] sm:$0xf]
  %v266 = vld [vmem:[%s1 + $0x3b4] sm:$0xf]
  %v267 = vld [vmem:[%s1 + $0x3b8] sm:$0xf]
  %v268 = vld [vmem:[%s1 + $0x3bc] sm:$0xf]
  %v269 = vld [vmem:[%s1 + $0x3c0] sm:$0xf]
  %v270 = vld [vmem:[%s1 + $0x3c4] sm:$0xf]
  %v271 = vld [vmem:[%s1 + $0x3c8] sm:$0xf]
  %v272 = vld [vmem:[%s1 + $0x3cc] sm:$0xf]
  %v273 = vld [vmem:[%s1 + $0x3d0] sm:$0xf]
  %v274 = vld [vmem:[%s1 + $0x3d4] sm:$0xf]
  %v275 = vld [vmem:[%s1 + $0x3d8] sm:$0xf]
  %v276 = vld [vmem:[%s1 + $0x3dc] sm:$0xf]
  %v277 = vld [vmem:[%s1 + $0x3e0] sm:$0xf]
  %v278 = vld [vmem:[%s1 + $0x3e4] sm:$0xf]
  %v279 = vld [vmem:[%s1 + $0x3e8] sm:$0xf]
  %v280 = vld [vmem:[%s1 + $0x3ec] sm:$0xf]
  %v281 = vld [vmem:[%s1 + $0x3f0] sm:$0xf]
  %v282 = vld [vmem:[%s1 + $0x3f4] sm:$0xf]
  %v283 = vld [vmem:[%s1 + $0x3f8] sm:$0xf]
  %v284 = vld [vmem:[%s1 + $0x3fc] sm:$0xf]
  %v293 = vunpack.c.l.b16 %v21
  %v294 = vunpack.c.h.b16 %v21
  %v295 = vunpack.c.l.b16 %v22
  %v296 = vunpack.c.h.b16 %v22
  %v297 = vunpack.c.l.b16 %v23
  %v298 = vunpack.c.h.b16 %v23
  %v299 = vunpack.c.l.b16 %v24
  %v300 = vunpack.c.h.b16 %v24
  %v301 = vunpack.c.l.b16 %v25
  %v302 = vunpack.c.h.b16 %v25
  %v303 = vunpack.c.l.b16 %v26
  %v304 = vunpack.c.h.b16 %v26
  %v305 = vunpack.c.l.b16 %v27
  %v306 = vunpack.c.h.b16 %v27
  %v307 = vunpack.c.l.b16 %v28
  %v308 = vunpack.c.h.b16 %v28
  %v309 = vpack.c.b16 %v293, %v293
  %v310 = vpack.c.b16 %v294, %v294
  %v311 = vpack.c.b16 %v295, %v295
  %v312 = vpack.c.b16 %v296, %v296
  %v313 = vpack.c.b16 %v297, %v297
  %v314 = vpack.c.b16 %v298, %v298
  %v315 = vpack.c.b16 %v299, %v299
  %v316 = vpack.c.b16 %v300, %v300
  %v317 = vpack.c.b16 %v301, %v301
  %v318 = vpack.c.b16 %v302, %v302
  %v319 = vpack.c.b16 %v303, %v303
  %v320 = vpack.c.b16 %v304, %v304
  %v321 = vpack.c.b16 %v305, %v305
  %v322 = vpack.c.b16 %v306, %v306
  %v323 = vpack.c.b16 %v307, %v307
  %v324 = vpack.c.b16 %v308, %v308
  %v597 = vunpack.c.l.b16 %v29
  %v598 = vunpack.c.l.b16 %v30
  %v599 = vunpack.c.l.b16 %v31
  %v600 = vunpack.c.l.b16 %v32
  %v601 = vunpack.c.l.b16 %v33
  %v602 = vunpack.c.l.b16 %v34
  %v603 = vunpack.c.l.b16 %v35
  %v604 = vunpack.c.l.b16 %v36
  %v605 = vunpack.c.l.b16 %v37
  %v606 = vunpack.c.l.b16 %v38
  %v607 = vunpack.c.l.b16 %v39
  %v608 = vunpack.c.l.b16 %v40
  %v609 = vunpack.c.l.b16 %v41
  %v610 = vunpack.c.l.b16 %v42
  %v611 = vunpack.c.l.b16 %v43
  %v612 = vunpack.c.l.b16 %v44
  %v613 = vunpack.c.l.b16 %v45
  %v614 = vunpack.c.l.b16 %v46
  %v615 = vunpack.c.l.b16 %v47
  %v616 = vunpack.c.l.b16 %v48
  %v617 = vunpack.c.l.b16 %v49
  %v618 = vunpack.c.l.b16 %v50
  %v619 = vunpack.c.l.b16 %v51
  %v620 = vunpack.c.l.b16 %v52
  %v621 = vunpack.c.l.b16 %v53
  %v622 = vunpack.c.l.b16 %v54
  %v623 = vunpack.c.l.b16 %v55
  %v624 = vunpack.c.l.b16 %v56
  %v625 = vunpack.c.l.b16 %v57
  %v626 = vunpack.c.l.b16 %v58
  %v627 = vunpack.c.l.b16 %v59
  %v628 = vunpack.c.l.b16 %v60
  %v629 = vunpack.c.l.b16 %v61
  %v630 = vunpack.c.l.b16 %v62
  %v631 = vunpack.c.l.b16 %v63
  %v632 = vunpack.c.l.b16 %v64
  %v633 = vunpack.c.l.b16 %v65
  %v634 = vunpack.c.l.b16 %v66
  %v635 = vunpack.c.l.b16 %v67
  %v636 = vunpack.c.l.b16 %v68
  %v637 = vunpack.c.l.b16 %v69
  %v638 = vunpack.c.l.b16 %v70
  %v639 = vunpack.c.l.b16 %v71
  %v640 = vunpack.c.l.b16 %v72
  %v641 = vunpack.c.l.b16 %v73
  %v642 = vunpack.c.l.b16 %v74
  %v643 = vunpack.c.l.b16 %v75
  %v644 = vunpack.c.l.b16 %v76
  %v645 = vunpack.c.l.b16 %v77
  %v646 = vunpack.c.l.b16 %v78
  %v647 = vunpack.c.l.b16 %v79
  %v648 = vunpack.c.l.b16 %v80
  %v649 = vunpack.c.l.b16 %v81
  %v650 = vunpack.c.l.b16 %v82
  %v651 = vunpack.c.l.b16 %v83
  %v652 = vunpack.c.l.b16 %v84
  %v653 = vunpack.c.l.b16 %v85
  %v654 = vunpack.c.l.b16 %v86
  %v655 = vunpack.c.l.b16 %v87
  %v656 = vunpack.c.l.b16 %v88
  %v657 = vunpack.c.l.b16 %v89
  %v658 = vunpack.c.l.b16 %v90
  %v659 = vunpack.c.l.b16 %v91
  %v660 = vunpack.c.l.b16 %v92
  %v661 = vunpack.c.l.b16 %v93
  %v662 = vunpack.c.l.b16 %v94
  %v663 = vunpack.c.l.b16 %v95
  %v664 = vunpack.c.l.b16 %v96
  %v665 = vunpack.c.l.b16 %v97
  %v666 = vunpack.c.l.b16 %v98
  %v667 = vunpack.c.l.b16 %v99
  %v668 = vunpack.c.l.b16 %v100
  %v669 = vunpack.c.l.b16 %v101
  %v670 = vunpack.c.l.b16 %v102
  %v671 = vunpack.c.l.b16 %v103
  %v672 = vunpack.c.l.b16 %v104
  %v673 = vunpack.c.l.b16 %v105
  %v674 = vunpack.c.l.b16 %v106
  %v675 = vunpack.c.l.b16 %v107
  %v676 = vunpack.c.l.b16 %v108
  %v677 = vunpack.c.l.b16 %v109
  %v678 = vunpack.c.l.b16 %v110
  %v679 = vunpack.c.l.b16 %v111
  %v680 = vunpack.c.l.b16 %v112
  %v681 = vunpack.c.l.b16 %v113
  %v682 = vunpack.c.l.b16 %v114
  %v683 = vunpack.c.l.b16 %v115
  %v684 = vunpack.c.l.b16 %v116
  %v685 = vunpack.c.l.b16 %v117
  %v686 = vunpack.c.l.b16 %v118
  %v687 = vunpack.c.l.b16 %v119
  %v688 = vunpack.c.l.b16 %v120
  %v689 = vunpack.c.l.b16 %v121
  %v690 = vunpack.c.l.b16 %v122
  %v691 = vunpack.c.l.b16 %v123
  %v692 = vunpack.c.l.b16 %v124
  %v693 = vunpack.c.l.b16 %v125
  %v694 = vunpack.c.l.b16 %v126
  %v695 = vunpack.c.l.b16 %v127
  %v696 = vunpack.c.l.b16 %v128
  %v697 = vunpack.c.l.b16 %v129
  %v698 = vunpack.c.l.b16 %v130
  %v699 = vunpack.c.l.b16 %v131
  %v700 = vunpack.c.l.b16 %v132
  %v701 = vunpack.c.l.b16 %v133
  %v702 = vunpack.c.l.b16 %v134
  %v703 = vunpack.c.l.b16 %v135
  %v704 = vunpack.c.l.b16 %v136
  %v705 = vunpack.c.l.b16 %v137
  %v706 = vunpack.c.l.b16 %v138
  %v707 = vunpack.c.l.b16 %v139
  %v708 = vunpack.c.l.b16 %v140
  %v709 = vunpack.c.l.b16 %v141
  %v710 = vunpack.c.l.b16 %v142
  %v711 = vunpack.c.l.b16 %v143
  %v712 = vunpack.c.l.b16 %v144
  %v713 = vunpack.c.l.b16 %v145
  %v714 = vunpack.c.l.b16 %v146
  %v715 = vunpack.c.l.b16 %v147
  %v716 = vunpack.c.l.b16 %v148
  %v717 = vunpack.c.l.b16 %v149
  %v718 = vunpack.c.l.b16 %v150
  %v719 = vunpack.c.l.b16 %v151
  %v720 = vunpack.c.l.b16 %v152
  %v721 = vunpack.c.l.b16 %v153
  %v722 = vunpack.c.l.b16 %v154
  %v723 = vunpack.c.l.b16 %v155
  %v724 = vunpack.c.l.b16 %v156
  %v725 = vunpack.c.l.b16 %v157
  %v726 = vunpack.c.l.b16 %v158
  %v727 = vunpack.c.l.b16 %v159
  %v728 = vunpack.c.l.b16 %v160
  %v729 = vunpack.c.l.b16 %v161
  %v730 = vunpack.c.l.b16 %v162
  %v731 = vunpack.c.l.b16 %v163
  %v732 = vunpack.c.l.b16 %v164
  %v733 = vunpack.c.l.b16 %v165
  %v734 = vunpack.c.l.b16 %v166
  %v735 = vunpack.c.l.b16 %v167
  %v736 = vunpack.c.l.b16 %v168
  %v737 = vunpack.c.l.b16 %v169
  %v738 = vunpack.c.l.b16 %v170
  %v739 = vunpack.c.l.b16 %v171
  %v740 = vunpack.c.l.b16 %v172
  %v741 = vunpack.c.l.b16 %v173
  %v742 = vunpack.c.l.b16 %v174
  %v743 = vunpack.c.l.b16 %v175
  %v744 = vunpack.c.l.b16 %v176
  %v745 = vunpack.c.l.b16 %v177
  %v746 = vunpack.c.l.b16 %v178
  %v747 = vunpack.c.l.b16 %v179
  %v748 = vunpack.c.l.b16 %v180
  %v749 = vunpack.c.l.b16 %v181
  %v750 = vunpack.c.l.b16 %v182
  %v751 = vunpack.c.l.b16 %v183
  %v752 = vunpack.c.l.b16 %v184
  %v753 = vunpack.c.l.b16 %v185
  %v754 = vunpack.c.l.b16 %v186
  %v755 = vunpack.c.l.b16 %v187
  %v756 = vunpack.c.l.b16 %v188
  %v757 = vunpack.c.l.b16 %v189
  %v758 = vunpack.c.l.b16 %v190
  %v759 = vunpack.c.l.b16 %v191
  %v760 = vunpack.c.l.b16 %v192
  %v761 = vunpack.c.l.b16 %v193
  %v762 = vunpack.c.l.b16 %v194
  %v763 = vunpack.c.l.b16 %v195
  %v764 = vunpack.c.l.b16 %v196
  %v765 = vunpack.c.l.b16 %v197
  %v766 = vunpack.c.l.b16 %v198
  %v767 = vunpack.c.l.b16 %v199
  %v768 = vunpack.c.l.b16 %v200
  %v769 = vunpack.c.l.b16 %v201
  %v770 = vunpack.c.l.b16 %v202
  %v771 = vunpack.c.l.b16 %v203
  %v772 = vunpack.c.l.b16 %v204
  %v773 = vunpack.c.l.b16 %v205
  %v774 = vunpack.c.l.b16 %v206
  %v775 = vunpack.c.l.b16 %v207
  %v776 = vunpack.c.l.b16 %v208
  %v777 = vunpack.c.l.b16 %v209
  %v778 = vunpack.c.l.b16 %v210
  %v779 = vunpack.c.l.b16 %v211
  %v780 = vunpack.c.l.b16 %v212
  %v781 = vunpack.c.l.b16 %v213
  %v782 = vunpack.c.l.b16 %v214
  %v783 = vunpack.c.l.b16 %v215
  %v784 = vunpack.c.l.b16 %v216
  %v785 = vunpack.c.l.b16 %v217
  %v786 = vunpack.c.l.b16 %v218
  %v787 = vunpack.c.l.b16 %v219
  %v788 = vunpack.c.l.b16 %v220
  %v789 = vunpack.c.l.b16 %v221
  %v790 = vunpack.c.l.b16 %v222
  %v791 = vunpack.c.l.b16 %v223
  %v792 = vunpack.c.l.b16 %v224
  %v793 = vunpack.c.l.b16 %v225
  %v794 = vunpack.c.l.b16 %v226
  %v795 = vunpack.c.l.b16 %v227
  %v796 = vunpack.c.l.b16 %v228
  %v797 = vunpack.c.l.b16 %v229
  %v798 = vunpack.c.l.b16 %v230
  %v799 = vunpack.c.l.b16 %v231
  %v800 = vunpack.c.l.b16 %v232
  %v801 = vunpack.c.l.b16 %v233
  %v802 = vunpack.c.l.b16 %v234
  %v803 = vunpack.c.l.b16 %v235
  %v804 = vunpack.c.l.b16 %v236
  %v805 = vunpack.c.l.b16 %v237
  %v806 = vunpack.c.l.b16 %v238
  %v807 = vunpack.c.l.b16 %v239
  %v808 = vunpack.c.l.b16 %v240
  %v809 = vunpack.c.l.b16 %v241
  %v810 = vunpack.c.l.b16 %v242
  %v811 = vunpack.c.l.b16 %v243
  %v812 = vunpack.c.l.b16 %v244
  %v813 = vunpack.c.l.b16 %v245
  %v814 = vunpack.c.l.b16 %v246
  %v815 = vunpack.c.l.b16 %v247
  %v816 = vunpack.c.l.b16 %v248
  %v817 = vunpack.c.l.b16 %v249
  %v818 = vunpack.c.l.b16 %v250
  %v819 = vunpack.c.l.b16 %v251
  %v820 = vunpack.c.l.b16 %v252
  %v821 = vunpack.c.l.b16 %v253
  %v822 = vunpack.c.l.b16 %v254
  %v823 = vunpack.c.l.b16 %v255
  %v824 = vunpack.c.l.b16 %v256
  %v825 = vunpack.c.l.b16 %v257
  %v826 = vunpack.c.l.b16 %v258
  %v827 = vunpack.c.l.b16 %v259
  %v828 = vunpack.c.l.b16 %v260
  %v829 = vunpack.c.l.b16 %v261
  %v830 = vunpack.c.l.b16 %v262
  %v831 = vunpack.c.l.b16 %v263
  %v832 = vunpack.c.l.b16 %v264
  %v833 = vunpack.c.l.b16 %v265
  %v834 = vunpack.c.l.b16 %v266
  %v835 = vunpack.c.l.b16 %v267
  %v836 = vunpack.c.l.b16 %v268
  %v837 = vunpack.c.l.b16 %v269
  %v838 = vunpack.c.l.b16 %v270
  %v839 = vunpack.c.l.b16 %v271
  %v840 = vunpack.c.l.b16 %v272
  %v841 = vunpack.c.l.b16 %v273
  %v842 = vunpack.c.l.b16 %v274
  %v843 = vunpack.c.l.b16 %v275
  %v844 = vunpack.c.l.b16 %v276
  %v845 = vunpack.c.l.b16 %v277
  %v846 = vunpack.c.l.b16 %v278
  %v847 = vunpack.c.l.b16 %v279
  %v848 = vunpack.c.l.b16 %v280
  %v849 = vunpack.c.l.b16 %v281
  %v850 = vunpack.c.l.b16 %v282
  %v851 = vunpack.c.l.b16 %v283
  %v852 = vunpack.c.l.b16 %v284
  %v853 = vpack.c.b16 %v598, %v597
  %v854 = vpack.c.b16 %v600, %v599
  %v855 = vpack.c.b16 %v602, %v601
  %v856 = vpack.c.b16 %v604, %v603
  %v857 = vpack.c.b16 %v606, %v605
  %v858 = vpack.c.b16 %v608, %v607
  %v859 = vpack.c.b16 %v610, %v609
  %v860 = vpack.c.b16 %v612, %v611
  %v861 = vpack.c.b16 %v614, %v613
  %v862 = vpack.c.b16 %v616, %v615
  %v863 = vpack.c.b16 %v618, %v617
  %v864 = vpack.c.b16 %v620, %v619
  %v865 = vpack.c.b16 %v622, %v621
  %v866 = vpack.c.b16 %v624, %v623
  %v867 = vpack.c.b16 %v626, %v625
  %v868 = vpack.c.b16 %v628, %v627
  %v869 = vpack.c.b16 %v630, %v629
  %v870 = vpack.c.b16 %v632, %v631
  %v871 = vpack.c.b16 %v634, %v633
  %v872 = vpack.c.b16 %v636, %v635
  %v873 = vpack.c.b16 %v638, %v637
  %v874 = vpack.c.b16 %v640, %v639
  %v875 = vpack.c.b16 %v642, %v641
  %v876 = vpack.c.b16 %v644, %v643
  %v877 = vpack.c.b16 %v646, %v645
  %v878 = vpack.c.b16 %v648, %v647
  %v879 = vpack.c.b16 %v650, %v649
  %v880 = vpack.c.b16 %v652, %v651
  %v881 = vpack.c.b16 %v654, %v653
  %v882 = vpack.c.b16 %v656, %v655
  %v883 = vpack.c.b16 %v658, %v657
  %v884 = vpack.c.b16 %v660, %v659
  %v885 = vpack.c.b16 %v662, %v661
  %v886 = vpack.c.b16 %v664, %v663
  %v887 = vpack.c.b16 %v666, %v665
  %v888 = vpack.c.b16 %v668, %v667
  %v889 = vpack.c.b16 %v670, %v669
  %v890 = vpack.c.b16 %v672, %v671
  %v891 = vpack.c.b16 %v674, %v673
  %v892 = vpack.c.b16 %v676, %v675
  %v893 = vpack.c.b16 %v678, %v677
  %v894 = vpack.c.b16 %v680, %v679
  %v895 = vpack.c.b16 %v682, %v681
  %v896 = vpack.c.b16 %v684, %v683
  %v897 = vpack.c.b16 %v686, %v685
  %v898 = vpack.c.b16 %v688, %v687
  %v899 = vpack.c.b16 %v690, %v689
  %v900 = vpack.c.b16 %v692, %v691
  %v901 = vpack.c.b16 %v694, %v693
  %v902 = vpack.c.b16 %v696, %v695
  %v903 = vpack.c.b16 %v698, %v697
  %v904 = vpack.c.b16 %v700, %v699
  %v905 = vpack.c.b16 %v702, %v701
  %v906 = vpack.c.b16 %v704, %v703
  %v907 = vpack.c.b16 %v706, %v705
  %v908 = vpack.c.b16 %v708, %v707
  %v909 = vpack.c.b16 %v710, %v709
  %v910 = vpack.c.b16 %v712, %v711
  %v911 = vpack.c.b16 %v714, %v713
  %v912 = vpack.c.b16 %v716, %v715
  %v913 = vpack.c.b16 %v718, %v717
  %v914 = vpack.c.b16 %v720, %v719
  %v915 = vpack.c.b16 %v722, %v721
  %v916 = vpack.c.b16 %v724, %v723
  %v917 = vpack.c.b16 %v726, %v725
  %v918 = vpack.c.b16 %v728, %v727
  %v919 = vpack.c.b16 %v730, %v729
  %v920 = vpack.c.b16 %v732, %v731
  %v921 = vpack.c.b16 %v734, %v733
  %v922 = vpack.c.b16 %v736, %v735
  %v923 = vpack.c.b16 %v738, %v737
  %v924 = vpack.c.b16 %v740, %v739
  %v925 = vpack.c.b16 %v742, %v741
  %v926 = vpack.c.b16 %v744, %v743
  %v927 = vpack.c.b16 %v746, %v745
  %v928 = vpack.c.b16 %v748, %v747
  %v929 = vpack.c.b16 %v750, %v749
  %v930 = vpack.c.b16 %v752, %v751
  %v931 = vpack.c.b16 %v754, %v753
  %v932 = vpack.c.b16 %v756, %v755
  %v933 = vpack.c.b16 %v758, %v757
  %v934 = vpack.c.b16 %v760, %v759
  %v935 = vpack.c.b16 %v762, %v761
  %v936 = vpack.c.b16 %v764, %v763
  %v937 = vpack.c.b16 %v766, %v765
  %v938 = vpack.c.b16 %v768, %v767
  %v939 = vpack.c.b16 %v770, %v769
  %v940 = vpack.c.b16 %v772, %v771
  %v941 = vpack.c.b16 %v774, %v773
  %v942 = vpack.c.b16 %v776, %v775
  %v943 = vpack.c.b16 %v778, %v777
  %v944 = vpack.c.b16 %v780, %v779
  %v945 = vpack.c.b16 %v782, %v781
  %v946 = vpack.c.b16 %v784, %v783
  %v947 = vpack.c.b16 %v786, %v785
  %v948 = vpack.c.b16 %v788, %v787
  %v949 = vpack.c.b16 %v790, %v789
  %v950 = vpack.c.b16 %v792, %v791
  %v951 = vpack.c.b16 %v794, %v793
  %v952 = vpack.c.b16 %v796, %v795
  %v953 = vpack.c.b16 %v798, %v797
  %v954 = vpack.c.b16 %v800, %v799
  %v955 = vpack.c.b16 %v802, %v801
  %v956 = vpack.c.b16 %v804, %v803
  %v957 = vpack.c.b16 %v806, %v805
  %v958 = vpack.c.b16 %v808, %v807
  %v959 = vpack.c.b16 %v810, %v809
  %v960 = vpack.c.b16 %v812, %v811
  %v961 = vpack.c.b16 %v814, %v813
  %v962 = vpack.c.b16 %v816, %v815
  %v963 = vpack.c.b16 %v818, %v817
  %v964 = vpack.c.b16 %v820, %v819
  %v965 = vpack.c.b16 %v822, %v821
  %v966 = vpack.c.b16 %v824, %v823
  %v967 = vpack.c.b16 %v826, %v825
  %v968 = vpack.c.b16 %v828, %v827
  %v969 = vpack.c.b16 %v830, %v829
  %v970 = vpack.c.b16 %v832, %v831
  %v971 = vpack.c.b16 %v834, %v833
  %v972 = vpack.c.b16 %v836, %v835
  %v973 = vpack.c.b16 %v838, %v837
  %v974 = vpack.c.b16 %v840, %v839
  %v975 = vpack.c.b16 %v842, %v841
  %v976 = vpack.c.b16 %v844, %v843
  %v977 = vpack.c.b16 %v846, %v845
  %v978 = vpack.c.b16 %v848, %v847
  %v979 = vpack.c.b16 %v850, %v849
  %v980 = vpack.c.b16 %v852, %v851
  %1109 = vmatprep.subr.bf16.mxu0 0
  %1110 = vmatpush1.bf16.msra.mxu0 %v860
  %1111 = vmatprep.subr.bf16.mxu0 0
  %1112 = vmatpush1.bf16.msra.mxu0 %v859
  %1113 = vmatprep.subr.bf16.mxu0 0
  %1114 = vmatpush1.bf16.msra.mxu0 %v858
  %1115 = vmatprep.subr.bf16.mxu0 0
  %1116 = vmatpush1.bf16.msra.mxu0 %v857
  %1117 = vmatprep.subr.bf16.mxu0 0
  %1118 = vmatpush1.bf16.msra.mxu0 %v856
  %1119 = vmatprep.subr.bf16.mxu0 0
  %1120 = vmatpush1.bf16.msra.mxu0 %v855
  %1121 = vmatprep.subr.bf16.mxu0 0
  %1122 = vmatpush1.bf16.msra.mxu0 %v854
  %1123 = vmatprep.subr.bf16.mxu0 0
  %1124 = vmatpush1.bf16.msra.mxu0 %v853
  %1125 = vmatprep.subr.bf16.mxu0 0
  %1126 = vmatpush2.bf16.msra.mxu0 %v868
  %1127 = vmatprep.subr.bf16.mxu0 0
  %1128 = vmatpush2.bf16.msra.mxu0 %v867
  %1129 = vmatprep.subr.bf16.mxu0 0
  %1130 = vmatpush2.bf16.msra.mxu0 %v866
  %1131 = vmatprep.subr.bf16.mxu0 0
  %1132 = vmatpush2.bf16.msra.mxu0 %v865
  %1133 = vmatprep.subr.bf16.mxu0 0
  %1134 = vmatpush2.bf16.msra.mxu0 %v864
  %1135 = vmatprep.subr.bf16.mxu0 0
  %1136 = vmatpush2.bf16.msra.mxu0 %v863
  %1137 = vmatprep.subr.bf16.mxu0 0
  %1138 = vmatpush2.bf16.msra.mxu0 %v862
  %1139 = vmatprep.subr.bf16.mxu0 0
  %1140 = vmatpush2.bf16.msra.mxu0 %v861
  %1141 = vmatprep.mubr.bf16.mxu0 %v310
  %1142 = vmatmul.mubr.bf16.gmra.mxu0 %v309
  %v1143 = vpop.f32.mrf.mxu0
  %v1144 = vadd.f32 0.0, %v1143
  %v1145 = vpop.f32.mrf.mxu0
  %v1146 = vpop.f32.mrf.mxu0
  %v1147 = vpop.f32.mrf.mxu0
  %1148 = vdwg.mxu0
  %1149 = vmatprep.subr.bf16.mxu0 0
  %1150 = vmatpush1.bf16.msra.mxu0 %v876
  %1151 = vmatprep.subr.bf16.mxu0 0
  %1152 = vmatpush1.bf16.msra.mxu0 %v875
  %1153 = vmatprep.subr.bf16.mxu0 0
  %1154 = vmatpush1.bf16.msra.mxu0 %v874
  %1155 = vmatprep.subr.bf16.mxu0 0
  %1156 = vmatpush1.bf16.msra.mxu0 %v873
  %1157 = vmatprep.subr.bf16.mxu0 0
  %1158 = vmatpush1.bf16.msra.mxu0 %v872
  %1159 = vmatprep.subr.bf16.mxu0 0
  %1160 = vmatpush1.bf16.msra.mxu0 %v871
  %1161 = vmatprep.subr.bf16.mxu0 0
  %1162 = vmatpush1.bf16.msra.mxu0 %v870
  %1163 = vmatprep.subr.bf16.mxu0 0
  %1164 = vmatpush1.bf16.msra.mxu0 %v869
  %1165 = vmatprep.subr.bf16.mxu0 0
  %1166 = vmatpush2.bf16.msra.mxu0 %v884
  %1167 = vmatprep.subr.bf16.mxu0 0
  %1168 = vmatpush2.bf16.msra.mxu0 %v883
  %1169 = vmatprep.subr.bf16.mxu0 0
  %1170 = vmatpush2.bf16.msra.mxu0 %v882
  %1171 = vmatprep.subr.bf16.mxu0 0
  %1172 = vmatpush2.bf16.msra.mxu0 %v881
  %1173 = vmatprep.subr.bf16.mxu0 0
  %1174 = vmatpush2.bf16.msra.mxu0 %v880
  %1175 = vmatprep.subr.bf16.mxu0 0
  %1176 = vmatpush2.bf16.msra.mxu0 %v879
  %1177 = vmatprep.subr.bf16.mxu0 0
  %1178 = vmatpush2.bf16.msra.mxu0 %v878
  %1179 = vmatprep.subr.bf16.mxu0 0
  %1180 = vmatpush2.bf16.msra.mxu0 %v877
  %1181 = vmatprep.mubr.bf16.mxu0 %v312
  %1182 = vmatmul.mubr.bf16.gmra.mxu0 %v311
  %v1183 = vpop.f32.mrf.mxu0
  %v1184 = vadd.f32 %v1144, %v1183
  %v1185 = vpop.f32.mrf.mxu0
  %v1186 = vpop.f32.mrf.mxu0
  %v1187 = vpop.f32.mrf.mxu0
  %1188 = vdwg.mxu0
  %1189 = vmatprep.subr.bf16.mxu0 0
  %1190 = vmatpush1.bf16.msra.mxu0 %v892
  %1191 = vmatprep.subr.bf16.mxu0 0
  %1192 = vmatpush1.bf16.msra.mxu0 %v891
  %1193 = vmatprep.subr.bf16.mxu0 0
  %1194 = vmatpush1.bf16.msra.mxu0 %v890
  %1195 = vmatprep.subr.bf16.mxu0 0
  %1196 = vmatpush1.bf16.msra.mxu0 %v889
  %1197 = vmatprep.subr.bf16.mxu0 0
  %1198 = vmatpush1.bf16.msra.mxu0 %v888
  %1199 = vmatprep.subr.bf16.mxu0 0
  %1200 = vmatpush1.bf16.msra.mxu0 %v887
  %1201 = vmatprep.subr.bf16.mxu0 0
  %1202 = vmatpush1.bf16.msra.mxu0 %v886
  %1203 = vmatprep.subr.bf16.mxu0 0
  %1204 = vmatpush1.bf16.msra.mxu0 %v885
  %1205 = vmatprep.subr.bf16.mxu0 0
  %1206 = vmatpush2.bf16.msra.mxu0 %v900
  %1207 = vmatprep.subr.bf16.mxu0 0
  %1208 = vmatpush2.bf16.msra.mxu0 %v899
  %1209 = vmatprep.subr.bf16.mxu0 0
  %1210 = vmatpush2.bf16.msra.mxu0 %v898
  %1211 = vmatprep.subr.bf16.mxu0 0
  %1212 = vmatpush2.bf16.msra.mxu0 %v897
  %1213 = vmatprep.subr.bf16.mxu0 0
  %1214 = vmatpush2.bf16.msra.mxu0 %v896
  %1215 = vmatprep.subr.bf16.mxu0 0
  %1216 = vmatpush2.bf16.msra.mxu0 %v895
  %1217 = vmatprep.subr.bf16.mxu0 0
  %1218 = vmatpush2.bf16.msra.mxu0 %v894
  %1219 = vmatprep.subr.bf16.mxu0 0
  %1220 = vmatpush2.bf16.msra.mxu0 %v893
  %1221 = vmatprep.mubr.bf16.mxu0 %v314
  %1222 = vmatmul.mubr.bf16.gmra.mxu0 %v313
  %v1223 = vpop.f32.mrf.mxu0
  %v1224 = vadd.f32 %v1184, %v1223
  %v1225 = vpop.f32.mrf.mxu0
  %v1226 = vpop.f32.mrf.mxu0
  %v1227 = vpop.f32.mrf.mxu0
  %1228 = vdwg.mxu0
  %1229 = vmatprep.subr.bf16.mxu0 0
  %1230 = vmatpush1.bf16.msra.mxu0 %v908
  %1231 = vmatprep.subr.bf16.mxu0 0
  %1232 = vmatpush1.bf16.msra.mxu0 %v907
  %1233 = vmatprep.subr.bf16.mxu0 0
  %1234 = vmatpush1.bf16.msra.mxu0 %v906
  %1235 = vmatprep.subr.bf16.mxu0 0
  %1236 = vmatpush1.bf16.msra.mxu0 %v905
  %1237 = vmatprep.subr.bf16.mxu0 0
  %1238 = vmatpush1.bf16.msra.mxu0 %v904
  %1239 = vmatprep.subr.bf16.mxu0 0
  %1240 = vmatpush1.bf16.msra.mxu0 %v903
  %1241 = vmatprep.subr.bf16.mxu0 0
  %1242 = vmatpush1.bf16.msra.mxu0 %v902
  %1243 = vmatprep.subr.bf16.mxu0 0
  %1244 = vmatpush1.bf16.msra.mxu0 %v901
  %1245 = vmatprep.subr.bf16.mxu0 0
  %1246 = vmatpush2.bf16.msra.mxu0 %v916
  %1247 = vmatprep.subr.bf16.mxu0 0
  %1248 = vmatpush2.bf16.msra.mxu0 %v915
  %1249 = vmatprep.subr.bf16.mxu0 0
  %1250 = vmatpush2.bf16.msra.mxu0 %v914
  %1251 = vmatprep.subr.bf16.mxu0 0
  %1252 = vmatpush2.bf16.msra.mxu0 %v913
  %1253 = vmatprep.subr.bf16.mxu0 0
  %1254 = vmatpush2.bf16.msra.mxu0 %v912
  %1255 = vmatprep.subr.bf16.mxu0 0
  %1256 = vmatpush2.bf16.msra.mxu0 %v911
  %1257 = vmatprep.subr.bf16.mxu0 0
  %1258 = vmatpush2.bf16.msra.mxu0 %v910
  %1259 = vmatprep.subr.bf16.mxu0 0
  %1260 = vmatpush2.bf16.msra.mxu0 %v909
  %1261 = vmatprep.mubr.bf16.mxu0 %v316
  %1262 = vmatmul.mubr.bf16.gmra.mxu0 %v315
  %v1263 = vpop.f32.mrf.mxu0
  %v1264 = vadd.f32 %v1224, %v1263
  %v1265 = vpop.f32.mrf.mxu0
  %v1266 = vpop.f32.mrf.mxu0
  %v1267 = vpop.f32.mrf.mxu0
  %1268 = vdwg.mxu0
  %1269 = vmatprep.subr.bf16.mxu0 0
  %1270 = vmatpush1.bf16.msra.mxu0 %v924
  %1271 = vmatprep.subr.bf16.mxu0 0
  %1272 = vmatpush1.bf16.msra.mxu0 %v923
  %1273 = vmatprep.subr.bf16.mxu0 0
  %1274 = vmatpush1.bf16.msra.mxu0 %v922
  %1275 = vmatprep.subr.bf16.mxu0 0
  %1276 = vmatpush1.bf16.msra.mxu0 %v921
  %1277 = vmatprep.subr.bf16.mxu0 0
  %1278 = vmatpush1.bf16.msra.mxu0 %v920
  %1279 = vmatprep.subr.bf16.mxu0 0
  %1280 = vmatpush1.bf16.msra.mxu0 %v919
  %1281 = vmatprep.subr.bf16.mxu0 0
  %1282 = vmatpush1.bf16.msra.mxu0 %v918
  %1283 = vmatprep.subr.bf16.mxu0 0
  %1284 = vmatpush1.bf16.msra.mxu0 %v917
  %1285 = vmatprep.subr.bf16.mxu0 0
  %1286 = vmatpush2.bf16.msra.mxu0 %v932
  %1287 = vmatprep.subr.bf16.mxu0 0
  %1288 = vmatpush2.bf16.msra.mxu0 %v931
  %1289 = vmatprep.subr.bf16.mxu0 0
  %1290 = vmatpush2.bf16.msra.mxu0 %v930
  %1291 = vmatprep.subr.bf16.mxu0 0
  %1292 = vmatpush2.bf16.msra.mxu0 %v929
  %1293 = vmatprep.subr.bf16.mxu0 0
  %1294 = vmatpush2.bf16.msra.mxu0 %v928
  %1295 = vmatprep.subr.bf16.mxu0 0
  %1296 = vmatpush2.bf16.msra.mxu0 %v927
  %1297 = vmatprep.subr.bf16.mxu0 0
  %1298 = vmatpush2.bf16.msra.mxu0 %v926
  %1299 = vmatprep.subr.bf16.mxu0 0
  %1300 = vmatpush2.bf16.msra.mxu0 %v925
  %1301 = vmatprep.mubr.bf16.mxu0 %v318
  %1302 = vmatmul.mubr.bf16.gmra.mxu0 %v317
  %v1303 = vpop.f32.mrf.mxu0
  %v1304 = vadd.f32 %v1264, %v1303
  %v1305 = vpop.f32.mrf.mxu0
  %v1306 = vpop.f32.mrf.mxu0
  %v1307 = vpop.f32.mrf.mxu0
  %1308 = vdwg.mxu0
  %1309 = vmatprep.subr.bf16.mxu0 0
  %1310 = vmatpush1.bf16.msra.mxu0 %v940
  %1311 = vmatprep.subr.bf16.mxu0 0
  %1312 = vmatpush1.bf16.msra.mxu0 %v939
  %1313 = vmatprep.subr.bf16.mxu0 0
  %1314 = vmatpush1.bf16.msra.mxu0 %v938
  %1315 = vmatprep.subr.bf16.mxu0 0
  %1316 = vmatpush1.bf16.msra.mxu0 %v937
  %1317 = vmatprep.subr.bf16.mxu0 0
  %1318 = vmatpush1.bf16.msra.mxu0 %v936
  %1319 = vmatprep.subr.bf16.mxu0 0
  %1320 = vmatpush1.bf16.msra.mxu0 %v935
  %1321 = vmatprep.subr.bf16.mxu0 0
  %1322 = vmatpush1.bf16.msra.mxu0 %v934
  %1323 = vmatprep.subr.bf16.mxu0 0
  %1324 = vmatpush1.bf16.msra.mxu0 %v933
  %1325 = vmatprep.subr.bf16.mxu0 0
  %1326 = vmatpush2.bf16.msra.mxu0 %v948
  %1327 = vmatprep.subr.bf16.mxu0 0
  %1328 = vmatpush2.bf16.msra.mxu0 %v947
  %1329 = vmatprep.subr.bf16.mxu0 0
  %1330 = vmatpush2.bf16.msra.mxu0 %v946
  %1331 = vmatprep.subr.bf16.mxu0 0
  %1332 = vmatpush2.bf16.msra.mxu0 %v945
  %1333 = vmatprep.subr.bf16.mxu0 0
  %1334 = vmatpush2.bf16.msra.mxu0 %v944
  %1335 = vmatprep.subr.bf16.mxu0 0
  %1336 = vmatpush2.bf16.msra.mxu0 %v943
  %1337 = vmatprep.subr.bf16.mxu0 0
  %1338 = vmatpush2.bf16.msra.mxu0 %v942
  %1339 = vmatprep.subr.bf16.mxu0 0
  %1340 = vmatpush2.bf16.msra.mxu0 %v941
  %1341 = vmatprep.mubr.bf16.mxu0 %v320
  %1342 = vmatmul.mubr.bf16.gmra.mxu0 %v319
  %v1343 = vpop.f32.mrf.mxu0
  %v1344 = vadd.f32 %v1304, %v1343
  %v1345 = vpop.f32.mrf.mxu0
  %v1346 = vpop.f32.mrf.mxu0
  %v1347 = vpop.f32.mrf.mxu0
  %1348 = vdwg.mxu0
  %1349 = vmatprep.subr.bf16.mxu0 0
  %1350 = vmatpush1.bf16.msra.mxu0 %v956
  %1351 = vmatprep.subr.bf16.mxu0 0
  %1352 = vmatpush1.bf16.msra.mxu0 %v955
  %1353 = vmatprep.subr.bf16.mxu0 0
  %1354 = vmatpush1.bf16.msra.mxu0 %v954
  %1355 = vmatprep.subr.bf16.mxu0 0
  %1356 = vmatpush1.bf16.msra.mxu0 %v953
  %1357 = vmatprep.subr.bf16.mxu0 0
  %1358 = vmatpush1.bf16.msra.mxu0 %v952
  %1359 = vmatprep.subr.bf16.mxu0 0
  %1360 = vmatpush1.bf16.msra.mxu0 %v951
  %1361 = vmatprep.subr.bf16.mxu0 0
  %1362 = vmatpush1.bf16.msra.mxu0 %v950
  %1363 = vmatprep.subr.bf16.mxu0 0
  %1364 = vmatpush1.bf16.msra.mxu0 %v949
  %1365 = vmatprep.subr.bf16.mxu0 0
  %1366 = vmatpush2.bf16.msra.mxu0 %v964
  %1367 = vmatprep.subr.bf16.mxu0 0
  %1368 = vmatpush2.bf16.msra.mxu0 %v963
  %1369 = vmatprep.subr.bf16.mxu0 0
  %1370 = vmatpush2.bf16.msra.mxu0 %v962
  %1371 = vmatprep.subr.bf16.mxu0 0
  %1372 = vmatpush2.bf16.msra.mxu0 %v961
  %1373 = vmatprep.subr.bf16.mxu0 0
  %1374 = vmatpush2.bf16.msra.mxu0 %v960
  %1375 = vmatprep.subr.bf16.mxu0 0
  %1376 = vmatpush2.bf16.msra.mxu0 %v959
  %1377 = vmatprep.subr.bf16.mxu0 0
  %1378 = vmatpush2.bf16.msra.mxu0 %v958
  %1379 = vmatprep.subr.bf16.mxu0 0
  %1380 = vmatpush2.bf16.msra.mxu0 %v957
  %1381 = vmatprep.mubr.bf16.mxu0 %v322
  %1382 = vmatmul.mubr.bf16.gmra.mxu0 %v321
  %v1383 = vpop.f32.mrf.mxu0
  %v1384 = vadd.f32 %v1344, %v1383
  %v1385 = vpop.f32.mrf.mxu0
  %v1386 = vpop.f32.mrf.mxu0
  %v1387 = vpop.f32.mrf.mxu0
  %1388 = vdwg.mxu0
  %1389 = vmatprep.subr.bf16.mxu0 0
  %1390 = vmatpush1.bf16.msra.mxu0 %v972
  %1391 = vmatprep.subr.bf16.mxu0 0
  %1392 = vmatpush1.bf16.msra.mxu0 %v971
  %1393 = vmatprep.subr.bf16.mxu0 0
  %1394 = vmatpush1.bf16.msra.mxu0 %v970
  %1395 = vmatprep.subr.bf16.mxu0 0
  %1396 = vmatpush1.bf16.msra.mxu0 %v969
  %1397 = vmatprep.subr.bf16.mxu0 0
  %1398 = vmatpush1.bf16.msra.mxu0 %v968
  %1399 = vmatprep.subr.bf16.mxu0 0
  %1400 = vmatpush1.bf16.msra.mxu0 %v967
  %1401 = vmatprep.subr.bf16.mxu0 0
  %1402 = vmatpush1.bf16.msra.mxu0 %v966
  %1403 = vmatprep.subr.bf16.mxu0 0
  %1404 = vmatpush1.bf16.msra.mxu0 %v965
  %1405 = vmatprep.subr.bf16.mxu0 0
  %1406 = vmatpush2.bf16.msra.mxu0 %v980
  %1407 = vmatprep.subr.bf16.mxu0 0
  %1408 = vmatpush2.bf16.msra.mxu0 %v979
  %1409 = vmatprep.subr.bf16.mxu0 0
  %1410 = vmatpush2.bf16.msra.mxu0 %v978
  %1411 = vmatprep.subr.bf16.mxu0 0
  %1412 = vmatpush2.bf16.msra.mxu0 %v977
  %1413 = vmatprep.subr.bf16.mxu0 0
  %1414 = vmatpush2.bf16.msra.mxu0 %v976
  %1415 = vmatprep.subr.bf16.mxu0 0
  %1416 = vmatpush2.bf16.msra.mxu0 %v975
  %1417 = vmatprep.subr.bf16.mxu0 0
  %1418 = vmatpush2.bf16.msra.mxu0 %v974
  %1419 = vmatprep.subr.bf16.mxu0 0
  %1420 = vmatpush2.bf16.msra.mxu0 %v973
  %1421 = vmatprep.mubr.bf16.mxu0 %v324
  %1422 = vmatmul.mubr.bf16.gmra.mxu0 %v323
  %v1423 = vpop.f32.mrf.mxu0
  %v1424 = vadd.f32 %v1384, %v1423
  %v1425 = vpop.f32.mrf.mxu0
  %v1426 = vpop.f32.mrf.mxu0
  %v1427 = vpop.f32.mrf.mxu0
  %1428 = vdwg.mxu0
  %v1429 = vadd.f32 %v20, %v1424
  %1430 = vst [vmem:[#allocation2] sm:$0xff] %v1429
  // Predicated region
  $region18: #{fc_discriminator_forward.8} parent=0 // pred_check
    %p1431 = pneg %p15
  $region19: #{fc_discriminator_forward.8} parent=0 // pred_check_branch
    %1433 = sbr.rel (%p1431) target = $region21
  $region20: #{fc_discriminator_forward.8} parent=0 // pred_region
    %v1434 = vld [vmem:[#allocation2] sm:$0xff]
    %v1435 = vld [vmem:[%s2] sm:$0x1]
    %v1437 = vlaneseq
    %v1438 = vshrl.u32 %v1437, 7
    %v1439 = vsub.s32 0, %v1438
    %v1440 = vrot.slane %v1435, %v1439
    %v1442 = vadd.f32 %v1434, %v1440
    %vm1443 = vcmp.ge.f32.partialorder %v1442, 0.0
    %v1444 = vmul.f32 %v1442, 0.2
    %v1445 = vsel %vm1443, %v1442, %v1444
    %v1446 = vpack.c.bf16 %v1445, %v1445
    %1447 = vst [vmem:[%s3] sm:$0xf] %v1446
  $region21: #{fc_discriminator_forward.8} parent=0 // pred_fallthru
    _
  // Predicated region
  $region22: #{fc_discriminator_forward.8} parent=0 // pred_check
    _
  $region23: #{fc_discriminator_forward.8} parent=0 // pred_check_branch
    %1449 = sbr.rel (0) target = $region25
  $region24: #{fc_discriminator_forward.8} parent=0 // pred_region
    _
  $region25: #{fc_discriminator_forward.8} parent=0 // pred_fallthru
    _
  // Predicated region
  $region26: #{fc_discriminator_forward.8} parent=0 // pred_check
    _
  $region27: #{fc_discriminator_forward.8} parent=0 // pred_check_branch
    %1451 = sbr.rel (0) target = $region29
  $region28: #{fc_discriminator_forward.8} parent=0 // pred_region
    _
  $region29: #{fc_discriminator_forward.8} parent=0 // pred_fallthru
    _

</llo_original>
